<compile_context>
chip_gen: v5e
topology: v5e:2x2
jax: 0.10.0
libtpu: 0.0.40
codegen_flags: <defaults>
</compile_context>

<pallas_src>
import math
import functools
import numpy as np
import jax
import jax.numpy as jnp
from jax.experimental import pallas as pl
from jax.experimental.pallas import tpu as pltpu


# ----------------------------------------------------------------------------
# Fixed anti-aliasing filter (alias_free_torch kaiser_sinc_filter1d), ratio = 2,
# kernel_size = 12 for both UpSample1d and DownSample1d.
# ----------------------------------------------------------------------------
def kaiser_sinc_filter1d(cutoff, half_width, kernel_size):
    even = (kernel_size % 2 == 0)
    half_size = kernel_size // 2
    delta_f = 4.0 * half_width
    A = 2.285 * (half_size - 1) * math.pi * delta_f + 7.95
    if A > 50.0:
        beta = 0.1102 * (A - 8.7)
    elif A >= 21.0:
        beta = 0.5842 * (A - 21.0) ** 0.4 + 0.07886 * (A - 21.0)
    else:
        beta = 0.0
    window = np.kaiser(kernel_size, beta)
    if even:
        time = np.arange(-half_size, half_size) + 0.5
    else:
        time = np.arange(kernel_size) - half_size
    if cutoff == 0:
        return np.zeros(kernel_size, dtype=np.float64)
    filt = 2.0 * cutoff * window * np.sinc(2.0 * cutoff * time)
    return filt / filt.sum()


_FILT = kaiser_sinc_filter1d(cutoff=0.25, half_width=0.3, kernel_size=12)

# Polyphase decomposition of UpSample1d(2) (replicate pad (5,5), conv_transpose
# stride 2, x2, trim [15:-15]):
#   u[2t]   = sum_m CE[m] * xe[t+5-m]     u[2t+1] = sum_m CO[m] * xe[t+6-m]
# with xe[j] = x[clip(j-3, 0, T-1)].
_CE = tuple(float(2.0 * _FILT[2 * m + 1]) for m in range(6))
_CO = tuple(float(2.0 * _FILT[2 * m]) for m in range(6))
# Polyphase decomposition of DownSample1d(2) (replicate pad (5,6), stride-2 conv):
#   z[t] = sum_m GE[m]*AE[t+m] + GO[m]*AO[t+m]
_GE = tuple(float(_FILT[2 * m]) for m in range(6))
_GO = tuple(float(_FILT[2 * m + 1]) for m in range(6))

# Channel count at or below which the channel mix runs on the VPU instead of
# pushing a nearly-empty tile through the MXU.
_VPU_CONV_MAX_C = 32


# ----------------------------------------------------------------------------
# In-kernel helpers (traced inside the single fused kernel body)
# ----------------------------------------------------------------------------
def _edge_fill(ref, start, stop, col):
    """Replicate a (C, 1) column into ref[:, start:stop] with ONE slab store."""
    n = stop - start
    if n <= 0:
        return
    ref[:, start:stop] = jnp.broadcast_to(col, (col.shape[0], n))


def _act1d(x, alpha, invb, xe_ref, ae_ref, ao_ref):
    """Anti-aliased SnakeBeta (alias_free_torch Activation1d, ratio 2, K=12) done
    entirely in VMEM as a polyphase pass (the 2x-rate signal is never materialized)."""
    C, T = x.shape

    # --- UpSample1d: replicate pad (+3 each side covers the (5,5) pad after folding
    #     the conv_transpose trim [15:-15] into the polyphase offsets).
    _edge_fill(xe_ref, 0, 3, x[:, 0:1])
    xe_ref[:, 3:3 + T] = x
    _edge_fill(xe_ref, 3 + T, 6 + T, x[:, T - 1:T])
    xe = xe_ref[...]
    # 7 shared shifted slices feed BOTH polyphase branches (instead of 12 loads).
    s = [xe[:, j:j + T] for j in range(7)]
    e = _CE[0] * s[5]
    o = _CO[0] * s[6]
    for m in range(1, 6):
        e = e + _CE[m] * s[5 - m]
        o = o + _CO[m] * s[6 - m]

    # --- SnakeBeta:  x + 1/(exp(beta)+1e-9) * sin(exp(alpha) * x)^2
    se = e + invb * jnp.sin(e * alpha) ** 2
    so = o + invb * jnp.sin(o * alpha) ** 2

    # --- DownSample1d (stride-2 low-pass), polyphase.  AE/AO hold the even/odd
    #     samples of the (5,6)-replicate-padded interleaved activation; the edge
    #     padding crosses branches (left edge -> se[0], right edge -> so[T-1]).
    _edge_fill(ae_ref, 0, 3, se[:, 0:1])
    ae_ref[:, 3:3 + T] = so
    _edge_fill(ae_ref, 3 + T, 5 + T, so[:, T - 1:T])
    _edge_fill(ao_ref, 0, 2, se[:, 0:1])
    ao_ref[:, 2:2 + T] = se
    _edge_fill(ao_ref, 2 + T, 5 + T, so[:, T - 1:T])
    aev = ae_ref[...]
    aov = ao_ref[...]
    z = _GE[0] * aev[:, 0:T] + _GO[0] * aov[:, 0:T]
    for m in range(1, 6):
        z = z + _GE[m] * aev[:, m:m + T] + _GO[m] * aov[:, m:m + T]
    return z


def _conv3(x, wcat, bias, dilation, xcat_ref):
    """'same' Conv1d(C, C, 3, dilation=d), zero padding done in-kernel.
    The 3 taps are folded into the contraction dimension (K = 3C)."""
    C, T = x.shape
    d = dilation
    # stage the 3 dilated taps stacked along the contraction axis
    xcat_ref[0:C, 0:d] = jnp.zeros((C, d), jnp.float32)          # tap 0: x[t-d]
    xcat_ref[0:C, d:T] = x[:, 0:T - d]
    xcat_ref[C:2 * C, 0:T] = x                                   # tap 1: x[t]
    xcat_ref[2 * C:3 * C, 0:T - d] = x[:, d:T]                   # tap 2: x[t+d]
    xcat_ref[2 * C:3 * C, T - d:T] = jnp.zeros((C, d), jnp.float32)
    xc = xcat_ref[...]
    if C <= _VPU_CONV_MAX_C:
        # Tiny channel counts would leave the 256x256 MXU nearly empty: do the
        # channel mix as rank-1 (outer-product) MACs on the VPU in full f32,
        # split into 3 independent per-tap chains for better ILP.
        partials = []
        for k in range(3):
            j0 = k * C
            acc_k = wcat[:, j0:j0 + 1] * xc[j0:j0 + 1, :]
            for c in range(1, C):
                j = j0 + c
                acc_k = acc_k + wcat[:, j:j + 1] * xc[j:j + 1, :]
            partials.append(acc_k)
        acc = (partials[0] + partials[1]) + partials[2]
    else:
        # Production channel counts: one MXU matmul, taps folded into K.
        acc = jnp.dot(wcat, xc, preferred_element_type=jnp.float32)
    return acc + bias


def _amp_block1_kernel(x_ref, w1_ref, b1_ref, w2_ref, b2_ref, al_ref, ib_ref,
                       o_ref, xe_ref, ae_ref, ao_ref, xcat_ref, *, dilation):
    """One batch element: the full AMPBlock1 forward, all intermediates in VMEM."""
    x = x_ref[0]                                   # (C, T)
    for i, d in enumerate(dilation):
        xt = _act1d(x, al_ref[2 * i], ib_ref[2 * i], xe_ref, ae_ref, ao_ref)
        xt = _conv3(xt, w1_ref[i], b1_ref[i], d, xcat_ref)
        xt = _act1d(xt, al_ref[2 * i + 1], ib_ref[2 * i + 1], xe_ref, ae_ref, ao_ref)
        xt = _conv3(xt, w2_ref[i], b2_ref[i], 1, xcat_ref)
        x = xt + x                                 # residual fused in-kernel
    o_ref[0] = x


# ----------------------------------------------------------------------------
# Wrapper
# ----------------------------------------------------------------------------
def _vmem_bytes_estimate(C, T):
    f32 = 4
    io_blocks = 2 * 2 * (C * T) * f32                                   # x / out, double-buffered
    weights = 2 * (2 * (3 * C * 3 * C) + 2 * (3 * C) + 2 * (6 * C)) * f32
    scratch = (C * (T + 6) + 2 * C * (T + 5) + 3 * C * T) * f32
    return io_blocks + weights + scratch


def amp_block1_pallas(x, params):
    B, C, T = x.shape
    dil = params["dilation"]

    kern = functools.partial(_amp_block1_kernel, dilation=dil)
    batch_spec = pl.BlockSpec((1, C, T), lambda b: (b, 0, 0))
    const3 = lambda b: (0, 0, 0)

    cp = dict(dimension_semantics=("parallel",))
    est = _vmem_bytes_estimate(C, T)
    if est > 12 * 1024 * 1024:
        # Raise the scoped-VMEM limit only when the conservative defaults
        # (16 MiB on v5e, 32 MiB on v6e/v7x) would be exceeded; stay below
        # v7x's 64 MiB physical VMEM.
        cp["vmem_limit_bytes"] = int(min(2 * est, 56 * 1024 * 1024))
    # TODO(synk): for production shapes (C>=256, T in the thousands) add an outer
    # time-tile grid axis with halo re-reads (receptive field ~66 samples/side over
    # the fused block) so each (C, T_TILE) slab fits the per-generation VMEM budget
    # (T_TILE a multiple of 128; roughly half on v7x), which also gives megacore
    # more than B parallel grid points.

    return pl.pallas_call(
        kern,
        out_shape=jax.ShapeDtypeStruct((B, C, T), jnp.float32),
        grid=(B,),
        in_specs=[
            batch_spec,
            pl.BlockSpec((3, C, 3 * C), const3),   # convs1 weights, taps folded into K
            pl.BlockSpec((3, C, 1), const3),       # convs1 bias
            pl.BlockSpec((3, C, 3 * C), const3),   # convs2 weights
            pl.BlockSpec((3, C, 1), const3),       # convs2 bias
            pl.BlockSpec((6, C, 1), const3),       # SnakeBeta exp(alpha)
            pl.BlockSpec((6, C, 1), const3),       # SnakeBeta 1/(exp(beta)+1e-9)
        ],
        out_specs=batch_spec,
        scratch_shapes=[
            pltpu.VMEM((C, T + 6), jnp.float32),   # replicate-padded activation input
            pltpu.VMEM((C, T + 5), jnp.float32),   # even down-sample phase (AE)
            pltpu.VMEM((C, T + 5), jnp.float32),   # odd  down-sample phase (AO)
            pltpu.VMEM((3 * C, T), jnp.float32),   # conv taps stacked along K
        ],
        compiler_params=pltpu.CompilerParams(**cp),
    )(x, params["w1"], params["b1"], params["w2"], params["b2"],
      params["alpha_exp"], params["inv_beta"])


# ----------------------------------------------------------------------------
# Parameter setup (deterministic synthetic init honouring the module structure)
# ----------------------------------------------------------------------------
def init_amp_block1_params(key, channels, kernel_size=3, dilation=(1, 3, 5)):
    C = channels
    keys = iter(jax.random.split(key, 64))

    def make_conv():
        v = 0.01 * jax.random.normal(next(keys), (C, C, kernel_size), jnp.float32)
        g = jax.random.uniform(next(keys), (C,), jnp.float32, 0.5, 1.5)
        # weight_norm: w = g * v / ||v||  (norm over (in_ch, tap) per output channel)
        norm = jnp.sqrt(jnp.sum(v * v, axis=(1, 2), keepdims=True)) + 1e-12
        w = g[:, None, None] * v / norm                           # (C_out, C_in, K)
        b = 0.1 * jax.random.normal(next(keys), (C,), jnp.float32)
        wcat = jnp.transpose(w, (0, 2, 1)).reshape(C, kernel_size * C)  # taps -> K
        return w, wcat, b

    c1 = [make_conv() for _ in range(3)]
    c2 = [make_conv() for _ in range(3)]

    alphas, invbs = [], []
    for _ in range(6):   # SnakeBeta (alpha_logscale=True) per Activation1d
        a = 0.1 * jax.random.normal(next(keys), (C,), jnp.float32)
        bt = 0.1 * jax.random.normal(next(keys), (C,), jnp.float32)
        alphas.append(jnp.exp(a))
        invbs.append(1.0 / (jnp.exp(bt) + 1e-9))

    return {
        "dilation": tuple(dilation),
        "w1": jnp.stack([wc for _, wc, _ in c1]),            # (3, C, 3C)
        "b1": jnp.stack([b for _, _, b in c1])[..., None],   # (3, C, 1)
        "w2": jnp.stack([wc for _, wc, _ in c2]),
        "b2": jnp.stack([b for _, _, b in c2])[..., None],
        "alpha_exp": jnp.stack(alphas)[..., None],            # (6, C, 1)
        "inv_beta": jnp.stack(invbs)[..., None],
        # raw per-tap weights, only for the NumPy reference check
        "w1_raw": jnp.stack([w for w, _, _ in c1]),           # (3, C, C, K)
        "w2_raw": jnp.stack([w for w, _, _ in c2]),
    }


# ----------------------------------------------------------------------------
# Direct NumPy reference (mirrors the PyTorch ops: replicate pad, conv_transpose,
# trim, SnakeBeta, replicate pad, strided conv, dilated Conv1d, residual).
# ----------------------------------------------------------------------------
def _ref_forward(x, params):
    xx = np.asarray(x, np.float64)
    filt = _FILT
    al = np.asarray(params["alpha_exp"], np.float64)
    ib = np.asarray(params["inv_beta"], np.float64)
    w1 = np.asarray(params["w1_raw"], np.float64)
    w2 = np.asarray(params["w2_raw"], np.float64)
    b1 = np.asarray(params["b1"], np.float64)
    b2 = np.asarray(params["b2"], np.float64)
    dil = params["dilation"]

    def act1d(v, a, inv_b):
        B, C, T = v.shape
        vp = np.pad(v, ((0, 0), (0, 0), (5, 5)), mode="edge")
        u = np.zeros((B, C, 2 * T + 30))
        for k in range(T + 10):
            u[..., 2 * k:2 * k + 12] += vp[..., k:k + 1] * filt
        u = 2.0 * u[..., 15:-15]                               # UpSample1d(2)
        u = u + inv_b[None] * np.sin(u * a[None]) ** 2         # SnakeBeta
        up = np.pad(u, ((0, 0), (0, 0), (5, 6)), mode="edge")
        z = np.zeros((B, C, T))
        for j in range(12):
            z += filt[j] * up[..., j:j + 2 * T:2]              # DownSample1d(2)
        return z

    def conv3(v, w, b, d):
        B, C, T = v.shape
        vp = np.pad(v, ((0, 0), (0, 0), (d, d)))
        out = np.zeros((B, C, T))
        for k in range(3):
            out += np.einsum("oc,bct->bot", w[:, :, k], vp[..., k * d:k * d + T])
        return out + b[None]

    for i in range(3):
        xt = act1d(xx, al[2 * i], ib[2 * i])
        xt = conv3(xt, w1[i], b1[i], dil[i])
        xt = act1d(xt, al[2 * i + 1], ib[2 * i + 1])
        xt = conv3(xt, w2[i], b2[i], 1)
        xx = xt + xx
    return xx


# ----------------------------------------------------------------------------
if __name__ == "__main__":
    key = jax.random.PRNGKey(0)
    kx, kp = jax.random.split(key)

    B, C, T = 2, 8, 32  # (batch, channels, time) — PyTorch Conv1d NCT layout
    x = jax.random.normal(kx, (B, C, T), jnp.float32)
    params = init_amp_block1_params(kp, channels=C, kernel_size=3, dilation=(1, 3, 5))

    fwd = jax.jit(lambda inp: amp_block1_pallas(inp, params))
    y = fwd(x)
    jax.block_until_ready(y)

    assert y.shape == (B, C, T) and y.dtype == jnp.float32
    y_np = np.asarray(y)
    assert np.all(np.isfinite(y_np))

    y_ref = _ref_forward(np.asarray(x, np.float64), params)
    max_err = float(np.max(np.abs(y_np - y_ref)))
    assert np.allclose(y_np, y_ref, rtol=2e-3, atol=2e-3), f"max |err| = {max_err}"

    print("KERNEL_OK")
</pallas_src>

<mosaic_0001>
module attributes {stable_mosaic.version = 11 : i64} {
  func.func @_amp_block1_kernel(%arg0: i32, %arg1: memref<1x8x32xf32, #tpu.memory_space<vmem>>, %arg2: memref<3x8x24xf32, #tpu.memory_space<vmem>>, %arg3: memref<3x8x1xf32, #tpu.memory_space<vmem>>, %arg4: memref<3x8x24xf32, #tpu.memory_space<vmem>>, %arg5: memref<3x8x1xf32, #tpu.memory_space<vmem>>, %arg6: memref<6x8x1xf32, #tpu.memory_space<vmem>>, %arg7: memref<6x8x1xf32, #tpu.memory_space<vmem>>, %arg8: memref<1x8x32xf32, #tpu.memory_space<vmem>>, %arg9: memref<8x38xf32, #tpu.memory_space<vmem>>, %arg10: memref<8x37xf32, #tpu.memory_space<vmem>>, %arg11: memref<8x37xf32, #tpu.memory_space<vmem>>, %arg12: memref<24x32xf32, #tpu.memory_space<vmem>>) attributes {dimension_semantics = [#tpu.dimension_semantics<parallel>], iteration_bounds = array<i64: 2>, scalar_prefetch = 0 : i64, scratch_operands = 4 : i64, tpu.core_type = #tpu.core_type<tc>, window_params = [{transform_indices = @transform_0, window_bounds = array<i64: 1, 8, 32>}, {pipeline_mode = #tpu.pipeline_mode<synchronous>, transform_indices = @transform_1, window_bounds = array<i64: 3, 8, 24>}, {pipeline_mode = #tpu.pipeline_mode<synchronous>, transform_indices = @transform_2, window_bounds = array<i64: 3, 8, 1>}, {pipeline_mode = #tpu.pipeline_mode<synchronous>, transform_indices = @transform_3, window_bounds = array<i64: 3, 8, 24>}, {pipeline_mode = #tpu.pipeline_mode<synchronous>, transform_indices = @transform_4, window_bounds = array<i64: 3, 8, 1>}, {pipeline_mode = #tpu.pipeline_mode<synchronous>, transform_indices = @transform_5, window_bounds = array<i64: 6, 8, 1>}, {pipeline_mode = #tpu.pipeline_mode<synchronous>, transform_indices = @transform_6, window_bounds = array<i64: 6, 8, 1>}, {transform_indices = @transform_7, window_bounds = array<i64: 1, 8, 32>}]} {
    %c0 = arith.constant 0 : index
    %c0_0 = arith.constant 0 : index
    %c0_1 = arith.constant 0 : index
    %0 = vector.load %arg1[%c0, %c0_0, %c0_1] : memref<1x8x32xf32, #tpu.memory_space<vmem>>, vector<1x8x32xf32>
    %1 = vector.shape_cast %0 : vector<1x8x32xf32> to vector<8x32xf32>
    %c0_2 = arith.constant 0 : index
    %c0_3 = arith.constant 0 : index
    %c0_4 = arith.constant 0 : index
    %2 = vector.load %arg6[%c0_2, %c0_3, %c0_4] : memref<6x8x1xf32, #tpu.memory_space<vmem>>, vector<1x8x1xf32>
    %3 = vector.shape_cast %2 : vector<1x8x1xf32> to vector<8x1xf32>
    %c0_5 = arith.constant 0 : index
    %c0_6 = arith.constant 0 : index
    %c0_7 = arith.constant 0 : index
    %4 = vector.load %arg7[%c0_5, %c0_6, %c0_7] : memref<6x8x1xf32, #tpu.memory_space<vmem>>, vector<1x8x1xf32>
    %5 = vector.shape_cast %4 : vector<1x8x1xf32> to vector<8x1xf32>
    %6 = vector.extract_strided_slice %1 {offsets = [0, 0], sizes = [8, 1], strides = [1, 1]} : vector<8x32xf32> to vector<8x1xf32>
    %7 = vector.shape_cast %6 : vector<8x1xf32> to vector<8x1xf32>
    %8 = vector.broadcast %7 : vector<8x1xf32> to vector<8x3xf32>
    %c0_8 = arith.constant 0 : index
    %c0_9 = arith.constant 0 : index
    %9 = vector.load %arg9[%c0_8, %c0_9] : memref<8x38xf32, #tpu.memory_space<vmem>>, vector<8x3xf32>
    tpu.vector_store %arg9[%c0_8, %c0_9], %8 {strides = array<i32>} : memref<8x38xf32, #tpu.memory_space<vmem>>, vector<8x3xf32>,
    %c0_10 = arith.constant 0 : index
    %c3 = arith.constant 3 : index
    %10 = vector.load %arg9[%c0_10, %c3] : memref<8x38xf32, #tpu.memory_space<vmem>>, vector<8x32xf32>
    tpu.vector_store %arg9[%c0_10, %c3], %1 {strides = array<i32>} : memref<8x38xf32, #tpu.memory_space<vmem>>, vector<8x32xf32>,
    %11 = vector.extract_strided_slice %1 {offsets = [0, 31], sizes = [8, 1], strides = [1, 1]} : vector<8x32xf32> to vector<8x1xf32>
    %12 = vector.shape_cast %11 : vector<8x1xf32> to vector<8x1xf32>
    %13 = vector.broadcast %12 : vector<8x1xf32> to vector<8x3xf32>
    %c0_11 = arith.constant 0 : index
    %c35 = arith.constant 35 : index
    %14 = vector.load %arg9[%c0_11, %c35] : memref<8x38xf32, #tpu.memory_space<vmem>>, vector<8x3xf32>
    tpu.vector_store %arg9[%c0_11, %c35], %13 {strides = array<i32>} : memref<8x38xf32, #tpu.memory_space<vmem>>, vector<8x3xf32>,
    %c0_12 = arith.constant 0 : index
    %c0_13 = arith.constant 0 : index
    %15 = vector.load %arg9[%c0_12, %c0_13] : memref<8x38xf32, #tpu.memory_space<vmem>>, vector<8x38xf32>
    %16 = vector.extract_strided_slice %15 {offsets = [0, 0], sizes = [8, 32], strides = [1, 1]} : vector<8x38xf32> to vector<8x32xf32>
    %17 = vector.extract_strided_slice %15 {offsets = [0, 1], sizes = [8, 32], strides = [1, 1]} : vector<8x38xf32> to vector<8x32xf32>
    %18 = vector.extract_strided_slice %15 {offsets = [0, 2], sizes = [8, 32], strides = [1, 1]} : vector<8x38xf32> to vector<8x32xf32>
    %19 = vector.extract_strided_slice %15 {offsets = [0, 3], sizes = [8, 32], strides = [1, 1]} : vector<8x38xf32> to vector<8x32xf32>
    %20 = vector.extract_strided_slice %15 {offsets = [0, 4], sizes = [8, 32], strides = [1, 1]} : vector<8x38xf32> to vector<8x32xf32>
    %21 = vector.extract_strided_slice %15 {offsets = [0, 5], sizes = [8, 32], strides = [1, 1]} : vector<8x38xf32> to vector<8x32xf32>
    %22 = vector.extract_strided_slice %15 {offsets = [0, 6], sizes = [8, 32], strides = [1, 1]} : vector<8x38xf32> to vector<8x32xf32>
    %cst = arith.constant 0.0187789276 : f32
    %23 = vector.broadcast %cst : f32 to vector<8x32xf32>
    %24 = arith.mulf %23, %21 : vector<8x32xf32>
    %cst_14 = arith.constant 0.00405793311 : f32
    %25 = vector.broadcast %cst_14 : f32 to vector<8x32xf32>
    %26 = arith.mulf %25, %22 : vector<8x32xf32>
    %cst_15 = arith.constant -0.115314752 : f32
    %27 = vector.broadcast %cst_15 : f32 to vector<8x32xf32>
    %28 = arith.mulf %27, %20 : vector<8x32xf32>
    %29 = arith.addf %24, %28 : vector<8x32xf32>
    %cst_16 = arith.constant -0.0510869287 : f32
    %30 = vector.broadcast %cst_16 : f32 to vector<8x32xf32>
    %31 = arith.mulf %30, %21 : vector<8x32xf32>
    %32 = arith.addf %26, %31 : vector<8x32xf32>
    %cst_17 = arith.constant 0.886419594 : f32
    %33 = vector.broadcast %cst_17 : f32 to vector<8x32xf32>
    %34 = arith.mulf %33, %19 : vector<8x32xf32>
    %35 = arith.addf %29, %34 : vector<8x32xf32>
    %cst_18 = arith.constant 0.257145226 : f32
    %36 = vector.broadcast %cst_18 : f32 to vector<8x32xf32>
    %37 = arith.mulf %36, %20 : vector<8x32xf32>
    %38 = arith.addf %32, %37 : vector<8x32xf32>
    %cst_19 = arith.constant 0.257145226 : f32
    %39 = vector.broadcast %cst_19 : f32 to vector<8x32xf32>
    %40 = arith.mulf %39, %18 : vector<8x32xf32>
    %41 = arith.addf %35, %40 : vector<8x32xf32>
    %cst_20 = arith.constant 0.886419594 : f32
    %42 = vector.broadcast %cst_20 : f32 to vector<8x32xf32>
    %43 = arith.mulf %42, %19 : vector<8x32xf32>
    %44 = arith.addf %38, %43 : vector<8x32xf32>
    %cst_21 = arith.constant -0.0510869287 : f32
    %45 = vector.broadcast %cst_21 : f32 to vector<8x32xf32>
    %46 = arith.mulf %45, %17 : vector<8x32xf32>
    %47 = arith.addf %41, %46 : vector<8x32xf32>
    %cst_22 = arith.constant -0.115314752 : f32
    %48 = vector.broadcast %cst_22 : f32 to vector<8x32xf32>
    %49 = arith.mulf %48, %18 : vector<8x32xf32>
    %50 = arith.addf %44, %49 : vector<8x32xf32>
    %cst_23 = arith.constant 0.00405793311 : f32
    %51 = vector.broadcast %cst_23 : f32 to vector<8x32xf32>
    %52 = arith.mulf %51, %16 : vector<8x32xf32>
    %53 = arith.addf %47, %52 : vector<8x32xf32>
    %cst_24 = arith.constant 0.0187789276 : f32
    %54 = vector.broadcast %cst_24 : f32 to vector<8x32xf32>
    %55 = arith.mulf %54, %17 : vector<8x32xf32>
    %56 = arith.addf %50, %55 : vector<8x32xf32>
    %57 = vector.broadcast %3 : vector<8x1xf32> to vector<8x32xf32>
    %58 = arith.mulf %53, %57 : vector<8x32xf32>
    %59 = math.sin %58 : vector<8x32xf32>
    %60 = arith.mulf %59, %59 : vector<8x32xf32>
    %61 = vector.broadcast %5 : vector<8x1xf32> to vector<8x32xf32>
    %62 = arith.mulf %61, %60 : vector<8x32xf32>
    %63 = arith.addf %53, %62 : vector<8x32xf32>
    %64 = vector.broadcast %3 : vector<8x1xf32> to vector<8x32xf32>
    %65 = arith.mulf %56, %64 : vector<8x32xf32>
    %66 = math.sin %65 : vector<8x32xf32>
    %67 = arith.mulf %66, %66 : vector<8x32xf32>
    %68 = vector.broadcast %5 : vector<8x1xf32> to vector<8x32xf32>
    %69 = arith.mulf %68, %67 : vector<8x32xf32>
    %70 = arith.addf %56, %69 : vector<8x32xf32>
    %71 = vector.extract_strided_slice %63 {offsets = [0, 0], sizes = [8, 1], strides = [1, 1]} : vector<8x32xf32> to vector<8x1xf32>
    %72 = vector.shape_cast %71 : vector<8x1xf32> to vector<8x1xf32>
    %73 = vector.broadcast %72 : vector<8x1xf32> to vector<8x3xf32>
    %c0_25 = arith.constant 0 : index
    %c0_26 = arith.constant 0 : index
    %74 = vector.load %arg10[%c0_25, %c0_26] : memref<8x37xf32, #tpu.memory_space<vmem>>, vector<8x3xf32>
    tpu.vector_store %arg10[%c0_25, %c0_26], %73 {strides = array<i32>} : memref<8x37xf32, #tpu.memory_space<vmem>>, vector<8x3xf32>,
    %c0_27 = arith.constant 0 : index
    %c3_28 = arith.constant 3 : index
    %75 = vector.load %arg10[%c0_27, %c3_28] : memref<8x37xf32, #tpu.memory_space<vmem>>, vector<8x32xf32>
    tpu.vector_store %arg10[%c0_27, %c3_28], %70 {strides = array<i32>} : memref<8x37xf32, #tpu.memory_space<vmem>>, vector<8x32xf32>,
    %76 = vector.extract_strided_slice %70 {offsets = [0, 31], sizes = [8, 1], strides = [1, 1]} : vector<8x32xf32> to vector<8x1xf32>
    %77 = vector.shape_cast %76 : vector<8x1xf32> to vector<8x1xf32>
    %78 = vector.broadcast %77 : vector<8x1xf32> to vector<8x2xf32>
    %c0_29 = arith.constant 0 : index
    %c35_30 = arith.constant 35 : index
    %79 = vector.load %arg10[%c0_29, %c35_30] : memref<8x37xf32, #tpu.memory_space<vmem>>, vector<8x2xf32>
    tpu.vector_store %arg10[%c0_29, %c35_30], %78 {strides = array<i32>} : memref<8x37xf32, #tpu.memory_space<vmem>>, vector<8x2xf32>,
    %80 = vector.extract_strided_slice %63 {offsets = [0, 0], sizes = [8, 1], strides = [1, 1]} : vector<8x32xf32> to vector<8x1xf32>
    %81 = vector.shape_cast %80 : vector<8x1xf32> to vector<8x1xf32>
    %82 = vector.broadcast %81 : vector<8x1xf32> to vector<8x2xf32>
    %c0_31 = arith.constant 0 : index
    %c0_32 = arith.constant 0 : index
    %83 = vector.load %arg11[%c0_31, %c0_32] : memref<8x37xf32, #tpu.memory_space<vmem>>, vector<8x2xf32>
    tpu.vector_store %arg11[%c0_31, %c0_32], %82 {strides = array<i32>} : memref<8x37xf32, #tpu.memory_space<vmem>>, vector<8x2xf32>,
    %c0_33 = arith.constant 0 : index
    %c2 = arith.constant 2 : index
    %84 = vector.load %arg11[%c0_33, %c2] : memref<8x37xf32, #tpu.memory_space<vmem>>, vector<8x32xf32>
    tpu.vector_store %arg11[%c0_33, %c2], %63 {strides = array<i32>} : memref<8x37xf32, #tpu.memory_space<vmem>>, vector<8x32xf32>,
    %85 = vector.extract_strided_slice %70 {offsets = [0, 31], sizes = [8, 1], strides = [1, 1]} : vector<8x32xf32> to vector<8x1xf32>
    %86 = vector.shape_cast %85 : vector<8x1xf32> to vector<8x1xf32>
    %87 = vector.broadcast %86 : vector<8x1xf32> to vector<8x3xf32>
    %c0_34 = arith.constant 0 : index
    %c34 = arith.constant 34 : index
    %88 = vector.load %arg11[%c0_34, %c34] : memref<8x37xf32, #tpu.memory_space<vmem>>, vector<8x3xf32>
    tpu.vector_store %arg11[%c0_34, %c34], %87 {strides = array<i32>} : memref<8x37xf32, #tpu.memory_space<vmem>>, vector<8x3xf32>,
    %c0_35 = arith.constant 0 : index
    %c0_36 = arith.constant 0 : index
    %89 = vector.load %arg10[%c0_35, %c0_36] : memref<8x37xf32, #tpu.memory_space<vmem>>, vector<8x37xf32>
    %c0_37 = arith.constant 0 : index
    %c0_38 = arith.constant 0 : index
    %90 = vector.load %arg11[%c0_37, %c0_38] : memref<8x37xf32, #tpu.memory_space<vmem>>, vector<8x37xf32>
    %91 = vector.extract_strided_slice %89 {offsets = [0, 0], sizes = [8, 32], strides = [1, 1]} : vector<8x37xf32> to vector<8x32xf32>
    %cst_39 = arith.constant 0.00202896656 : f32
    %92 = vector.broadcast %cst_39 : f32 to vector<8x32xf32>
    %93 = arith.mulf %92, %91 : vector<8x32xf32>
    %94 = vector.extract_strided_slice %90 {offsets = [0, 0], sizes = [8, 32], strides = [1, 1]} : vector<8x37xf32> to vector<8x32xf32>
    %cst_40 = arith.constant 0.00938946381 : f32
    %95 = vector.broadcast %cst_40 : f32 to vector<8x32xf32>
    %96 = arith.mulf %95, %94 : vector<8x32xf32>
    %97 = arith.addf %93, %96 : vector<8x32xf32>
    %98 = vector.extract_strided_slice %89 {offsets = [0, 1], sizes = [8, 32], strides = [1, 1]} : vector<8x37xf32> to vector<8x32xf32>
    %cst_41 = arith.constant -0.0255434643 : f32
    %99 = vector.broadcast %cst_41 : f32 to vector<8x32xf32>
    %100 = arith.mulf %99, %98 : vector<8x32xf32>
    %101 = arith.addf %97, %100 : vector<8x32xf32>
    %102 = vector.extract_strided_slice %90 {offsets = [0, 1], sizes = [8, 32], strides = [1, 1]} : vector<8x37xf32> to vector<8x32xf32>
    %cst_42 = arith.constant -0.0576573759 : f32
    %103 = vector.broadcast %cst_42 : f32 to vector<8x32xf32>
    %104 = arith.mulf %103, %102 : vector<8x32xf32>
    %105 = arith.addf %101, %104 : vector<8x32xf32>
    %106 = vector.extract_strided_slice %89 {offsets = [0, 2], sizes = [8, 32], strides = [1, 1]} : vector<8x37xf32> to vector<8x32xf32>
    %cst_43 = arith.constant 0.128572613 : f32
    %107 = vector.broadcast %cst_43 : f32 to vector<8x32xf32>
    %108 = arith.mulf %107, %106 : vector<8x32xf32>
    %109 = arith.addf %105, %108 : vector<8x32xf32>
    %110 = vector.extract_strided_slice %90 {offsets = [0, 2], sizes = [8, 32], strides = [1, 1]} : vector<8x37xf32> to vector<8x32xf32>
    %cst_44 = arith.constant 0.443209797 : f32
    %111 = vector.broadcast %cst_44 : f32 to vector<8x32xf32>
    %112 = arith.mulf %111, %110 : vector<8x32xf32>
    %113 = arith.addf %109, %112 : vector<8x32xf32>
    %114 = vector.extract_strided_slice %89 {offsets = [0, 3], sizes = [8, 32], strides = [1, 1]} : vector<8x37xf32> to vector<8x32xf32>
    %cst_45 = arith.constant 0.443209797 : f32
    %115 = vector.broadcast %cst_45 : f32 to vector<8x32xf32>
    %116 = arith.mulf %115, %114 : vector<8x32xf32>
    %117 = arith.addf %113, %116 : vector<8x32xf32>
    %118 = vector.extract_strided_slice %90 {offsets = [0, 3], sizes = [8, 32], strides = [1, 1]} : vector<8x37xf32> to vector<8x32xf32>
    %cst_46 = arith.constant 0.128572613 : f32
    %119 = vector.broadcast %cst_46 : f32 to vector<8x32xf32>
    %120 = arith.mulf %119, %118 : vector<8x32xf32>
    %121 = arith.addf %117, %120 : vector<8x32xf32>
    %122 = vector.extract_strided_slice %89 {offsets = [0, 4], sizes = [8, 32], strides = [1, 1]} : vector<8x37xf32> to vector<8x32xf32>
    %cst_47 = arith.constant -0.0576573759 : f32
    %123 = vector.broadcast %cst_47 : f32 to vector<8x32xf32>
    %124 = arith.mulf %123, %122 : vector<8x32xf32>
    %125 = arith.addf %121, %124 : vector<8x32xf32>
    %126 = vector.extract_strided_slice %90 {offsets = [0, 4], sizes = [8, 32], strides = [1, 1]} : vector<8x37xf32> to vector<8x32xf32>
    %cst_48 = arith.constant -0.0255434643 : f32
    %127 = vector.broadcast %cst_48 : f32 to vector<8x32xf32>
    %128 = arith.mulf %127, %126 : vector<8x32xf32>
    %129 = arith.addf %125, %128 : vector<8x32xf32>
    %130 = vector.extract_strided_slice %89 {offsets = [0, 5], sizes = [8, 32], strides = [1, 1]} : vector<8x37xf32> to vector<8x32xf32>
    %cst_49 = arith.constant 0.00938946381 : f32
    %131 = vector.broadcast %cst_49 : f32 to vector<8x32xf32>
    %132 = arith.mulf %131, %130 : vector<8x32xf32>
    %133 = arith.addf %129, %132 : vector<8x32xf32>
    %134 = vector.extract_strided_slice %90 {offsets = [0, 5], sizes = [8, 32], strides = [1, 1]} : vector<8x37xf32> to vector<8x32xf32>
    %cst_50 = arith.constant 0.00202896656 : f32
    %135 = vector.broadcast %cst_50 : f32 to vector<8x32xf32>
    %136 = arith.mulf %135, %134 : vector<8x32xf32>
    %137 = arith.addf %133, %136 : vector<8x32xf32>
    %c0_51 = arith.constant 0 : index
    %c0_52 = arith.constant 0 : index
    %c0_53 = arith.constant 0 : index
    %138 = vector.load %arg2[%c0_51, %c0_52, %c0_53] : memref<3x8x24xf32, #tpu.memory_space<vmem>>, vector<1x8x24xf32>
    %139 = vector.shape_cast %138 : vector<1x8x24xf32> to vector<8x24xf32>
    %c0_54 = arith.constant 0 : index
    %c0_55 = arith.constant 0 : index
    %c0_56 = arith.constant 0 : index
    %140 = vector.load %arg3[%c0_54, %c0_55, %c0_56] : memref<3x8x1xf32, #tpu.memory_space<vmem>>, vector<1x8x1xf32>
    %141 = vector.shape_cast %140 : vector<1x8x1xf32> to vector<8x1xf32>
    %cst_57 = arith.constant 0.000000e+00 : f32
    %142 = vector.broadcast %cst_57 : f32 to vector<8x1xf32>
    %c0_58 = arith.constant 0 : index
    %c0_59 = arith.constant 0 : index
    %143 = vector.load %arg12[%c0_58, %c0_59] : memref<24x32xf32, #tpu.memory_space<vmem>>, vector<8x1xf32>
    tpu.vector_store %arg12[%c0_58, %c0_59], %142 {strides = array<i32>} : memref<24x32xf32, #tpu.memory_space<vmem>>, vector<8x1xf32>,
    %144 = vector.extract_strided_slice %137 {offsets = [0, 0], sizes = [8, 31], strides = [1, 1]} : vector<8x32xf32> to vector<8x31xf32>
    %c0_60 = arith.constant 0 : index
    %c1 = arith.constant 1 : index
    %145 = vector.load %arg12[%c0_60, %c1] : memref<24x32xf32, #tpu.memory_space<vmem>>, vector<8x31xf32>
    tpu.vector_store %arg12[%c0_60, %c1], %144 {strides = array<i32>} : memref<24x32xf32, #tpu.memory_space<vmem>>, vector<8x31xf32>,
    %c8 = arith.constant 8 : index
    %c0_61 = arith.constant 0 : index
    %146 = vector.load %arg12[%c8, %c0_61] : memref<24x32xf32, #tpu.memory_space<vmem>>, vector<8x32xf32>
    tpu.vector_store %arg12[%c8, %c0_61], %137 {strides = array<i32>} : memref<24x32xf32, #tpu.memory_space<vmem>>, vector<8x32xf32>,
    %147 = vector.extract_strided_slice %137 {offsets = [0, 1], sizes = [8, 31], strides = [1, 1]} : vector<8x32xf32> to vector<8x31xf32>
    %c16 = arith.constant 16 : index
    %c0_62 = arith.constant 0 : index
    %148 = vector.load %arg12[%c16, %c0_62] : memref<24x32xf32, #tpu.memory_space<vmem>>, vector<8x31xf32>
    tpu.vector_store %arg12[%c16, %c0_62], %147 {strides = array<i32>} : memref<24x32xf32, #tpu.memory_space<vmem>>, vector<8x31xf32>,
    %cst_63 = arith.constant 0.000000e+00 : f32
    %149 = vector.broadcast %cst_63 : f32 to vector<8x1xf32>
    %c16_64 = arith.constant 16 : index
    %c31 = arith.constant 31 : index
    %150 = vector.load %arg12[%c16_64, %c31] : memref<24x32xf32, #tpu.memory_space<vmem>>, vector<8x1xf32>
    tpu.vector_store %arg12[%c16_64, %c31], %149 {strides = array<i32>} : memref<24x32xf32, #tpu.memory_space<vmem>>, vector<8x1xf32>,
    %c0_65 = arith.constant 0 : index
    %c0_66 = arith.constant 0 : index
    %151 = vector.load %arg12[%c0_65, %c0_66] : memref<24x32xf32, #tpu.memory_space<vmem>>, vector<24x32xf32>
    %152 = vector.extract_strided_slice %139 {offsets = [0, 0], sizes = [8, 1], strides = [1, 1]} : vector<8x24xf32> to vector<8x1xf32>
    %153 = vector.extract_strided_slice %151 {offsets = [0, 0], sizes = [1, 32], strides = [1, 1]} : vector<24x32xf32> to vector<1x32xf32>
    %154 = vector.broadcast %152 : vector<8x1xf32> to vector<8x32xf32>
    %155 = vector.broadcast %153 : vector<1x32xf32> to vector<8x32xf32>
    %156 = arith.mulf %154, %155 : vector<8x32xf32>
    %157 = vector.extract_strided_slice %139 {offsets = [0, 1], sizes = [8, 1], strides = [1, 1]} : vector<8x24xf32> to vector<8x1xf32>
    %158 = vector.extract_strided_slice %151 {offsets = [1, 0], sizes = [1, 32], strides = [1, 1]} : vector<24x32xf32> to vector<1x32xf32>
    %159 = vector.broadcast %157 : vector<8x1xf32> to vector<8x32xf32>
    %160 = vector.broadcast %158 : vector<1x32xf32> to vector<8x32xf32>
    %161 = arith.mulf %159, %160 : vector<8x32xf32>
    %162 = arith.addf %156, %161 : vector<8x32xf32>
    %163 = vector.extract_strided_slice %139 {offsets = [0, 2], sizes = [8, 1], strides = [1, 1]} : vector<8x24xf32> to vector<8x1xf32>
    %164 = vector.extract_strided_slice %151 {offsets = [2, 0], sizes = [1, 32], strides = [1, 1]} : vector<24x32xf32> to vector<1x32xf32>
    %165 = vector.broadcast %163 : vector<8x1xf32> to vector<8x32xf32>
    %166 = vector.broadcast %164 : vector<1x32xf32> to vector<8x32xf32>
    %167 = arith.mulf %165, %166 : vector<8x32xf32>
    %168 = arith.addf %162, %167 : vector<8x32xf32>
    %169 = vector.extract_strided_slice %139 {offsets = [0, 3], sizes = [8, 1], strides = [1, 1]} : vector<8x24xf32> to vector<8x1xf32>
    %170 = vector.extract_strided_slice %151 {offsets = [3, 0], sizes = [1, 32], strides = [1, 1]} : vector<24x32xf32> to vector<1x32xf32>
    %171 = vector.broadcast %169 : vector<8x1xf32> to vector<8x32xf32>
    %172 = vector.broadcast %170 : vector<1x32xf32> to vector<8x32xf32>
    %173 = arith.mulf %171, %172 : vector<8x32xf32>
    %174 = arith.addf %168, %173 : vector<8x32xf32>
    %175 = vector.extract_strided_slice %139 {offsets = [0, 4], sizes = [8, 1], strides = [1, 1]} : vector<8x24xf32> to vector<8x1xf32>
    %176 = vector.extract_strided_slice %151 {offsets = [4, 0], sizes = [1, 32], strides = [1, 1]} : vector<24x32xf32> to vector<1x32xf32>
    %177 = vector.broadcast %175 : vector<8x1xf32> to vector<8x32xf32>
    %178 = vector.broadcast %176 : vector<1x32xf32> to vector<8x32xf32>
    %179 = arith.mulf %177, %178 : vector<8x32xf32>
    %180 = arith.addf %174, %179 : vector<8x32xf32>
    %181 = vector.extract_strided_slice %139 {offsets = [0, 5], sizes = [8, 1], strides = [1, 1]} : vector<8x24xf32> to vector<8x1xf32>
    %182 = vector.extract_strided_slice %151 {offsets = [5, 0], sizes = [1, 32], strides = [1, 1]} : vector<24x32xf32> to vector<1x32xf32>
    %183 = vector.broadcast %181 : vector<8x1xf32> to vector<8x32xf32>
    %184 = vector.broadcast %182 : vector<1x32xf32> to vector<8x32xf32>
    %185 = arith.mulf %183, %184 : vector<8x32xf32>
    %186 = arith.addf %180, %185 : vector<8x32xf32>
    %187 = vector.extract_strided_slice %139 {offsets = [0, 6], sizes = [8, 1], strides = [1, 1]} : vector<8x24xf32> to vector<8x1xf32>
    %188 = vector.extract_strided_slice %151 {offsets = [6, 0], sizes = [1, 32], strides = [1, 1]} : vector<24x32xf32> to vector<1x32xf32>
    %189 = vector.broadcast %187 : vector<8x1xf32> to vector<8x32xf32>
    %190 = vector.broadcast %188 : vector<1x32xf32> to vector<8x32xf32>
    %191 = arith.mulf %189, %190 : vector<8x32xf32>
    %192 = arith.addf %186, %191 : vector<8x32xf32>
    %193 = vector.extract_strided_slice %139 {offsets = [0, 7], sizes = [8, 1], strides = [1, 1]} : vector<8x24xf32> to vector<8x1xf32>
    %194 = vector.extract_strided_slice %151 {offsets = [7, 0], sizes = [1, 32], strides = [1, 1]} : vector<24x32xf32> to vector<1x32xf32>
    %195 = vector.broadcast %193 : vector<8x1xf32> to vector<8x32xf32>
    %196 = vector.broadcast %194 : vector<1x32xf32> to vector<8x32xf32>
    %197 = arith.mulf %195, %196 : vector<8x32xf32>
    %198 = arith.addf %192, %197 : vector<8x32xf32>
    %199 = vector.extract_strided_slice %139 {offsets = [0, 8], sizes = [8, 1], strides = [1, 1]} : vector<8x24xf32> to vector<8x1xf32>
    %200 = vector.extract_strided_slice %151 {offsets = [8, 0], sizes = [1, 32], strides = [1, 1]} : vector<24x32xf32> to vector<1x32xf32>
    %201 = vector.broadcast %199 : vector<8x1xf32> to vector<8x32xf32>
    %202 = vector.broadcast %200 : vector<1x32xf32> to vector<8x32xf32>
    %203 = arith.mulf %201, %202 : vector<8x32xf32>
    %204 = vector.extract_strided_slice %139 {offsets = [0, 9], sizes = [8, 1], strides = [1, 1]} : vector<8x24xf32> to vector<8x1xf32>
    %205 = vector.extract_strided_slice %151 {offsets = [9, 0], sizes = [1, 32], strides = [1, 1]} : vector<24x32xf32> to vector<1x32xf32>
    %206 = vector.broadcast %204 : vector<8x1xf32> to vector<8x32xf32>
    %207 = vector.broadcast %205 : vector<1x32xf32> to vector<8x32xf32>
    %208 = arith.mulf %206, %207 : vector<8x32xf32>
    %209 = arith.addf %203, %208 : vector<8x32xf32>
    %210 = vector.extract_strided_slice %139 {offsets = [0, 10], sizes = [8, 1], strides = [1, 1]} : vector<8x24xf32> to vector<8x1xf32>
    %211 = vector.extract_strided_slice %151 {offsets = [10, 0], sizes = [1, 32], strides = [1, 1]} : vector<24x32xf32> to vector<1x32xf32>
    %212 = vector.broadcast %210 : vector<8x1xf32> to vector<8x32xf32>
    %213 = vector.broadcast %211 : vector<1x32xf32> to vector<8x32xf32>
    %214 = arith.mulf %212, %213 : vector<8x32xf32>
    %215 = arith.addf %209, %214 : vector<8x32xf32>
    %216 = vector.extract_strided_slice %139 {offsets = [0, 11], sizes = [8, 1], strides = [1, 1]} : vector<8x24xf32> to vector<8x1xf32>
    %217 = vector.extract_strided_slice %151 {offsets = [11, 0], sizes = [1, 32], strides = [1, 1]} : vector<24x32xf32> to vector<1x32xf32>
    %218 = vector.broadcast %216 : vector<8x1xf32> to vector<8x32xf32>
    %219 = vector.broadcast %217 : vector<1x32xf32> to vector<8x32xf32>
    %220 = arith.mulf %218, %219 : vector<8x32xf32>
    %221 = arith.addf %215, %220 : vector<8x32xf32>
    %222 = vector.extract_strided_slice %139 {offsets = [0, 12], sizes = [8, 1], strides = [1, 1]} : vector<8x24xf32> to vector<8x1xf32>
    %223 = vector.extract_strided_slice %151 {offsets = [12, 0], sizes = [1, 32], strides = [1, 1]} : vector<24x32xf32> to vector<1x32xf32>
    %224 = vector.broadcast %222 : vector<8x1xf32> to vector<8x32xf32>
    %225 = vector.broadcast %223 : vector<1x32xf32> to vector<8x32xf32>
    %226 = arith.mulf %224, %225 : vector<8x32xf32>
    %227 = arith.addf %221, %226 : vector<8x32xf32>
    %228 = vector.extract_strided_slice %139 {offsets = [0, 13], sizes = [8, 1], strides = [1, 1]} : vector<8x24xf32> to vector<8x1xf32>
    %229 = vector.extract_strided_slice %151 {offsets = [13, 0], sizes = [1, 32], strides = [1, 1]} : vector<24x32xf32> to vector<1x32xf32>
    %230 = vector.broadcast %228 : vector<8x1xf32> to vector<8x32xf32>
    %231 = vector.broadcast %229 : vector<1x32xf32> to vector<8x32xf32>
    %232 = arith.mulf %230, %231 : vector<8x32xf32>
    %233 = arith.addf %227, %232 : vector<8x32xf32>
    %234 = vector.extract_strided_slice %139 {offsets = [0, 14], sizes = [8, 1], strides = [1, 1]} : vector<8x24xf32> to vector<8x1xf32>
    %235 = vector.extract_strided_slice %151 {offsets = [14, 0], sizes = [1, 32], strides = [1, 1]} : vector<24x32xf32> to vector<1x32xf32>
    %236 = vector.broadcast %234 : vector<8x1xf32> to vector<8x32xf32>
    %237 = vector.broadcast %235 : vector<1x32xf32> to vector<8x32xf32>
    %238 = arith.mulf %236, %237 : vector<8x32xf32>
    %239 = arith.addf %233, %238 : vector<8x32xf32>
    %240 = vector.extract_strided_slice %139 {offsets = [0, 15], sizes = [8, 1], strides = [1, 1]} : vector<8x24xf32> to vector<8x1xf32>
    %241 = vector.extract_strided_slice %151 {offsets = [15, 0], sizes = [1, 32], strides = [1, 1]} : vector<24x32xf32> to vector<1x32xf32>
    %242 = vector.broadcast %240 : vector<8x1xf32> to vector<8x32xf32>
    %243 = vector.broadcast %241 : vector<1x32xf32> to vector<8x32xf32>
    %244 = arith.mulf %242, %243 : vector<8x32xf32>
    %245 = arith.addf %239, %244 : vector<8x32xf32>
    %246 = vector.extract_strided_slice %139 {offsets = [0, 16], sizes = [8, 1], strides = [1, 1]} : vector<8x24xf32> to vector<8x1xf32>
    %247 = vector.extract_strided_slice %151 {offsets = [16, 0], sizes = [1, 32], strides = [1, 1]} : vector<24x32xf32> to vector<1x32xf32>
    %248 = vector.broadcast %246 : vector<8x1xf32> to vector<8x32xf32>
    %249 = vector.broadcast %247 : vector<1x32xf32> to vector<8x32xf32>
    %250 = arith.mulf %248, %249 : vector<8x32xf32>
    %251 = vector.extract_strided_slice %139 {offsets = [0, 17], sizes = [8, 1], strides = [1, 1]} : vector<8x24xf32> to vector<8x1xf32>
    %252 = vector.extract_strided_slice %151 {offsets = [17, 0], sizes = [1, 32], strides = [1, 1]} : vector<24x32xf32> to vector<1x32xf32>
    %253 = vector.broadcast %251 : vector<8x1xf32> to vector<8x32xf32>
    %254 = vector.broadcast %252 : vector<1x32xf32> to vector<8x32xf32>
    %255 = arith.mulf %253, %254 : vector<8x32xf32>
    %256 = arith.addf %250, %255 : vector<8x32xf32>
    %257 = vector.extract_strided_slice %139 {offsets = [0, 18], sizes = [8, 1], strides = [1, 1]} : vector<8x24xf32> to vector<8x1xf32>
    %258 = vector.extract_strided_slice %151 {offsets = [18, 0], sizes = [1, 32], strides = [1, 1]} : vector<24x32xf32> to vector<1x32xf32>
    %259 = vector.broadcast %257 : vector<8x1xf32> to vector<8x32xf32>
    %260 = vector.broadcast %258 : vector<1x32xf32> to vector<8x32xf32>
    %261 = arith.mulf %259, %260 : vector<8x32xf32>
    %262 = arith.addf %256, %261 : vector<8x32xf32>
    %263 = vector.extract_strided_slice %139 {offsets = [0, 19], sizes = [8, 1], strides = [1, 1]} : vector<8x24xf32> to vector<8x1xf32>
    %264 = vector.extract_strided_slice %151 {offsets = [19, 0], sizes = [1, 32], strides = [1, 1]} : vector<24x32xf32> to vector<1x32xf32>
    %265 = vector.broadcast %263 : vector<8x1xf32> to vector<8x32xf32>
    %266 = vector.broadcast %264 : vector<1x32xf32> to vector<8x32xf32>
    %267 = arith.mulf %265, %266 : vector<8x32xf32>
    %268 = arith.addf %262, %267 : vector<8x32xf32>
    %269 = vector.extract_strided_slice %139 {offsets = [0, 20], sizes = [8, 1], strides = [1, 1]} : vector<8x24xf32> to vector<8x1xf32>
    %270 = vector.extract_strided_slice %151 {offsets = [20, 0], sizes = [1, 32], strides = [1, 1]} : vector<24x32xf32> to vector<1x32xf32>
    %271 = vector.broadcast %269 : vector<8x1xf32> to vector<8x32xf32>
    %272 = vector.broadcast %270 : vector<1x32xf32> to vector<8x32xf32>
    %273 = arith.mulf %271, %272 : vector<8x32xf32>
    %274 = arith.addf %268, %273 : vector<8x32xf32>
    %275 = vector.extract_strided_slice %139 {offsets = [0, 21], sizes = [8, 1], strides = [1, 1]} : vector<8x24xf32> to vector<8x1xf32>
    %276 = vector.extract_strided_slice %151 {offsets = [21, 0], sizes = [1, 32], strides = [1, 1]} : vector<24x32xf32> to vector<1x32xf32>
    %277 = vector.broadcast %275 : vector<8x1xf32> to vector<8x32xf32>
    %278 = vector.broadcast %276 : vector<1x32xf32> to vector<8x32xf32>
    %279 = arith.mulf %277, %278 : vector<8x32xf32>
    %280 = arith.addf %274, %279 : vector<8x32xf32>
    %281 = vector.extract_strided_slice %139 {offsets = [0, 22], sizes = [8, 1], strides = [1, 1]} : vector<8x24xf32> to vector<8x1xf32>
    %282 = vector.extract_strided_slice %151 {offsets = [22, 0], sizes = [1, 32], strides = [1, 1]} : vector<24x32xf32> to vector<1x32xf32>
    %283 = vector.broadcast %281 : vector<8x1xf32> to vector<8x32xf32>
    %284 = vector.broadcast %282 : vector<1x32xf32> to vector<8x32xf32>
    %285 = arith.mulf %283, %284 : vector<8x32xf32>
    %286 = arith.addf %280, %285 : vector<8x32xf32>
    %287 = vector.extract_strided_slice %139 {offsets = [0, 23], sizes = [8, 1], strides = [1, 1]} : vector<8x24xf32> to vector<8x1xf32>
    %288 = vector.extract_strided_slice %151 {offsets = [23, 0], sizes = [1, 32], strides = [1, 1]} : vector<24x32xf32> to vector<1x32xf32>
    %289 = vector.broadcast %287 : vector<8x1xf32> to vector<8x32xf32>
    %290 = vector.broadcast %288 : vector<1x32xf32> to vector<8x32xf32>
    %291 = arith.mulf %289, %290 : vector<8x32xf32>
    %292 = arith.addf %286, %291 : vector<8x32xf32>
    %293 = arith.addf %198, %245 : vector<8x32xf32>
    %294 = arith.addf %293, %292 : vector<8x32xf32>
    %295 = vector.broadcast %141 : vector<8x1xf32> to vector<8x32xf32>
    %296 = arith.addf %294, %295 : vector<8x32xf32>
    %c1_67 = arith.constant 1 : index
    %c0_68 = arith.constant 0 : index
    %c0_69 = arith.constant 0 : index
    %297 = vector.load %arg6[%c1_67, %c0_68, %c0_69] : memref<6x8x1xf32, #tpu.memory_space<vmem>>, vector<1x8x1xf32>
    %298 = vector.shape_cast %297 : vector<1x8x1xf32> to vector<8x1xf32>
    %c1_70 = arith.constant 1 : index
    %c0_71 = arith.constant 0 : index
    %c0_72 = arith.constant 0 : index
    %299 = vector.load %arg7[%c1_70, %c0_71, %c0_72] : memref<6x8x1xf32, #tpu.memory_space<vmem>>, vector<1x8x1xf32>
    %300 = vector.shape_cast %299 : vector<1x8x1xf32> to vector<8x1xf32>
    %301 = vector.extract_strided_slice %296 {offsets = [0, 0], sizes = [8, 1], strides = [1, 1]} : vector<8x32xf32> to vector<8x1xf32>
    %302 = vector.shape_cast %301 : vector<8x1xf32> to vector<8x1xf32>
    %303 = vector.broadcast %302 : vector<8x1xf32> to vector<8x3xf32>
    %c0_73 = arith.constant 0 : index
    %c0_74 = arith.constant 0 : index
    %304 = vector.load %arg9[%c0_73, %c0_74] : memref<8x38xf32, #tpu.memory_space<vmem>>, vector<8x3xf32>
    tpu.vector_store %arg9[%c0_73, %c0_74], %303 {strides = array<i32>} : memref<8x38xf32, #tpu.memory_space<vmem>>, vector<8x3xf32>,
    %c0_75 = arith.constant 0 : index
    %c3_76 = arith.constant 3 : index
    %305 = vector.load %arg9[%c0_75, %c3_76] : memref<8x38xf32, #tpu.memory_space<vmem>>, vector<8x32xf32>
    tpu.vector_store %arg9[%c0_75, %c3_76], %296 {strides = array<i32>} : memref<8x38xf32, #tpu.memory_space<vmem>>, vector<8x32xf32>,
    %306 = vector.extract_strided_slice %296 {offsets = [0, 31], sizes = [8, 1], strides = [1, 1]} : vector<8x32xf32> to vector<8x1xf32>
    %307 = vector.shape_cast %306 : vector<8x1xf32> to vector<8x1xf32>
    %308 = vector.broadcast %307 : vector<8x1xf32> to vector<8x3xf32>
    %c0_77 = arith.constant 0 : index
    %c35_78 = arith.constant 35 : index
    %309 = vector.load %arg9[%c0_77, %c35_78] : memref<8x38xf32, #tpu.memory_space<vmem>>, vector<8x3xf32>
    tpu.vector_store %arg9[%c0_77, %c35_78], %308 {strides = array<i32>} : memref<8x38xf32, #tpu.memory_space<vmem>>, vector<8x3xf32>,
    %c0_79 = arith.constant 0 : index
    %c0_80 = arith.constant 0 : index
    %310 = vector.load %arg9[%c0_79, %c0_80] : memref<8x38xf32, #tpu.memory_space<vmem>>, vector<8x38xf32>
    %311 = vector.extract_strided_slice %310 {offsets = [0, 0], sizes = [8, 32], strides = [1, 1]} : vector<8x38xf32> to vector<8x32xf32>
    %312 = vector.extract_strided_slice %310 {offsets = [0, 1], sizes = [8, 32], strides = [1, 1]} : vector<8x38xf32> to vector<8x32xf32>
    %313 = vector.extract_strided_slice %310 {offsets = [0, 2], sizes = [8, 32], strides = [1, 1]} : vector<8x38xf32> to vector<8x32xf32>
    %314 = vector.extract_strided_slice %310 {offsets = [0, 3], sizes = [8, 32], strides = [1, 1]} : vector<8x38xf32> to vector<8x32xf32>
    %315 = vector.extract_strided_slice %310 {offsets = [0, 4], sizes = [8, 32], strides = [1, 1]} : vector<8x38xf32> to vector<8x32xf32>
    %316 = vector.extract_strided_slice %310 {offsets = [0, 5], sizes = [8, 32], strides = [1, 1]} : vector<8x38xf32> to vector<8x32xf32>
    %317 = vector.extract_strided_slice %310 {offsets = [0, 6], sizes = [8, 32], strides = [1, 1]} : vector<8x38xf32> to vector<8x32xf32>
    %cst_81 = arith.constant 0.0187789276 : f32
    %318 = vector.broadcast %cst_81 : f32 to vector<8x32xf32>
    %319 = arith.mulf %318, %316 : vector<8x32xf32>
    %cst_82 = arith.constant 0.00405793311 : f32
    %320 = vector.broadcast %cst_82 : f32 to vector<8x32xf32>
    %321 = arith.mulf %320, %317 : vector<8x32xf32>
    %cst_83 = arith.constant -0.115314752 : f32
    %322 = vector.broadcast %cst_83 : f32 to vector<8x32xf32>
    %323 = arith.mulf %322, %315 : vector<8x32xf32>
    %324 = arith.addf %319, %323 : vector<8x32xf32>
    %cst_84 = arith.constant -0.0510869287 : f32
    %325 = vector.broadcast %cst_84 : f32 to vector<8x32xf32>
    %326 = arith.mulf %325, %316 : vector<8x32xf32>
    %327 = arith.addf %321, %326 : vector<8x32xf32>
    %cst_85 = arith.constant 0.886419594 : f32
    %328 = vector.broadcast %cst_85 : f32 to vector<8x32xf32>
    %329 = arith.mulf %328, %314 : vector<8x32xf32>
    %330 = arith.addf %324, %329 : vector<8x32xf32>
    %cst_86 = arith.constant 0.257145226 : f32
    %331 = vector.broadcast %cst_86 : f32 to vector<8x32xf32>
    %332 = arith.mulf %331, %315 : vector<8x32xf32>
    %333 = arith.addf %327, %332 : vector<8x32xf32>
    %cst_87 = arith.constant 0.257145226 : f32
    %334 = vector.broadcast %cst_87 : f32 to vector<8x32xf32>
    %335 = arith.mulf %334, %313 : vector<8x32xf32>
    %336 = arith.addf %330, %335 : vector<8x32xf32>
    %cst_88 = arith.constant 0.886419594 : f32
    %337 = vector.broadcast %cst_88 : f32 to vector<8x32xf32>
    %338 = arith.mulf %337, %314 : vector<8x32xf32>
    %339 = arith.addf %333, %338 : vector<8x32xf32>
    %cst_89 = arith.constant -0.0510869287 : f32
    %340 = vector.broadcast %cst_89 : f32 to vector<8x32xf32>
    %341 = arith.mulf %340, %312 : vector<8x32xf32>
    %342 = arith.addf %336, %341 : vector<8x32xf32>
    %cst_90 = arith.constant -0.115314752 : f32
    %343 = vector.broadcast %cst_90 : f32 to vector<8x32xf32>
    %344 = arith.mulf %343, %313 : vector<8x32xf32>
    %345 = arith.addf %339, %344 : vector<8x32xf32>
    %cst_91 = arith.constant 0.00405793311 : f32
    %346 = vector.broadcast %cst_91 : f32 to vector<8x32xf32>
    %347 = arith.mulf %346, %311 : vector<8x32xf32>
    %348 = arith.addf %342, %347 : vector<8x32xf32>
    %cst_92 = arith.constant 0.0187789276 : f32
    %349 = vector.broadcast %cst_92 : f32 to vector<8x32xf32>
    %350 = arith.mulf %349, %312 : vector<8x32xf32>
    %351 = arith.addf %345, %350 : vector<8x32xf32>
    %352 = vector.broadcast %298 : vector<8x1xf32> to vector<8x32xf32>
    %353 = arith.mulf %348, %352 : vector<8x32xf32>
    %354 = math.sin %353 : vector<8x32xf32>
    %355 = arith.mulf %354, %354 : vector<8x32xf32>
    %356 = vector.broadcast %300 : vector<8x1xf32> to vector<8x32xf32>
    %357 = arith.mulf %356, %355 : vector<8x32xf32>
    %358 = arith.addf %348, %357 : vector<8x32xf32>
    %359 = vector.broadcast %298 : vector<8x1xf32> to vector<8x32xf32>
    %360 = arith.mulf %351, %359 : vector<8x32xf32>
    %361 = math.sin %360 : vector<8x32xf32>
    %362 = arith.mulf %361, %361 : vector<8x32xf32>
    %363 = vector.broadcast %300 : vector<8x1xf32> to vector<8x32xf32>
    %364 = arith.mulf %363, %362 : vector<8x32xf32>
    %365 = arith.addf %351, %364 : vector<8x32xf32>
    %366 = vector.extract_strided_slice %358 {offsets = [0, 0], sizes = [8, 1], strides = [1, 1]} : vector<8x32xf32> to vector<8x1xf32>
    %367 = vector.shape_cast %366 : vector<8x1xf32> to vector<8x1xf32>
    %368 = vector.broadcast %367 : vector<8x1xf32> to vector<8x3xf32>
    %c0_93 = arith.constant 0 : index
    %c0_94 = arith.constant 0 : index
    %369 = vector.load %arg10[%c0_93, %c0_94] : memref<8x37xf32, #tpu.memory_space<vmem>>, vector<8x3xf32>
    tpu.vector_store %arg10[%c0_93, %c0_94], %368 {strides = array<i32>} : memref<8x37xf32, #tpu.memory_space<vmem>>, vector<8x3xf32>,
    %c0_95 = arith.constant 0 : index
    %c3_96 = arith.constant 3 : index
    %370 = vector.load %arg10[%c0_95, %c3_96] : memref<8x37xf32, #tpu.memory_space<vmem>>, vector<8x32xf32>
    tpu.vector_store %arg10[%c0_95, %c3_96], %365 {strides = array<i32>} : memref<8x37xf32, #tpu.memory_space<vmem>>, vector<8x32xf32>,
    %371 = vector.extract_strided_slice %365 {offsets = [0, 31], sizes = [8, 1], strides = [1, 1]} : vector<8x32xf32> to vector<8x1xf32>
    %372 = vector.shape_cast %371 : vector<8x1xf32> to vector<8x1xf32>
    %373 = vector.broadcast %372 : vector<8x1xf32> to vector<8x2xf32>
    %c0_97 = arith.constant 0 : index
    %c35_98 = arith.constant 35 : index
    %374 = vector.load %arg10[%c0_97, %c35_98] : memref<8x37xf32, #tpu.memory_space<vmem>>, vector<8x2xf32>
    tpu.vector_store %arg10[%c0_97, %c35_98], %373 {strides = array<i32>} : memref<8x37xf32, #tpu.memory_space<vmem>>, vector<8x2xf32>,
    %375 = vector.extract_strided_slice %358 {offsets = [0, 0], sizes = [8, 1], strides = [1, 1]} : vector<8x32xf32> to vector<8x1xf32>
    %376 = vector.shape_cast %375 : vector<8x1xf32> to vector<8x1xf32>
    %377 = vector.broadcast %376 : vector<8x1xf32> to vector<8x2xf32>
    %c0_99 = arith.constant 0 : index
    %c0_100 = arith.constant 0 : index
    %378 = vector.load %arg11[%c0_99, %c0_100] : memref<8x37xf32, #tpu.memory_space<vmem>>, vector<8x2xf32>
    tpu.vector_store %arg11[%c0_99, %c0_100], %377 {strides = array<i32>} : memref<8x37xf32, #tpu.memory_space<vmem>>, vector<8x2xf32>,
    %c0_101 = arith.constant 0 : index
    %c2_102 = arith.constant 2 : index
    %379 = vector.load %arg11[%c0_101, %c2_102] : memref<8x37xf32, #tpu.memory_space<vmem>>, vector<8x32xf32>
    tpu.vector_store %arg11[%c0_101, %c2_102], %358 {strides = array<i32>} : memref<8x37xf32, #tpu.memory_space<vmem>>, vector<8x32xf32>,
    %380 = vector.extract_strided_slice %365 {offsets = [0, 31], sizes = [8, 1], strides = [1, 1]} : vector<8x32xf32> to vector<8x1xf32>
    %381 = vector.shape_cast %380 : vector<8x1xf32> to vector<8x1xf32>
    %382 = vector.broadcast %381 : vector<8x1xf32> to vector<8x3xf32>
    %c0_103 = arith.constant 0 : index
    %c34_104 = arith.constant 34 : index
    %383 = vector.load %arg11[%c0_103, %c34_104] : memref<8x37xf32, #tpu.memory_space<vmem>>, vector<8x3xf32>
    tpu.vector_store %arg11[%c0_103, %c34_104], %382 {strides = array<i32>} : memref<8x37xf32, #tpu.memory_space<vmem>>, vector<8x3xf32>,
    %c0_105 = arith.constant 0 : index
    %c0_106 = arith.constant 0 : index
    %384 = vector.load %arg10[%c0_105, %c0_106] : memref<8x37xf32, #tpu.memory_space<vmem>>, vector<8x37xf32>
    %c0_107 = arith.constant 0 : index
    %c0_108 = arith.constant 0 : index
    %385 = vector.load %arg11[%c0_107, %c0_108] : memref<8x37xf32, #tpu.memory_space<vmem>>, vector<8x37xf32>
    %386 = vector.extract_strided_slice %384 {offsets = [0, 0], sizes = [8, 32], strides = [1, 1]} : vector<8x37xf32> to vector<8x32xf32>
    %cst_109 = arith.constant 0.00202896656 : f32
    %387 = vector.broadcast %cst_109 : f32 to vector<8x32xf32>
    %388 = arith.mulf %387, %386 : vector<8x32xf32>
    %389 = vector.extract_strided_slice %385 {offsets = [0, 0], sizes = [8, 32], strides = [1, 1]} : vector<8x37xf32> to vector<8x32xf32>
    %cst_110 = arith.constant 0.00938946381 : f32
    %390 = vector.broadcast %cst_110 : f32 to vector<8x32xf32>
    %391 = arith.mulf %390, %389 : vector<8x32xf32>
    %392 = arith.addf %388, %391 : vector<8x32xf32>
    %393 = vector.extract_strided_slice %384 {offsets = [0, 1], sizes = [8, 32], strides = [1, 1]} : vector<8x37xf32> to vector<8x32xf32>
    %cst_111 = arith.constant -0.0255434643 : f32
    %394 = vector.broadcast %cst_111 : f32 to vector<8x32xf32>
    %395 = arith.mulf %394, %393 : vector<8x32xf32>
    %396 = arith.addf %392, %395 : vector<8x32xf32>
    %397 = vector.extract_strided_slice %385 {offsets = [0, 1], sizes = [8, 32], strides = [1, 1]} : vector<8x37xf32> to vector<8x32xf32>
    %cst_112 = arith.constant -0.0576573759 : f32
    %398 = vector.broadcast %cst_112 : f32 to vector<8x32xf32>
    %399 = arith.mulf %398, %397 : vector<8x32xf32>
    %400 = arith.addf %396, %399 : vector<8x32xf32>
    %401 = vector.extract_strided_slice %384 {offsets = [0, 2], sizes = [8, 32], strides = [1, 1]} : vector<8x37xf32> to vector<8x32xf32>
    %cst_113 = arith.constant 0.128572613 : f32
    %402 = vector.broadcast %cst_113 : f32 to vector<8x32xf32>
    %403 = arith.mulf %402, %401 : vector<8x32xf32>
    %404 = arith.addf %400, %403 : vector<8x32xf32>
    %405 = vector.extract_strided_slice %385 {offsets = [0, 2], sizes = [8, 32], strides = [1, 1]} : vector<8x37xf32> to vector<8x32xf32>
    %cst_114 = arith.constant 0.443209797 : f32
    %406 = vector.broadcast %cst_114 : f32 to vector<8x32xf32>
    %407 = arith.mulf %406, %405 : vector<8x32xf32>
    %408 = arith.addf %404, %407 : vector<8x32xf32>
    %409 = vector.extract_strided_slice %384 {offsets = [0, 3], sizes = [8, 32], strides = [1, 1]} : vector<8x37xf32> to vector<8x32xf32>
    %cst_115 = arith.constant 0.443209797 : f32
    %410 = vector.broadcast %cst_115 : f32 to vector<8x32xf32>
    %411 = arith.mulf %410, %409 : vector<8x32xf32>
    %412 = arith.addf %408, %411 : vector<8x32xf32>
    %413 = vector.extract_strided_slice %385 {offsets = [0, 3], sizes = [8, 32], strides = [1, 1]} : vector<8x37xf32> to vector<8x32xf32>
    %cst_116 = arith.constant 0.128572613 : f32
    %414 = vector.broadcast %cst_116 : f32 to vector<8x32xf32>
    %415 = arith.mulf %414, %413 : vector<8x32xf32>
    %416 = arith.addf %412, %415 : vector<8x32xf32>
    %417 = vector.extract_strided_slice %384 {offsets = [0, 4], sizes = [8, 32], strides = [1, 1]} : vector<8x37xf32> to vector<8x32xf32>
    %cst_117 = arith.constant -0.0576573759 : f32
    %418 = vector.broadcast %cst_117 : f32 to vector<8x32xf32>
    %419 = arith.mulf %418, %417 : vector<8x32xf32>
    %420 = arith.addf %416, %419 : vector<8x32xf32>
    %421 = vector.extract_strided_slice %385 {offsets = [0, 4], sizes = [8, 32], strides = [1, 1]} : vector<8x37xf32> to vector<8x32xf32>
    %cst_118 = arith.constant -0.0255434643 : f32
    %422 = vector.broadcast %cst_118 : f32 to vector<8x32xf32>
    %423 = arith.mulf %422, %421 : vector<8x32xf32>
    %424 = arith.addf %420, %423 : vector<8x32xf32>
    %425 = vector.extract_strided_slice %384 {offsets = [0, 5], sizes = [8, 32], strides = [1, 1]} : vector<8x37xf32> to vector<8x32xf32>
    %cst_119 = arith.constant 0.00938946381 : f32
    %426 = vector.broadcast %cst_119 : f32 to vector<8x32xf32>
    %427 = arith.mulf %426, %425 : vector<8x32xf32>
    %428 = arith.addf %424, %427 : vector<8x32xf32>
    %429 = vector.extract_strided_slice %385 {offsets = [0, 5], sizes = [8, 32], strides = [1, 1]} : vector<8x37xf32> to vector<8x32xf32>
    %cst_120 = arith.constant 0.00202896656 : f32
    %430 = vector.broadcast %cst_120 : f32 to vector<8x32xf32>
    %431 = arith.mulf %430, %429 : vector<8x32xf32>
    %432 = arith.addf %428, %431 : vector<8x32xf32>
    %c0_121 = arith.constant 0 : index
    %c0_122 = arith.constant 0 : index
    %c0_123 = arith.constant 0 : index
    %433 = vector.load %arg4[%c0_121, %c0_122, %c0_123] : memref<3x8x24xf32, #tpu.memory_space<vmem>>, vector<1x8x24xf32>
    %434 = vector.shape_cast %433 : vector<1x8x24xf32> to vector<8x24xf32>
    %c0_124 = arith.constant 0 : index
    %c0_125 = arith.constant 0 : index
    %c0_126 = arith.constant 0 : index
    %435 = vector.load %arg5[%c0_124, %c0_125, %c0_126] : memref<3x8x1xf32, #tpu.memory_space<vmem>>, vector<1x8x1xf32>
    %436 = vector.shape_cast %435 : vector<1x8x1xf32> to vector<8x1xf32>
    %cst_127 = arith.constant 0.000000e+00 : f32
    %437 = vector.broadcast %cst_127 : f32 to vector<8x1xf32>
    %c0_128 = arith.constant 0 : index
    %c0_129 = arith.constant 0 : index
    %438 = vector.load %arg12[%c0_128, %c0_129] : memref<24x32xf32, #tpu.memory_space<vmem>>, vector<8x1xf32>
    tpu.vector_store %arg12[%c0_128, %c0_129], %437 {strides = array<i32>} : memref<24x32xf32, #tpu.memory_space<vmem>>, vector<8x1xf32>,
    %439 = vector.extract_strided_slice %432 {offsets = [0, 0], sizes = [8, 31], strides = [1, 1]} : vector<8x32xf32> to vector<8x31xf32>
    %c0_130 = arith.constant 0 : index
    %c1_131 = arith.constant 1 : index
    %440 = vector.load %arg12[%c0_130, %c1_131] : memref<24x32xf32, #tpu.memory_space<vmem>>, vector<8x31xf32>
    tpu.vector_store %arg12[%c0_130, %c1_131], %439 {strides = array<i32>} : memref<24x32xf32, #tpu.memory_space<vmem>>, vector<8x31xf32>,
    %c8_132 = arith.constant 8 : index
    %c0_133 = arith.constant 0 : index
    %441 = vector.load %arg12[%c8_132, %c0_133] : memref<24x32xf32, #tpu.memory_space<vmem>>, vector<8x32xf32>
    tpu.vector_store %arg12[%c8_132, %c0_133], %432 {strides = array<i32>} : memref<24x32xf32, #tpu.memory_space<vmem>>, vector<8x32xf32>,
    %442 = vector.extract_strided_slice %432 {offsets = [0, 1], sizes = [8, 31], strides = [1, 1]} : vector<8x32xf32> to vector<8x31xf32>
    %c16_134 = arith.constant 16 : index
    %c0_135 = arith.constant 0 : index
    %443 = vector.load %arg12[%c16_134, %c0_135] : memref<24x32xf32, #tpu.memory_space<vmem>>, vector<8x31xf32>
    tpu.vector_store %arg12[%c16_134, %c0_135], %442 {strides = array<i32>} : memref<24x32xf32, #tpu.memory_space<vmem>>, vector<8x31xf32>,
    %cst_136 = arith.constant 0.000000e+00 : f32
    %444 = vector.broadcast %cst_136 : f32 to vector<8x1xf32>
    %c16_137 = arith.constant 16 : index
    %c31_138 = arith.constant 31 : index
    %445 = vector.load %arg12[%c16_137, %c31_138] : memref<24x32xf32, #tpu.memory_space<vmem>>, vector<8x1xf32>
    tpu.vector_store %arg12[%c16_137, %c31_138], %444 {strides = array<i32>} : memref<24x32xf32, #tpu.memory_space<vmem>>, vector<8x1xf32>,
    %c0_139 = arith.constant 0 : index
    %c0_140 = arith.constant 0 : index
    %446 = vector.load %arg12[%c0_139, %c0_140] : memref<24x32xf32, #tpu.memory_space<vmem>>, vector<24x32xf32>
    %447 = vector.extract_strided_slice %434 {offsets = [0, 0], sizes = [8, 1], strides = [1, 1]} : vector<8x24xf32> to vector<8x1xf32>
    %448 = vector.extract_strided_slice %446 {offsets = [0, 0], sizes = [1, 32], strides = [1, 1]} : vector<24x32xf32> to vector<1x32xf32>
    %449 = vector.broadcast %447 : vector<8x1xf32> to vector<8x32xf32>
    %450 = vector.broadcast %448 : vector<1x32xf32> to vector<8x32xf32>
    %451 = arith.mulf %449, %450 : vector<8x32xf32>
    %452 = vector.extract_strided_slice %434 {offsets = [0, 1], sizes = [8, 1], strides = [1, 1]} : vector<8x24xf32> to vector<8x1xf32>
    %453 = vector.extract_strided_slice %446 {offsets = [1, 0], sizes = [1, 32], strides = [1, 1]} : vector<24x32xf32> to vector<1x32xf32>
    %454 = vector.broadcast %452 : vector<8x1xf32> to vector<8x32xf32>
    %455 = vector.broadcast %453 : vector<1x32xf32> to vector<8x32xf32>
    %456 = arith.mulf %454, %455 : vector<8x32xf32>
    %457 = arith.addf %451, %456 : vector<8x32xf32>
    %458 = vector.extract_strided_slice %434 {offsets = [0, 2], sizes = [8, 1], strides = [1, 1]} : vector<8x24xf32> to vector<8x1xf32>
    %459 = vector.extract_strided_slice %446 {offsets = [2, 0], sizes = [1, 32], strides = [1, 1]} : vector<24x32xf32> to vector<1x32xf32>
    %460 = vector.broadcast %458 : vector<8x1xf32> to vector<8x32xf32>
    %461 = vector.broadcast %459 : vector<1x32xf32> to vector<8x32xf32>
    %462 = arith.mulf %460, %461 : vector<8x32xf32>
    %463 = arith.addf %457, %462 : vector<8x32xf32>
    %464 = vector.extract_strided_slice %434 {offsets = [0, 3], sizes = [8, 1], strides = [1, 1]} : vector<8x24xf32> to vector<8x1xf32>
    %465 = vector.extract_strided_slice %446 {offsets = [3, 0], sizes = [1, 32], strides = [1, 1]} : vector<24x32xf32> to vector<1x32xf32>
    %466 = vector.broadcast %464 : vector<8x1xf32> to vector<8x32xf32>
    %467 = vector.broadcast %465 : vector<1x32xf32> to vector<8x32xf32>
    %468 = arith.mulf %466, %467 : vector<8x32xf32>
    %469 = arith.addf %463, %468 : vector<8x32xf32>
    %470 = vector.extract_strided_slice %434 {offsets = [0, 4], sizes = [8, 1], strides = [1, 1]} : vector<8x24xf32> to vector<8x1xf32>
    %471 = vector.extract_strided_slice %446 {offsets = [4, 0], sizes = [1, 32], strides = [1, 1]} : vector<24x32xf32> to vector<1x32xf32>
    %472 = vector.broadcast %470 : vector<8x1xf32> to vector<8x32xf32>
    %473 = vector.broadcast %471 : vector<1x32xf32> to vector<8x32xf32>
    %474 = arith.mulf %472, %473 : vector<8x32xf32>
    %475 = arith.addf %469, %474 : vector<8x32xf32>
    %476 = vector.extract_strided_slice %434 {offsets = [0, 5], sizes = [8, 1], strides = [1, 1]} : vector<8x24xf32> to vector<8x1xf32>
    %477 = vector.extract_strided_slice %446 {offsets = [5, 0], sizes = [1, 32], strides = [1, 1]} : vector<24x32xf32> to vector<1x32xf32>
    %478 = vector.broadcast %476 : vector<8x1xf32> to vector<8x32xf32>
    %479 = vector.broadcast %477 : vector<1x32xf32> to vector<8x32xf32>
    %480 = arith.mulf %478, %479 : vector<8x32xf32>
    %481 = arith.addf %475, %480 : vector<8x32xf32>
    %482 = vector.extract_strided_slice %434 {offsets = [0, 6], sizes = [8, 1], strides = [1, 1]} : vector<8x24xf32> to vector<8x1xf32>
    %483 = vector.extract_strided_slice %446 {offsets = [6, 0], sizes = [1, 32], strides = [1, 1]} : vector<24x32xf32> to vector<1x32xf32>
    %484 = vector.broadcast %482 : vector<8x1xf32> to vector<8x32xf32>
    %485 = vector.broadcast %483 : vector<1x32xf32> to vector<8x32xf32>
    %486 = arith.mulf %484, %485 : vector<8x32xf32>
    %487 = arith.addf %481, %486 : vector<8x32xf32>
    %488 = vector.extract_strided_slice %434 {offsets = [0, 7], sizes = [8, 1], strides = [1, 1]} : vector<8x24xf32> to vector<8x1xf32>
    %489 = vector.extract_strided_slice %446 {offsets = [7, 0], sizes = [1, 32], strides = [1, 1]} : vector<24x32xf32> to vector<1x32xf32>
    %490 = vector.broadcast %488 : vector<8x1xf32> to vector<8x32xf32>
    %491 = vector.broadcast %489 : vector<1x32xf32> to vector<8x32xf32>
    %492 = arith.mulf %490, %491 : vector<8x32xf32>
    %493 = arith.addf %487, %492 : vector<8x32xf32>
    %494 = vector.extract_strided_slice %434 {offsets = [0, 8], sizes = [8, 1], strides = [1, 1]} : vector<8x24xf32> to vector<8x1xf32>
    %495 = vector.extract_strided_slice %446 {offsets = [8, 0], sizes = [1, 32], strides = [1, 1]} : vector<24x32xf32> to vector<1x32xf32>
    %496 = vector.broadcast %494 : vector<8x1xf32> to vector<8x32xf32>
    %497 = vector.broadcast %495 : vector<1x32xf32> to vector<8x32xf32>
    %498 = arith.mulf %496, %497 : vector<8x32xf32>
    %499 = vector.extract_strided_slice %434 {offsets = [0, 9], sizes = [8, 1], strides = [1, 1]} : vector<8x24xf32> to vector<8x1xf32>
    %500 = vector.extract_strided_slice %446 {offsets = [9, 0], sizes = [1, 32], strides = [1, 1]} : vector<24x32xf32> to vector<1x32xf32>
    %501 = vector.broadcast %499 : vector<8x1xf32> to vector<8x32xf32>
    %502 = vector.broadcast %500 : vector<1x32xf32> to vector<8x32xf32>
    %503 = arith.mulf %501, %502 : vector<8x32xf32>
    %504 = arith.addf %498, %503 : vector<8x32xf32>
    %505 = vector.extract_strided_slice %434 {offsets = [0, 10], sizes = [8, 1], strides = [1, 1]} : vector<8x24xf32> to vector<8x1xf32>
    %506 = vector.extract_strided_slice %446 {offsets = [10, 0], sizes = [1, 32], strides = [1, 1]} : vector<24x32xf32> to vector<1x32xf32>
    %507 = vector.broadcast %505 : vector<8x1xf32> to vector<8x32xf32>
    %508 = vector.broadcast %506 : vector<1x32xf32> to vector<8x32xf32>
    %509 = arith.mulf %507, %508 : vector<8x32xf32>
    %510 = arith.addf %504, %509 : vector<8x32xf32>
    %511 = vector.extract_strided_slice %434 {offsets = [0, 11], sizes = [8, 1], strides = [1, 1]} : vector<8x24xf32> to vector<8x1xf32>
    %512 = vector.extract_strided_slice %446 {offsets = [11, 0], sizes = [1, 32], strides = [1, 1]} : vector<24x32xf32> to vector<1x32xf32>
    %513 = vector.broadcast %511 : vector<8x1xf32> to vector<8x32xf32>
    %514 = vector.broadcast %512 : vector<1x32xf32> to vector<8x32xf32>
    %515 = arith.mulf %513, %514 : vector<8x32xf32>
    %516 = arith.addf %510, %515 : vector<8x32xf32>
    %517 = vector.extract_strided_slice %434 {offsets = [0, 12], sizes = [8, 1], strides = [1, 1]} : vector<8x24xf32> to vector<8x1xf32>
    %518 = vector.extract_strided_slice %446 {offsets = [12, 0], sizes = [1, 32], strides = [1, 1]} : vector<24x32xf32> to vector<1x32xf32>
    %519 = vector.broadcast %517 : vector<8x1xf32> to vector<8x32xf32>
    %520 = vector.broadcast %518 : vector<1x32xf32> to vector<8x32xf32>
    %521 = arith.mulf %519, %520 : vector<8x32xf32>
    %522 = arith.addf %516, %521 : vector<8x32xf32>
    %523 = vector.extract_strided_slice %434 {offsets = [0, 13], sizes = [8, 1], strides = [1, 1]} : vector<8x24xf32> to vector<8x1xf32>
    %524 = vector.extract_strided_slice %446 {offsets = [13, 0], sizes = [1, 32], strides = [1, 1]} : vector<24x32xf32> to vector<1x32xf32>
    %525 = vector.broadcast %523 : vector<8x1xf32> to vector<8x32xf32>
    %526 = vector.broadcast %524 : vector<1x32xf32> to vector<8x32xf32>
    %527 = arith.mulf %525, %526 : vector<8x32xf32>
    %528 = arith.addf %522, %527 : vector<8x32xf32>
    %529 = vector.extract_strided_slice %434 {offsets = [0, 14], sizes = [8, 1], strides = [1, 1]} : vector<8x24xf32> to vector<8x1xf32>
    %530 = vector.extract_strided_slice %446 {offsets = [14, 0], sizes = [1, 32], strides = [1, 1]} : vector<24x32xf32> to vector<1x32xf32>
    %531 = vector.broadcast %529 : vector<8x1xf32> to vector<8x32xf32>
    %532 = vector.broadcast %530 : vector<1x32xf32> to vector<8x32xf32>
    %533 = arith.mulf %531, %532 : vector<8x32xf32>
    %534 = arith.addf %528, %533 : vector<8x32xf32>
    %535 = vector.extract_strided_slice %434 {offsets = [0, 15], sizes = [8, 1], strides = [1, 1]} : vector<8x24xf32> to vector<8x1xf32>
    %536 = vector.extract_strided_slice %446 {offsets = [15, 0], sizes = [1, 32], strides = [1, 1]} : vector<24x32xf32> to vector<1x32xf32>
    %537 = vector.broadcast %535 : vector<8x1xf32> to vector<8x32xf32>
    %538 = vector.broadcast %536 : vector<1x32xf32> to vector<8x32xf32>
    %539 = arith.mulf %537, %538 : vector<8x32xf32>
    %540 = arith.addf %534, %539 : vector<8x32xf32>
    %541 = vector.extract_strided_slice %434 {offsets = [0, 16], sizes = [8, 1], strides = [1, 1]} : vector<8x24xf32> to vector<8x1xf32>
    %542 = vector.extract_strided_slice %446 {offsets = [16, 0], sizes = [1, 32], strides = [1, 1]} : vector<24x32xf32> to vector<1x32xf32>
    %543 = vector.broadcast %541 : vector<8x1xf32> to vector<8x32xf32>
    %544 = vector.broadcast %542 : vector<1x32xf32> to vector<8x32xf32>
    %545 = arith.mulf %543, %544 : vector<8x32xf32>
    %546 = vector.extract_strided_slice %434 {offsets = [0, 17], sizes = [8, 1], strides = [1, 1]} : vector<8x24xf32> to vector<8x1xf32>
    %547 = vector.extract_strided_slice %446 {offsets = [17, 0], sizes = [1, 32], strides = [1, 1]} : vector<24x32xf32> to vector<1x32xf32>
    %548 = vector.broadcast %546 : vector<8x1xf32> to vector<8x32xf32>
    %549 = vector.broadcast %547 : vector<1x32xf32> to vector<8x32xf32>
    %550 = arith.mulf %548, %549 : vector<8x32xf32>
    %551 = arith.addf %545, %550 : vector<8x32xf32>
    %552 = vector.extract_strided_slice %434 {offsets = [0, 18], sizes = [8, 1], strides = [1, 1]} : vector<8x24xf32> to vector<8x1xf32>
    %553 = vector.extract_strided_slice %446 {offsets = [18, 0], sizes = [1, 32], strides = [1, 1]} : vector<24x32xf32> to vector<1x32xf32>
    %554 = vector.broadcast %552 : vector<8x1xf32> to vector<8x32xf32>
    %555 = vector.broadcast %553 : vector<1x32xf32> to vector<8x32xf32>
    %556 = arith.mulf %554, %555 : vector<8x32xf32>
    %557 = arith.addf %551, %556 : vector<8x32xf32>
    %558 = vector.extract_strided_slice %434 {offsets = [0, 19], sizes = [8, 1], strides = [1, 1]} : vector<8x24xf32> to vector<8x1xf32>
    %559 = vector.extract_strided_slice %446 {offsets = [19, 0], sizes = [1, 32], strides = [1, 1]} : vector<24x32xf32> to vector<1x32xf32>
    %560 = vector.broadcast %558 : vector<8x1xf32> to vector<8x32xf32>
    %561 = vector.broadcast %559 : vector<1x32xf32> to vector<8x32xf32>
    %562 = arith.mulf %560, %561 : vector<8x32xf32>
    %563 = arith.addf %557, %562 : vector<8x32xf32>
    %564 = vector.extract_strided_slice %434 {offsets = [0, 20], sizes = [8, 1], strides = [1, 1]} : vector<8x24xf32> to vector<8x1xf32>
    %565 = vector.extract_strided_slice %446 {offsets = [20, 0], sizes = [1, 32], strides = [1, 1]} : vector<24x32xf32> to vector<1x32xf32>
    %566 = vector.broadcast %564 : vector<8x1xf32> to vector<8x32xf32>
    %567 = vector.broadcast %565 : vector<1x32xf32> to vector<8x32xf32>
    %568 = arith.mulf %566, %567 : vector<8x32xf32>
    %569 = arith.addf %563, %568 : vector<8x32xf32>
    %570 = vector.extract_strided_slice %434 {offsets = [0, 21], sizes = [8, 1], strides = [1, 1]} : vector<8x24xf32> to vector<8x1xf32>
    %571 = vector.extract_strided_slice %446 {offsets = [21, 0], sizes = [1, 32], strides = [1, 1]} : vector<24x32xf32> to vector<1x32xf32>
    %572 = vector.broadcast %570 : vector<8x1xf32> to vector<8x32xf32>
    %573 = vector.broadcast %571 : vector<1x32xf32> to vector<8x32xf32>
    %574 = arith.mulf %572, %573 : vector<8x32xf32>
    %575 = arith.addf %569, %574 : vector<8x32xf32>
    %576 = vector.extract_strided_slice %434 {offsets = [0, 22], sizes = [8, 1], strides = [1, 1]} : vector<8x24xf32> to vector<8x1xf32>
    %577 = vector.extract_strided_slice %446 {offsets = [22, 0], sizes = [1, 32], strides = [1, 1]} : vector<24x32xf32> to vector<1x32xf32>
    %578 = vector.broadcast %576 : vector<8x1xf32> to vector<8x32xf32>
    %579 = vector.broadcast %577 : vector<1x32xf32> to vector<8x32xf32>
    %580 = arith.mulf %578, %579 : vector<8x32xf32>
    %581 = arith.addf %575, %580 : vector<8x32xf32>
    %582 = vector.extract_strided_slice %434 {offsets = [0, 23], sizes = [8, 1], strides = [1, 1]} : vector<8x24xf32> to vector<8x1xf32>
    %583 = vector.extract_strided_slice %446 {offsets = [23, 0], sizes = [1, 32], strides = [1, 1]} : vector<24x32xf32> to vector<1x32xf32>
    %584 = vector.broadcast %582 : vector<8x1xf32> to vector<8x32xf32>
    %585 = vector.broadcast %583 : vector<1x32xf32> to vector<8x32xf32>
    %586 = arith.mulf %584, %585 : vector<8x32xf32>
    %587 = arith.addf %581, %586 : vector<8x32xf32>
    %588 = arith.addf %493, %540 : vector<8x32xf32>
    %589 = arith.addf %588, %587 : vector<8x32xf32>
    %590 = vector.broadcast %436 : vector<8x1xf32> to vector<8x32xf32>
    %591 = arith.addf %589, %590 : vector<8x32xf32>
    %592 = arith.addf %591, %1 : vector<8x32xf32>
    %c2_141 = arith.constant 2 : index
    %c0_142 = arith.constant 0 : index
    %c0_143 = arith.constant 0 : index
    %593 = vector.load %arg6[%c2_141, %c0_142, %c0_143] : memref<6x8x1xf32, #tpu.memory_space<vmem>>, vector<1x8x1xf32>
    %594 = vector.shape_cast %593 : vector<1x8x1xf32> to vector<8x1xf32>
    %c2_144 = arith.constant 2 : index
    %c0_145 = arith.constant 0 : index
    %c0_146 = arith.constant 0 : index
    %595 = vector.load %arg7[%c2_144, %c0_145, %c0_146] : memref<6x8x1xf32, #tpu.memory_space<vmem>>, vector<1x8x1xf32>
    %596 = vector.shape_cast %595 : vector<1x8x1xf32> to vector<8x1xf32>
    %597 = vector.extract_strided_slice %592 {offsets = [0, 0], sizes = [8, 1], strides = [1, 1]} : vector<8x32xf32> to vector<8x1xf32>
    %598 = vector.shape_cast %597 : vector<8x1xf32> to vector<8x1xf32>
    %599 = vector.broadcast %598 : vector<8x1xf32> to vector<8x3xf32>
    %c0_147 = arith.constant 0 : index
    %c0_148 = arith.constant 0 : index
    %600 = vector.load %arg9[%c0_147, %c0_148] : memref<8x38xf32, #tpu.memory_space<vmem>>, vector<8x3xf32>
    tpu.vector_store %arg9[%c0_147, %c0_148], %599 {strides = array<i32>} : memref<8x38xf32, #tpu.memory_space<vmem>>, vector<8x3xf32>,
    %c0_149 = arith.constant 0 : index
    %c3_150 = arith.constant 3 : index
    %601 = vector.load %arg9[%c0_149, %c3_150] : memref<8x38xf32, #tpu.memory_space<vmem>>, vector<8x32xf32>
    tpu.vector_store %arg9[%c0_149, %c3_150], %592 {strides = array<i32>} : memref<8x38xf32, #tpu.memory_space<vmem>>, vector<8x32xf32>,
    %602 = vector.extract_strided_slice %592 {offsets = [0, 31], sizes = [8, 1], strides = [1, 1]} : vector<8x32xf32> to vector<8x1xf32>
    %603 = vector.shape_cast %602 : vector<8x1xf32> to vector<8x1xf32>
    %604 = vector.broadcast %603 : vector<8x1xf32> to vector<8x3xf32>
    %c0_151 = arith.constant 0 : index
    %c35_152 = arith.constant 35 : index
    %605 = vector.load %arg9[%c0_151, %c35_152] : memref<8x38xf32, #tpu.memory_space<vmem>>, vector<8x3xf32>
    tpu.vector_store %arg9[%c0_151, %c35_152], %604 {strides = array<i32>} : memref<8x38xf32, #tpu.memory_space<vmem>>, vector<8x3xf32>,
    %c0_153 = arith.constant 0 : index
    %c0_154 = arith.constant 0 : index
    %606 = vector.load %arg9[%c0_153, %c0_154] : memref<8x38xf32, #tpu.memory_space<vmem>>, vector<8x38xf32>
    %607 = vector.extract_strided_slice %606 {offsets = [0, 0], sizes = [8, 32], strides = [1, 1]} : vector<8x38xf32> to vector<8x32xf32>
    %608 = vector.extract_strided_slice %606 {offsets = [0, 1], sizes = [8, 32], strides = [1, 1]} : vector<8x38xf32> to vector<8x32xf32>
    %609 = vector.extract_strided_slice %606 {offsets = [0, 2], sizes = [8, 32], strides = [1, 1]} : vector<8x38xf32> to vector<8x32xf32>
    %610 = vector.extract_strided_slice %606 {offsets = [0, 3], sizes = [8, 32], strides = [1, 1]} : vector<8x38xf32> to vector<8x32xf32>
    %611 = vector.extract_strided_slice %606 {offsets = [0, 4], sizes = [8, 32], strides = [1, 1]} : vector<8x38xf32> to vector<8x32xf32>
    %612 = vector.extract_strided_slice %606 {offsets = [0, 5], sizes = [8, 32], strides = [1, 1]} : vector<8x38xf32> to vector<8x32xf32>
    %613 = vector.extract_strided_slice %606 {offsets = [0, 6], sizes = [8, 32], strides = [1, 1]} : vector<8x38xf32> to vector<8x32xf32>
    %cst_155 = arith.constant 0.0187789276 : f32
    %614 = vector.broadcast %cst_155 : f32 to vector<8x32xf32>
    %615 = arith.mulf %614, %612 : vector<8x32xf32>
    %cst_156 = arith.constant 0.00405793311 : f32
    %616 = vector.broadcast %cst_156 : f32 to vector<8x32xf32>
    %617 = arith.mulf %616, %613 : vector<8x32xf32>
    %cst_157 = arith.constant -0.115314752 : f32
    %618 = vector.broadcast %cst_157 : f32 to vector<8x32xf32>
    %619 = arith.mulf %618, %611 : vector<8x32xf32>
    %620 = arith.addf %615, %619 : vector<8x32xf32>
    %cst_158 = arith.constant -0.0510869287 : f32
    %621 = vector.broadcast %cst_158 : f32 to vector<8x32xf32>
    %622 = arith.mulf %621, %612 : vector<8x32xf32>
    %623 = arith.addf %617, %622 : vector<8x32xf32>
    %cst_159 = arith.constant 0.886419594 : f32
    %624 = vector.broadcast %cst_159 : f32 to vector<8x32xf32>
    %625 = arith.mulf %624, %610 : vector<8x32xf32>
    %626 = arith.addf %620, %625 : vector<8x32xf32>
    %cst_160 = arith.constant 0.257145226 : f32
    %627 = vector.broadcast %cst_160 : f32 to vector<8x32xf32>
    %628 = arith.mulf %627, %611 : vector<8x32xf32>
    %629 = arith.addf %623, %628 : vector<8x32xf32>
    %cst_161 = arith.constant 0.257145226 : f32
    %630 = vector.broadcast %cst_161 : f32 to vector<8x32xf32>
    %631 = arith.mulf %630, %609 : vector<8x32xf32>
    %632 = arith.addf %626, %631 : vector<8x32xf32>
    %cst_162 = arith.constant 0.886419594 : f32
    %633 = vector.broadcast %cst_162 : f32 to vector<8x32xf32>
    %634 = arith.mulf %633, %610 : vector<8x32xf32>
    %635 = arith.addf %629, %634 : vector<8x32xf32>
    %cst_163 = arith.constant -0.0510869287 : f32
    %636 = vector.broadcast %cst_163 : f32 to vector<8x32xf32>
    %637 = arith.mulf %636, %608 : vector<8x32xf32>
    %638 = arith.addf %632, %637 : vector<8x32xf32>
    %cst_164 = arith.constant -0.115314752 : f32
    %639 = vector.broadcast %cst_164 : f32 to vector<8x32xf32>
    %640 = arith.mulf %639, %609 : vector<8x32xf32>
    %641 = arith.addf %635, %640 : vector<8x32xf32>
    %cst_165 = arith.constant 0.00405793311 : f32
    %642 = vector.broadcast %cst_165 : f32 to vector<8x32xf32>
    %643 = arith.mulf %642, %607 : vector<8x32xf32>
    %644 = arith.addf %638, %643 : vector<8x32xf32>
    %cst_166 = arith.constant 0.0187789276 : f32
    %645 = vector.broadcast %cst_166 : f32 to vector<8x32xf32>
    %646 = arith.mulf %645, %608 : vector<8x32xf32>
    %647 = arith.addf %641, %646 : vector<8x32xf32>
    %648 = vector.broadcast %594 : vector<8x1xf32> to vector<8x32xf32>
    %649 = arith.mulf %644, %648 : vector<8x32xf32>
    %650 = math.sin %649 : vector<8x32xf32>
    %651 = arith.mulf %650, %650 : vector<8x32xf32>
    %652 = vector.broadcast %596 : vector<8x1xf32> to vector<8x32xf32>
    %653 = arith.mulf %652, %651 : vector<8x32xf32>
    %654 = arith.addf %644, %653 : vector<8x32xf32>
    %655 = vector.broadcast %594 : vector<8x1xf32> to vector<8x32xf32>
    %656 = arith.mulf %647, %655 : vector<8x32xf32>
    %657 = math.sin %656 : vector<8x32xf32>
    %658 = arith.mulf %657, %657 : vector<8x32xf32>
    %659 = vector.broadcast %596 : vector<8x1xf32> to vector<8x32xf32>
    %660 = arith.mulf %659, %658 : vector<8x32xf32>
    %661 = arith.addf %647, %660 : vector<8x32xf32>
    %662 = vector.extract_strided_slice %654 {offsets = [0, 0], sizes = [8, 1], strides = [1, 1]} : vector<8x32xf32> to vector<8x1xf32>
    %663 = vector.shape_cast %662 : vector<8x1xf32> to vector<8x1xf32>
    %664 = vector.broadcast %663 : vector<8x1xf32> to vector<8x3xf32>
    %c0_167 = arith.constant 0 : index
    %c0_168 = arith.constant 0 : index
    %665 = vector.load %arg10[%c0_167, %c0_168] : memref<8x37xf32, #tpu.memory_space<vmem>>, vector<8x3xf32>
    tpu.vector_store %arg10[%c0_167, %c0_168], %664 {strides = array<i32>} : memref<8x37xf32, #tpu.memory_space<vmem>>, vector<8x3xf32>,
    %c0_169 = arith.constant 0 : index
    %c3_170 = arith.constant 3 : index
    %666 = vector.load %arg10[%c0_169, %c3_170] : memref<8x37xf32, #tpu.memory_space<vmem>>, vector<8x32xf32>
    tpu.vector_store %arg10[%c0_169, %c3_170], %661 {strides = array<i32>} : memref<8x37xf32, #tpu.memory_space<vmem>>, vector<8x32xf32>,
    %667 = vector.extract_strided_slice %661 {offsets = [0, 31], sizes = [8, 1], strides = [1, 1]} : vector<8x32xf32> to vector<8x1xf32>
    %668 = vector.shape_cast %667 : vector<8x1xf32> to vector<8x1xf32>
    %669 = vector.broadcast %668 : vector<8x1xf32> to vector<8x2xf32>
    %c0_171 = arith.constant 0 : index
    %c35_172 = arith.constant 35 : index
    %670 = vector.load %arg10[%c0_171, %c35_172] : memref<8x37xf32, #tpu.memory_space<vmem>>, vector<8x2xf32>
    tpu.vector_store %arg10[%c0_171, %c35_172], %669 {strides = array<i32>} : memref<8x37xf32, #tpu.memory_space<vmem>>, vector<8x2xf32>,
    %671 = vector.extract_strided_slice %654 {offsets = [0, 0], sizes = [8, 1], strides = [1, 1]} : vector<8x32xf32> to vector<8x1xf32>
    %672 = vector.shape_cast %671 : vector<8x1xf32> to vector<8x1xf32>
    %673 = vector.broadcast %672 : vector<8x1xf32> to vector<8x2xf32>
    %c0_173 = arith.constant 0 : index
    %c0_174 = arith.constant 0 : index
    %674 = vector.load %arg11[%c0_173, %c0_174] : memref<8x37xf32, #tpu.memory_space<vmem>>, vector<8x2xf32>
    tpu.vector_store %arg11[%c0_173, %c0_174], %673 {strides = array<i32>} : memref<8x37xf32, #tpu.memory_space<vmem>>, vector<8x2xf32>,
    %c0_175 = arith.constant 0 : index
    %c2_176 = arith.constant 2 : index
    %675 = vector.load %arg11[%c0_175, %c2_176] : memref<8x37xf32, #tpu.memory_space<vmem>>, vector<8x32xf32>
    tpu.vector_store %arg11[%c0_175, %c2_176], %654 {strides = array<i32>} : memref<8x37xf32, #tpu.memory_space<vmem>>, vector<8x32xf32>,
    %676 = vector.extract_strided_slice %661 {offsets = [0, 31], sizes = [8, 1], strides = [1, 1]} : vector<8x32xf32> to vector<8x1xf32>
    %677 = vector.shape_cast %676 : vector<8x1xf32> to vector<8x1xf32>
    %678 = vector.broadcast %677 : vector<8x1xf32> to vector<8x3xf32>
    %c0_177 = arith.constant 0 : index
    %c34_178 = arith.constant 34 : index
    %679 = vector.load %arg11[%c0_177, %c34_178] : memref<8x37xf32, #tpu.memory_space<vmem>>, vector<8x3xf32>
    tpu.vector_store %arg11[%c0_177, %c34_178], %678 {strides = array<i32>} : memref<8x37xf32, #tpu.memory_space<vmem>>, vector<8x3xf32>,
    %c0_179 = arith.constant 0 : index
    %c0_180 = arith.constant 0 : index
    %680 = vector.load %arg10[%c0_179, %c0_180] : memref<8x37xf32, #tpu.memory_space<vmem>>, vector<8x37xf32>
    %c0_181 = arith.constant 0 : index
    %c0_182 = arith.constant 0 : index
    %681 = vector.load %arg11[%c0_181, %c0_182] : memref<8x37xf32, #tpu.memory_space<vmem>>, vector<8x37xf32>
    %682 = vector.extract_strided_slice %680 {offsets = [0, 0], sizes = [8, 32], strides = [1, 1]} : vector<8x37xf32> to vector<8x32xf32>
    %cst_183 = arith.constant 0.00202896656 : f32
    %683 = vector.broadcast %cst_183 : f32 to vector<8x32xf32>
    %684 = arith.mulf %683, %682 : vector<8x32xf32>
    %685 = vector.extract_strided_slice %681 {offsets = [0, 0], sizes = [8, 32], strides = [1, 1]} : vector<8x37xf32> to vector<8x32xf32>
    %cst_184 = arith.constant 0.00938946381 : f32
    %686 = vector.broadcast %cst_184 : f32 to vector<8x32xf32>
    %687 = arith.mulf %686, %685 : vector<8x32xf32>
    %688 = arith.addf %684, %687 : vector<8x32xf32>
    %689 = vector.extract_strided_slice %680 {offsets = [0, 1], sizes = [8, 32], strides = [1, 1]} : vector<8x37xf32> to vector<8x32xf32>
    %cst_185 = arith.constant -0.0255434643 : f32
    %690 = vector.broadcast %cst_185 : f32 to vector<8x32xf32>
    %691 = arith.mulf %690, %689 : vector<8x32xf32>
    %692 = arith.addf %688, %691 : vector<8x32xf32>
    %693 = vector.extract_strided_slice %681 {offsets = [0, 1], sizes = [8, 32], strides = [1, 1]} : vector<8x37xf32> to vector<8x32xf32>
    %cst_186 = arith.constant -0.0576573759 : f32
    %694 = vector.broadcast %cst_186 : f32 to vector<8x32xf32>
    %695 = arith.mulf %694, %693 : vector<8x32xf32>
    %696 = arith.addf %692, %695 : vector<8x32xf32>
    %697 = vector.extract_strided_slice %680 {offsets = [0, 2], sizes = [8, 32], strides = [1, 1]} : vector<8x37xf32> to vector<8x32xf32>
    %cst_187 = arith.constant 0.128572613 : f32
    %698 = vector.broadcast %cst_187 : f32 to vector<8x32xf32>
    %699 = arith.mulf %698, %697 : vector<8x32xf32>
    %700 = arith.addf %696, %699 : vector<8x32xf32>
    %701 = vector.extract_strided_slice %681 {offsets = [0, 2], sizes = [8, 32], strides = [1, 1]} : vector<8x37xf32> to vector<8x32xf32>
    %cst_188 = arith.constant 0.443209797 : f32
    %702 = vector.broadcast %cst_188 : f32 to vector<8x32xf32>
    %703 = arith.mulf %702, %701 : vector<8x32xf32>
    %704 = arith.addf %700, %703 : vector<8x32xf32>
    %705 = vector.extract_strided_slice %680 {offsets = [0, 3], sizes = [8, 32], strides = [1, 1]} : vector<8x37xf32> to vector<8x32xf32>
    %cst_189 = arith.constant 0.443209797 : f32
    %706 = vector.broadcast %cst_189 : f32 to vector<8x32xf32>
    %707 = arith.mulf %706, %705 : vector<8x32xf32>
    %708 = arith.addf %704, %707 : vector<8x32xf32>
    %709 = vector.extract_strided_slice %681 {offsets = [0, 3], sizes = [8, 32], strides = [1, 1]} : vector<8x37xf32> to vector<8x32xf32>
    %cst_190 = arith.constant 0.128572613 : f32
    %710 = vector.broadcast %cst_190 : f32 to vector<8x32xf32>
    %711 = arith.mulf %710, %709 : vector<8x32xf32>
    %712 = arith.addf %708, %711 : vector<8x32xf32>
    %713 = vector.extract_strided_slice %680 {offsets = [0, 4], sizes = [8, 32], strides = [1, 1]} : vector<8x37xf32> to vector<8x32xf32>
    %cst_191 = arith.constant -0.0576573759 : f32
    %714 = vector.broadcast %cst_191 : f32 to vector<8x32xf32>
    %715 = arith.mulf %714, %713 : vector<8x32xf32>
    %716 = arith.addf %712, %715 : vector<8x32xf32>
    %717 = vector.extract_strided_slice %681 {offsets = [0, 4], sizes = [8, 32], strides = [1, 1]} : vector<8x37xf32> to vector<8x32xf32>
    %cst_192 = arith.constant -0.0255434643 : f32
    %718 = vector.broadcast %cst_192 : f32 to vector<8x32xf32>
    %719 = arith.mulf %718, %717 : vector<8x32xf32>
    %720 = arith.addf %716, %719 : vector<8x32xf32>
    %721 = vector.extract_strided_slice %680 {offsets = [0, 5], sizes = [8, 32], strides = [1, 1]} : vector<8x37xf32> to vector<8x32xf32>
    %cst_193 = arith.constant 0.00938946381 : f32
    %722 = vector.broadcast %cst_193 : f32 to vector<8x32xf32>
    %723 = arith.mulf %722, %721 : vector<8x32xf32>
    %724 = arith.addf %720, %723 : vector<8x32xf32>
    %725 = vector.extract_strided_slice %681 {offsets = [0, 5], sizes = [8, 32], strides = [1, 1]} : vector<8x37xf32> to vector<8x32xf32>
    %cst_194 = arith.constant 0.00202896656 : f32
    %726 = vector.broadcast %cst_194 : f32 to vector<8x32xf32>
    %727 = arith.mulf %726, %725 : vector<8x32xf32>
    %728 = arith.addf %724, %727 : vector<8x32xf32>
    %c1_195 = arith.constant 1 : index
    %c0_196 = arith.constant 0 : index
    %c0_197 = arith.constant 0 : index
    %729 = vector.load %arg2[%c1_195, %c0_196, %c0_197] : memref<3x8x24xf32, #tpu.memory_space<vmem>>, vector<1x8x24xf32>
    %730 = vector.shape_cast %729 : vector<1x8x24xf32> to vector<8x24xf32>
    %c1_198 = arith.constant 1 : index
    %c0_199 = arith.constant 0 : index
    %c0_200 = arith.constant 0 : index
    %731 = vector.load %arg3[%c1_198, %c0_199, %c0_200] : memref<3x8x1xf32, #tpu.memory_space<vmem>>, vector<1x8x1xf32>
    %732 = vector.shape_cast %731 : vector<1x8x1xf32> to vector<8x1xf32>
    %cst_201 = arith.constant 0.000000e+00 : f32
    %733 = vector.broadcast %cst_201 : f32 to vector<8x3xf32>
    %c0_202 = arith.constant 0 : index
    %c0_203 = arith.constant 0 : index
    %734 = vector.load %arg12[%c0_202, %c0_203] : memref<24x32xf32, #tpu.memory_space<vmem>>, vector<8x3xf32>
    tpu.vector_store %arg12[%c0_202, %c0_203], %733 {strides = array<i32>} : memref<24x32xf32, #tpu.memory_space<vmem>>, vector<8x3xf32>,
    %735 = vector.extract_strided_slice %728 {offsets = [0, 0], sizes = [8, 29], strides = [1, 1]} : vector<8x32xf32> to vector<8x29xf32>
    %c0_204 = arith.constant 0 : index
    %c3_205 = arith.constant 3 : index
    %736 = vector.load %arg12[%c0_204, %c3_205] : memref<24x32xf32, #tpu.memory_space<vmem>>, vector<8x29xf32>
    tpu.vector_store %arg12[%c0_204, %c3_205], %735 {strides = array<i32>} : memref<24x32xf32, #tpu.memory_space<vmem>>, vector<8x29xf32>,
    %c8_206 = arith.constant 8 : index
    %c0_207 = arith.constant 0 : index
    %737 = vector.load %arg12[%c8_206, %c0_207] : memref<24x32xf32, #tpu.memory_space<vmem>>, vector<8x32xf32>
    tpu.vector_store %arg12[%c8_206, %c0_207], %728 {strides = array<i32>} : memref<24x32xf32, #tpu.memory_space<vmem>>, vector<8x32xf32>,
    %738 = vector.extract_strided_slice %728 {offsets = [0, 3], sizes = [8, 29], strides = [1, 1]} : vector<8x32xf32> to vector<8x29xf32>
    %c16_208 = arith.constant 16 : index
    %c0_209 = arith.constant 0 : index
    %739 = vector.load %arg12[%c16_208, %c0_209] : memref<24x32xf32, #tpu.memory_space<vmem>>, vector<8x29xf32>
    tpu.vector_store %arg12[%c16_208, %c0_209], %738 {strides = array<i32>} : memref<24x32xf32, #tpu.memory_space<vmem>>, vector<8x29xf32>,
    %cst_210 = arith.constant 0.000000e+00 : f32
    %740 = vector.broadcast %cst_210 : f32 to vector<8x3xf32>
    %c16_211 = arith.constant 16 : index
    %c29 = arith.constant 29 : index
    %741 = vector.load %arg12[%c16_211, %c29] : memref<24x32xf32, #tpu.memory_space<vmem>>, vector<8x3xf32>
    tpu.vector_store %arg12[%c16_211, %c29], %740 {strides = array<i32>} : memref<24x32xf32, #tpu.memory_space<vmem>>, vector<8x3xf32>,
    %c0_212 = arith.constant 0 : index
    %c0_213 = arith.constant 0 : index
    %742 = vector.load %arg12[%c0_212, %c0_213] : memref<24x32xf32, #tpu.memory_space<vmem>>, vector<24x32xf32>
    %743 = vector.extract_strided_slice %730 {offsets = [0, 0], sizes = [8, 1], strides = [1, 1]} : vector<8x24xf32> to vector<8x1xf32>
    %744 = vector.extract_strided_slice %742 {offsets = [0, 0], sizes = [1, 32], strides = [1, 1]} : vector<24x32xf32> to vector<1x32xf32>
    %745 = vector.broadcast %743 : vector<8x1xf32> to vector<8x32xf32>
    %746 = vector.broadcast %744 : vector<1x32xf32> to vector<8x32xf32>
    %747 = arith.mulf %745, %746 : vector<8x32xf32>
    %748 = vector.extract_strided_slice %730 {offsets = [0, 1], sizes = [8, 1], strides = [1, 1]} : vector<8x24xf32> to vector<8x1xf32>
    %749 = vector.extract_strided_slice %742 {offsets = [1, 0], sizes = [1, 32], strides = [1, 1]} : vector<24x32xf32> to vector<1x32xf32>
    %750 = vector.broadcast %748 : vector<8x1xf32> to vector<8x32xf32>
    %751 = vector.broadcast %749 : vector<1x32xf32> to vector<8x32xf32>
    %752 = arith.mulf %750, %751 : vector<8x32xf32>
    %753 = arith.addf %747, %752 : vector<8x32xf32>
    %754 = vector.extract_strided_slice %730 {offsets = [0, 2], sizes = [8, 1], strides = [1, 1]} : vector<8x24xf32> to vector<8x1xf32>
    %755 = vector.extract_strided_slice %742 {offsets = [2, 0], sizes = [1, 32], strides = [1, 1]} : vector<24x32xf32> to vector<1x32xf32>
    %756 = vector.broadcast %754 : vector<8x1xf32> to vector<8x32xf32>
    %757 = vector.broadcast %755 : vector<1x32xf32> to vector<8x32xf32>
    %758 = arith.mulf %756, %757 : vector<8x32xf32>
    %759 = arith.addf %753, %758 : vector<8x32xf32>
    %760 = vector.extract_strided_slice %730 {offsets = [0, 3], sizes = [8, 1], strides = [1, 1]} : vector<8x24xf32> to vector<8x1xf32>
    %761 = vector.extract_strided_slice %742 {offsets = [3, 0], sizes = [1, 32], strides = [1, 1]} : vector<24x32xf32> to vector<1x32xf32>
    %762 = vector.broadcast %760 : vector<8x1xf32> to vector<8x32xf32>
    %763 = vector.broadcast %761 : vector<1x32xf32> to vector<8x32xf32>
    %764 = arith.mulf %762, %763 : vector<8x32xf32>
    %765 = arith.addf %759, %764 : vector<8x32xf32>
    %766 = vector.extract_strided_slice %730 {offsets = [0, 4], sizes = [8, 1], strides = [1, 1]} : vector<8x24xf32> to vector<8x1xf32>
    %767 = vector.extract_strided_slice %742 {offsets = [4, 0], sizes = [1, 32], strides = [1, 1]} : vector<24x32xf32> to vector<1x32xf32>
    %768 = vector.broadcast %766 : vector<8x1xf32> to vector<8x32xf32>
    %769 = vector.broadcast %767 : vector<1x32xf32> to vector<8x32xf32>
    %770 = arith.mulf %768, %769 : vector<8x32xf32>
    %771 = arith.addf %765, %770 : vector<8x32xf32>
    %772 = vector.extract_strided_slice %730 {offsets = [0, 5], sizes = [8, 1], strides = [1, 1]} : vector<8x24xf32> to vector<8x1xf32>
    %773 = vector.extract_strided_slice %742 {offsets = [5, 0], sizes = [1, 32], strides = [1, 1]} : vector<24x32xf32> to vector<1x32xf32>
    %774 = vector.broadcast %772 : vector<8x1xf32> to vector<8x32xf32>
    %775 = vector.broadcast %773 : vector<1x32xf32> to vector<8x32xf32>
    %776 = arith.mulf %774, %775 : vector<8x32xf32>
    %777 = arith.addf %771, %776 : vector<8x32xf32>
    %778 = vector.extract_strided_slice %730 {offsets = [0, 6], sizes = [8, 1], strides = [1, 1]} : vector<8x24xf32> to vector<8x1xf32>
    %779 = vector.extract_strided_slice %742 {offsets = [6, 0], sizes = [1, 32], strides = [1, 1]} : vector<24x32xf32> to vector<1x32xf32>
    %780 = vector.broadcast %778 : vector<8x1xf32> to vector<8x32xf32>
    %781 = vector.broadcast %779 : vector<1x32xf32> to vector<8x32xf32>
    %782 = arith.mulf %780, %781 : vector<8x32xf32>
    %783 = arith.addf %777, %782 : vector<8x32xf32>
    %784 = vector.extract_strided_slice %730 {offsets = [0, 7], sizes = [8, 1], strides = [1, 1]} : vector<8x24xf32> to vector<8x1xf32>
    %785 = vector.extract_strided_slice %742 {offsets = [7, 0], sizes = [1, 32], strides = [1, 1]} : vector<24x32xf32> to vector<1x32xf32>
    %786 = vector.broadcast %784 : vector<8x1xf32> to vector<8x32xf32>
    %787 = vector.broadcast %785 : vector<1x32xf32> to vector<8x32xf32>
    %788 = arith.mulf %786, %787 : vector<8x32xf32>
    %789 = arith.addf %783, %788 : vector<8x32xf32>
    %790 = vector.extract_strided_slice %730 {offsets = [0, 8], sizes = [8, 1], strides = [1, 1]} : vector<8x24xf32> to vector<8x1xf32>
    %791 = vector.extract_strided_slice %742 {offsets = [8, 0], sizes = [1, 32], strides = [1, 1]} : vector<24x32xf32> to vector<1x32xf32>
    %792 = vector.broadcast %790 : vector<8x1xf32> to vector<8x32xf32>
    %793 = vector.broadcast %791 : vector<1x32xf32> to vector<8x32xf32>
    %794 = arith.mulf %792, %793 : vector<8x32xf32>
    %795 = vector.extract_strided_slice %730 {offsets = [0, 9], sizes = [8, 1], strides = [1, 1]} : vector<8x24xf32> to vector<8x1xf32>
    %796 = vector.extract_strided_slice %742 {offsets = [9, 0], sizes = [1, 32], strides = [1, 1]} : vector<24x32xf32> to vector<1x32xf32>
    %797 = vector.broadcast %795 : vector<8x1xf32> to vector<8x32xf32>
    %798 = vector.broadcast %796 : vector<1x32xf32> to vector<8x32xf32>
    %799 = arith.mulf %797, %798 : vector<8x32xf32>
    %800 = arith.addf %794, %799 : vector<8x32xf32>
    %801 = vector.extract_strided_slice %730 {offsets = [0, 10], sizes = [8, 1], strides = [1, 1]} : vector<8x24xf32> to vector<8x1xf32>
    %802 = vector.extract_strided_slice %742 {offsets = [10, 0], sizes = [1, 32], strides = [1, 1]} : vector<24x32xf32> to vector<1x32xf32>
    %803 = vector.broadcast %801 : vector<8x1xf32> to vector<8x32xf32>
    %804 = vector.broadcast %802 : vector<1x32xf32> to vector<8x32xf32>
    %805 = arith.mulf %803, %804 : vector<8x32xf32>
    %806 = arith.addf %800, %805 : vector<8x32xf32>
    %807 = vector.extract_strided_slice %730 {offsets = [0, 11], sizes = [8, 1], strides = [1, 1]} : vector<8x24xf32> to vector<8x1xf32>
    %808 = vector.extract_strided_slice %742 {offsets = [11, 0], sizes = [1, 32], strides = [1, 1]} : vector<24x32xf32> to vector<1x32xf32>
    %809 = vector.broadcast %807 : vector<8x1xf32> to vector<8x32xf32>
    %810 = vector.broadcast %808 : vector<1x32xf32> to vector<8x32xf32>
    %811 = arith.mulf %809, %810 : vector<8x32xf32>
    %812 = arith.addf %806, %811 : vector<8x32xf32>
    %813 = vector.extract_strided_slice %730 {offsets = [0, 12], sizes = [8, 1], strides = [1, 1]} : vector<8x24xf32> to vector<8x1xf32>
    %814 = vector.extract_strided_slice %742 {offsets = [12, 0], sizes = [1, 32], strides = [1, 1]} : vector<24x32xf32> to vector<1x32xf32>
    %815 = vector.broadcast %813 : vector<8x1xf32> to vector<8x32xf32>
    %816 = vector.broadcast %814 : vector<1x32xf32> to vector<8x32xf32>
    %817 = arith.mulf %815, %816 : vector<8x32xf32>
    %818 = arith.addf %812, %817 : vector<8x32xf32>
    %819 = vector.extract_strided_slice %730 {offsets = [0, 13], sizes = [8, 1], strides = [1, 1]} : vector<8x24xf32> to vector<8x1xf32>
    %820 = vector.extract_strided_slice %742 {offsets = [13, 0], sizes = [1, 32], strides = [1, 1]} : vector<24x32xf32> to vector<1x32xf32>
    %821 = vector.broadcast %819 : vector<8x1xf32> to vector<8x32xf32>
    %822 = vector.broadcast %820 : vector<1x32xf32> to vector<8x32xf32>
    %823 = arith.mulf %821, %822 : vector<8x32xf32>
    %824 = arith.addf %818, %823 : vector<8x32xf32>
    %825 = vector.extract_strided_slice %730 {offsets = [0, 14], sizes = [8, 1], strides = [1, 1]} : vector<8x24xf32> to vector<8x1xf32>
    %826 = vector.extract_strided_slice %742 {offsets = [14, 0], sizes = [1, 32], strides = [1, 1]} : vector<24x32xf32> to vector<1x32xf32>
    %827 = vector.broadcast %825 : vector<8x1xf32> to vector<8x32xf32>
    %828 = vector.broadcast %826 : vector<1x32xf32> to vector<8x32xf32>
    %829 = arith.mulf %827, %828 : vector<8x32xf32>
    %830 = arith.addf %824, %829 : vector<8x32xf32>
    %831 = vector.extract_strided_slice %730 {offsets = [0, 15], sizes = [8, 1], strides = [1, 1]} : vector<8x24xf32> to vector<8x1xf32>
    %832 = vector.extract_strided_slice %742 {offsets = [15, 0], sizes = [1, 32], strides = [1, 1]} : vector<24x32xf32> to vector<1x32xf32>
    %833 = vector.broadcast %831 : vector<8x1xf32> to vector<8x32xf32>
    %834 = vector.broadcast %832 : vector<1x32xf32> to vector<8x32xf32>
    %835 = arith.mulf %833, %834 : vector<8x32xf32>
    %836 = arith.addf %830, %835 : vector<8x32xf32>
    %837 = vector.extract_strided_slice %730 {offsets = [0, 16], sizes = [8, 1], strides = [1, 1]} : vector<8x24xf32> to vector<8x1xf32>
    %838 = vector.extract_strided_slice %742 {offsets = [16, 0], sizes = [1, 32], strides = [1, 1]} : vector<24x32xf32> to vector<1x32xf32>
    %839 = vector.broadcast %837 : vector<8x1xf32> to vector<8x32xf32>
    %840 = vector.broadcast %838 : vector<1x32xf32> to vector<8x32xf32>
    %841 = arith.mulf %839, %840 : vector<8x32xf32>
    %842 = vector.extract_strided_slice %730 {offsets = [0, 17], sizes = [8, 1], strides = [1, 1]} : vector<8x24xf32> to vector<8x1xf32>
    %843 = vector.extract_strided_slice %742 {offsets = [17, 0], sizes = [1, 32], strides = [1, 1]} : vector<24x32xf32> to vector<1x32xf32>
    %844 = vector.broadcast %842 : vector<8x1xf32> to vector<8x32xf32>
    %845 = vector.broadcast %843 : vector<1x32xf32> to vector<8x32xf32>
    %846 = arith.mulf %844, %845 : vector<8x32xf32>
    %847 = arith.addf %841, %846 : vector<8x32xf32>
    %848 = vector.extract_strided_slice %730 {offsets = [0, 18], sizes = [8, 1], strides = [1, 1]} : vector<8x24xf32> to vector<8x1xf32>
    %849 = vector.extract_strided_slice %742 {offsets = [18, 0], sizes = [1, 32], strides = [1, 1]} : vector<24x32xf32> to vector<1x32xf32>
    %850 = vector.broadcast %848 : vector<8x1xf32> to vector<8x32xf32>
    %851 = vector.broadcast %849 : vector<1x32xf32> to vector<8x32xf32>
    %852 = arith.mulf %850, %851 : vector<8x32xf32>
    %853 = arith.addf %847, %852 : vector<8x32xf32>
    %854 = vector.extract_strided_slice %730 {offsets = [0, 19], sizes = [8, 1], strides = [1, 1]} : vector<8x24xf32> to vector<8x1xf32>
    %855 = vector.extract_strided_slice %742 {offsets = [19, 0], sizes = [1, 32], strides = [1, 1]} : vector<24x32xf32> to vector<1x32xf32>
    %856 = vector.broadcast %854 : vector<8x1xf32> to vector<8x32xf32>
    %857 = vector.broadcast %855 : vector<1x32xf32> to vector<8x32xf32>
    %858 = arith.mulf %856, %857 : vector<8x32xf32>
    %859 = arith.addf %853, %858 : vector<8x32xf32>
    %860 = vector.extract_strided_slice %730 {offsets = [0, 20], sizes = [8, 1], strides = [1, 1]} : vector<8x24xf32> to vector<8x1xf32>
    %861 = vector.extract_strided_slice %742 {offsets = [20, 0], sizes = [1, 32], strides = [1, 1]} : vector<24x32xf32> to vector<1x32xf32>
    %862 = vector.broadcast %860 : vector<8x1xf32> to vector<8x32xf32>
    %863 = vector.broadcast %861 : vector<1x32xf32> to vector<8x32xf32>
    %864 = arith.mulf %862, %863 : vector<8x32xf32>
    %865 = arith.addf %859, %864 : vector<8x32xf32>
    %866 = vector.extract_strided_slice %730 {offsets = [0, 21], sizes = [8, 1], strides = [1, 1]} : vector<8x24xf32> to vector<8x1xf32>
    %867 = vector.extract_strided_slice %742 {offsets = [21, 0], sizes = [1, 32], strides = [1, 1]} : vector<24x32xf32> to vector<1x32xf32>
    %868 = vector.broadcast %866 : vector<8x1xf32> to vector<8x32xf32>
    %869 = vector.broadcast %867 : vector<1x32xf32> to vector<8x32xf32>
    %870 = arith.mulf %868, %869 : vector<8x32xf32>
    %871 = arith.addf %865, %870 : vector<8x32xf32>
    %872 = vector.extract_strided_slice %730 {offsets = [0, 22], sizes = [8, 1], strides = [1, 1]} : vector<8x24xf32> to vector<8x1xf32>
    %873 = vector.extract_strided_slice %742 {offsets = [22, 0], sizes = [1, 32], strides = [1, 1]} : vector<24x32xf32> to vector<1x32xf32>
    %874 = vector.broadcast %872 : vector<8x1xf32> to vector<8x32xf32>
    %875 = vector.broadcast %873 : vector<1x32xf32> to vector<8x32xf32>
    %876 = arith.mulf %874, %875 : vector<8x32xf32>
    %877 = arith.addf %871, %876 : vector<8x32xf32>
    %878 = vector.extract_strided_slice %730 {offsets = [0, 23], sizes = [8, 1], strides = [1, 1]} : vector<8x24xf32> to vector<8x1xf32>
    %879 = vector.extract_strided_slice %742 {offsets = [23, 0], sizes = [1, 32], strides = [1, 1]} : vector<24x32xf32> to vector<1x32xf32>
    %880 = vector.broadcast %878 : vector<8x1xf32> to vector<8x32xf32>
    %881 = vector.broadcast %879 : vector<1x32xf32> to vector<8x32xf32>
    %882 = arith.mulf %880, %881 : vector<8x32xf32>
    %883 = arith.addf %877, %882 : vector<8x32xf32>
    %884 = arith.addf %789, %836 : vector<8x32xf32>
    %885 = arith.addf %884, %883 : vector<8x32xf32>
    %886 = vector.broadcast %732 : vector<8x1xf32> to vector<8x32xf32>
    %887 = arith.addf %885, %886 : vector<8x32xf32>
    %c3_214 = arith.constant 3 : index
    %c0_215 = arith.constant 0 : index
    %c0_216 = arith.constant 0 : index
    %888 = vector.load %arg6[%c3_214, %c0_215, %c0_216] : memref<6x8x1xf32, #tpu.memory_space<vmem>>, vector<1x8x1xf32>
    %889 = vector.shape_cast %888 : vector<1x8x1xf32> to vector<8x1xf32>
    %c3_217 = arith.constant 3 : index
    %c0_218 = arith.constant 0 : index
    %c0_219 = arith.constant 0 : index
    %890 = vector.load %arg7[%c3_217, %c0_218, %c0_219] : memref<6x8x1xf32, #tpu.memory_space<vmem>>, vector<1x8x1xf32>
    %891 = vector.shape_cast %890 : vector<1x8x1xf32> to vector<8x1xf32>
    %892 = vector.extract_strided_slice %887 {offsets = [0, 0], sizes = [8, 1], strides = [1, 1]} : vector<8x32xf32> to vector<8x1xf32>
    %893 = vector.shape_cast %892 : vector<8x1xf32> to vector<8x1xf32>
    %894 = vector.broadcast %893 : vector<8x1xf32> to vector<8x3xf32>
    %c0_220 = arith.constant 0 : index
    %c0_221 = arith.constant 0 : index
    %895 = vector.load %arg9[%c0_220, %c0_221] : memref<8x38xf32, #tpu.memory_space<vmem>>, vector<8x3xf32>
    tpu.vector_store %arg9[%c0_220, %c0_221], %894 {strides = array<i32>} : memref<8x38xf32, #tpu.memory_space<vmem>>, vector<8x3xf32>,
    %c0_222 = arith.constant 0 : index
    %c3_223 = arith.constant 3 : index
    %896 = vector.load %arg9[%c0_222, %c3_223] : memref<8x38xf32, #tpu.memory_space<vmem>>, vector<8x32xf32>
    tpu.vector_store %arg9[%c0_222, %c3_223], %887 {strides = array<i32>} : memref<8x38xf32, #tpu.memory_space<vmem>>, vector<8x32xf32>,
    %897 = vector.extract_strided_slice %887 {offsets = [0, 31], sizes = [8, 1], strides = [1, 1]} : vector<8x32xf32> to vector<8x1xf32>
    %898 = vector.shape_cast %897 : vector<8x1xf32> to vector<8x1xf32>
    %899 = vector.broadcast %898 : vector<8x1xf32> to vector<8x3xf32>
    %c0_224 = arith.constant 0 : index
    %c35_225 = arith.constant 35 : index
    %900 = vector.load %arg9[%c0_224, %c35_225] : memref<8x38xf32, #tpu.memory_space<vmem>>, vector<8x3xf32>
    tpu.vector_store %arg9[%c0_224, %c35_225], %899 {strides = array<i32>} : memref<8x38xf32, #tpu.memory_space<vmem>>, vector<8x3xf32>,
    %c0_226 = arith.constant 0 : index
    %c0_227 = arith.constant 0 : index
    %901 = vector.load %arg9[%c0_226, %c0_227] : memref<8x38xf32, #tpu.memory_space<vmem>>, vector<8x38xf32>
    %902 = vector.extract_strided_slice %901 {offsets = [0, 0], sizes = [8, 32], strides = [1, 1]} : vector<8x38xf32> to vector<8x32xf32>
    %903 = vector.extract_strided_slice %901 {offsets = [0, 1], sizes = [8, 32], strides = [1, 1]} : vector<8x38xf32> to vector<8x32xf32>
    %904 = vector.extract_strided_slice %901 {offsets = [0, 2], sizes = [8, 32], strides = [1, 1]} : vector<8x38xf32> to vector<8x32xf32>
    %905 = vector.extract_strided_slice %901 {offsets = [0, 3], sizes = [8, 32], strides = [1, 1]} : vector<8x38xf32> to vector<8x32xf32>
    %906 = vector.extract_strided_slice %901 {offsets = [0, 4], sizes = [8, 32], strides = [1, 1]} : vector<8x38xf32> to vector<8x32xf32>
    %907 = vector.extract_strided_slice %901 {offsets = [0, 5], sizes = [8, 32], strides = [1, 1]} : vector<8x38xf32> to vector<8x32xf32>
    %908 = vector.extract_strided_slice %901 {offsets = [0, 6], sizes = [8, 32], strides = [1, 1]} : vector<8x38xf32> to vector<8x32xf32>
    %cst_228 = arith.constant 0.0187789276 : f32
    %909 = vector.broadcast %cst_228 : f32 to vector<8x32xf32>
    %910 = arith.mulf %909, %907 : vector<8x32xf32>
    %cst_229 = arith.constant 0.00405793311 : f32
    %911 = vector.broadcast %cst_229 : f32 to vector<8x32xf32>
    %912 = arith.mulf %911, %908 : vector<8x32xf32>
    %cst_230 = arith.constant -0.115314752 : f32
    %913 = vector.broadcast %cst_230 : f32 to vector<8x32xf32>
    %914 = arith.mulf %913, %906 : vector<8x32xf32>
    %915 = arith.addf %910, %914 : vector<8x32xf32>
    %cst_231 = arith.constant -0.0510869287 : f32
    %916 = vector.broadcast %cst_231 : f32 to vector<8x32xf32>
    %917 = arith.mulf %916, %907 : vector<8x32xf32>
    %918 = arith.addf %912, %917 : vector<8x32xf32>
    %cst_232 = arith.constant 0.886419594 : f32
    %919 = vector.broadcast %cst_232 : f32 to vector<8x32xf32>
    %920 = arith.mulf %919, %905 : vector<8x32xf32>
    %921 = arith.addf %915, %920 : vector<8x32xf32>
    %cst_233 = arith.constant 0.257145226 : f32
    %922 = vector.broadcast %cst_233 : f32 to vector<8x32xf32>
    %923 = arith.mulf %922, %906 : vector<8x32xf32>
    %924 = arith.addf %918, %923 : vector<8x32xf32>
    %cst_234 = arith.constant 0.257145226 : f32
    %925 = vector.broadcast %cst_234 : f32 to vector<8x32xf32>
    %926 = arith.mulf %925, %904 : vector<8x32xf32>
    %927 = arith.addf %921, %926 : vector<8x32xf32>
    %cst_235 = arith.constant 0.886419594 : f32
    %928 = vector.broadcast %cst_235 : f32 to vector<8x32xf32>
    %929 = arith.mulf %928, %905 : vector<8x32xf32>
    %930 = arith.addf %924, %929 : vector<8x32xf32>
    %cst_236 = arith.constant -0.0510869287 : f32
    %931 = vector.broadcast %cst_236 : f32 to vector<8x32xf32>
    %932 = arith.mulf %931, %903 : vector<8x32xf32>
    %933 = arith.addf %927, %932 : vector<8x32xf32>
    %cst_237 = arith.constant -0.115314752 : f32
    %934 = vector.broadcast %cst_237 : f32 to vector<8x32xf32>
    %935 = arith.mulf %934, %904 : vector<8x32xf32>
    %936 = arith.addf %930, %935 : vector<8x32xf32>
    %cst_238 = arith.constant 0.00405793311 : f32
    %937 = vector.broadcast %cst_238 : f32 to vector<8x32xf32>
    %938 = arith.mulf %937, %902 : vector<8x32xf32>
    %939 = arith.addf %933, %938 : vector<8x32xf32>
    %cst_239 = arith.constant 0.0187789276 : f32
    %940 = vector.broadcast %cst_239 : f32 to vector<8x32xf32>
    %941 = arith.mulf %940, %903 : vector<8x32xf32>
    %942 = arith.addf %936, %941 : vector<8x32xf32>
    %943 = vector.broadcast %889 : vector<8x1xf32> to vector<8x32xf32>
    %944 = arith.mulf %939, %943 : vector<8x32xf32>
    %945 = math.sin %944 : vector<8x32xf32>
    %946 = arith.mulf %945, %945 : vector<8x32xf32>
    %947 = vector.broadcast %891 : vector<8x1xf32> to vector<8x32xf32>
    %948 = arith.mulf %947, %946 : vector<8x32xf32>
    %949 = arith.addf %939, %948 : vector<8x32xf32>
    %950 = vector.broadcast %889 : vector<8x1xf32> to vector<8x32xf32>
    %951 = arith.mulf %942, %950 : vector<8x32xf32>
    %952 = math.sin %951 : vector<8x32xf32>
    %953 = arith.mulf %952, %952 : vector<8x32xf32>
    %954 = vector.broadcast %891 : vector<8x1xf32> to vector<8x32xf32>
    %955 = arith.mulf %954, %953 : vector<8x32xf32>
    %956 = arith.addf %942, %955 : vector<8x32xf32>
    %957 = vector.extract_strided_slice %949 {offsets = [0, 0], sizes = [8, 1], strides = [1, 1]} : vector<8x32xf32> to vector<8x1xf32>
    %958 = vector.shape_cast %957 : vector<8x1xf32> to vector<8x1xf32>
    %959 = vector.broadcast %958 : vector<8x1xf32> to vector<8x3xf32>
    %c0_240 = arith.constant 0 : index
    %c0_241 = arith.constant 0 : index
    %960 = vector.load %arg10[%c0_240, %c0_241] : memref<8x37xf32, #tpu.memory_space<vmem>>, vector<8x3xf32>
    tpu.vector_store %arg10[%c0_240, %c0_241], %959 {strides = array<i32>} : memref<8x37xf32, #tpu.memory_space<vmem>>, vector<8x3xf32>,
    %c0_242 = arith.constant 0 : index
    %c3_243 = arith.constant 3 : index
    %961 = vector.load %arg10[%c0_242, %c3_243] : memref<8x37xf32, #tpu.memory_space<vmem>>, vector<8x32xf32>
    tpu.vector_store %arg10[%c0_242, %c3_243], %956 {strides = array<i32>} : memref<8x37xf32, #tpu.memory_space<vmem>>, vector<8x32xf32>,
    %962 = vector.extract_strided_slice %956 {offsets = [0, 31], sizes = [8, 1], strides = [1, 1]} : vector<8x32xf32> to vector<8x1xf32>
    %963 = vector.shape_cast %962 : vector<8x1xf32> to vector<8x1xf32>
    %964 = vector.broadcast %963 : vector<8x1xf32> to vector<8x2xf32>
    %c0_244 = arith.constant 0 : index
    %c35_245 = arith.constant 35 : index
    %965 = vector.load %arg10[%c0_244, %c35_245] : memref<8x37xf32, #tpu.memory_space<vmem>>, vector<8x2xf32>
    tpu.vector_store %arg10[%c0_244, %c35_245], %964 {strides = array<i32>} : memref<8x37xf32, #tpu.memory_space<vmem>>, vector<8x2xf32>,
    %966 = vector.extract_strided_slice %949 {offsets = [0, 0], sizes = [8, 1], strides = [1, 1]} : vector<8x32xf32> to vector<8x1xf32>
    %967 = vector.shape_cast %966 : vector<8x1xf32> to vector<8x1xf32>
    %968 = vector.broadcast %967 : vector<8x1xf32> to vector<8x2xf32>
    %c0_246 = arith.constant 0 : index
    %c0_247 = arith.constant 0 : index
    %969 = vector.load %arg11[%c0_246, %c0_247] : memref<8x37xf32, #tpu.memory_space<vmem>>, vector<8x2xf32>
    tpu.vector_store %arg11[%c0_246, %c0_247], %968 {strides = array<i32>} : memref<8x37xf32, #tpu.memory_space<vmem>>, vector<8x2xf32>,
    %c0_248 = arith.constant 0 : index
    %c2_249 = arith.constant 2 : index
    %970 = vector.load %arg11[%c0_248, %c2_249] : memref<8x37xf32, #tpu.memory_space<vmem>>, vector<8x32xf32>
    tpu.vector_store %arg11[%c0_248, %c2_249], %949 {strides = array<i32>} : memref<8x37xf32, #tpu.memory_space<vmem>>, vector<8x32xf32>,
    %971 = vector.extract_strided_slice %956 {offsets = [0, 31], sizes = [8, 1], strides = [1, 1]} : vector<8x32xf32> to vector<8x1xf32>
    %972 = vector.shape_cast %971 : vector<8x1xf32> to vector<8x1xf32>
    %973 = vector.broadcast %972 : vector<8x1xf32> to vector<8x3xf32>
    %c0_250 = arith.constant 0 : index
    %c34_251 = arith.constant 34 : index
    %974 = vector.load %arg11[%c0_250, %c34_251] : memref<8x37xf32, #tpu.memory_space<vmem>>, vector<8x3xf32>
    tpu.vector_store %arg11[%c0_250, %c34_251], %973 {strides = array<i32>} : memref<8x37xf32, #tpu.memory_space<vmem>>, vector<8x3xf32>,
    %c0_252 = arith.constant 0 : index
    %c0_253 = arith.constant 0 : index
    %975 = vector.load %arg10[%c0_252, %c0_253] : memref<8x37xf32, #tpu.memory_space<vmem>>, vector<8x37xf32>
    %c0_254 = arith.constant 0 : index
    %c0_255 = arith.constant 0 : index
    %976 = vector.load %arg11[%c0_254, %c0_255] : memref<8x37xf32, #tpu.memory_space<vmem>>, vector<8x37xf32>
    %977 = vector.extract_strided_slice %975 {offsets = [0, 0], sizes = [8, 32], strides = [1, 1]} : vector<8x37xf32> to vector<8x32xf32>
    %cst_256 = arith.constant 0.00202896656 : f32
    %978 = vector.broadcast %cst_256 : f32 to vector<8x32xf32>
    %979 = arith.mulf %978, %977 : vector<8x32xf32>
    %980 = vector.extract_strided_slice %976 {offsets = [0, 0], sizes = [8, 32], strides = [1, 1]} : vector<8x37xf32> to vector<8x32xf32>
    %cst_257 = arith.constant 0.00938946381 : f32
    %981 = vector.broadcast %cst_257 : f32 to vector<8x32xf32>
    %982 = arith.mulf %981, %980 : vector<8x32xf32>
    %983 = arith.addf %979, %982 : vector<8x32xf32>
    %984 = vector.extract_strided_slice %975 {offsets = [0, 1], sizes = [8, 32], strides = [1, 1]} : vector<8x37xf32> to vector<8x32xf32>
    %cst_258 = arith.constant -0.0255434643 : f32
    %985 = vector.broadcast %cst_258 : f32 to vector<8x32xf32>
    %986 = arith.mulf %985, %984 : vector<8x32xf32>
    %987 = arith.addf %983, %986 : vector<8x32xf32>
    %988 = vector.extract_strided_slice %976 {offsets = [0, 1], sizes = [8, 32], strides = [1, 1]} : vector<8x37xf32> to vector<8x32xf32>
    %cst_259 = arith.constant -0.0576573759 : f32
    %989 = vector.broadcast %cst_259 : f32 to vector<8x32xf32>
    %990 = arith.mulf %989, %988 : vector<8x32xf32>
    %991 = arith.addf %987, %990 : vector<8x32xf32>
    %992 = vector.extract_strided_slice %975 {offsets = [0, 2], sizes = [8, 32], strides = [1, 1]} : vector<8x37xf32> to vector<8x32xf32>
    %cst_260 = arith.constant 0.128572613 : f32
    %993 = vector.broadcast %cst_260 : f32 to vector<8x32xf32>
    %994 = arith.mulf %993, %992 : vector<8x32xf32>
    %995 = arith.addf %991, %994 : vector<8x32xf32>
    %996 = vector.extract_strided_slice %976 {offsets = [0, 2], sizes = [8, 32], strides = [1, 1]} : vector<8x37xf32> to vector<8x32xf32>
    %cst_261 = arith.constant 0.443209797 : f32
    %997 = vector.broadcast %cst_261 : f32 to vector<8x32xf32>
    %998 = arith.mulf %997, %996 : vector<8x32xf32>
    %999 = arith.addf %995, %998 : vector<8x32xf32>
    %1000 = vector.extract_strided_slice %975 {offsets = [0, 3], sizes = [8, 32], strides = [1, 1]} : vector<8x37xf32> to vector<8x32xf32>
    %cst_262 = arith.constant 0.443209797 : f32
    %1001 = vector.broadcast %cst_262 : f32 to vector<8x32xf32>
    %1002 = arith.mulf %1001, %1000 : vector<8x32xf32>
    %1003 = arith.addf %999, %1002 : vector<8x32xf32>
    %1004 = vector.extract_strided_slice %976 {offsets = [0, 3], sizes = [8, 32], strides = [1, 1]} : vector<8x37xf32> to vector<8x32xf32>
    %cst_263 = arith.constant 0.128572613 : f32
    %1005 = vector.broadcast %cst_263 : f32 to vector<8x32xf32>
    %1006 = arith.mulf %1005, %1004 : vector<8x32xf32>
    %1007 = arith.addf %1003, %1006 : vector<8x32xf32>
    %1008 = vector.extract_strided_slice %975 {offsets = [0, 4], sizes = [8, 32], strides = [1, 1]} : vector<8x37xf32> to vector<8x32xf32>
    %cst_264 = arith.constant -0.0576573759 : f32
    %1009 = vector.broadcast %cst_264 : f32 to vector<8x32xf32>
    %1010 = arith.mulf %1009, %1008 : vector<8x32xf32>
    %1011 = arith.addf %1007, %1010 : vector<8x32xf32>
    %1012 = vector.extract_strided_slice %976 {offsets = [0, 4], sizes = [8, 32], strides = [1, 1]} : vector<8x37xf32> to vector<8x32xf32>
    %cst_265 = arith.constant -0.0255434643 : f32
    %1013 = vector.broadcast %cst_265 : f32 to vector<8x32xf32>
    %1014 = arith.mulf %1013, %1012 : vector<8x32xf32>
    %1015 = arith.addf %1011, %1014 : vector<8x32xf32>
    %1016 = vector.extract_strided_slice %975 {offsets = [0, 5], sizes = [8, 32], strides = [1, 1]} : vector<8x37xf32> to vector<8x32xf32>
    %cst_266 = arith.constant 0.00938946381 : f32
    %1017 = vector.broadcast %cst_266 : f32 to vector<8x32xf32>
    %1018 = arith.mulf %1017, %1016 : vector<8x32xf32>
    %1019 = arith.addf %1015, %1018 : vector<8x32xf32>
    %1020 = vector.extract_strided_slice %976 {offsets = [0, 5], sizes = [8, 32], strides = [1, 1]} : vector<8x37xf32> to vector<8x32xf32>
    %cst_267 = arith.constant 0.00202896656 : f32
    %1021 = vector.broadcast %cst_267 : f32 to vector<8x32xf32>
    %1022 = arith.mulf %1021, %1020 : vector<8x32xf32>
    %1023 = arith.addf %1019, %1022 : vector<8x32xf32>
    %c1_268 = arith.constant 1 : index
    %c0_269 = arith.constant 0 : index
    %c0_270 = arith.constant 0 : index
    %1024 = vector.load %arg4[%c1_268, %c0_269, %c0_270] : memref<3x8x24xf32, #tpu.memory_space<vmem>>, vector<1x8x24xf32>
    %1025 = vector.shape_cast %1024 : vector<1x8x24xf32> to vector<8x24xf32>
    %c1_271 = arith.constant 1 : index
    %c0_272 = arith.constant 0 : index
    %c0_273 = arith.constant 0 : index
    %1026 = vector.load %arg5[%c1_271, %c0_272, %c0_273] : memref<3x8x1xf32, #tpu.memory_space<vmem>>, vector<1x8x1xf32>
    %1027 = vector.shape_cast %1026 : vector<1x8x1xf32> to vector<8x1xf32>
    %cst_274 = arith.constant 0.000000e+00 : f32
    %1028 = vector.broadcast %cst_274 : f32 to vector<8x1xf32>
    %c0_275 = arith.constant 0 : index
    %c0_276 = arith.constant 0 : index
    %1029 = vector.load %arg12[%c0_275, %c0_276] : memref<24x32xf32, #tpu.memory_space<vmem>>, vector<8x1xf32>
    tpu.vector_store %arg12[%c0_275, %c0_276], %1028 {strides = array<i32>} : memref<24x32xf32, #tpu.memory_space<vmem>>, vector<8x1xf32>,
    %1030 = vector.extract_strided_slice %1023 {offsets = [0, 0], sizes = [8, 31], strides = [1, 1]} : vector<8x32xf32> to vector<8x31xf32>
    %c0_277 = arith.constant 0 : index
    %c1_278 = arith.constant 1 : index
    %1031 = vector.load %arg12[%c0_277, %c1_278] : memref<24x32xf32, #tpu.memory_space<vmem>>, vector<8x31xf32>
    tpu.vector_store %arg12[%c0_277, %c1_278], %1030 {strides = array<i32>} : memref<24x32xf32, #tpu.memory_space<vmem>>, vector<8x31xf32>,
    %c8_279 = arith.constant 8 : index
    %c0_280 = arith.constant 0 : index
    %1032 = vector.load %arg12[%c8_279, %c0_280] : memref<24x32xf32, #tpu.memory_space<vmem>>, vector<8x32xf32>
    tpu.vector_store %arg12[%c8_279, %c0_280], %1023 {strides = array<i32>} : memref<24x32xf32, #tpu.memory_space<vmem>>, vector<8x32xf32>,
    %1033 = vector.extract_strided_slice %1023 {offsets = [0, 1], sizes = [8, 31], strides = [1, 1]} : vector<8x32xf32> to vector<8x31xf32>
    %c16_281 = arith.constant 16 : index
    %c0_282 = arith.constant 0 : index
    %1034 = vector.load %arg12[%c16_281, %c0_282] : memref<24x32xf32, #tpu.memory_space<vmem>>, vector<8x31xf32>
    tpu.vector_store %arg12[%c16_281, %c0_282], %1033 {strides = array<i32>} : memref<24x32xf32, #tpu.memory_space<vmem>>, vector<8x31xf32>,
    %cst_283 = arith.constant 0.000000e+00 : f32
    %1035 = vector.broadcast %cst_283 : f32 to vector<8x1xf32>
    %c16_284 = arith.constant 16 : index
    %c31_285 = arith.constant 31 : index
    %1036 = vector.load %arg12[%c16_284, %c31_285] : memref<24x32xf32, #tpu.memory_space<vmem>>, vector<8x1xf32>
    tpu.vector_store %arg12[%c16_284, %c31_285], %1035 {strides = array<i32>} : memref<24x32xf32, #tpu.memory_space<vmem>>, vector<8x1xf32>,
    %c0_286 = arith.constant 0 : index
    %c0_287 = arith.constant 0 : index
    %1037 = vector.load %arg12[%c0_286, %c0_287] : memref<24x32xf32, #tpu.memory_space<vmem>>, vector<24x32xf32>
    %1038 = vector.extract_strided_slice %1025 {offsets = [0, 0], sizes = [8, 1], strides = [1, 1]} : vector<8x24xf32> to vector<8x1xf32>
    %1039 = vector.extract_strided_slice %1037 {offsets = [0, 0], sizes = [1, 32], strides = [1, 1]} : vector<24x32xf32> to vector<1x32xf32>
    %1040 = vector.broadcast %1038 : vector<8x1xf32> to vector<8x32xf32>
    %1041 = vector.broadcast %1039 : vector<1x32xf32> to vector<8x32xf32>
    %1042 = arith.mulf %1040, %1041 : vector<8x32xf32>
    %1043 = vector.extract_strided_slice %1025 {offsets = [0, 1], sizes = [8, 1], strides = [1, 1]} : vector<8x24xf32> to vector<8x1xf32>
    %1044 = vector.extract_strided_slice %1037 {offsets = [1, 0], sizes = [1, 32], strides = [1, 1]} : vector<24x32xf32> to vector<1x32xf32>
    %1045 = vector.broadcast %1043 : vector<8x1xf32> to vector<8x32xf32>
    %1046 = vector.broadcast %1044 : vector<1x32xf32> to vector<8x32xf32>
    %1047 = arith.mulf %1045, %1046 : vector<8x32xf32>
    %1048 = arith.addf %1042, %1047 : vector<8x32xf32>
    %1049 = vector.extract_strided_slice %1025 {offsets = [0, 2], sizes = [8, 1], strides = [1, 1]} : vector<8x24xf32> to vector<8x1xf32>
    %1050 = vector.extract_strided_slice %1037 {offsets = [2, 0], sizes = [1, 32], strides = [1, 1]} : vector<24x32xf32> to vector<1x32xf32>
    %1051 = vector.broadcast %1049 : vector<8x1xf32> to vector<8x32xf32>
    %1052 = vector.broadcast %1050 : vector<1x32xf32> to vector<8x32xf32>
    %1053 = arith.mulf %1051, %1052 : vector<8x32xf32>
    %1054 = arith.addf %1048, %1053 : vector<8x32xf32>
    %1055 = vector.extract_strided_slice %1025 {offsets = [0, 3], sizes = [8, 1], strides = [1, 1]} : vector<8x24xf32> to vector<8x1xf32>
    %1056 = vector.extract_strided_slice %1037 {offsets = [3, 0], sizes = [1, 32], strides = [1, 1]} : vector<24x32xf32> to vector<1x32xf32>
    %1057 = vector.broadcast %1055 : vector<8x1xf32> to vector<8x32xf32>
    %1058 = vector.broadcast %1056 : vector<1x32xf32> to vector<8x32xf32>
    %1059 = arith.mulf %1057, %1058 : vector<8x32xf32>
    %1060 = arith.addf %1054, %1059 : vector<8x32xf32>
    %1061 = vector.extract_strided_slice %1025 {offsets = [0, 4], sizes = [8, 1], strides = [1, 1]} : vector<8x24xf32> to vector<8x1xf32>
    %1062 = vector.extract_strided_slice %1037 {offsets = [4, 0], sizes = [1, 32], strides = [1, 1]} : vector<24x32xf32> to vector<1x32xf32>
    %1063 = vector.broadcast %1061 : vector<8x1xf32> to vector<8x32xf32>
    %1064 = vector.broadcast %1062 : vector<1x32xf32> to vector<8x32xf32>
    %1065 = arith.mulf %1063, %1064 : vector<8x32xf32>
    %1066 = arith.addf %1060, %1065 : vector<8x32xf32>
    %1067 = vector.extract_strided_slice %1025 {offsets = [0, 5], sizes = [8, 1], strides = [1, 1]} : vector<8x24xf32> to vector<8x1xf32>
    %1068 = vector.extract_strided_slice %1037 {offsets = [5, 0], sizes = [1, 32], strides = [1, 1]} : vector<24x32xf32> to vector<1x32xf32>
    %1069 = vector.broadcast %1067 : vector<8x1xf32> to vector<8x32xf32>
    %1070 = vector.broadcast %1068 : vector<1x32xf32> to vector<8x32xf32>
    %1071 = arith.mulf %1069, %1070 : vector<8x32xf32>
    %1072 = arith.addf %1066, %1071 : vector<8x32xf32>
    %1073 = vector.extract_strided_slice %1025 {offsets = [0, 6], sizes = [8, 1], strides = [1, 1]} : vector<8x24xf32> to vector<8x1xf32>
    %1074 = vector.extract_strided_slice %1037 {offsets = [6, 0], sizes = [1, 32], strides = [1, 1]} : vector<24x32xf32> to vector<1x32xf32>
    %1075 = vector.broadcast %1073 : vector<8x1xf32> to vector<8x32xf32>
    %1076 = vector.broadcast %1074 : vector<1x32xf32> to vector<8x32xf32>
    %1077 = arith.mulf %1075, %1076 : vector<8x32xf32>
    %1078 = arith.addf %1072, %1077 : vector<8x32xf32>
    %1079 = vector.extract_strided_slice %1025 {offsets = [0, 7], sizes = [8, 1], strides = [1, 1]} : vector<8x24xf32> to vector<8x1xf32>
    %1080 = vector.extract_strided_slice %1037 {offsets = [7, 0], sizes = [1, 32], strides = [1, 1]} : vector<24x32xf32> to vector<1x32xf32>
    %1081 = vector.broadcast %1079 : vector<8x1xf32> to vector<8x32xf32>
    %1082 = vector.broadcast %1080 : vector<1x32xf32> to vector<8x32xf32>
    %1083 = arith.mulf %1081, %1082 : vector<8x32xf32>
    %1084 = arith.addf %1078, %1083 : vector<8x32xf32>
    %1085 = vector.extract_strided_slice %1025 {offsets = [0, 8], sizes = [8, 1], strides = [1, 1]} : vector<8x24xf32> to vector<8x1xf32>
    %1086 = vector.extract_strided_slice %1037 {offsets = [8, 0], sizes = [1, 32], strides = [1, 1]} : vector<24x32xf32> to vector<1x32xf32>
    %1087 = vector.broadcast %1085 : vector<8x1xf32> to vector<8x32xf32>
    %1088 = vector.broadcast %1086 : vector<1x32xf32> to vector<8x32xf32>
    %1089 = arith.mulf %1087, %1088 : vector<8x32xf32>
    %1090 = vector.extract_strided_slice %1025 {offsets = [0, 9], sizes = [8, 1], strides = [1, 1]} : vector<8x24xf32> to vector<8x1xf32>
    %1091 = vector.extract_strided_slice %1037 {offsets = [9, 0], sizes = [1, 32], strides = [1, 1]} : vector<24x32xf32> to vector<1x32xf32>
    %1092 = vector.broadcast %1090 : vector<8x1xf32> to vector<8x32xf32>
    %1093 = vector.broadcast %1091 : vector<1x32xf32> to vector<8x32xf32>
    %1094 = arith.mulf %1092, %1093 : vector<8x32xf32>
    %1095 = arith.addf %1089, %1094 : vector<8x32xf32>
    %1096 = vector.extract_strided_slice %1025 {offsets = [0, 10], sizes = [8, 1], strides = [1, 1]} : vector<8x24xf32> to vector<8x1xf32>
    %1097 = vector.extract_strided_slice %1037 {offsets = [10, 0], sizes = [1, 32], strides = [1, 1]} : vector<24x32xf32> to vector<1x32xf32>
    %1098 = vector.broadcast %1096 : vector<8x1xf32> to vector<8x32xf32>
    %1099 = vector.broadcast %1097 : vector<1x32xf32> to vector<8x32xf32>
    %1100 = arith.mulf %1098, %1099 : vector<8x32xf32>
    %1101 = arith.addf %1095, %1100 : vector<8x32xf32>
    %1102 = vector.extract_strided_slice %1025 {offsets = [0, 11], sizes = [8, 1], strides = [1, 1]} : vector<8x24xf32> to vector<8x1xf32>
    %1103 = vector.extract_strided_slice %1037 {offsets = [11, 0], sizes = [1, 32], strides = [1, 1]} : vector<24x32xf32> to vector<1x32xf32>
    %1104 = vector.broadcast %1102 : vector<8x1xf32> to vector<8x32xf32>
    %1105 = vector.broadcast %1103 : vector<1x32xf32> to vector<8x32xf32>
    %1106 = arith.mulf %1104, %1105 : vector<8x32xf32>
    %1107 = arith.addf %1101, %1106 : vector<8x32xf32>
    %1108 = vector.extract_strided_slice %1025 {offsets = [0, 12], sizes = [8, 1], strides = [1, 1]} : vector<8x24xf32> to vector<8x1xf32>
    %1109 = vector.extract_strided_slice %1037 {offsets = [12, 0], sizes = [1, 32], strides = [1, 1]} : vector<24x32xf32> to vector<1x32xf32>
    %1110 = vector.broadcast %1108 : vector<8x1xf32> to vector<8x32xf32>
    %1111 = vector.broadcast %1109 : vector<1x32xf32> to vector<8x32xf32>
    %1112 = arith.mulf %1110, %1111 : vector<8x32xf32>
    %1113 = arith.addf %1107, %1112 : vector<8x32xf32>
    %1114 = vector.extract_strided_slice %1025 {offsets = [0, 13], sizes = [8, 1], strides = [1, 1]} : vector<8x24xf32> to vector<8x1xf32>
    %1115 = vector.extract_strided_slice %1037 {offsets = [13, 0], sizes = [1, 32], strides = [1, 1]} : vector<24x32xf32> to vector<1x32xf32>
    %1116 = vector.broadcast %1114 : vector<8x1xf32> to vector<8x32xf32>
    %1117 = vector.broadcast %1115 : vector<1x32xf32> to vector<8x32xf32>
    %1118 = arith.mulf %1116, %1117 : vector<8x32xf32>
    %1119 = arith.addf %1113, %1118 : vector<8x32xf32>
    %1120 = vector.extract_strided_slice %1025 {offsets = [0, 14], sizes = [8, 1], strides = [1, 1]} : vector<8x24xf32> to vector<8x1xf32>
    %1121 = vector.extract_strided_slice %1037 {offsets = [14, 0], sizes = [1, 32], strides = [1, 1]} : vector<24x32xf32> to vector<1x32xf32>
    %1122 = vector.broadcast %1120 : vector<8x1xf32> to vector<8x32xf32>
    %1123 = vector.broadcast %1121 : vector<1x32xf32> to vector<8x32xf32>
    %1124 = arith.mulf %1122, %1123 : vector<8x32xf32>
    %1125 = arith.addf %1119, %1124 : vector<8x32xf32>
    %1126 = vector.extract_strided_slice %1025 {offsets = [0, 15], sizes = [8, 1], strides = [1, 1]} : vector<8x24xf32> to vector<8x1xf32>
    %1127 = vector.extract_strided_slice %1037 {offsets = [15, 0], sizes = [1, 32], strides = [1, 1]} : vector<24x32xf32> to vector<1x32xf32>
    %1128 = vector.broadcast %1126 : vector<8x1xf32> to vector<8x32xf32>
    %1129 = vector.broadcast %1127 : vector<1x32xf32> to vector<8x32xf32>
    %1130 = arith.mulf %1128, %1129 : vector<8x32xf32>
    %1131 = arith.addf %1125, %1130 : vector<8x32xf32>
    %1132 = vector.extract_strided_slice %1025 {offsets = [0, 16], sizes = [8, 1], strides = [1, 1]} : vector<8x24xf32> to vector<8x1xf32>
    %1133 = vector.extract_strided_slice %1037 {offsets = [16, 0], sizes = [1, 32], strides = [1, 1]} : vector<24x32xf32> to vector<1x32xf32>
    %1134 = vector.broadcast %1132 : vector<8x1xf32> to vector<8x32xf32>
    %1135 = vector.broadcast %1133 : vector<1x32xf32> to vector<8x32xf32>
    %1136 = arith.mulf %1134, %1135 : vector<8x32xf32>
    %1137 = vector.extract_strided_slice %1025 {offsets = [0, 17], sizes = [8, 1], strides = [1, 1]} : vector<8x24xf32> to vector<8x1xf32>
    %1138 = vector.extract_strided_slice %1037 {offsets = [17, 0], sizes = [1, 32], strides = [1, 1]} : vector<24x32xf32> to vector<1x32xf32>
    %1139 = vector.broadcast %1137 : vector<8x1xf32> to vector<8x32xf32>
    %1140 = vector.broadcast %1138 : vector<1x32xf32> to vector<8x32xf32>
    %1141 = arith.mulf %1139, %1140 : vector<8x32xf32>
    %1142 = arith.addf %1136, %1141 : vector<8x32xf32>
    %1143 = vector.extract_strided_slice %1025 {offsets = [0, 18], sizes = [8, 1], strides = [1, 1]} : vector<8x24xf32> to vector<8x1xf32>
    %1144 = vector.extract_strided_slice %1037 {offsets = [18, 0], sizes = [1, 32], strides = [1, 1]} : vector<24x32xf32> to vector<1x32xf32>
    %1145 = vector.broadcast %1143 : vector<8x1xf32> to vector<8x32xf32>
    %1146 = vector.broadcast %1144 : vector<1x32xf32> to vector<8x32xf32>
    %1147 = arith.mulf %1145, %1146 : vector<8x32xf32>
    %1148 = arith.addf %1142, %1147 : vector<8x32xf32>
    %1149 = vector.extract_strided_slice %1025 {offsets = [0, 19], sizes = [8, 1], strides = [1, 1]} : vector<8x24xf32> to vector<8x1xf32>
    %1150 = vector.extract_strided_slice %1037 {offsets = [19, 0], sizes = [1, 32], strides = [1, 1]} : vector<24x32xf32> to vector<1x32xf32>
    %1151 = vector.broadcast %1149 : vector<8x1xf32> to vector<8x32xf32>
    %1152 = vector.broadcast %1150 : vector<1x32xf32> to vector<8x32xf32>
    %1153 = arith.mulf %1151, %1152 : vector<8x32xf32>
    %1154 = arith.addf %1148, %1153 : vector<8x32xf32>
    %1155 = vector.extract_strided_slice %1025 {offsets = [0, 20], sizes = [8, 1], strides = [1, 1]} : vector<8x24xf32> to vector<8x1xf32>
    %1156 = vector.extract_strided_slice %1037 {offsets = [20, 0], sizes = [1, 32], strides = [1, 1]} : vector<24x32xf32> to vector<1x32xf32>
    %1157 = vector.broadcast %1155 : vector<8x1xf32> to vector<8x32xf32>
    %1158 = vector.broadcast %1156 : vector<1x32xf32> to vector<8x32xf32>
    %1159 = arith.mulf %1157, %1158 : vector<8x32xf32>
    %1160 = arith.addf %1154, %1159 : vector<8x32xf32>
    %1161 = vector.extract_strided_slice %1025 {offsets = [0, 21], sizes = [8, 1], strides = [1, 1]} : vector<8x24xf32> to vector<8x1xf32>
    %1162 = vector.extract_strided_slice %1037 {offsets = [21, 0], sizes = [1, 32], strides = [1, 1]} : vector<24x32xf32> to vector<1x32xf32>
    %1163 = vector.broadcast %1161 : vector<8x1xf32> to vector<8x32xf32>
    %1164 = vector.broadcast %1162 : vector<1x32xf32> to vector<8x32xf32>
    %1165 = arith.mulf %1163, %1164 : vector<8x32xf32>
    %1166 = arith.addf %1160, %1165 : vector<8x32xf32>
    %1167 = vector.extract_strided_slice %1025 {offsets = [0, 22], sizes = [8, 1], strides = [1, 1]} : vector<8x24xf32> to vector<8x1xf32>
    %1168 = vector.extract_strided_slice %1037 {offsets = [22, 0], sizes = [1, 32], strides = [1, 1]} : vector<24x32xf32> to vector<1x32xf32>
    %1169 = vector.broadcast %1167 : vector<8x1xf32> to vector<8x32xf32>
    %1170 = vector.broadcast %1168 : vector<1x32xf32> to vector<8x32xf32>
    %1171 = arith.mulf %1169, %1170 : vector<8x32xf32>
    %1172 = arith.addf %1166, %1171 : vector<8x32xf32>
    %1173 = vector.extract_strided_slice %1025 {offsets = [0, 23], sizes = [8, 1], strides = [1, 1]} : vector<8x24xf32> to vector<8x1xf32>
    %1174 = vector.extract_strided_slice %1037 {offsets = [23, 0], sizes = [1, 32], strides = [1, 1]} : vector<24x32xf32> to vector<1x32xf32>
    %1175 = vector.broadcast %1173 : vector<8x1xf32> to vector<8x32xf32>
    %1176 = vector.broadcast %1174 : vector<1x32xf32> to vector<8x32xf32>
    %1177 = arith.mulf %1175, %1176 : vector<8x32xf32>
    %1178 = arith.addf %1172, %1177 : vector<8x32xf32>
    %1179 = arith.addf %1084, %1131 : vector<8x32xf32>
    %1180 = arith.addf %1179, %1178 : vector<8x32xf32>
    %1181 = vector.broadcast %1027 : vector<8x1xf32> to vector<8x32xf32>
    %1182 = arith.addf %1180, %1181 : vector<8x32xf32>
    %1183 = arith.addf %1182, %592 : vector<8x32xf32>
    %c4 = arith.constant 4 : index
    %c0_288 = arith.constant 0 : index
    %c0_289 = arith.constant 0 : index
    %1184 = vector.load %arg6[%c4, %c0_288, %c0_289] : memref<6x8x1xf32, #tpu.memory_space<vmem>>, vector<1x8x1xf32>
    %1185 = vector.shape_cast %1184 : vector<1x8x1xf32> to vector<8x1xf32>
    %c4_290 = arith.constant 4 : index
    %c0_291 = arith.constant 0 : index
    %c0_292 = arith.constant 0 : index
    %1186 = vector.load %arg7[%c4_290, %c0_291, %c0_292] : memref<6x8x1xf32, #tpu.memory_space<vmem>>, vector<1x8x1xf32>
    %1187 = vector.shape_cast %1186 : vector<1x8x1xf32> to vector<8x1xf32>
    %1188 = vector.extract_strided_slice %1183 {offsets = [0, 0], sizes = [8, 1], strides = [1, 1]} : vector<8x32xf32> to vector<8x1xf32>
    %1189 = vector.shape_cast %1188 : vector<8x1xf32> to vector<8x1xf32>
    %1190 = vector.broadcast %1189 : vector<8x1xf32> to vector<8x3xf32>
    %c0_293 = arith.constant 0 : index
    %c0_294 = arith.constant 0 : index
    %1191 = vector.load %arg9[%c0_293, %c0_294] : memref<8x38xf32, #tpu.memory_space<vmem>>, vector<8x3xf32>
    tpu.vector_store %arg9[%c0_293, %c0_294], %1190 {strides = array<i32>} : memref<8x38xf32, #tpu.memory_space<vmem>>, vector<8x3xf32>,
    %c0_295 = arith.constant 0 : index
    %c3_296 = arith.constant 3 : index
    %1192 = vector.load %arg9[%c0_295, %c3_296] : memref<8x38xf32, #tpu.memory_space<vmem>>, vector<8x32xf32>
    tpu.vector_store %arg9[%c0_295, %c3_296], %1183 {strides = array<i32>} : memref<8x38xf32, #tpu.memory_space<vmem>>, vector<8x32xf32>,
    %1193 = vector.extract_strided_slice %1183 {offsets = [0, 31], sizes = [8, 1], strides = [1, 1]} : vector<8x32xf32> to vector<8x1xf32>
    %1194 = vector.shape_cast %1193 : vector<8x1xf32> to vector<8x1xf32>
    %1195 = vector.broadcast %1194 : vector<8x1xf32> to vector<8x3xf32>
    %c0_297 = arith.constant 0 : index
    %c35_298 = arith.constant 35 : index
    %1196 = vector.load %arg9[%c0_297, %c35_298] : memref<8x38xf32, #tpu.memory_space<vmem>>, vector<8x3xf32>
    tpu.vector_store %arg9[%c0_297, %c35_298], %1195 {strides = array<i32>} : memref<8x38xf32, #tpu.memory_space<vmem>>, vector<8x3xf32>,
    %c0_299 = arith.constant 0 : index
    %c0_300 = arith.constant 0 : index
    %1197 = vector.load %arg9[%c0_299, %c0_300] : memref<8x38xf32, #tpu.memory_space<vmem>>, vector<8x38xf32>
    %1198 = vector.extract_strided_slice %1197 {offsets = [0, 0], sizes = [8, 32], strides = [1, 1]} : vector<8x38xf32> to vector<8x32xf32>
    %1199 = vector.extract_strided_slice %1197 {offsets = [0, 1], sizes = [8, 32], strides = [1, 1]} : vector<8x38xf32> to vector<8x32xf32>
    %1200 = vector.extract_strided_slice %1197 {offsets = [0, 2], sizes = [8, 32], strides = [1, 1]} : vector<8x38xf32> to vector<8x32xf32>
    %1201 = vector.extract_strided_slice %1197 {offsets = [0, 3], sizes = [8, 32], strides = [1, 1]} : vector<8x38xf32> to vector<8x32xf32>
    %1202 = vector.extract_strided_slice %1197 {offsets = [0, 4], sizes = [8, 32], strides = [1, 1]} : vector<8x38xf32> to vector<8x32xf32>
    %1203 = vector.extract_strided_slice %1197 {offsets = [0, 5], sizes = [8, 32], strides = [1, 1]} : vector<8x38xf32> to vector<8x32xf32>
    %1204 = vector.extract_strided_slice %1197 {offsets = [0, 6], sizes = [8, 32], strides = [1, 1]} : vector<8x38xf32> to vector<8x32xf32>
    %cst_301 = arith.constant 0.0187789276 : f32
    %1205 = vector.broadcast %cst_301 : f32 to vector<8x32xf32>
    %1206 = arith.mulf %1205, %1203 : vector<8x32xf32>
    %cst_302 = arith.constant 0.00405793311 : f32
    %1207 = vector.broadcast %cst_302 : f32 to vector<8x32xf32>
    %1208 = arith.mulf %1207, %1204 : vector<8x32xf32>
    %cst_303 = arith.constant -0.115314752 : f32
    %1209 = vector.broadcast %cst_303 : f32 to vector<8x32xf32>
    %1210 = arith.mulf %1209, %1202 : vector<8x32xf32>
    %1211 = arith.addf %1206, %1210 : vector<8x32xf32>
    %cst_304 = arith.constant -0.0510869287 : f32
    %1212 = vector.broadcast %cst_304 : f32 to vector<8x32xf32>
    %1213 = arith.mulf %1212, %1203 : vector<8x32xf32>
    %1214 = arith.addf %1208, %1213 : vector<8x32xf32>
    %cst_305 = arith.constant 0.886419594 : f32
    %1215 = vector.broadcast %cst_305 : f32 to vector<8x32xf32>
    %1216 = arith.mulf %1215, %1201 : vector<8x32xf32>
    %1217 = arith.addf %1211, %1216 : vector<8x32xf32>
    %cst_306 = arith.constant 0.257145226 : f32
    %1218 = vector.broadcast %cst_306 : f32 to vector<8x32xf32>
    %1219 = arith.mulf %1218, %1202 : vector<8x32xf32>
    %1220 = arith.addf %1214, %1219 : vector<8x32xf32>
    %cst_307 = arith.constant 0.257145226 : f32
    %1221 = vector.broadcast %cst_307 : f32 to vector<8x32xf32>
    %1222 = arith.mulf %1221, %1200 : vector<8x32xf32>
    %1223 = arith.addf %1217, %1222 : vector<8x32xf32>
    %cst_308 = arith.constant 0.886419594 : f32
    %1224 = vector.broadcast %cst_308 : f32 to vector<8x32xf32>
    %1225 = arith.mulf %1224, %1201 : vector<8x32xf32>
    %1226 = arith.addf %1220, %1225 : vector<8x32xf32>
    %cst_309 = arith.constant -0.0510869287 : f32
    %1227 = vector.broadcast %cst_309 : f32 to vector<8x32xf32>
    %1228 = arith.mulf %1227, %1199 : vector<8x32xf32>
    %1229 = arith.addf %1223, %1228 : vector<8x32xf32>
    %cst_310 = arith.constant -0.115314752 : f32
    %1230 = vector.broadcast %cst_310 : f32 to vector<8x32xf32>
    %1231 = arith.mulf %1230, %1200 : vector<8x32xf32>
    %1232 = arith.addf %1226, %1231 : vector<8x32xf32>
    %cst_311 = arith.constant 0.00405793311 : f32
    %1233 = vector.broadcast %cst_311 : f32 to vector<8x32xf32>
    %1234 = arith.mulf %1233, %1198 : vector<8x32xf32>
    %1235 = arith.addf %1229, %1234 : vector<8x32xf32>
    %cst_312 = arith.constant 0.0187789276 : f32
    %1236 = vector.broadcast %cst_312 : f32 to vector<8x32xf32>
    %1237 = arith.mulf %1236, %1199 : vector<8x32xf32>
    %1238 = arith.addf %1232, %1237 : vector<8x32xf32>
    %1239 = vector.broadcast %1185 : vector<8x1xf32> to vector<8x32xf32>
    %1240 = arith.mulf %1235, %1239 : vector<8x32xf32>
    %1241 = math.sin %1240 : vector<8x32xf32>
    %1242 = arith.mulf %1241, %1241 : vector<8x32xf32>
    %1243 = vector.broadcast %1187 : vector<8x1xf32> to vector<8x32xf32>
    %1244 = arith.mulf %1243, %1242 : vector<8x32xf32>
    %1245 = arith.addf %1235, %1244 : vector<8x32xf32>
    %1246 = vector.broadcast %1185 : vector<8x1xf32> to vector<8x32xf32>
    %1247 = arith.mulf %1238, %1246 : vector<8x32xf32>
    %1248 = math.sin %1247 : vector<8x32xf32>
    %1249 = arith.mulf %1248, %1248 : vector<8x32xf32>
    %1250 = vector.broadcast %1187 : vector<8x1xf32> to vector<8x32xf32>
    %1251 = arith.mulf %1250, %1249 : vector<8x32xf32>
    %1252 = arith.addf %1238, %1251 : vector<8x32xf32>
    %1253 = vector.extract_strided_slice %1245 {offsets = [0, 0], sizes = [8, 1], strides = [1, 1]} : vector<8x32xf32> to vector<8x1xf32>
    %1254 = vector.shape_cast %1253 : vector<8x1xf32> to vector<8x1xf32>
    %1255 = vector.broadcast %1254 : vector<8x1xf32> to vector<8x3xf32>
    %c0_313 = arith.constant 0 : index
    %c0_314 = arith.constant 0 : index
    %1256 = vector.load %arg10[%c0_313, %c0_314] : memref<8x37xf32, #tpu.memory_space<vmem>>, vector<8x3xf32>
    tpu.vector_store %arg10[%c0_313, %c0_314], %1255 {strides = array<i32>} : memref<8x37xf32, #tpu.memory_space<vmem>>, vector<8x3xf32>,
    %c0_315 = arith.constant 0 : index
    %c3_316 = arith.constant 3 : index
    %1257 = vector.load %arg10[%c0_315, %c3_316] : memref<8x37xf32, #tpu.memory_space<vmem>>, vector<8x32xf32>
    tpu.vector_store %arg10[%c0_315, %c3_316], %1252 {strides = array<i32>} : memref<8x37xf32, #tpu.memory_space<vmem>>, vector<8x32xf32>,
    %1258 = vector.extract_strided_slice %1252 {offsets = [0, 31], sizes = [8, 1], strides = [1, 1]} : vector<8x32xf32> to vector<8x1xf32>
    %1259 = vector.shape_cast %1258 : vector<8x1xf32> to vector<8x1xf32>
    %1260 = vector.broadcast %1259 : vector<8x1xf32> to vector<8x2xf32>
    %c0_317 = arith.constant 0 : index
    %c35_318 = arith.constant 35 : index
    %1261 = vector.load %arg10[%c0_317, %c35_318] : memref<8x37xf32, #tpu.memory_space<vmem>>, vector<8x2xf32>
    tpu.vector_store %arg10[%c0_317, %c35_318], %1260 {strides = array<i32>} : memref<8x37xf32, #tpu.memory_space<vmem>>, vector<8x2xf32>,
    %1262 = vector.extract_strided_slice %1245 {offsets = [0, 0], sizes = [8, 1], strides = [1, 1]} : vector<8x32xf32> to vector<8x1xf32>
    %1263 = vector.shape_cast %1262 : vector<8x1xf32> to vector<8x1xf32>
    %1264 = vector.broadcast %1263 : vector<8x1xf32> to vector<8x2xf32>
    %c0_319 = arith.constant 0 : index
    %c0_320 = arith.constant 0 : index
    %1265 = vector.load %arg11[%c0_319, %c0_320] : memref<8x37xf32, #tpu.memory_space<vmem>>, vector<8x2xf32>
    tpu.vector_store %arg11[%c0_319, %c0_320], %1264 {strides = array<i32>} : memref<8x37xf32, #tpu.memory_space<vmem>>, vector<8x2xf32>,
    %c0_321 = arith.constant 0 : index
    %c2_322 = arith.constant 2 : index
    %1266 = vector.load %arg11[%c0_321, %c2_322] : memref<8x37xf32, #tpu.memory_space<vmem>>, vector<8x32xf32>
    tpu.vector_store %arg11[%c0_321, %c2_322], %1245 {strides = array<i32>} : memref<8x37xf32, #tpu.memory_space<vmem>>, vector<8x32xf32>,
    %1267 = vector.extract_strided_slice %1252 {offsets = [0, 31], sizes = [8, 1], strides = [1, 1]} : vector<8x32xf32> to vector<8x1xf32>
    %1268 = vector.shape_cast %1267 : vector<8x1xf32> to vector<8x1xf32>
    %1269 = vector.broadcast %1268 : vector<8x1xf32> to vector<8x3xf32>
    %c0_323 = arith.constant 0 : index
    %c34_324 = arith.constant 34 : index
    %1270 = vector.load %arg11[%c0_323, %c34_324] : memref<8x37xf32, #tpu.memory_space<vmem>>, vector<8x3xf32>
    tpu.vector_store %arg11[%c0_323, %c34_324], %1269 {strides = array<i32>} : memref<8x37xf32, #tpu.memory_space<vmem>>, vector<8x3xf32>,
    %c0_325 = arith.constant 0 : index
    %c0_326 = arith.constant 0 : index
    %1271 = vector.load %arg10[%c0_325, %c0_326] : memref<8x37xf32, #tpu.memory_space<vmem>>, vector<8x37xf32>
    %c0_327 = arith.constant 0 : index
    %c0_328 = arith.constant 0 : index
    %1272 = vector.load %arg11[%c0_327, %c0_328] : memref<8x37xf32, #tpu.memory_space<vmem>>, vector<8x37xf32>
    %1273 = vector.extract_strided_slice %1271 {offsets = [0, 0], sizes = [8, 32], strides = [1, 1]} : vector<8x37xf32> to vector<8x32xf32>
    %cst_329 = arith.constant 0.00202896656 : f32
    %1274 = vector.broadcast %cst_329 : f32 to vector<8x32xf32>
    %1275 = arith.mulf %1274, %1273 : vector<8x32xf32>
    %1276 = vector.extract_strided_slice %1272 {offsets = [0, 0], sizes = [8, 32], strides = [1, 1]} : vector<8x37xf32> to vector<8x32xf32>
    %cst_330 = arith.constant 0.00938946381 : f32
    %1277 = vector.broadcast %cst_330 : f32 to vector<8x32xf32>
    %1278 = arith.mulf %1277, %1276 : vector<8x32xf32>
    %1279 = arith.addf %1275, %1278 : vector<8x32xf32>
    %1280 = vector.extract_strided_slice %1271 {offsets = [0, 1], sizes = [8, 32], strides = [1, 1]} : vector<8x37xf32> to vector<8x32xf32>
    %cst_331 = arith.constant -0.0255434643 : f32
    %1281 = vector.broadcast %cst_331 : f32 to vector<8x32xf32>
    %1282 = arith.mulf %1281, %1280 : vector<8x32xf32>
    %1283 = arith.addf %1279, %1282 : vector<8x32xf32>
    %1284 = vector.extract_strided_slice %1272 {offsets = [0, 1], sizes = [8, 32], strides = [1, 1]} : vector<8x37xf32> to vector<8x32xf32>
    %cst_332 = arith.constant -0.0576573759 : f32
    %1285 = vector.broadcast %cst_332 : f32 to vector<8x32xf32>
    %1286 = arith.mulf %1285, %1284 : vector<8x32xf32>
    %1287 = arith.addf %1283, %1286 : vector<8x32xf32>
    %1288 = vector.extract_strided_slice %1271 {offsets = [0, 2], sizes = [8, 32], strides = [1, 1]} : vector<8x37xf32> to vector<8x32xf32>
    %cst_333 = arith.constant 0.128572613 : f32
    %1289 = vector.broadcast %cst_333 : f32 to vector<8x32xf32>
    %1290 = arith.mulf %1289, %1288 : vector<8x32xf32>
    %1291 = arith.addf %1287, %1290 : vector<8x32xf32>
    %1292 = vector.extract_strided_slice %1272 {offsets = [0, 2], sizes = [8, 32], strides = [1, 1]} : vector<8x37xf32> to vector<8x32xf32>
    %cst_334 = arith.constant 0.443209797 : f32
    %1293 = vector.broadcast %cst_334 : f32 to vector<8x32xf32>
    %1294 = arith.mulf %1293, %1292 : vector<8x32xf32>
    %1295 = arith.addf %1291, %1294 : vector<8x32xf32>
    %1296 = vector.extract_strided_slice %1271 {offsets = [0, 3], sizes = [8, 32], strides = [1, 1]} : vector<8x37xf32> to vector<8x32xf32>
    %cst_335 = arith.constant 0.443209797 : f32
    %1297 = vector.broadcast %cst_335 : f32 to vector<8x32xf32>
    %1298 = arith.mulf %1297, %1296 : vector<8x32xf32>
    %1299 = arith.addf %1295, %1298 : vector<8x32xf32>
    %1300 = vector.extract_strided_slice %1272 {offsets = [0, 3], sizes = [8, 32], strides = [1, 1]} : vector<8x37xf32> to vector<8x32xf32>
    %cst_336 = arith.constant 0.128572613 : f32
    %1301 = vector.broadcast %cst_336 : f32 to vector<8x32xf32>
    %1302 = arith.mulf %1301, %1300 : vector<8x32xf32>
    %1303 = arith.addf %1299, %1302 : vector<8x32xf32>
    %1304 = vector.extract_strided_slice %1271 {offsets = [0, 4], sizes = [8, 32], strides = [1, 1]} : vector<8x37xf32> to vector<8x32xf32>
    %cst_337 = arith.constant -0.0576573759 : f32
    %1305 = vector.broadcast %cst_337 : f32 to vector<8x32xf32>
    %1306 = arith.mulf %1305, %1304 : vector<8x32xf32>
    %1307 = arith.addf %1303, %1306 : vector<8x32xf32>
    %1308 = vector.extract_strided_slice %1272 {offsets = [0, 4], sizes = [8, 32], strides = [1, 1]} : vector<8x37xf32> to vector<8x32xf32>
    %cst_338 = arith.constant -0.0255434643 : f32
    %1309 = vector.broadcast %cst_338 : f32 to vector<8x32xf32>
    %1310 = arith.mulf %1309, %1308 : vector<8x32xf32>
    %1311 = arith.addf %1307, %1310 : vector<8x32xf32>
    %1312 = vector.extract_strided_slice %1271 {offsets = [0, 5], sizes = [8, 32], strides = [1, 1]} : vector<8x37xf32> to vector<8x32xf32>
    %cst_339 = arith.constant 0.00938946381 : f32
    %1313 = vector.broadcast %cst_339 : f32 to vector<8x32xf32>
    %1314 = arith.mulf %1313, %1312 : vector<8x32xf32>
    %1315 = arith.addf %1311, %1314 : vector<8x32xf32>
    %1316 = vector.extract_strided_slice %1272 {offsets = [0, 5], sizes = [8, 32], strides = [1, 1]} : vector<8x37xf32> to vector<8x32xf32>
    %cst_340 = arith.constant 0.00202896656 : f32
    %1317 = vector.broadcast %cst_340 : f32 to vector<8x32xf32>
    %1318 = arith.mulf %1317, %1316 : vector<8x32xf32>
    %1319 = arith.addf %1315, %1318 : vector<8x32xf32>
    %c2_341 = arith.constant 2 : index
    %c0_342 = arith.constant 0 : index
    %c0_343 = arith.constant 0 : index
    %1320 = vector.load %arg2[%c2_341, %c0_342, %c0_343] : memref<3x8x24xf32, #tpu.memory_space<vmem>>, vector<1x8x24xf32>
    %1321 = vector.shape_cast %1320 : vector<1x8x24xf32> to vector<8x24xf32>
    %c2_344 = arith.constant 2 : index
    %c0_345 = arith.constant 0 : index
    %c0_346 = arith.constant 0 : index
    %1322 = vector.load %arg3[%c2_344, %c0_345, %c0_346] : memref<3x8x1xf32, #tpu.memory_space<vmem>>, vector<1x8x1xf32>
    %1323 = vector.shape_cast %1322 : vector<1x8x1xf32> to vector<8x1xf32>
    %cst_347 = arith.constant 0.000000e+00 : f32
    %1324 = vector.broadcast %cst_347 : f32 to vector<8x5xf32>
    %c0_348 = arith.constant 0 : index
    %c0_349 = arith.constant 0 : index
    %1325 = vector.load %arg12[%c0_348, %c0_349] : memref<24x32xf32, #tpu.memory_space<vmem>>, vector<8x5xf32>
    tpu.vector_store %arg12[%c0_348, %c0_349], %1324 {strides = array<i32>} : memref<24x32xf32, #tpu.memory_space<vmem>>, vector<8x5xf32>,
    %1326 = vector.extract_strided_slice %1319 {offsets = [0, 0], sizes = [8, 27], strides = [1, 1]} : vector<8x32xf32> to vector<8x27xf32>
    %c0_350 = arith.constant 0 : index
    %c5 = arith.constant 5 : index
    %1327 = vector.load %arg12[%c0_350, %c5] : memref<24x32xf32, #tpu.memory_space<vmem>>, vector<8x27xf32>
    tpu.vector_store %arg12[%c0_350, %c5], %1326 {strides = array<i32>} : memref<24x32xf32, #tpu.memory_space<vmem>>, vector<8x27xf32>,
    %c8_351 = arith.constant 8 : index
    %c0_352 = arith.constant 0 : index
    %1328 = vector.load %arg12[%c8_351, %c0_352] : memref<24x32xf32, #tpu.memory_space<vmem>>, vector<8x32xf32>
    tpu.vector_store %arg12[%c8_351, %c0_352], %1319 {strides = array<i32>} : memref<24x32xf32, #tpu.memory_space<vmem>>, vector<8x32xf32>,
    %1329 = vector.extract_strided_slice %1319 {offsets = [0, 5], sizes = [8, 27], strides = [1, 1]} : vector<8x32xf32> to vector<8x27xf32>
    %c16_353 = arith.constant 16 : index
    %c0_354 = arith.constant 0 : index
    %1330 = vector.load %arg12[%c16_353, %c0_354] : memref<24x32xf32, #tpu.memory_space<vmem>>, vector<8x27xf32>
    tpu.vector_store %arg12[%c16_353, %c0_354], %1329 {strides = array<i32>} : memref<24x32xf32, #tpu.memory_space<vmem>>, vector<8x27xf32>,
    %cst_355 = arith.constant 0.000000e+00 : f32
    %1331 = vector.broadcast %cst_355 : f32 to vector<8x5xf32>
    %c16_356 = arith.constant 16 : index
    %c27 = arith.constant 27 : index
    %1332 = vector.load %arg12[%c16_356, %c27] : memref<24x32xf32, #tpu.memory_space<vmem>>, vector<8x5xf32>
    tpu.vector_store %arg12[%c16_356, %c27], %1331 {strides = array<i32>} : memref<24x32xf32, #tpu.memory_space<vmem>>, vector<8x5xf32>,
    %c0_357 = arith.constant 0 : index
    %c0_358 = arith.constant 0 : index
    %1333 = vector.load %arg12[%c0_357, %c0_358] : memref<24x32xf32, #tpu.memory_space<vmem>>, vector<24x32xf32>
    %1334 = vector.extract_strided_slice %1321 {offsets = [0, 0], sizes = [8, 1], strides = [1, 1]} : vector<8x24xf32> to vector<8x1xf32>
    %1335 = vector.extract_strided_slice %1333 {offsets = [0, 0], sizes = [1, 32], strides = [1, 1]} : vector<24x32xf32> to vector<1x32xf32>
    %1336 = vector.broadcast %1334 : vector<8x1xf32> to vector<8x32xf32>
    %1337 = vector.broadcast %1335 : vector<1x32xf32> to vector<8x32xf32>
    %1338 = arith.mulf %1336, %1337 : vector<8x32xf32>
    %1339 = vector.extract_strided_slice %1321 {offsets = [0, 1], sizes = [8, 1], strides = [1, 1]} : vector<8x24xf32> to vector<8x1xf32>
    %1340 = vector.extract_strided_slice %1333 {offsets = [1, 0], sizes = [1, 32], strides = [1, 1]} : vector<24x32xf32> to vector<1x32xf32>
    %1341 = vector.broadcast %1339 : vector<8x1xf32> to vector<8x32xf32>
    %1342 = vector.broadcast %1340 : vector<1x32xf32> to vector<8x32xf32>
    %1343 = arith.mulf %1341, %1342 : vector<8x32xf32>
    %1344 = arith.addf %1338, %1343 : vector<8x32xf32>
    %1345 = vector.extract_strided_slice %1321 {offsets = [0, 2], sizes = [8, 1], strides = [1, 1]} : vector<8x24xf32> to vector<8x1xf32>
    %1346 = vector.extract_strided_slice %1333 {offsets = [2, 0], sizes = [1, 32], strides = [1, 1]} : vector<24x32xf32> to vector<1x32xf32>
    %1347 = vector.broadcast %1345 : vector<8x1xf32> to vector<8x32xf32>
    %1348 = vector.broadcast %1346 : vector<1x32xf32> to vector<8x32xf32>
    %1349 = arith.mulf %1347, %1348 : vector<8x32xf32>
    %1350 = arith.addf %1344, %1349 : vector<8x32xf32>
    %1351 = vector.extract_strided_slice %1321 {offsets = [0, 3], sizes = [8, 1], strides = [1, 1]} : vector<8x24xf32> to vector<8x1xf32>
    %1352 = vector.extract_strided_slice %1333 {offsets = [3, 0], sizes = [1, 32], strides = [1, 1]} : vector<24x32xf32> to vector<1x32xf32>
    %1353 = vector.broadcast %1351 : vector<8x1xf32> to vector<8x32xf32>
    %1354 = vector.broadcast %1352 : vector<1x32xf32> to vector<8x32xf32>
    %1355 = arith.mulf %1353, %1354 : vector<8x32xf32>
    %1356 = arith.addf %1350, %1355 : vector<8x32xf32>
    %1357 = vector.extract_strided_slice %1321 {offsets = [0, 4], sizes = [8, 1], strides = [1, 1]} : vector<8x24xf32> to vector<8x1xf32>
    %1358 = vector.extract_strided_slice %1333 {offsets = [4, 0], sizes = [1, 32], strides = [1, 1]} : vector<24x32xf32> to vector<1x32xf32>
    %1359 = vector.broadcast %1357 : vector<8x1xf32> to vector<8x32xf32>
    %1360 = vector.broadcast %1358 : vector<1x32xf32> to vector<8x32xf32>
    %1361 = arith.mulf %1359, %1360 : vector<8x32xf32>
    %1362 = arith.addf %1356, %1361 : vector<8x32xf32>
    %1363 = vector.extract_strided_slice %1321 {offsets = [0, 5], sizes = [8, 1], strides = [1, 1]} : vector<8x24xf32> to vector<8x1xf32>
    %1364 = vector.extract_strided_slice %1333 {offsets = [5, 0], sizes = [1, 32], strides = [1, 1]} : vector<24x32xf32> to vector<1x32xf32>
    %1365 = vector.broadcast %1363 : vector<8x1xf32> to vector<8x32xf32>
    %1366 = vector.broadcast %1364 : vector<1x32xf32> to vector<8x32xf32>
    %1367 = arith.mulf %1365, %1366 : vector<8x32xf32>
    %1368 = arith.addf %1362, %1367 : vector<8x32xf32>
    %1369 = vector.extract_strided_slice %1321 {offsets = [0, 6], sizes = [8, 1], strides = [1, 1]} : vector<8x24xf32> to vector<8x1xf32>
    %1370 = vector.extract_strided_slice %1333 {offsets = [6, 0], sizes = [1, 32], strides = [1, 1]} : vector<24x32xf32> to vector<1x32xf32>
    %1371 = vector.broadcast %1369 : vector<8x1xf32> to vector<8x32xf32>
    %1372 = vector.broadcast %1370 : vector<1x32xf32> to vector<8x32xf32>
    %1373 = arith.mulf %1371, %1372 : vector<8x32xf32>
    %1374 = arith.addf %1368, %1373 : vector<8x32xf32>
    %1375 = vector.extract_strided_slice %1321 {offsets = [0, 7], sizes = [8, 1], strides = [1, 1]} : vector<8x24xf32> to vector<8x1xf32>
    %1376 = vector.extract_strided_slice %1333 {offsets = [7, 0], sizes = [1, 32], strides = [1, 1]} : vector<24x32xf32> to vector<1x32xf32>
    %1377 = vector.broadcast %1375 : vector<8x1xf32> to vector<8x32xf32>
    %1378 = vector.broadcast %1376 : vector<1x32xf32> to vector<8x32xf32>
    %1379 = arith.mulf %1377, %1378 : vector<8x32xf32>
    %1380 = arith.addf %1374, %1379 : vector<8x32xf32>
    %1381 = vector.extract_strided_slice %1321 {offsets = [0, 8], sizes = [8, 1], strides = [1, 1]} : vector<8x24xf32> to vector<8x1xf32>
    %1382 = vector.extract_strided_slice %1333 {offsets = [8, 0], sizes = [1, 32], strides = [1, 1]} : vector<24x32xf32> to vector<1x32xf32>
    %1383 = vector.broadcast %1381 : vector<8x1xf32> to vector<8x32xf32>
    %1384 = vector.broadcast %1382 : vector<1x32xf32> to vector<8x32xf32>
    %1385 = arith.mulf %1383, %1384 : vector<8x32xf32>
    %1386 = vector.extract_strided_slice %1321 {offsets = [0, 9], sizes = [8, 1], strides = [1, 1]} : vector<8x24xf32> to vector<8x1xf32>
    %1387 = vector.extract_strided_slice %1333 {offsets = [9, 0], sizes = [1, 32], strides = [1, 1]} : vector<24x32xf32> to vector<1x32xf32>
    %1388 = vector.broadcast %1386 : vector<8x1xf32> to vector<8x32xf32>
    %1389 = vector.broadcast %1387 : vector<1x32xf32> to vector<8x32xf32>
    %1390 = arith.mulf %1388, %1389 : vector<8x32xf32>
    %1391 = arith.addf %1385, %1390 : vector<8x32xf32>
    %1392 = vector.extract_strided_slice %1321 {offsets = [0, 10], sizes = [8, 1], strides = [1, 1]} : vector<8x24xf32> to vector<8x1xf32>
    %1393 = vector.extract_strided_slice %1333 {offsets = [10, 0], sizes = [1, 32], strides = [1, 1]} : vector<24x32xf32> to vector<1x32xf32>
    %1394 = vector.broadcast %1392 : vector<8x1xf32> to vector<8x32xf32>
    %1395 = vector.broadcast %1393 : vector<1x32xf32> to vector<8x32xf32>
    %1396 = arith.mulf %1394, %1395 : vector<8x32xf32>
    %1397 = arith.addf %1391, %1396 : vector<8x32xf32>
    %1398 = vector.extract_strided_slice %1321 {offsets = [0, 11], sizes = [8, 1], strides = [1, 1]} : vector<8x24xf32> to vector<8x1xf32>
    %1399 = vector.extract_strided_slice %1333 {offsets = [11, 0], sizes = [1, 32], strides = [1, 1]} : vector<24x32xf32> to vector<1x32xf32>
    %1400 = vector.broadcast %1398 : vector<8x1xf32> to vector<8x32xf32>
    %1401 = vector.broadcast %1399 : vector<1x32xf32> to vector<8x32xf32>
    %1402 = arith.mulf %1400, %1401 : vector<8x32xf32>
    %1403 = arith.addf %1397, %1402 : vector<8x32xf32>
    %1404 = vector.extract_strided_slice %1321 {offsets = [0, 12], sizes = [8, 1], strides = [1, 1]} : vector<8x24xf32> to vector<8x1xf32>
    %1405 = vector.extract_strided_slice %1333 {offsets = [12, 0], sizes = [1, 32], strides = [1, 1]} : vector<24x32xf32> to vector<1x32xf32>
    %1406 = vector.broadcast %1404 : vector<8x1xf32> to vector<8x32xf32>
    %1407 = vector.broadcast %1405 : vector<1x32xf32> to vector<8x32xf32>
    %1408 = arith.mulf %1406, %1407 : vector<8x32xf32>
    %1409 = arith.addf %1403, %1408 : vector<8x32xf32>
    %1410 = vector.extract_strided_slice %1321 {offsets = [0, 13], sizes = [8, 1], strides = [1, 1]} : vector<8x24xf32> to vector<8x1xf32>
    %1411 = vector.extract_strided_slice %1333 {offsets = [13, 0], sizes = [1, 32], strides = [1, 1]} : vector<24x32xf32> to vector<1x32xf32>
    %1412 = vector.broadcast %1410 : vector<8x1xf32> to vector<8x32xf32>
    %1413 = vector.broadcast %1411 : vector<1x32xf32> to vector<8x32xf32>
    %1414 = arith.mulf %1412, %1413 : vector<8x32xf32>
    %1415 = arith.addf %1409, %1414 : vector<8x32xf32>
    %1416 = vector.extract_strided_slice %1321 {offsets = [0, 14], sizes = [8, 1], strides = [1, 1]} : vector<8x24xf32> to vector<8x1xf32>
    %1417 = vector.extract_strided_slice %1333 {offsets = [14, 0], sizes = [1, 32], strides = [1, 1]} : vector<24x32xf32> to vector<1x32xf32>
    %1418 = vector.broadcast %1416 : vector<8x1xf32> to vector<8x32xf32>
    %1419 = vector.broadcast %1417 : vector<1x32xf32> to vector<8x32xf32>
    %1420 = arith.mulf %1418, %1419 : vector<8x32xf32>
    %1421 = arith.addf %1415, %1420 : vector<8x32xf32>
    %1422 = vector.extract_strided_slice %1321 {offsets = [0, 15], sizes = [8, 1], strides = [1, 1]} : vector<8x24xf32> to vector<8x1xf32>
    %1423 = vector.extract_strided_slice %1333 {offsets = [15, 0], sizes = [1, 32], strides = [1, 1]} : vector<24x32xf32> to vector<1x32xf32>
    %1424 = vector.broadcast %1422 : vector<8x1xf32> to vector<8x32xf32>
    %1425 = vector.broadcast %1423 : vector<1x32xf32> to vector<8x32xf32>
    %1426 = arith.mulf %1424, %1425 : vector<8x32xf32>
    %1427 = arith.addf %1421, %1426 : vector<8x32xf32>
    %1428 = vector.extract_strided_slice %1321 {offsets = [0, 16], sizes = [8, 1], strides = [1, 1]} : vector<8x24xf32> to vector<8x1xf32>
    %1429 = vector.extract_strided_slice %1333 {offsets = [16, 0], sizes = [1, 32], strides = [1, 1]} : vector<24x32xf32> to vector<1x32xf32>
    %1430 = vector.broadcast %1428 : vector<8x1xf32> to vector<8x32xf32>
    %1431 = vector.broadcast %1429 : vector<1x32xf32> to vector<8x32xf32>
    %1432 = arith.mulf %1430, %1431 : vector<8x32xf32>
    %1433 = vector.extract_strided_slice %1321 {offsets = [0, 17], sizes = [8, 1], strides = [1, 1]} : vector<8x24xf32> to vector<8x1xf32>
    %1434 = vector.extract_strided_slice %1333 {offsets = [17, 0], sizes = [1, 32], strides = [1, 1]} : vector<24x32xf32> to vector<1x32xf32>
    %1435 = vector.broadcast %1433 : vector<8x1xf32> to vector<8x32xf32>
    %1436 = vector.broadcast %1434 : vector<1x32xf32> to vector<8x32xf32>
    %1437 = arith.mulf %1435, %1436 : vector<8x32xf32>
    %1438 = arith.addf %1432, %1437 : vector<8x32xf32>
    %1439 = vector.extract_strided_slice %1321 {offsets = [0, 18], sizes = [8, 1], strides = [1, 1]} : vector<8x24xf32> to vector<8x1xf32>
    %1440 = vector.extract_strided_slice %1333 {offsets = [18, 0], sizes = [1, 32], strides = [1, 1]} : vector<24x32xf32> to vector<1x32xf32>
    %1441 = vector.broadcast %1439 : vector<8x1xf32> to vector<8x32xf32>
    %1442 = vector.broadcast %1440 : vector<1x32xf32> to vector<8x32xf32>
    %1443 = arith.mulf %1441, %1442 : vector<8x32xf32>
    %1444 = arith.addf %1438, %1443 : vector<8x32xf32>
    %1445 = vector.extract_strided_slice %1321 {offsets = [0, 19], sizes = [8, 1], strides = [1, 1]} : vector<8x24xf32> to vector<8x1xf32>
    %1446 = vector.extract_strided_slice %1333 {offsets = [19, 0], sizes = [1, 32], strides = [1, 1]} : vector<24x32xf32> to vector<1x32xf32>
    %1447 = vector.broadcast %1445 : vector<8x1xf32> to vector<8x32xf32>
    %1448 = vector.broadcast %1446 : vector<1x32xf32> to vector<8x32xf32>
    %1449 = arith.mulf %1447, %1448 : vector<8x32xf32>
    %1450 = arith.addf %1444, %1449 : vector<8x32xf32>
    %1451 = vector.extract_strided_slice %1321 {offsets = [0, 20], sizes = [8, 1], strides = [1, 1]} : vector<8x24xf32> to vector<8x1xf32>
    %1452 = vector.extract_strided_slice %1333 {offsets = [20, 0], sizes = [1, 32], strides = [1, 1]} : vector<24x32xf32> to vector<1x32xf32>
    %1453 = vector.broadcast %1451 : vector<8x1xf32> to vector<8x32xf32>
    %1454 = vector.broadcast %1452 : vector<1x32xf32> to vector<8x32xf32>
    %1455 = arith.mulf %1453, %1454 : vector<8x32xf32>
    %1456 = arith.addf %1450, %1455 : vector<8x32xf32>
    %1457 = vector.extract_strided_slice %1321 {offsets = [0, 21], sizes = [8, 1], strides = [1, 1]} : vector<8x24xf32> to vector<8x1xf32>
    %1458 = vector.extract_strided_slice %1333 {offsets = [21, 0], sizes = [1, 32], strides = [1, 1]} : vector<24x32xf32> to vector<1x32xf32>
    %1459 = vector.broadcast %1457 : vector<8x1xf32> to vector<8x32xf32>
    %1460 = vector.broadcast %1458 : vector<1x32xf32> to vector<8x32xf32>
    %1461 = arith.mulf %1459, %1460 : vector<8x32xf32>
    %1462 = arith.addf %1456, %1461 : vector<8x32xf32>
    %1463 = vector.extract_strided_slice %1321 {offsets = [0, 22], sizes = [8, 1], strides = [1, 1]} : vector<8x24xf32> to vector<8x1xf32>
    %1464 = vector.extract_strided_slice %1333 {offsets = [22, 0], sizes = [1, 32], strides = [1, 1]} : vector<24x32xf32> to vector<1x32xf32>
    %1465 = vector.broadcast %1463 : vector<8x1xf32> to vector<8x32xf32>
    %1466 = vector.broadcast %1464 : vector<1x32xf32> to vector<8x32xf32>
    %1467 = arith.mulf %1465, %1466 : vector<8x32xf32>
    %1468 = arith.addf %1462, %1467 : vector<8x32xf32>
    %1469 = vector.extract_strided_slice %1321 {offsets = [0, 23], sizes = [8, 1], strides = [1, 1]} : vector<8x24xf32> to vector<8x1xf32>
    %1470 = vector.extract_strided_slice %1333 {offsets = [23, 0], sizes = [1, 32], strides = [1, 1]} : vector<24x32xf32> to vector<1x32xf32>
    %1471 = vector.broadcast %1469 : vector<8x1xf32> to vector<8x32xf32>
    %1472 = vector.broadcast %1470 : vector<1x32xf32> to vector<8x32xf32>
    %1473 = arith.mulf %1471, %1472 : vector<8x32xf32>
    %1474 = arith.addf %1468, %1473 : vector<8x32xf32>
    %1475 = arith.addf %1380, %1427 : vector<8x32xf32>
    %1476 = arith.addf %1475, %1474 : vector<8x32xf32>
    %1477 = vector.broadcast %1323 : vector<8x1xf32> to vector<8x32xf32>
    %1478 = arith.addf %1476, %1477 : vector<8x32xf32>
    %c5_359 = arith.constant 5 : index
    %c0_360 = arith.constant 0 : index
    %c0_361 = arith.constant 0 : index
    %1479 = vector.load %arg6[%c5_359, %c0_360, %c0_361] : memref<6x8x1xf32, #tpu.memory_space<vmem>>, vector<1x8x1xf32>
    %1480 = vector.shape_cast %1479 : vector<1x8x1xf32> to vector<8x1xf32>
    %c5_362 = arith.constant 5 : index
    %c0_363 = arith.constant 0 : index
    %c0_364 = arith.constant 0 : index
    %1481 = vector.load %arg7[%c5_362, %c0_363, %c0_364] : memref<6x8x1xf32, #tpu.memory_space<vmem>>, vector<1x8x1xf32>
    %1482 = vector.shape_cast %1481 : vector<1x8x1xf32> to vector<8x1xf32>
    %1483 = vector.extract_strided_slice %1478 {offsets = [0, 0], sizes = [8, 1], strides = [1, 1]} : vector<8x32xf32> to vector<8x1xf32>
    %1484 = vector.shape_cast %1483 : vector<8x1xf32> to vector<8x1xf32>
    %1485 = vector.broadcast %1484 : vector<8x1xf32> to vector<8x3xf32>
    %c0_365 = arith.constant 0 : index
    %c0_366 = arith.constant 0 : index
    %1486 = vector.load %arg9[%c0_365, %c0_366] : memref<8x38xf32, #tpu.memory_space<vmem>>, vector<8x3xf32>
    tpu.vector_store %arg9[%c0_365, %c0_366], %1485 {strides = array<i32>} : memref<8x38xf32, #tpu.memory_space<vmem>>, vector<8x3xf32>,
    %c0_367 = arith.constant 0 : index
    %c3_368 = arith.constant 3 : index
    %1487 = vector.load %arg9[%c0_367, %c3_368] : memref<8x38xf32, #tpu.memory_space<vmem>>, vector<8x32xf32>
    tpu.vector_store %arg9[%c0_367, %c3_368], %1478 {strides = array<i32>} : memref<8x38xf32, #tpu.memory_space<vmem>>, vector<8x32xf32>,
    %1488 = vector.extract_strided_slice %1478 {offsets = [0, 31], sizes = [8, 1], strides = [1, 1]} : vector<8x32xf32> to vector<8x1xf32>
    %1489 = vector.shape_cast %1488 : vector<8x1xf32> to vector<8x1xf32>
    %1490 = vector.broadcast %1489 : vector<8x1xf32> to vector<8x3xf32>
    %c0_369 = arith.constant 0 : index
    %c35_370 = arith.constant 35 : index
    %1491 = vector.load %arg9[%c0_369, %c35_370] : memref<8x38xf32, #tpu.memory_space<vmem>>, vector<8x3xf32>
    tpu.vector_store %arg9[%c0_369, %c35_370], %1490 {strides = array<i32>} : memref<8x38xf32, #tpu.memory_space<vmem>>, vector<8x3xf32>,
    %c0_371 = arith.constant 0 : index
    %c0_372 = arith.constant 0 : index
    %1492 = vector.load %arg9[%c0_371, %c0_372] : memref<8x38xf32, #tpu.memory_space<vmem>>, vector<8x38xf32>
    %1493 = vector.extract_strided_slice %1492 {offsets = [0, 0], sizes = [8, 32], strides = [1, 1]} : vector<8x38xf32> to vector<8x32xf32>
    %1494 = vector.extract_strided_slice %1492 {offsets = [0, 1], sizes = [8, 32], strides = [1, 1]} : vector<8x38xf32> to vector<8x32xf32>
    %1495 = vector.extract_strided_slice %1492 {offsets = [0, 2], sizes = [8, 32], strides = [1, 1]} : vector<8x38xf32> to vector<8x32xf32>
    %1496 = vector.extract_strided_slice %1492 {offsets = [0, 3], sizes = [8, 32], strides = [1, 1]} : vector<8x38xf32> to vector<8x32xf32>
    %1497 = vector.extract_strided_slice %1492 {offsets = [0, 4], sizes = [8, 32], strides = [1, 1]} : vector<8x38xf32> to vector<8x32xf32>
    %1498 = vector.extract_strided_slice %1492 {offsets = [0, 5], sizes = [8, 32], strides = [1, 1]} : vector<8x38xf32> to vector<8x32xf32>
    %1499 = vector.extract_strided_slice %1492 {offsets = [0, 6], sizes = [8, 32], strides = [1, 1]} : vector<8x38xf32> to vector<8x32xf32>
    %cst_373 = arith.constant 0.0187789276 : f32
    %1500 = vector.broadcast %cst_373 : f32 to vector<8x32xf32>
    %1501 = arith.mulf %1500, %1498 : vector<8x32xf32>
    %cst_374 = arith.constant 0.00405793311 : f32
    %1502 = vector.broadcast %cst_374 : f32 to vector<8x32xf32>
    %1503 = arith.mulf %1502, %1499 : vector<8x32xf32>
    %cst_375 = arith.constant -0.115314752 : f32
    %1504 = vector.broadcast %cst_375 : f32 to vector<8x32xf32>
    %1505 = arith.mulf %1504, %1497 : vector<8x32xf32>
    %1506 = arith.addf %1501, %1505 : vector<8x32xf32>
    %cst_376 = arith.constant -0.0510869287 : f32
    %1507 = vector.broadcast %cst_376 : f32 to vector<8x32xf32>
    %1508 = arith.mulf %1507, %1498 : vector<8x32xf32>
    %1509 = arith.addf %1503, %1508 : vector<8x32xf32>
    %cst_377 = arith.constant 0.886419594 : f32
    %1510 = vector.broadcast %cst_377 : f32 to vector<8x32xf32>
    %1511 = arith.mulf %1510, %1496 : vector<8x32xf32>
    %1512 = arith.addf %1506, %1511 : vector<8x32xf32>
    %cst_378 = arith.constant 0.257145226 : f32
    %1513 = vector.broadcast %cst_378 : f32 to vector<8x32xf32>
    %1514 = arith.mulf %1513, %1497 : vector<8x32xf32>
    %1515 = arith.addf %1509, %1514 : vector<8x32xf32>
    %cst_379 = arith.constant 0.257145226 : f32
    %1516 = vector.broadcast %cst_379 : f32 to vector<8x32xf32>
    %1517 = arith.mulf %1516, %1495 : vector<8x32xf32>
    %1518 = arith.addf %1512, %1517 : vector<8x32xf32>
    %cst_380 = arith.constant 0.886419594 : f32
    %1519 = vector.broadcast %cst_380 : f32 to vector<8x32xf32>
    %1520 = arith.mulf %1519, %1496 : vector<8x32xf32>
    %1521 = arith.addf %1515, %1520 : vector<8x32xf32>
    %cst_381 = arith.constant -0.0510869287 : f32
    %1522 = vector.broadcast %cst_381 : f32 to vector<8x32xf32>
    %1523 = arith.mulf %1522, %1494 : vector<8x32xf32>
    %1524 = arith.addf %1518, %1523 : vector<8x32xf32>
    %cst_382 = arith.constant -0.115314752 : f32
    %1525 = vector.broadcast %cst_382 : f32 to vector<8x32xf32>
    %1526 = arith.mulf %1525, %1495 : vector<8x32xf32>
    %1527 = arith.addf %1521, %1526 : vector<8x32xf32>
    %cst_383 = arith.constant 0.00405793311 : f32
    %1528 = vector.broadcast %cst_383 : f32 to vector<8x32xf32>
    %1529 = arith.mulf %1528, %1493 : vector<8x32xf32>
    %1530 = arith.addf %1524, %1529 : vector<8x32xf32>
    %cst_384 = arith.constant 0.0187789276 : f32
    %1531 = vector.broadcast %cst_384 : f32 to vector<8x32xf32>
    %1532 = arith.mulf %1531, %1494 : vector<8x32xf32>
    %1533 = arith.addf %1527, %1532 : vector<8x32xf32>
    %1534 = vector.broadcast %1480 : vector<8x1xf32> to vector<8x32xf32>
    %1535 = arith.mulf %1530, %1534 : vector<8x32xf32>
    %1536 = math.sin %1535 : vector<8x32xf32>
    %1537 = arith.mulf %1536, %1536 : vector<8x32xf32>
    %1538 = vector.broadcast %1482 : vector<8x1xf32> to vector<8x32xf32>
    %1539 = arith.mulf %1538, %1537 : vector<8x32xf32>
    %1540 = arith.addf %1530, %1539 : vector<8x32xf32>
    %1541 = vector.broadcast %1480 : vector<8x1xf32> to vector<8x32xf32>
    %1542 = arith.mulf %1533, %1541 : vector<8x32xf32>
    %1543 = math.sin %1542 : vector<8x32xf32>
    %1544 = arith.mulf %1543, %1543 : vector<8x32xf32>
    %1545 = vector.broadcast %1482 : vector<8x1xf32> to vector<8x32xf32>
    %1546 = arith.mulf %1545, %1544 : vector<8x32xf32>
    %1547 = arith.addf %1533, %1546 : vector<8x32xf32>
    %1548 = vector.extract_strided_slice %1540 {offsets = [0, 0], sizes = [8, 1], strides = [1, 1]} : vector<8x32xf32> to vector<8x1xf32>
    %1549 = vector.shape_cast %1548 : vector<8x1xf32> to vector<8x1xf32>
    %1550 = vector.broadcast %1549 : vector<8x1xf32> to vector<8x3xf32>
    %c0_385 = arith.constant 0 : index
    %c0_386 = arith.constant 0 : index
    %1551 = vector.load %arg10[%c0_385, %c0_386] : memref<8x37xf32, #tpu.memory_space<vmem>>, vector<8x3xf32>
    tpu.vector_store %arg10[%c0_385, %c0_386], %1550 {strides = array<i32>} : memref<8x37xf32, #tpu.memory_space<vmem>>, vector<8x3xf32>,
    %c0_387 = arith.constant 0 : index
    %c3_388 = arith.constant 3 : index
    %1552 = vector.load %arg10[%c0_387, %c3_388] : memref<8x37xf32, #tpu.memory_space<vmem>>, vector<8x32xf32>
    tpu.vector_store %arg10[%c0_387, %c3_388], %1547 {strides = array<i32>} : memref<8x37xf32, #tpu.memory_space<vmem>>, vector<8x32xf32>,
    %1553 = vector.extract_strided_slice %1547 {offsets = [0, 31], sizes = [8, 1], strides = [1, 1]} : vector<8x32xf32> to vector<8x1xf32>
    %1554 = vector.shape_cast %1553 : vector<8x1xf32> to vector<8x1xf32>
    %1555 = vector.broadcast %1554 : vector<8x1xf32> to vector<8x2xf32>
    %c0_389 = arith.constant 0 : index
    %c35_390 = arith.constant 35 : index
    %1556 = vector.load %arg10[%c0_389, %c35_390] : memref<8x37xf32, #tpu.memory_space<vmem>>, vector<8x2xf32>
    tpu.vector_store %arg10[%c0_389, %c35_390], %1555 {strides = array<i32>} : memref<8x37xf32, #tpu.memory_space<vmem>>, vector<8x2xf32>,
    %1557 = vector.extract_strided_slice %1540 {offsets = [0, 0], sizes = [8, 1], strides = [1, 1]} : vector<8x32xf32> to vector<8x1xf32>
    %1558 = vector.shape_cast %1557 : vector<8x1xf32> to vector<8x1xf32>
    %1559 = vector.broadcast %1558 : vector<8x1xf32> to vector<8x2xf32>
    %c0_391 = arith.constant 0 : index
    %c0_392 = arith.constant 0 : index
    %1560 = vector.load %arg11[%c0_391, %c0_392] : memref<8x37xf32, #tpu.memory_space<vmem>>, vector<8x2xf32>
    tpu.vector_store %arg11[%c0_391, %c0_392], %1559 {strides = array<i32>} : memref<8x37xf32, #tpu.memory_space<vmem>>, vector<8x2xf32>,
    %c0_393 = arith.constant 0 : index
    %c2_394 = arith.constant 2 : index
    %1561 = vector.load %arg11[%c0_393, %c2_394] : memref<8x37xf32, #tpu.memory_space<vmem>>, vector<8x32xf32>
    tpu.vector_store %arg11[%c0_393, %c2_394], %1540 {strides = array<i32>} : memref<8x37xf32, #tpu.memory_space<vmem>>, vector<8x32xf32>,
    %1562 = vector.extract_strided_slice %1547 {offsets = [0, 31], sizes = [8, 1], strides = [1, 1]} : vector<8x32xf32> to vector<8x1xf32>
    %1563 = vector.shape_cast %1562 : vector<8x1xf32> to vector<8x1xf32>
    %1564 = vector.broadcast %1563 : vector<8x1xf32> to vector<8x3xf32>
    %c0_395 = arith.constant 0 : index
    %c34_396 = arith.constant 34 : index
    %1565 = vector.load %arg11[%c0_395, %c34_396] : memref<8x37xf32, #tpu.memory_space<vmem>>, vector<8x3xf32>
    tpu.vector_store %arg11[%c0_395, %c34_396], %1564 {strides = array<i32>} : memref<8x37xf32, #tpu.memory_space<vmem>>, vector<8x3xf32>,
    %c0_397 = arith.constant 0 : index
    %c0_398 = arith.constant 0 : index
    %1566 = vector.load %arg10[%c0_397, %c0_398] : memref<8x37xf32, #tpu.memory_space<vmem>>, vector<8x37xf32>
    %c0_399 = arith.constant 0 : index
    %c0_400 = arith.constant 0 : index
    %1567 = vector.load %arg11[%c0_399, %c0_400] : memref<8x37xf32, #tpu.memory_space<vmem>>, vector<8x37xf32>
    %1568 = vector.extract_strided_slice %1566 {offsets = [0, 0], sizes = [8, 32], strides = [1, 1]} : vector<8x37xf32> to vector<8x32xf32>
    %cst_401 = arith.constant 0.00202896656 : f32
    %1569 = vector.broadcast %cst_401 : f32 to vector<8x32xf32>
    %1570 = arith.mulf %1569, %1568 : vector<8x32xf32>
    %1571 = vector.extract_strided_slice %1567 {offsets = [0, 0], sizes = [8, 32], strides = [1, 1]} : vector<8x37xf32> to vector<8x32xf32>
    %cst_402 = arith.constant 0.00938946381 : f32
    %1572 = vector.broadcast %cst_402 : f32 to vector<8x32xf32>
    %1573 = arith.mulf %1572, %1571 : vector<8x32xf32>
    %1574 = arith.addf %1570, %1573 : vector<8x32xf32>
    %1575 = vector.extract_strided_slice %1566 {offsets = [0, 1], sizes = [8, 32], strides = [1, 1]} : vector<8x37xf32> to vector<8x32xf32>
    %cst_403 = arith.constant -0.0255434643 : f32
    %1576 = vector.broadcast %cst_403 : f32 to vector<8x32xf32>
    %1577 = arith.mulf %1576, %1575 : vector<8x32xf32>
    %1578 = arith.addf %1574, %1577 : vector<8x32xf32>
    %1579 = vector.extract_strided_slice %1567 {offsets = [0, 1], sizes = [8, 32], strides = [1, 1]} : vector<8x37xf32> to vector<8x32xf32>
    %cst_404 = arith.constant -0.0576573759 : f32
    %1580 = vector.broadcast %cst_404 : f32 to vector<8x32xf32>
    %1581 = arith.mulf %1580, %1579 : vector<8x32xf32>
    %1582 = arith.addf %1578, %1581 : vector<8x32xf32>
    %1583 = vector.extract_strided_slice %1566 {offsets = [0, 2], sizes = [8, 32], strides = [1, 1]} : vector<8x37xf32> to vector<8x32xf32>
    %cst_405 = arith.constant 0.128572613 : f32
    %1584 = vector.broadcast %cst_405 : f32 to vector<8x32xf32>
    %1585 = arith.mulf %1584, %1583 : vector<8x32xf32>
    %1586 = arith.addf %1582, %1585 : vector<8x32xf32>
    %1587 = vector.extract_strided_slice %1567 {offsets = [0, 2], sizes = [8, 32], strides = [1, 1]} : vector<8x37xf32> to vector<8x32xf32>
    %cst_406 = arith.constant 0.443209797 : f32
    %1588 = vector.broadcast %cst_406 : f32 to vector<8x32xf32>
    %1589 = arith.mulf %1588, %1587 : vector<8x32xf32>
    %1590 = arith.addf %1586, %1589 : vector<8x32xf32>
    %1591 = vector.extract_strided_slice %1566 {offsets = [0, 3], sizes = [8, 32], strides = [1, 1]} : vector<8x37xf32> to vector<8x32xf32>
    %cst_407 = arith.constant 0.443209797 : f32
    %1592 = vector.broadcast %cst_407 : f32 to vector<8x32xf32>
    %1593 = arith.mulf %1592, %1591 : vector<8x32xf32>
    %1594 = arith.addf %1590, %1593 : vector<8x32xf32>
    %1595 = vector.extract_strided_slice %1567 {offsets = [0, 3], sizes = [8, 32], strides = [1, 1]} : vector<8x37xf32> to vector<8x32xf32>
    %cst_408 = arith.constant 0.128572613 : f32
    %1596 = vector.broadcast %cst_408 : f32 to vector<8x32xf32>
    %1597 = arith.mulf %1596, %1595 : vector<8x32xf32>
    %1598 = arith.addf %1594, %1597 : vector<8x32xf32>
    %1599 = vector.extract_strided_slice %1566 {offsets = [0, 4], sizes = [8, 32], strides = [1, 1]} : vector<8x37xf32> to vector<8x32xf32>
    %cst_409 = arith.constant -0.0576573759 : f32
    %1600 = vector.broadcast %cst_409 : f32 to vector<8x32xf32>
    %1601 = arith.mulf %1600, %1599 : vector<8x32xf32>
    %1602 = arith.addf %1598, %1601 : vector<8x32xf32>
    %1603 = vector.extract_strided_slice %1567 {offsets = [0, 4], sizes = [8, 32], strides = [1, 1]} : vector<8x37xf32> to vector<8x32xf32>
    %cst_410 = arith.constant -0.0255434643 : f32
    %1604 = vector.broadcast %cst_410 : f32 to vector<8x32xf32>
    %1605 = arith.mulf %1604, %1603 : vector<8x32xf32>
    %1606 = arith.addf %1602, %1605 : vector<8x32xf32>
    %1607 = vector.extract_strided_slice %1566 {offsets = [0, 5], sizes = [8, 32], strides = [1, 1]} : vector<8x37xf32> to vector<8x32xf32>
    %cst_411 = arith.constant 0.00938946381 : f32
    %1608 = vector.broadcast %cst_411 : f32 to vector<8x32xf32>
    %1609 = arith.mulf %1608, %1607 : vector<8x32xf32>
    %1610 = arith.addf %1606, %1609 : vector<8x32xf32>
    %1611 = vector.extract_strided_slice %1567 {offsets = [0, 5], sizes = [8, 32], strides = [1, 1]} : vector<8x37xf32> to vector<8x32xf32>
    %cst_412 = arith.constant 0.00202896656 : f32
    %1612 = vector.broadcast %cst_412 : f32 to vector<8x32xf32>
    %1613 = arith.mulf %1612, %1611 : vector<8x32xf32>
    %1614 = arith.addf %1610, %1613 : vector<8x32xf32>
    %c2_413 = arith.constant 2 : index
    %c0_414 = arith.constant 0 : index
    %c0_415 = arith.constant 0 : index
    %1615 = vector.load %arg4[%c2_413, %c0_414, %c0_415] : memref<3x8x24xf32, #tpu.memory_space<vmem>>, vector<1x8x24xf32>
    %1616 = vector.shape_cast %1615 : vector<1x8x24xf32> to vector<8x24xf32>
    %c2_416 = arith.constant 2 : index
    %c0_417 = arith.constant 0 : index
    %c0_418 = arith.constant 0 : index
    %1617 = vector.load %arg5[%c2_416, %c0_417, %c0_418] : memref<3x8x1xf32, #tpu.memory_space<vmem>>, vector<1x8x1xf32>
    %1618 = vector.shape_cast %1617 : vector<1x8x1xf32> to vector<8x1xf32>
    %cst_419 = arith.constant 0.000000e+00 : f32
    %1619 = vector.broadcast %cst_419 : f32 to vector<8x1xf32>
    %c0_420 = arith.constant 0 : index
    %c0_421 = arith.constant 0 : index
    %1620 = vector.load %arg12[%c0_420, %c0_421] : memref<24x32xf32, #tpu.memory_space<vmem>>, vector<8x1xf32>
    tpu.vector_store %arg12[%c0_420, %c0_421], %1619 {strides = array<i32>} : memref<24x32xf32, #tpu.memory_space<vmem>>, vector<8x1xf32>,
    %1621 = vector.extract_strided_slice %1614 {offsets = [0, 0], sizes = [8, 31], strides = [1, 1]} : vector<8x32xf32> to vector<8x31xf32>
    %c0_422 = arith.constant 0 : index
    %c1_423 = arith.constant 1 : index
    %1622 = vector.load %arg12[%c0_422, %c1_423] : memref<24x32xf32, #tpu.memory_space<vmem>>, vector<8x31xf32>
    tpu.vector_store %arg12[%c0_422, %c1_423], %1621 {strides = array<i32>} : memref<24x32xf32, #tpu.memory_space<vmem>>, vector<8x31xf32>,
    %c8_424 = arith.constant 8 : index
    %c0_425 = arith.constant 0 : index
    %1623 = vector.load %arg12[%c8_424, %c0_425] : memref<24x32xf32, #tpu.memory_space<vmem>>, vector<8x32xf32>
    tpu.vector_store %arg12[%c8_424, %c0_425], %1614 {strides = array<i32>} : memref<24x32xf32, #tpu.memory_space<vmem>>, vector<8x32xf32>,
    %1624 = vector.extract_strided_slice %1614 {offsets = [0, 1], sizes = [8, 31], strides = [1, 1]} : vector<8x32xf32> to vector<8x31xf32>
    %c16_426 = arith.constant 16 : index
    %c0_427 = arith.constant 0 : index
    %1625 = vector.load %arg12[%c16_426, %c0_427] : memref<24x32xf32, #tpu.memory_space<vmem>>, vector<8x31xf32>
    tpu.vector_store %arg12[%c16_426, %c0_427], %1624 {strides = array<i32>} : memref<24x32xf32, #tpu.memory_space<vmem>>, vector<8x31xf32>,
    %cst_428 = arith.constant 0.000000e+00 : f32
    %1626 = vector.broadcast %cst_428 : f32 to vector<8x1xf32>
    %c16_429 = arith.constant 16 : index
    %c31_430 = arith.constant 31 : index
    %1627 = vector.load %arg12[%c16_429, %c31_430] : memref<24x32xf32, #tpu.memory_space<vmem>>, vector<8x1xf32>
    tpu.vector_store %arg12[%c16_429, %c31_430], %1626 {strides = array<i32>} : memref<24x32xf32, #tpu.memory_space<vmem>>, vector<8x1xf32>,
    %c0_431 = arith.constant 0 : index
    %c0_432 = arith.constant 0 : index
    %1628 = vector.load %arg12[%c0_431, %c0_432] : memref<24x32xf32, #tpu.memory_space<vmem>>, vector<24x32xf32>
    %1629 = vector.extract_strided_slice %1616 {offsets = [0, 0], sizes = [8, 1], strides = [1, 1]} : vector<8x24xf32> to vector<8x1xf32>
    %1630 = vector.extract_strided_slice %1628 {offsets = [0, 0], sizes = [1, 32], strides = [1, 1]} : vector<24x32xf32> to vector<1x32xf32>
    %1631 = vector.broadcast %1629 : vector<8x1xf32> to vector<8x32xf32>
    %1632 = vector.broadcast %1630 : vector<1x32xf32> to vector<8x32xf32>
    %1633 = arith.mulf %1631, %1632 : vector<8x32xf32>
    %1634 = vector.extract_strided_slice %1616 {offsets = [0, 1], sizes = [8, 1], strides = [1, 1]} : vector<8x24xf32> to vector<8x1xf32>
    %1635 = vector.extract_strided_slice %1628 {offsets = [1, 0], sizes = [1, 32], strides = [1, 1]} : vector<24x32xf32> to vector<1x32xf32>
    %1636 = vector.broadcast %1634 : vector<8x1xf32> to vector<8x32xf32>
    %1637 = vector.broadcast %1635 : vector<1x32xf32> to vector<8x32xf32>
    %1638 = arith.mulf %1636, %1637 : vector<8x32xf32>
    %1639 = arith.addf %1633, %1638 : vector<8x32xf32>
    %1640 = vector.extract_strided_slice %1616 {offsets = [0, 2], sizes = [8, 1], strides = [1, 1]} : vector<8x24xf32> to vector<8x1xf32>
    %1641 = vector.extract_strided_slice %1628 {offsets = [2, 0], sizes = [1, 32], strides = [1, 1]} : vector<24x32xf32> to vector<1x32xf32>
    %1642 = vector.broadcast %1640 : vector<8x1xf32> to vector<8x32xf32>
    %1643 = vector.broadcast %1641 : vector<1x32xf32> to vector<8x32xf32>
    %1644 = arith.mulf %1642, %1643 : vector<8x32xf32>
    %1645 = arith.addf %1639, %1644 : vector<8x32xf32>
    %1646 = vector.extract_strided_slice %1616 {offsets = [0, 3], sizes = [8, 1], strides = [1, 1]} : vector<8x24xf32> to vector<8x1xf32>
    %1647 = vector.extract_strided_slice %1628 {offsets = [3, 0], sizes = [1, 32], strides = [1, 1]} : vector<24x32xf32> to vector<1x32xf32>
    %1648 = vector.broadcast %1646 : vector<8x1xf32> to vector<8x32xf32>
    %1649 = vector.broadcast %1647 : vector<1x32xf32> to vector<8x32xf32>
    %1650 = arith.mulf %1648, %1649 : vector<8x32xf32>
    %1651 = arith.addf %1645, %1650 : vector<8x32xf32>
    %1652 = vector.extract_strided_slice %1616 {offsets = [0, 4], sizes = [8, 1], strides = [1, 1]} : vector<8x24xf32> to vector<8x1xf32>
    %1653 = vector.extract_strided_slice %1628 {offsets = [4, 0], sizes = [1, 32], strides = [1, 1]} : vector<24x32xf32> to vector<1x32xf32>
    %1654 = vector.broadcast %1652 : vector<8x1xf32> to vector<8x32xf32>
    %1655 = vector.broadcast %1653 : vector<1x32xf32> to vector<8x32xf32>
    %1656 = arith.mulf %1654, %1655 : vector<8x32xf32>
    %1657 = arith.addf %1651, %1656 : vector<8x32xf32>
    %1658 = vector.extract_strided_slice %1616 {offsets = [0, 5], sizes = [8, 1], strides = [1, 1]} : vector<8x24xf32> to vector<8x1xf32>
    %1659 = vector.extract_strided_slice %1628 {offsets = [5, 0], sizes = [1, 32], strides = [1, 1]} : vector<24x32xf32> to vector<1x32xf32>
    %1660 = vector.broadcast %1658 : vector<8x1xf32> to vector<8x32xf32>
    %1661 = vector.broadcast %1659 : vector<1x32xf32> to vector<8x32xf32>
    %1662 = arith.mulf %1660, %1661 : vector<8x32xf32>
    %1663 = arith.addf %1657, %1662 : vector<8x32xf32>
    %1664 = vector.extract_strided_slice %1616 {offsets = [0, 6], sizes = [8, 1], strides = [1, 1]} : vector<8x24xf32> to vector<8x1xf32>
    %1665 = vector.extract_strided_slice %1628 {offsets = [6, 0], sizes = [1, 32], strides = [1, 1]} : vector<24x32xf32> to vector<1x32xf32>
    %1666 = vector.broadcast %1664 : vector<8x1xf32> to vector<8x32xf32>
    %1667 = vector.broadcast %1665 : vector<1x32xf32> to vector<8x32xf32>
    %1668 = arith.mulf %1666, %1667 : vector<8x32xf32>
    %1669 = arith.addf %1663, %1668 : vector<8x32xf32>
    %1670 = vector.extract_strided_slice %1616 {offsets = [0, 7], sizes = [8, 1], strides = [1, 1]} : vector<8x24xf32> to vector<8x1xf32>
    %1671 = vector.extract_strided_slice %1628 {offsets = [7, 0], sizes = [1, 32], strides = [1, 1]} : vector<24x32xf32> to vector<1x32xf32>
    %1672 = vector.broadcast %1670 : vector<8x1xf32> to vector<8x32xf32>
    %1673 = vector.broadcast %1671 : vector<1x32xf32> to vector<8x32xf32>
    %1674 = arith.mulf %1672, %1673 : vector<8x32xf32>
    %1675 = arith.addf %1669, %1674 : vector<8x32xf32>
    %1676 = vector.extract_strided_slice %1616 {offsets = [0, 8], sizes = [8, 1], strides = [1, 1]} : vector<8x24xf32> to vector<8x1xf32>
    %1677 = vector.extract_strided_slice %1628 {offsets = [8, 0], sizes = [1, 32], strides = [1, 1]} : vector<24x32xf32> to vector<1x32xf32>
    %1678 = vector.broadcast %1676 : vector<8x1xf32> to vector<8x32xf32>
    %1679 = vector.broadcast %1677 : vector<1x32xf32> to vector<8x32xf32>
    %1680 = arith.mulf %1678, %1679 : vector<8x32xf32>
    %1681 = vector.extract_strided_slice %1616 {offsets = [0, 9], sizes = [8, 1], strides = [1, 1]} : vector<8x24xf32> to vector<8x1xf32>
    %1682 = vector.extract_strided_slice %1628 {offsets = [9, 0], sizes = [1, 32], strides = [1, 1]} : vector<24x32xf32> to vector<1x32xf32>
    %1683 = vector.broadcast %1681 : vector<8x1xf32> to vector<8x32xf32>
    %1684 = vector.broadcast %1682 : vector<1x32xf32> to vector<8x32xf32>
    %1685 = arith.mulf %1683, %1684 : vector<8x32xf32>
    %1686 = arith.addf %1680, %1685 : vector<8x32xf32>
    %1687 = vector.extract_strided_slice %1616 {offsets = [0, 10], sizes = [8, 1], strides = [1, 1]} : vector<8x24xf32> to vector<8x1xf32>
    %1688 = vector.extract_strided_slice %1628 {offsets = [10, 0], sizes = [1, 32], strides = [1, 1]} : vector<24x32xf32> to vector<1x32xf32>
    %1689 = vector.broadcast %1687 : vector<8x1xf32> to vector<8x32xf32>
    %1690 = vector.broadcast %1688 : vector<1x32xf32> to vector<8x32xf32>
    %1691 = arith.mulf %1689, %1690 : vector<8x32xf32>
    %1692 = arith.addf %1686, %1691 : vector<8x32xf32>
    %1693 = vector.extract_strided_slice %1616 {offsets = [0, 11], sizes = [8, 1], strides = [1, 1]} : vector<8x24xf32> to vector<8x1xf32>
    %1694 = vector.extract_strided_slice %1628 {offsets = [11, 0], sizes = [1, 32], strides = [1, 1]} : vector<24x32xf32> to vector<1x32xf32>
    %1695 = vector.broadcast %1693 : vector<8x1xf32> to vector<8x32xf32>
    %1696 = vector.broadcast %1694 : vector<1x32xf32> to vector<8x32xf32>
    %1697 = arith.mulf %1695, %1696 : vector<8x32xf32>
    %1698 = arith.addf %1692, %1697 : vector<8x32xf32>
    %1699 = vector.extract_strided_slice %1616 {offsets = [0, 12], sizes = [8, 1], strides = [1, 1]} : vector<8x24xf32> to vector<8x1xf32>
    %1700 = vector.extract_strided_slice %1628 {offsets = [12, 0], sizes = [1, 32], strides = [1, 1]} : vector<24x32xf32> to vector<1x32xf32>
    %1701 = vector.broadcast %1699 : vector<8x1xf32> to vector<8x32xf32>
    %1702 = vector.broadcast %1700 : vector<1x32xf32> to vector<8x32xf32>
    %1703 = arith.mulf %1701, %1702 : vector<8x32xf32>
    %1704 = arith.addf %1698, %1703 : vector<8x32xf32>
    %1705 = vector.extract_strided_slice %1616 {offsets = [0, 13], sizes = [8, 1], strides = [1, 1]} : vector<8x24xf32> to vector<8x1xf32>
    %1706 = vector.extract_strided_slice %1628 {offsets = [13, 0], sizes = [1, 32], strides = [1, 1]} : vector<24x32xf32> to vector<1x32xf32>
    %1707 = vector.broadcast %1705 : vector<8x1xf32> to vector<8x32xf32>
    %1708 = vector.broadcast %1706 : vector<1x32xf32> to vector<8x32xf32>
    %1709 = arith.mulf %1707, %1708 : vector<8x32xf32>
    %1710 = arith.addf %1704, %1709 : vector<8x32xf32>
    %1711 = vector.extract_strided_slice %1616 {offsets = [0, 14], sizes = [8, 1], strides = [1, 1]} : vector<8x24xf32> to vector<8x1xf32>
    %1712 = vector.extract_strided_slice %1628 {offsets = [14, 0], sizes = [1, 32], strides = [1, 1]} : vector<24x32xf32> to vector<1x32xf32>
    %1713 = vector.broadcast %1711 : vector<8x1xf32> to vector<8x32xf32>
    %1714 = vector.broadcast %1712 : vector<1x32xf32> to vector<8x32xf32>
    %1715 = arith.mulf %1713, %1714 : vector<8x32xf32>
    %1716 = arith.addf %1710, %1715 : vector<8x32xf32>
    %1717 = vector.extract_strided_slice %1616 {offsets = [0, 15], sizes = [8, 1], strides = [1, 1]} : vector<8x24xf32> to vector<8x1xf32>
    %1718 = vector.extract_strided_slice %1628 {offsets = [15, 0], sizes = [1, 32], strides = [1, 1]} : vector<24x32xf32> to vector<1x32xf32>
    %1719 = vector.broadcast %1717 : vector<8x1xf32> to vector<8x32xf32>
    %1720 = vector.broadcast %1718 : vector<1x32xf32> to vector<8x32xf32>
    %1721 = arith.mulf %1719, %1720 : vector<8x32xf32>
    %1722 = arith.addf %1716, %1721 : vector<8x32xf32>
    %1723 = vector.extract_strided_slice %1616 {offsets = [0, 16], sizes = [8, 1], strides = [1, 1]} : vector<8x24xf32> to vector<8x1xf32>
    %1724 = vector.extract_strided_slice %1628 {offsets = [16, 0], sizes = [1, 32], strides = [1, 1]} : vector<24x32xf32> to vector<1x32xf32>
    %1725 = vector.broadcast %1723 : vector<8x1xf32> to vector<8x32xf32>
    %1726 = vector.broadcast %1724 : vector<1x32xf32> to vector<8x32xf32>
    %1727 = arith.mulf %1725, %1726 : vector<8x32xf32>
    %1728 = vector.extract_strided_slice %1616 {offsets = [0, 17], sizes = [8, 1], strides = [1, 1]} : vector<8x24xf32> to vector<8x1xf32>
    %1729 = vector.extract_strided_slice %1628 {offsets = [17, 0], sizes = [1, 32], strides = [1, 1]} : vector<24x32xf32> to vector<1x32xf32>
    %1730 = vector.broadcast %1728 : vector<8x1xf32> to vector<8x32xf32>
    %1731 = vector.broadcast %1729 : vector<1x32xf32> to vector<8x32xf32>
    %1732 = arith.mulf %1730, %1731 : vector<8x32xf32>
    %1733 = arith.addf %1727, %1732 : vector<8x32xf32>
    %1734 = vector.extract_strided_slice %1616 {offsets = [0, 18], sizes = [8, 1], strides = [1, 1]} : vector<8x24xf32> to vector<8x1xf32>
    %1735 = vector.extract_strided_slice %1628 {offsets = [18, 0], sizes = [1, 32], strides = [1, 1]} : vector<24x32xf32> to vector<1x32xf32>
    %1736 = vector.broadcast %1734 : vector<8x1xf32> to vector<8x32xf32>
    %1737 = vector.broadcast %1735 : vector<1x32xf32> to vector<8x32xf32>
    %1738 = arith.mulf %1736, %1737 : vector<8x32xf32>
    %1739 = arith.addf %1733, %1738 : vector<8x32xf32>
    %1740 = vector.extract_strided_slice %1616 {offsets = [0, 19], sizes = [8, 1], strides = [1, 1]} : vector<8x24xf32> to vector<8x1xf32>
    %1741 = vector.extract_strided_slice %1628 {offsets = [19, 0], sizes = [1, 32], strides = [1, 1]} : vector<24x32xf32> to vector<1x32xf32>
    %1742 = vector.broadcast %1740 : vector<8x1xf32> to vector<8x32xf32>
    %1743 = vector.broadcast %1741 : vector<1x32xf32> to vector<8x32xf32>
    %1744 = arith.mulf %1742, %1743 : vector<8x32xf32>
    %1745 = arith.addf %1739, %1744 : vector<8x32xf32>
    %1746 = vector.extract_strided_slice %1616 {offsets = [0, 20], sizes = [8, 1], strides = [1, 1]} : vector<8x24xf32> to vector<8x1xf32>
    %1747 = vector.extract_strided_slice %1628 {offsets = [20, 0], sizes = [1, 32], strides = [1, 1]} : vector<24x32xf32> to vector<1x32xf32>
    %1748 = vector.broadcast %1746 : vector<8x1xf32> to vector<8x32xf32>
    %1749 = vector.broadcast %1747 : vector<1x32xf32> to vector<8x32xf32>
    %1750 = arith.mulf %1748, %1749 : vector<8x32xf32>
    %1751 = arith.addf %1745, %1750 : vector<8x32xf32>
    %1752 = vector.extract_strided_slice %1616 {offsets = [0, 21], sizes = [8, 1], strides = [1, 1]} : vector<8x24xf32> to vector<8x1xf32>
    %1753 = vector.extract_strided_slice %1628 {offsets = [21, 0], sizes = [1, 32], strides = [1, 1]} : vector<24x32xf32> to vector<1x32xf32>
    %1754 = vector.broadcast %1752 : vector<8x1xf32> to vector<8x32xf32>
    %1755 = vector.broadcast %1753 : vector<1x32xf32> to vector<8x32xf32>
    %1756 = arith.mulf %1754, %1755 : vector<8x32xf32>
    %1757 = arith.addf %1751, %1756 : vector<8x32xf32>
    %1758 = vector.extract_strided_slice %1616 {offsets = [0, 22], sizes = [8, 1], strides = [1, 1]} : vector<8x24xf32> to vector<8x1xf32>
    %1759 = vector.extract_strided_slice %1628 {offsets = [22, 0], sizes = [1, 32], strides = [1, 1]} : vector<24x32xf32> to vector<1x32xf32>
    %1760 = vector.broadcast %1758 : vector<8x1xf32> to vector<8x32xf32>
    %1761 = vector.broadcast %1759 : vector<1x32xf32> to vector<8x32xf32>
    %1762 = arith.mulf %1760, %1761 : vector<8x32xf32>
    %1763 = arith.addf %1757, %1762 : vector<8x32xf32>
    %1764 = vector.extract_strided_slice %1616 {offsets = [0, 23], sizes = [8, 1], strides = [1, 1]} : vector<8x24xf32> to vector<8x1xf32>
    %1765 = vector.extract_strided_slice %1628 {offsets = [23, 0], sizes = [1, 32], strides = [1, 1]} : vector<24x32xf32> to vector<1x32xf32>
    %1766 = vector.broadcast %1764 : vector<8x1xf32> to vector<8x32xf32>
    %1767 = vector.broadcast %1765 : vector<1x32xf32> to vector<8x32xf32>
    %1768 = arith.mulf %1766, %1767 : vector<8x32xf32>
    %1769 = arith.addf %1763, %1768 : vector<8x32xf32>
    %1770 = arith.addf %1675, %1722 : vector<8x32xf32>
    %1771 = arith.addf %1770, %1769 : vector<8x32xf32>
    %1772 = vector.broadcast %1618 : vector<8x1xf32> to vector<8x32xf32>
    %1773 = arith.addf %1771, %1772 : vector<8x32xf32>
    %1774 = arith.addf %1773, %1183 : vector<8x32xf32>
    %c0_433 = arith.constant 0 : index
    %c0_434 = arith.constant 0 : index
    %c0_435 = arith.constant 0 : index
    %1775 = vector.load %arg8[%c0_433, %c0_434, %c0_435] : memref<1x8x32xf32, #tpu.memory_space<vmem>>, vector<1x8x32xf32>
    %1776 = vector.shape_cast %1775 : vector<1x8x32xf32> to vector<8x32xf32>
    %1777 = vector.shape_cast %1774 : vector<8x32xf32> to vector<1x8x32xf32>
    tpu.vector_store %arg8[%c0_433, %c0_434, %c0_435], %1777 {strides = array<i32>} : memref<1x8x32xf32, #tpu.memory_space<vmem>>, vector<1x8x32xf32>,
    return
  }
  func.func @transform_0(%arg0: i32) -> (i32, i32, i32) {
    %c0_i32 = arith.constant 0 : i32
    %c0_i32_0 = arith.constant 0 : i32
    %c0_i32_1 = arith.constant 0 : i32
    return %arg0, %c0_i32, %c0_i32_0 : i32, i32, i32
  }
  func.func @transform_1(%arg0: i32) -> (i32, i32, i32) {
    %c0_i32 = arith.constant 0 : i32
    %c0_i32_0 = arith.constant 0 : i32
    %c0_i32_1 = arith.constant 0 : i32
    %c0_i32_2 = arith.constant 0 : i32
    return %c0_i32, %c0_i32_0, %c0_i32_1 : i32, i32, i32
  }
  func.func @transform_2(%arg0: i32) -> (i32, i32, i32) {
    %c0_i32 = arith.constant 0 : i32
    %c0_i32_0 = arith.constant 0 : i32
    %c0_i32_1 = arith.constant 0 : i32
    %c0_i32_2 = arith.constant 0 : i32
    return %c0_i32, %c0_i32_0, %c0_i32_1 : i32, i32, i32
  }
  func.func @transform_3(%arg0: i32) -> (i32, i32, i32) {
    %c0_i32 = arith.constant 0 : i32
    %c0_i32_0 = arith.constant 0 : i32
    %c0_i32_1 = arith.constant 0 : i32
    %c0_i32_2 = arith.constant 0 : i32
    return %c0_i32, %c0_i32_0, %c0_i32_1 : i32, i32, i32
  }
  func.func @transform_4(%arg0: i32) -> (i32, i32, i32) {
    %c0_i32 = arith.constant 0 : i32
    %c0_i32_0 = arith.constant 0 : i32
    %c0_i32_1 = arith.constant 0 : i32
    %c0_i32_2 = arith.constant 0 : i32
    return %c0_i32, %c0_i32_0, %c0_i32_1 : i32, i32, i32
  }
  func.func @transform_5(%arg0: i32) -> (i32, i32, i32) {
    %c0_i32 = arith.constant 0 : i32
    %c0_i32_0 = arith.constant 0 : i32
    %c0_i32_1 = arith.constant 0 : i32
    %c0_i32_2 = arith.constant 0 : i32
    return %c0_i32, %c0_i32_0, %c0_i32_1 : i32, i32, i32
  }
  func.func @transform_6(%arg0: i32) -> (i32, i32, i32) {
    %c0_i32 = arith.constant 0 : i32
    %c0_i32_0 = arith.constant 0 : i32
    %c0_i32_1 = arith.constant 0 : i32
    %c0_i32_2 = arith.constant 0 : i32
    return %c0_i32, %c0_i32_0, %c0_i32_1 : i32, i32, i32
  }
  func.func @transform_7(%arg0: i32) -> (i32, i32, i32) {
    %c0_i32 = arith.constant 0 : i32
    %c0_i32_0 = arith.constant 0 : i32
    %c0_i32_1 = arith.constant 0 : i32
    return %arg0, %c0_i32, %c0_i32_0 : i32, i32, i32
  }
}

</mosaic_0001>

<llo_original>
// kernel: _lambda_.1
$region0: #{_lambda_.1}
  #allocation0 [shape = 'u32[]', space=smem, size = 0x4, offset = 0x4, fixed_abs, tag = 'smem constant byte address 0x4 - core index']
  #allocation1 [shape = 'u32[72,128]{1,0:T(1,128)}', space=vmem, size = 0x9000, scoped, tag = 'internal scratch']
  #allocation2 [shape = 'f32[8,38]{1,0:T(8,128)}', space=vmem, size = 0x1000, scoped, tag = 'scratch operand']
  #allocation3 [shape = 'f32[8,37]{1,0:T(8,128)}', space=vmem, size = 0x1000, scoped, tag = 'scratch operand']
  #allocation4 [shape = 'f32[8,37]{1,0:T(8,128)}', space=vmem, size = 0x1000, scoped, tag = 'scratch operand']
  #allocation5 [shape = 'f32[24,32]{1,0:T(8,128)}', space=vmem, size = 0x3000, scoped, tag = 'scratch operand']
  %s0 = inlined_call_operand.hbm [shape: f32[2,8,32], index: 0, kind: input, shape index: {}]
  %s1 = inlined_call_operand.hbm [shape: f32[3,8,24], index: 1, kind: input, shape index: {}]
  %s2 = inlined_call_operand.hbm [shape: f32[3,8,1], index: 2, kind: input, shape index: {}]
  %s3 = inlined_call_operand.hbm [shape: f32[3,8,24], index: 3, kind: input, shape index: {}]
  %s4 = inlined_call_operand.hbm [shape: f32[3,8,1], index: 4, kind: input, shape index: {}]
  %s5 = inlined_call_operand.hbm [shape: f32[6,8,1], index: 5, kind: input, shape index: {}]
  %s6 = inlined_call_operand.hbm [shape: f32[6,8,1], index: 6, kind: input, shape index: {}]
  %s7 = inlined_call_operand.hbm [shape: f32[2,8,32], index: 7, kind: output, shape index: {}]
  %s8 = sld [smem:[#allocation0]]
  $region89: #{_lambda_.1} parent=0
    _
  %s10 = ssub.s32 1, %s8
  %s11 = scalar_select 0, %s10, %s8
  $region1: #{_lambda_.1} parent=0
    #allocation6 [shape = 'u8[8192]{0}', space=vmem, size = 0x2000, scoped, tag = 'input window, operand 0']
    #allocation7 [shape = 's32[2]{0}', space=sflag, size = 0x8, scoped, tag = 'scoped memory for _lambda_.1']
    #allocation8 [shape = 's32[2]{0}', space=sflag, size = 0x8, scoped, tag = 'scoped memory for _lambda_.1']
    #allocation9 [shape = 'u8[12288]{0}', space=vmem, size = 0x3000, scoped, tag = 'input window, operand 1, single buffered']
    #allocation10 [shape = 's32[1]{0}', space=sflag, size = 0x4, scoped, tag = 'scoped memory for _lambda_.1']
    #allocation11 [shape = 'u8[12288]{0}', space=vmem, size = 0x3000, scoped, tag = 'input window, operand 2, single buffered']
    #allocation12 [shape = 'u8[12288]{0}', space=vmem, size = 0x3000, scoped, tag = 'input window, operand 3, single buffered']
    #allocation13 [shape = 's32[1]{0}', space=sflag, size = 0x4, scoped, tag = 'scoped memory for _lambda_.1']
    #allocation14 [shape = 'u8[12288]{0}', space=vmem, size = 0x3000, scoped, tag = 'input window, operand 4, single buffered']
    #allocation15 [shape = 'u8[24576]{0}', space=vmem, size = 0x6000, scoped, tag = 'input window, operand 5, single buffered']
    #allocation16 [shape = 's32[1]{0}', space=sflag, size = 0x4, scoped, tag = 'scoped memory for _lambda_.1']
    #allocation17 [shape = 'u8[24576]{0}', space=vmem, size = 0x6000, scoped, tag = 'input window, operand 6, single buffered']
    #allocation18 [shape = 'u8[8192]{0}', space=vmem, size = 0x2000, scoped, tag = 'output window, operand 0']
    %12 = vsyncpa [#allocation7], 0
    %s13 = scalar_lea.sflag [#allocation7], 1
    %14 = vsyncpa %s13, 0
    %15 = vsyncpa [#allocation10], 0
    %16 = vsyncpa [#allocation13], 0
    %17 = vsyncpa [#allocation16], 0
    %18 = vsyncpa [#allocation8], 0
    %s19 = scalar_lea.sflag [#allocation8], 1
    %20 = vsyncpa %s19, 0
    loop: start=0, step=1, limit=4
    $region2: #{_lambda_.1} parent=1 // loop_pre_header
      _
    $region3: #{_lambda_.1} parent=1 // loop_header
      %s22 = sphi 0, %s26
      %p23 = scmp.ge.s32.totalorder %s22, 4
      %s32 = sphi 0, %s34
      %s35 = sphi 0, %s32
      %s36 = sphi 0, %s35
      %s52 = sphi 0, %s36
      %s56 = sphi 0, %s56
      %s58 = sphi 0, %s56
      %s59 = sphi 0, %s58
      %s73 = sphi 0, %s59
      %s77 = sphi 0, %s77
      %s79 = sphi 0, %s77
      %s80 = sphi 0, %s79
      %s94 = sphi 0, %s80
      %s98 = sphi 0, %s98
      %s100 = sphi 0, %s98
      %s101 = sphi 0, %s100
      %s115 = sphi 0, %s101
      %s119 = sphi 0, %s119
      %s121 = sphi 0, %s119
      %s122 = sphi 0, %s121
      %s136 = sphi 0, %s122
      %s140 = sphi 0, %s140
      %s142 = sphi 0, %s140
      %s143 = sphi 0, %s142
      %s157 = sphi 0, %s143
      %s161 = sphi 0, %s161
      %s163 = sphi 0, %s161
      %s164 = sphi 0, %s163
      %s178 = sphi 0, %s164
      %s184 = sphi 0, %s186
      %s187 = sphi 0, %s184
      %s188 = sphi 0, %s187
      %s204 = sphi 0, %s188
    $region4: #{_lambda_.1} parent=1 // loop_header_branch
      %25 = sbr.rel (%p23) target = $region8
    $region5: #{_lambda_.1} parent=1 // loop_body
      %s27 = ssub.s32 %s22, 1
      %s28 = ssub.s32 %s22, 2
      %s29 = sadd.s32 %s22, 1
      %s30 = ssub.s32 %s22, %s29
      %p31 = scmp.eq.s32.totalorder %s30, 0
      %s33 = sadd.s32 %s32, 1
      %s34 = scalar_select %p31, %s32, %s33
      %p37 = pneg %p31
      %p38 = scmp.eq.s32.totalorder %s22, 1
      %p39 = por %p37, %p38
      %p40 = scmp.ne.s32.totalorder %s32, %s35
      %p41 = scmp.eq.s32.totalorder %s22, 0
      %p42 = por %p40, %p41
      %p43 = scmp.ne.s32.totalorder %s32, %s35
      %p44 = scmp.eq.s32.totalorder %s27, 1
      %p45 = por %p43, %p44
      %p46 = scmp.ne.s32.totalorder %s35, %s36
      %p47 = scmp.eq.s32.totalorder %s27, 0
      %p48 = por %p46, %p47
      %p49 = scmp.ne.s32.totalorder %s35, %s36
      %p50 = scmp.eq.s32.totalorder %s28, 1
      %p51 = por %p49, %p50
      %p53 = scmp.ne.s32.totalorder %s36, %s52
      %p54 = scmp.eq.s32.totalorder %s28, 0
      %p55 = por %p53, %p54
      %s57 = sadd.s32 %s56, 1
      %p60 = scmp.eq.s32.totalorder %s22, 1
      %p61 = scmp.ne.s32.totalorder %s56, %s58
      %p62 = scmp.eq.s32.totalorder %s22, 0
      %p63 = por %p61, %p62
      %p64 = scmp.ne.s32.totalorder %s56, %s58
      %p65 = scmp.eq.s32.totalorder %s27, 1
      %p66 = por %p64, %p65
      %p67 = scmp.ne.s32.totalorder %s58, %s59
      %p68 = scmp.eq.s32.totalorder %s27, 0
      %p69 = por %p67, %p68
      %p70 = scmp.ne.s32.totalorder %s58, %s59
      %p71 = scmp.eq.s32.totalorder %s28, 1
      %p72 = por %p70, %p71
      %p74 = scmp.ne.s32.totalorder %s59, %s73
      %p75 = scmp.eq.s32.totalorder %s28, 0
      %p76 = por %p74, %p75
      %s78 = sadd.s32 %s77, 1
      %p81 = scmp.eq.s32.totalorder %s22, 1
      %p82 = scmp.ne.s32.totalorder %s77, %s79
      %p83 = scmp.eq.s32.totalorder %s22, 0
      %p84 = por %p82, %p83
      %p85 = scmp.ne.s32.totalorder %s77, %s79
      %p86 = scmp.eq.s32.totalorder %s27, 1
      %p87 = por %p85, %p86
      %p88 = scmp.ne.s32.totalorder %s79, %s80
      %p89 = scmp.eq.s32.totalorder %s27, 0
      %p90 = por %p88, %p89
      %p91 = scmp.ne.s32.totalorder %s79, %s80
      %p92 = scmp.eq.s32.totalorder %s28, 1
      %p93 = por %p91, %p92
      %p95 = scmp.ne.s32.totalorder %s80, %s94
      %p96 = scmp.eq.s32.totalorder %s28, 0
      %p97 = por %p95, %p96
      %s99 = sadd.s32 %s98, 1
      %p102 = scmp.eq.s32.totalorder %s22, 1
      %p103 = scmp.ne.s32.totalorder %s98, %s100
      %p104 = scmp.eq.s32.totalorder %s22, 0
      %p105 = por %p103, %p104
      %p106 = scmp.ne.s32.totalorder %s98, %s100
      %p107 = scmp.eq.s32.totalorder %s27, 1
      %p108 = por %p106, %p107
      %p109 = scmp.ne.s32.totalorder %s100, %s101
      %p110 = scmp.eq.s32.totalorder %s27, 0
      %p111 = por %p109, %p110
      %p112 = scmp.ne.s32.totalorder %s100, %s101
      %p113 = scmp.eq.s32.totalorder %s28, 1
      %p114 = por %p112, %p113
      %p116 = scmp.ne.s32.totalorder %s101, %s115
      %p117 = scmp.eq.s32.totalorder %s28, 0
      %p118 = por %p116, %p117
      %s120 = sadd.s32 %s119, 1
      %p123 = scmp.eq.s32.totalorder %s22, 1
      %p124 = scmp.ne.s32.totalorder %s119, %s121
      %p125 = scmp.eq.s32.totalorder %s22, 0
      %p126 = por %p124, %p125
      %p127 = scmp.ne.s32.totalorder %s119, %s121
      %p128 = scmp.eq.s32.totalorder %s27, 1
      %p129 = por %p127, %p128
      %p130 = scmp.ne.s32.totalorder %s121, %s122
      %p131 = scmp.eq.s32.totalorder %s27, 0
      %p132 = por %p130, %p131
      %p133 = scmp.ne.s32.totalorder %s121, %s122
      %p134 = scmp.eq.s32.totalorder %s28, 1
      %p135 = por %p133, %p134
      %p137 = scmp.ne.s32.totalorder %s122, %s136
      %p138 = scmp.eq.s32.totalorder %s28, 0
      %p139 = por %p137, %p138
      %s141 = sadd.s32 %s140, 1
      %p144 = scmp.eq.s32.totalorder %s22, 1
      %p145 = scmp.ne.s32.totalorder %s140, %s142
      %p146 = scmp.eq.s32.totalorder %s22, 0
      %p147 = por %p145, %p146
      %p148 = scmp.ne.s32.totalorder %s140, %s142
      %p149 = scmp.eq.s32.totalorder %s27, 1
      %p150 = por %p148, %p149
      %p151 = scmp.ne.s32.totalorder %s142, %s143
      %p152 = scmp.eq.s32.totalorder %s27, 0
      %p153 = por %p151, %p152
      %p154 = scmp.ne.s32.totalorder %s142, %s143
      %p155 = scmp.eq.s32.totalorder %s28, 1
      %p156 = por %p154, %p155
      %p158 = scmp.ne.s32.totalorder %s143, %s157
      %p159 = scmp.eq.s32.totalorder %s28, 0
      %p160 = por %p158, %p159
      %s162 = sadd.s32 %s161, 1
      %p165 = scmp.eq.s32.totalorder %s22, 1
      %p166 = scmp.ne.s32.totalorder %s161, %s163
      %p167 = scmp.eq.s32.totalorder %s22, 0
      %p168 = por %p166, %p167
      %p169 = scmp.ne.s32.totalorder %s161, %s163
      %p170 = scmp.eq.s32.totalorder %s27, 1
      %p171 = por %p169, %p170
      %p172 = scmp.ne.s32.totalorder %s163, %s164
      %p173 = scmp.eq.s32.totalorder %s27, 0
      %p174 = por %p172, %p173
      %p175 = scmp.ne.s32.totalorder %s163, %s164
      %p176 = scmp.eq.s32.totalorder %s28, 1
      %p177 = por %p175, %p176
      %p179 = scmp.ne.s32.totalorder %s164, %s178
      %p180 = scmp.eq.s32.totalorder %s28, 0
      %p181 = por %p179, %p180
      %s182 = ssub.s32 %s22, %s29
      %p183 = scmp.eq.s32.totalorder %s182, 0
      %s185 = sadd.s32 %s184, 1
      %s186 = scalar_select %p183, %s184, %s185
      %p189 = pneg %p183
      %p190 = scmp.eq.s32.totalorder %s22, 1
      %p191 = por %p189, %p190
      %p192 = scmp.ne.s32.totalorder %s184, %s187
      %p193 = scmp.eq.s32.totalorder %s22, 0
      %p194 = por %p192, %p193
      %p195 = scmp.ne.s32.totalorder %s184, %s187
      %p196 = scmp.eq.s32.totalorder %s27, 1
      %p197 = por %p195, %p196
      %p198 = scmp.ne.s32.totalorder %s187, %s188
      %p199 = scmp.eq.s32.totalorder %s27, 0
      %p200 = por %p198, %p199
      %p201 = scmp.ne.s32.totalorder %s187, %s188
      %p202 = scmp.eq.s32.totalorder %s28, 1
      %p203 = por %p201, %p202
      %p205 = scmp.ne.s32.totalorder %s188, %s204
      %p206 = scmp.eq.s32.totalorder %s28, 0
      %p207 = por %p205, %p206
      %p208 = scmp.le.s32.totalorder 1, %s22
      %p209 = scmp.lt.s32.totalorder %s22, 3
      %p210 = pnand %p208, %p209
      %p211 = pneg %p210
      // Predicated region
      $region9: #{_lambda_.1} parent=5 // pred_check
        _
      $region10: #{_lambda_.1} parent=5 // pred_check_branch
        %213 = sbr.rel (%p210) target = $region12
      $region11: #{_lambda_.1} parent=5 // pred_region
        %s214 = ssub.s32 %s22, 1
        // Predicated region
        $region13: #{_lambda_.1} parent=11 // pred_check
          %p215 = pneg %p69
        $region14: #{_lambda_.1} parent=11 // pred_check_branch
          %217 = sbr.rel (%p215) target = $region16
        $region15: #{_lambda_.1} parent=11 // pred_region
          %219 = vsyncadd [#allocation10], 0
          %s220 = sshll.u32 %s1, 4
          %s221 = int_to_ptr.hbm [resolvable:$true] %s220
          %s222 = sshll.u32 [#allocation9], 4
          %s223 = int_to_ptr.vmem [resolvable:$true] %s222
          %228 = dma.hbm_to_vmem [thread:$0]  %s221, 384, %s223, [#allocation10], 128, 128, 8
        $region16: #{_lambda_.1} parent=11 // pred_fallthru
          _
        // Predicated region
        $region17: #{_lambda_.1} parent=11 // pred_check
          %p229 = pneg %p90
        $region18: #{_lambda_.1} parent=11 // pred_check_branch
          %231 = sbr.rel (%p229) target = $region20
        $region19: #{_lambda_.1} parent=11 // pred_region
          %233 = vsyncadd [#allocation10], 0
          %s234 = sshll.u32 %s2, 4
          %s235 = int_to_ptr.hbm [resolvable:$true] %s234
          %s236 = sshll.u32 [#allocation11], 4
          %s237 = int_to_ptr.vmem [resolvable:$true] %s236
          %242 = dma.hbm_to_vmem [thread:$0]  %s235, 384, %s237, [#allocation10], 128, 128, 8
        $region20: #{_lambda_.1} parent=11 // pred_fallthru
          _
        // Predicated region
        $region21: #{_lambda_.1} parent=11 // pred_check
          %p243 = pneg %p111
        $region22: #{_lambda_.1} parent=11 // pred_check_branch
          %245 = sbr.rel (%p243) target = $region24
        $region23: #{_lambda_.1} parent=11 // pred_region
          %247 = vsyncadd [#allocation13], 0
          %s248 = sshll.u32 %s3, 4
          %s249 = int_to_ptr.hbm [resolvable:$true] %s248
          %s250 = sshll.u32 [#allocation12], 4
          %s251 = int_to_ptr.vmem [resolvable:$true] %s250
          %256 = dma.hbm_to_vmem [thread:$0]  %s249, 384, %s251, [#allocation13], 128, 128, 8
        $region24: #{_lambda_.1} parent=11 // pred_fallthru
          _
        // Predicated region
        $region25: #{_lambda_.1} parent=11 // pred_check
          %p257 = pneg %p132
        $region26: #{_lambda_.1} parent=11 // pred_check_branch
          %259 = sbr.rel (%p257) target = $region28
        $region27: #{_lambda_.1} parent=11 // pred_region
          %261 = vsyncadd [#allocation13], 0
          %s262 = sshll.u32 %s4, 4
          %s263 = int_to_ptr.hbm [resolvable:$true] %s262
          %s264 = sshll.u32 [#allocation14], 4
          %s265 = int_to_ptr.vmem [resolvable:$true] %s264
          %270 = dma.hbm_to_vmem [thread:$0]  %s263, 384, %s265, [#allocation13], 128, 128, 8
        $region28: #{_lambda_.1} parent=11 // pred_fallthru
          _
        // Predicated region
        $region29: #{_lambda_.1} parent=11 // pred_check
          %p271 = pneg %p153
        $region30: #{_lambda_.1} parent=11 // pred_check_branch
          %273 = sbr.rel (%p271) target = $region32
        $region31: #{_lambda_.1} parent=11 // pred_region
          %275 = vsyncadd [#allocation16], 0
          %s276 = sshll.u32 %s5, 4
          %s277 = int_to_ptr.hbm [resolvable:$true] %s276
          %s278 = sshll.u32 [#allocation15], 4
          %s279 = int_to_ptr.vmem [resolvable:$true] %s278
          %284 = dma.hbm_to_vmem [thread:$0]  %s277, 768, %s279, [#allocation16], 128, 128, 8
        $region32: #{_lambda_.1} parent=11 // pred_fallthru
          _
        // Predicated region
        $region33: #{_lambda_.1} parent=11 // pred_check
          %p285 = pneg %p174
        $region34: #{_lambda_.1} parent=11 // pred_check_branch
          %287 = sbr.rel (%p285) target = $region36
        $region35: #{_lambda_.1} parent=11 // pred_region
          %289 = vsyncadd [#allocation16], 0
          %s290 = sshll.u32 %s6, 4
          %s291 = int_to_ptr.hbm [resolvable:$true] %s290
          %s292 = sshll.u32 [#allocation17], 4
          %s293 = int_to_ptr.vmem [resolvable:$true] %s292
          %298 = dma.hbm_to_vmem [thread:$0]  %s291, 768, %s293, [#allocation16], 128, 128, 8
        $region36: #{_lambda_.1} parent=11 // pred_fallthru
          _
      $region12: #{_lambda_.1} parent=5 // pred_fallthru
        _
      %p299 = scmp.lt.s32.totalorder %s22, 2
      // Predicated region
      $region37: #{_lambda_.1} parent=5 // pred_check
        %p300 = pneg %p299
      $region38: #{_lambda_.1} parent=5 // pred_check_branch
        %302 = sbr.rel (%p300) target = $region40
      $region39: #{_lambda_.1} parent=5 // pred_region
        // Predicated region
        $region41: #{_lambda_.1} parent=39 // pred_check
          %p303 = pneg %p42
        $region42: #{_lambda_.1} parent=39 // pred_check_branch
          %305 = sbr.rel (%p303) target = $region44
        $region43: #{_lambda_.1} parent=39 // pred_region
          %s306 = sand.u32 %s32, 1
          %s307 = scalar_lea.sflag [#allocation7], %s306
          %s308 = sand.u32 %s32, 1
          %s309 = smul.addr %s308, 8
          %s310 = scalar_lea.vmem [#allocation6], %s309
          %312 = vsyncadd %s307, 0
          %s313 = smul.addr %s22, 8
          %s314 = scalar_lea.hbm %s0, %s313
          %s316 = sshll.u32 %s314, 4
          %s317 = int_to_ptr.hbm [resolvable:$true] %s316
          %s318 = sshll.u32 %s310, 4
          %s319 = int_to_ptr.vmem [resolvable:$true] %s318
          %321 = dma.hbm_to_vmem [thread:$0]  %s317, 128, %s319, %s307
        $region44: #{_lambda_.1} parent=39 // pred_fallthru
          _
      $region40: #{_lambda_.1} parent=5 // pred_fallthru
        _
      %p322 = scmp.le.s32.totalorder 1, %s22
      %p323 = scmp.lt.s32.totalorder %s22, 3
      %p324 = pnand %p322, %p323
      %p325 = pneg %p324
      // Predicated region
      $region45: #{_lambda_.1} parent=5 // pred_check
        _
      $region46: #{_lambda_.1} parent=5 // pred_check_branch
        %327 = sbr.rel (%p324) target = $region48
      $region47: #{_lambda_.1} parent=5 // pred_region
        %s328 = ssub.s32 %s22, 1
        %s329 = sand.u32 %s35, 1
        %s330 = scalar_lea.sflag [#allocation7], %s329
        %s331 = sand.u32 %s35, 1
        %s332 = smul.addr %s331, 8
        %s333 = scalar_lea.vmem [#allocation6], %s332
        // Predicated region
        $region49: #{_lambda_.1} parent=47 // pred_check
          %p334 = pneg %p48
        $region50: #{_lambda_.1} parent=47 // pred_check_branch
          %336 = sbr.rel (%p334) target = $region52
        $region51: #{_lambda_.1} parent=47 // pred_region
          %338 = dma.done %s330, 128
        $region52: #{_lambda_.1} parent=47 // pred_fallthru
          _
        // Predicated region
        $region53: #{_lambda_.1} parent=47 // pred_check
          %p339 = pneg %p69
        $region54: #{_lambda_.1} parent=47 // pred_check_branch
          %341 = sbr.rel (%p339) target = $region56
        $region55: #{_lambda_.1} parent=47 // pred_region
          %343 = dma.done [#allocation10], 384
        $region56: #{_lambda_.1} parent=47 // pred_fallthru
          _
        // Predicated region
        $region57: #{_lambda_.1} parent=47 // pred_check
          %p344 = pneg %p90
        $region58: #{_lambda_.1} parent=47 // pred_check_branch
          %346 = sbr.rel (%p344) target = $region60
        $region59: #{_lambda_.1} parent=47 // pred_region
          %348 = dma.done [#allocation10], 384
        $region60: #{_lambda_.1} parent=47 // pred_fallthru
          _
        // Predicated region
        $region61: #{_lambda_.1} parent=47 // pred_check
          %p349 = pneg %p111
        $region62: #{_lambda_.1} parent=47 // pred_check_branch
          %351 = sbr.rel (%p349) target = $region64
        $region63: #{_lambda_.1} parent=47 // pred_region
          %353 = dma.done [#allocation13], 384
        $region64: #{_lambda_.1} parent=47 // pred_fallthru
          _
        // Predicated region
        $region65: #{_lambda_.1} parent=47 // pred_check
          %p354 = pneg %p132
        $region66: #{_lambda_.1} parent=47 // pred_check_branch
          %356 = sbr.rel (%p354) target = $region68
        $region67: #{_lambda_.1} parent=47 // pred_region
          %358 = dma.done [#allocation13], 384
        $region68: #{_lambda_.1} parent=47 // pred_fallthru
          _
        // Predicated region
        $region69: #{_lambda_.1} parent=47 // pred_check
          %p359 = pneg %p153
        $region70: #{_lambda_.1} parent=47 // pred_check_branch
          %361 = sbr.rel (%p359) target = $region72
        $region71: #{_lambda_.1} parent=47 // pred_region
          %363 = dma.done [#allocation16], 768
        $region72: #{_lambda_.1} parent=47 // pred_fallthru
          _
        // Predicated region
        $region73: #{_lambda_.1} parent=47 // pred_check
          %p364 = pneg %p174
        $region74: #{_lambda_.1} parent=47 // pred_check_branch
          %366 = sbr.rel (%p364) target = $region76
        $region75: #{_lambda_.1} parent=47 // pred_region
          %368 = dma.done [#allocation16], 768
        $region76: #{_lambda_.1} parent=47 // pred_fallthru
          _
        %s369 = sand.u32 %s35, 1
        %s370 = scalar_lea.sflag [#allocation7], %s369
        %s371 = sand.u32 %s35, 1
        %s372 = smul.addr %s371, 8
        %s373 = scalar_lea.vmem [#allocation6], %s372
        %p374 = pneg %p48
        %p375 = pneg %p45
        %p376 = pneg %p69
        %p377 = pneg %p66
        %p378 = pneg %p90
        %p379 = pneg %p87
        %p380 = pneg %p111
        %p381 = pneg %p108
        %p382 = pneg %p132
        %p383 = pneg %p129
        %p384 = pneg %p153
        %p385 = pneg %p150
        %p386 = pneg %p174
        %p387 = pneg %p171
        %p388 = pneg %p200
        %p389 = pneg %p197
        %s390 = sand.u32 %s187, 1
        %s391 = scalar_lea.sflag [#allocation8], %s390
        %s392 = sand.u32 %s187, 1
        %s393 = smul.addr %s392, 8
        %s394 = scalar_lea.vmem [#allocation18], %s393
        %v395 = vld [vmem:[%s333] sm:$0xff]
        %v396 = vld [vmem:[#allocation15] sm:$0xff]
        %v397 = vld [vmem:[#allocation17] sm:$0xff]
        %399 = vset.pattern.permute.xlu0 0
        %400 = vperm.xlu0 %399, %v395
        %v401 = vpop.permute.xlu0 %400
        %vm403 = vcmask 23552
        %404 = vst.msk [vmem:[#allocation2] sm:$0xff] %vm403, %v401
        %405 = vrot.lane.b32.xlu0 %v395, 3
        %v406 = vpop.permute.xlu0 %405
        %vm408 = vcmask 285720
        %409 = vst.msk [vmem:[#allocation2] sm:$0xff] %vm408, %v406
        %410 = vset.pattern.permute.xlu0 31
        %411 = vperm.xlu0 %410, %v395
        %v412 = vpop.permute.xlu0 %411
        %vm414 = vcmask 310552
        %415 = vst.msk [vmem:[#allocation2] sm:$0xff] %vm414, %v412
        %v416 = vld [vmem:[#allocation2] sm:$0xff]
        %v417 = vmul.f32 %v416, 0.018778928
        %v418 = vmul.f32 %v416, 0.004057933
        %v419 = vmul.f32 %v416, -0.11531475
        %421 = vrot.lane.b32.xlu0 %v419, 1
        %v422 = vpop.permute.xlu0 %421
        %v424 = vadd.f32 %v417, %v422
        %v425 = vmul.f32 %v416, -0.05108693
        %427 = vrot.lane.b32.xlu0 %v425, 1
        %v428 = vpop.permute.xlu0 %427
        %v430 = vadd.f32 %v418, %v428
        %v431 = vmul.f32 %v416, 0.8864196
        %433 = vrot.lane.b32.xlu0 %v431, 2
        %v434 = vpop.permute.xlu0 %433
        %v436 = vadd.f32 %v424, %v434
        %v437 = vmul.f32 %v416, 0.25714523
        %439 = vrot.lane.b32.xlu0 %v437, 2
        %v440 = vpop.permute.xlu0 %439
        %v442 = vadd.f32 %v430, %v440
        %443 = vrot.lane.b32.xlu0 %v437, 3
        %v444 = vpop.permute.xlu0 %443
        %v446 = vadd.f32 %v436, %v444
        %447 = vrot.lane.b32.xlu0 %v431, 3
        %v448 = vpop.permute.xlu0 %447
        %v450 = vadd.f32 %v442, %v448
        %451 = vrot.lane.b32.xlu0 %v425, 4
        %v452 = vpop.permute.xlu0 %451
        %v454 = vadd.f32 %v446, %v452
        %455 = vrot.lane.b32.xlu0 %v419, 4
        %v456 = vpop.permute.xlu0 %455
        %v458 = vadd.f32 %v450, %v456
        %460 = vrot.lane.b32.xlu0 %v418, 5
        %v461 = vpop.permute.xlu0 %460
        %v463 = vadd.f32 %v454, %v461
        %465 = vrot.lane.b32.xlu0 %v417, 5
        %v466 = vpop.permute.xlu0 %465
        %v468 = vadd.f32 %v458, %v466
        %470 = vset.pattern.permute.xlu0 0
        %471 = vperm.xlu0 %470, %v396
        %v472 = vpop.permute.xlu0 %471
        %v474 = vmul.f32 %v463, %v472
        %v475 = vand.u32 2147483647, %v474
        %vm476 = vcmp.le.f32.partialorder %v475, 0.7853982
        %vm477 = vcmp.lt.s32.totalorder %v474, 0
        %v478 = vand.u32 %v474, 2139095040
        %v479 = vshrl.u32 %v478, 23
        %v480 = vsub.s32 %v479, 127
        %v481 = vand.u32 2147483647, %v474
        %v482 = vand.u32 %v481, 8388607
        %v483 = vor.u32 %v482, 8388608
        %v484 = vsub.s32 0, %v483
        %v485 = vadd.s32 %v480, 1
        %vm486 = vcmp.gt.s32.totalorder %v485, 0
        %v487 = vsel %vm486, %v485, 0
        %v488 = vshrl.u32 %v487, 5
        %v489 = vand.u32 %v487, 31
        %v490 = vsub.s32 32, %v489
        %v491 = vshrl.u32 683565275, %v490
        %v492 = vshll.u32 683565275, %v489
        %v493 = vshrl.u32 2475754826, %v490
        %v494 = vor.u32 %v492, %v493
        %v495 = vshll.u32 2475754826, %v489
        %v496 = vshrl.u32 2131351028, %v490
        %v497 = vor.u32 %v495, %v496
        %v498 = vshll.u32 2131351028, %v489
        %v499 = vshrl.u32 2102212464, %v490
        %v500 = vor.u32 %v498, %v499
        %v501 = vshll.u32 2102212464, %v489
        %v502 = vshrl.u32 920167782, %v490
        %v503 = vor.u32 %v501, %v502
        %v504 = vshll.u32 920167782, %v489
        %v505 = vshrl.u32 1326507024, %v490
        %v506 = vor.u32 %v504, %v505
        %vm507 = vcmp.lt.s32.totalorder %v488, 1
        %vm508 = vcmp.lt.s32.totalorder %v488, 2
        %vm509 = vcmp.lt.s32.totalorder %v488, 3
        %vm510 = vcmp.lt.s32.totalorder %v488, 4
        %v511 = vsel %vm507, %v491, %v494
        %v512 = vsel %vm510, %v500, 2102212464
        %v513 = vsel %vm509, %v497, %v512
        %v514 = vsel %vm508, %v511, %v513
        %v515 = vsel %vm507, %v494, %v497
        %v516 = vsel %vm510, %v503, 920167782
        %v517 = vsel %vm509, %v500, %v516
        %v518 = vsel %vm508, %v515, %v517
        %v519 = vsel %vm507, %v497, %v500
        %v520 = vsel %vm510, %v506, 1326507024
        %v521 = vsel %vm509, %v503, %v520
        %v522 = vsel %vm508, %v519, %v521
        %v523 = vshll.u32 %v483, 8
        %v524 = vand.u32 %v523, 65535
        %v525 = vshrl.u32 %v523, 16
        %v526 = vand.u32 %v522, 65535
        %v527 = vshrl.u32 %v522, 16
        %v528 = vmul.u32 %v524, %v526
        %v529 = vmul.u32 %v524, %v527
        %v530 = vmul.u32 %v525, %v526
        %v531 = vmul.u32 %v525, %v527
        %v532 = vshll.u32 %v529, 16
        %v533 = vshrl.u32 %v529, 16
        %v534 = vshll.u32 %v530, 16
        %v535 = vshrl.u32 %v530, 16
        %vm536 = vc.u32 %v528, %v532
        %v537 = vsel %vm536, 1, 0
        %v538 = vadd.s32 %v528, %v532
        %v539 = vadd.s32 %v531, %v537
        %vm540 = vc.u32 %v538, %v534
        %v541 = vsel %vm540, 1, 0
        %v542 = vadd.s32 %v538, %v534
        %v543 = vadd.s32 %v539, %v541
        %v544 = vadd.s32 %v543, %v533
        %v545 = vadd.s32 %v544, %v535
        %v546 = vand.u32 %v523, 65535
        %v547 = vshrl.u32 %v523, 16
        %v548 = vand.u32 %v518, 65535
        %v549 = vshrl.u32 %v518, 16
        %v550 = vmul.u32 %v546, %v548
        %v551 = vmul.u32 %v546, %v549
        %v552 = vmul.u32 %v547, %v548
        %v553 = vmul.u32 %v547, %v549
        %v554 = vshll.u32 %v551, 16
        %v555 = vshrl.u32 %v551, 16
        %v556 = vshll.u32 %v552, 16
        %v557 = vshrl.u32 %v552, 16
        %vm558 = vc.u32 %v550, %v554
        %v559 = vsel %vm558, 1, 0
        %v560 = vadd.s32 %v550, %v554
        %v561 = vadd.s32 %v553, %v559
        %vm562 = vc.u32 %v560, %v556
        %v563 = vsel %vm562, 1, 0
        %v564 = vadd.s32 %v560, %v556
        %v565 = vadd.s32 %v561, %v563
        %v566 = vadd.s32 %v565, %v555
        %v567 = vadd.s32 %v566, %v557
        %v568 = vmul.u32 %v523, %v514
        %v569 = vadd.s32 %v545, %v564
        %vm570 = vc.u32 %v545, %v564
        %v571 = vadd.s32 %v567, 1
        %v572 = vsel %vm570, %v571, %v567
        %v573 = vadd.s32 %v568, %v572
        %v574 = vadd.s32 %v573, 536870912
        %v575 = vshrl.u32 %v574, 30
        %v576 = vshll.u32 %v575, 30
        %v577 = vsub.s32 %v573, %v576
        %vm578 = vcmp.lt.s32.totalorder %v577, 0
        %v579 = vsub.s32 0, %v577
        %v580 = vsel %vm578, %v579, %v577
        %v581 = vclz %v580
        %v582 = vsub.s32 %v581, 2
        %vm583 = vcmp.gt.s32.totalorder 0, %v582
        %v584 = vsel %vm583, 0, %v582
        %v585 = vsub.s32 32, %v584
        %v586 = vshll.u32 %v577, %v584
        %v587 = vshrl.u32 %v569, %v585
        %v588 = vor.u32 %v586, %v587
        %v589 = vsub.s32 4294967266, %v584
        %v590 = vadd.s32 %v589, 127
        %v591 = vshll.u32 %v590, 23
        %v592 = vor.u32 4788187, %v591
        %v593 = vand.u32 2147483647, %v592
        %v595 = vcvt.s32.f32 %v588
        %v596 = vmul.f32 %v595, %v593
        %v597 = vxor.u32 %v596, 2147483648
        %v598 = vsel %vm477, %v597, %v596
        %v599 = vsub.s32 4, %v575
        %v600 = vsel %vm477, %v599, %v575
        %v601 = vsel %vm476, %v474, %v598
        %v602 = vsel %vm476, 0, %v600
        %v603 = vmul.f32 %v601, %v601
        %v604 = vmul.f32 %v603, -0.001358992
        %v605 = vadd.f32 %v604, 0.041655596
        %v606 = vmul.f32 %v603, %v605
        %v607 = vadd.f32 %v606, -0.4999988
        %v608 = vmul.f32 %v603, %v607
        %v609 = vadd.f32 1.0, %v608
        %v610 = vmul.f32 %v601, %v601
        %v611 = vmul.f32 %v610, -0.00019511016
        %v612 = vadd.f32 %v611, 0.008332121
        %v613 = vmul.f32 %v610, %v612
        %v614 = vadd.f32 %v613, -0.16666654
        %v615 = vmul.f32 %v610, %v614
        %v616 = vadd.f32 %v615, 1.0
        %v617 = vmul.f32 %v616, %v601
        %vm618 = vweird.f32 %v474
        %v619 = vadd.s32 %v602, 3
        %v620 = vand.u32 %v619, 3
        %vm621 = vcmp.lt.s32.totalorder %v620, 2
        %vm622 = vcmp.eq.s32.totalorder %v620, 0
        %v623 = vxor.u32 %v617, 2147483648
        %v624 = vsel %vm622, %v609, %v623
        %vm625 = vcmp.eq.s32.totalorder %v620, 2
        %v626 = vxor.u32 %v609, 2147483648
        %v627 = vsel %vm625, %v626, %v617
        %v628 = vsel %vm621, %v624, %v627
        %v629 = vsel %vm618, nan, %v628
        %v630 = vmul.f32 %v629, %v629
        %632 = vset.pattern.permute.xlu0 0
        %633 = vperm.xlu0 %632, %v397
        %v634 = vpop.permute.xlu0 %633
        %v636 = vmul.f32 %v634, %v630
        %v637 = vadd.f32 %v463, %v636
        %v638 = vmul.f32 %v468, %v472
        %v639 = vand.u32 2147483647, %v638
        %vm640 = vcmp.le.f32.partialorder %v639, 0.7853982
        %vm641 = vcmp.lt.s32.totalorder %v638, 0
        %v642 = vand.u32 %v638, 2139095040
        %v643 = vshrl.u32 %v642, 23
        %v644 = vsub.s32 %v643, 127
        %v645 = vand.u32 2147483647, %v638
        %v646 = vand.u32 %v645, 8388607
        %v647 = vor.u32 %v646, 8388608
        %v648 = vsub.s32 0, %v647
        %v649 = vadd.s32 %v644, 1
        %vm650 = vcmp.gt.s32.totalorder %v649, 0
        %v651 = vsel %vm650, %v649, 0
        %v652 = vshrl.u32 %v651, 5
        %v653 = vand.u32 %v651, 31
        %v654 = vsub.s32 32, %v653
        %v655 = vshrl.u32 683565275, %v654
        %v656 = vshll.u32 683565275, %v653
        %v657 = vshrl.u32 2475754826, %v654
        %v658 = vor.u32 %v656, %v657
        %v659 = vshll.u32 2475754826, %v653
        %v660 = vshrl.u32 2131351028, %v654
        %v661 = vor.u32 %v659, %v660
        %v662 = vshll.u32 2131351028, %v653
        %v663 = vshrl.u32 2102212464, %v654
        %v664 = vor.u32 %v662, %v663
        %v665 = vshll.u32 2102212464, %v653
        %v666 = vshrl.u32 920167782, %v654
        %v667 = vor.u32 %v665, %v666
        %v668 = vshll.u32 920167782, %v653
        %v669 = vshrl.u32 1326507024, %v654
        %v670 = vor.u32 %v668, %v669
        %vm671 = vcmp.lt.s32.totalorder %v652, 1
        %vm672 = vcmp.lt.s32.totalorder %v652, 2
        %vm673 = vcmp.lt.s32.totalorder %v652, 3
        %vm674 = vcmp.lt.s32.totalorder %v652, 4
        %v675 = vsel %vm671, %v655, %v658
        %v676 = vsel %vm674, %v664, 2102212464
        %v677 = vsel %vm673, %v661, %v676
        %v678 = vsel %vm672, %v675, %v677
        %v679 = vsel %vm671, %v658, %v661
        %v680 = vsel %vm674, %v667, 920167782
        %v681 = vsel %vm673, %v664, %v680
        %v682 = vsel %vm672, %v679, %v681
        %v683 = vsel %vm671, %v661, %v664
        %v684 = vsel %vm674, %v670, 1326507024
        %v685 = vsel %vm673, %v667, %v684
        %v686 = vsel %vm672, %v683, %v685
        %v687 = vshll.u32 %v647, 8
        %v688 = vand.u32 %v687, 65535
        %v689 = vshrl.u32 %v687, 16
        %v690 = vand.u32 %v686, 65535
        %v691 = vshrl.u32 %v686, 16
        %v692 = vmul.u32 %v688, %v690
        %v693 = vmul.u32 %v688, %v691
        %v694 = vmul.u32 %v689, %v690
        %v695 = vmul.u32 %v689, %v691
        %v696 = vshll.u32 %v693, 16
        %v697 = vshrl.u32 %v693, 16
        %v698 = vshll.u32 %v694, 16
        %v699 = vshrl.u32 %v694, 16
        %vm700 = vc.u32 %v692, %v696
        %v701 = vsel %vm700, 1, 0
        %v702 = vadd.s32 %v692, %v696
        %v703 = vadd.s32 %v695, %v701
        %vm704 = vc.u32 %v702, %v698
        %v705 = vsel %vm704, 1, 0
        %v706 = vadd.s32 %v702, %v698
        %v707 = vadd.s32 %v703, %v705
        %v708 = vadd.s32 %v707, %v697
        %v709 = vadd.s32 %v708, %v699
        %v710 = vand.u32 %v687, 65535
        %v711 = vshrl.u32 %v687, 16
        %v712 = vand.u32 %v682, 65535
        %v713 = vshrl.u32 %v682, 16
        %v714 = vmul.u32 %v710, %v712
        %v715 = vmul.u32 %v710, %v713
        %v716 = vmul.u32 %v711, %v712
        %v717 = vmul.u32 %v711, %v713
        %v718 = vshll.u32 %v715, 16
        %v719 = vshrl.u32 %v715, 16
        %v720 = vshll.u32 %v716, 16
        %v721 = vshrl.u32 %v716, 16
        %vm722 = vc.u32 %v714, %v718
        %v723 = vsel %vm722, 1, 0
        %v724 = vadd.s32 %v714, %v718
        %v725 = vadd.s32 %v717, %v723
        %vm726 = vc.u32 %v724, %v720
        %v727 = vsel %vm726, 1, 0
        %v728 = vadd.s32 %v724, %v720
        %v729 = vadd.s32 %v725, %v727
        %v730 = vadd.s32 %v729, %v719
        %v731 = vadd.s32 %v730, %v721
        %v732 = vmul.u32 %v687, %v678
        %v733 = vadd.s32 %v709, %v728
        %vm734 = vc.u32 %v709, %v728
        %v735 = vadd.s32 %v731, 1
        %v736 = vsel %vm734, %v735, %v731
        %v737 = vadd.s32 %v732, %v736
        %v738 = vadd.s32 %v737, 536870912
        %v739 = vshrl.u32 %v738, 30
        %v740 = vshll.u32 %v739, 30
        %v741 = vsub.s32 %v737, %v740
        %vm742 = vcmp.lt.s32.totalorder %v741, 0
        %v743 = vsub.s32 0, %v741
        %v744 = vsel %vm742, %v743, %v741
        %v745 = vclz %v744
        %v746 = vsub.s32 %v745, 2
        %vm747 = vcmp.gt.s32.totalorder 0, %v746
        %v748 = vsel %vm747, 0, %v746
        %v749 = vsub.s32 32, %v748
        %v750 = vshll.u32 %v741, %v748
        %v751 = vshrl.u32 %v733, %v749
        %v752 = vor.u32 %v750, %v751
        %v753 = vsub.s32 4294967266, %v748
        %v754 = vadd.s32 %v753, 127
        %v755 = vshll.u32 %v754, 23
        %v756 = vor.u32 4788187, %v755
        %v757 = vand.u32 2147483647, %v756
        %v759 = vcvt.s32.f32 %v752
        %v760 = vmul.f32 %v759, %v757
        %v761 = vxor.u32 %v760, 2147483648
        %v762 = vsel %vm641, %v761, %v760
        %v763 = vsub.s32 4, %v739
        %v764 = vsel %vm641, %v763, %v739
        %v765 = vsel %vm640, %v638, %v762
        %v766 = vsel %vm640, 0, %v764
        %v767 = vmul.f32 %v765, %v765
        %v768 = vmul.f32 %v767, -0.001358992
        %v769 = vadd.f32 %v768, 0.041655596
        %v770 = vmul.f32 %v767, %v769
        %v771 = vadd.f32 %v770, -0.4999988
        %v772 = vmul.f32 %v767, %v771
        %v773 = vadd.f32 1.0, %v772
        %v774 = vmul.f32 %v765, %v765
        %v775 = vmul.f32 %v774, -0.00019511016
        %v776 = vadd.f32 %v775, 0.008332121
        %v777 = vmul.f32 %v774, %v776
        %v778 = vadd.f32 %v777, -0.16666654
        %v779 = vmul.f32 %v774, %v778
        %v780 = vadd.f32 %v779, 1.0
        %v781 = vmul.f32 %v780, %v765
        %vm782 = vweird.f32 %v638
        %v783 = vadd.s32 %v766, 3
        %v784 = vand.u32 %v783, 3
        %vm785 = vcmp.lt.s32.totalorder %v784, 2
        %vm786 = vcmp.eq.s32.totalorder %v784, 0
        %v787 = vxor.u32 %v781, 2147483648
        %v788 = vsel %vm786, %v773, %v787
        %vm789 = vcmp.eq.s32.totalorder %v784, 2
        %v790 = vxor.u32 %v773, 2147483648
        %v791 = vsel %vm789, %v790, %v781
        %v792 = vsel %vm785, %v788, %v791
        %v793 = vsel %vm782, nan, %v792
        %v794 = vmul.f32 %v793, %v793
        %v795 = vmul.f32 %v634, %v794
        %v796 = vadd.f32 %v468, %v795
        %798 = vset.pattern.permute.xlu0 5
        %799 = vperm.xlu0 %798, %v637
        %v800 = vpop.permute.xlu0 %799
        %802 = vst.msk [vmem:[#allocation3] sm:$0xff] %vm403, %v800
        %804 = vrot.lane.b32.xlu0 %v796, 125
        %v805 = vpop.permute.xlu0 %804
        %807 = vst.msk [vmem:[#allocation3] sm:$0xff] %vm408, %v805
        %808 = vset.pattern.permute.xlu0 37
        %809 = vperm.xlu0 %808, %v796
        %v810 = vpop.permute.xlu0 %809
        %vm812 = vcmask 302360
        %813 = vst.msk [vmem:[#allocation3] sm:$0xff] %vm812, %v810
        %vm814 = vcmask 15360
        %815 = vst.msk [vmem:[#allocation4] sm:$0xff] %vm814, %v800
        %816 = vrot.lane.b32.xlu0 %v637, 125
        %v817 = vpop.permute.xlu0 %816
        %vm819 = vcmask 277520
        %820 = vst.msk [vmem:[#allocation4] sm:$0xff] %vm819, %v817
        %vm821 = vcmask 302352
        %822 = vst.msk [vmem:[#allocation4] sm:$0xff] %vm821, %v810
        %v823 = vld [vmem:[#allocation3] sm:$0xff]
        %v824 = vld [vmem:[#allocation4] sm:$0xff]
        %v825 = vmul.f32 %v823, 0.0020289666
        %v826 = vmul.f32 %v824, 0.009389464
        %v827 = vadd.f32 %v825, %v826
        %v828 = vmul.f32 %v823, -0.025543464
        %830 = vrot.lane.b32.xlu0 %v828, 127
        %v831 = vpop.permute.xlu0 %830
        %v833 = vadd.f32 %v827, %v831
        %v834 = vmul.f32 %v824, -0.057657376
        %836 = vrot.lane.b32.xlu0 %v834, 127
        %v837 = vpop.permute.xlu0 %836
        %v839 = vadd.f32 %v833, %v837
        %v840 = vmul.f32 %v823, 0.12857261
        %842 = vrot.lane.b32.xlu0 %v840, 126
        %v843 = vpop.permute.xlu0 %842
        %v845 = vadd.f32 %v839, %v843
        %v846 = vmul.f32 %v824, 0.4432098
        %848 = vrot.lane.b32.xlu0 %v846, 126
        %v849 = vpop.permute.xlu0 %848
        %v851 = vadd.f32 %v845, %v849
        %v852 = vmul.f32 %v823, 0.4432098
        %854 = vrot.lane.b32.xlu0 %v852, 125
        %v855 = vpop.permute.xlu0 %854
        %v857 = vadd.f32 %v851, %v855
        %v858 = vmul.f32 %v824, 0.12857261
        %860 = vrot.lane.b32.xlu0 %v858, 125
        %v861 = vpop.permute.xlu0 %860
        %v863 = vadd.f32 %v857, %v861
        %v864 = vmul.f32 %v823, -0.057657376
        %866 = vrot.lane.b32.xlu0 %v864, 124
        %v867 = vpop.permute.xlu0 %866
        %v869 = vadd.f32 %v863, %v867
        %v870 = vmul.f32 %v824, -0.025543464
        %872 = vrot.lane.b32.xlu0 %v870, 124
        %v873 = vpop.permute.xlu0 %872
        %v875 = vadd.f32 %v869, %v873
        %v876 = vmul.f32 %v823, 0.009389464
        %878 = vrot.lane.b32.xlu0 %v876, 123
        %v879 = vpop.permute.xlu0 %878
        %v881 = vadd.f32 %v875, %v879
        %v882 = vmul.f32 %v824, 0.0020289666
        %884 = vrot.lane.b32.xlu0 %v882, 123
        %v885 = vpop.permute.xlu0 %884
        %v887 = vadd.f32 %v881, %v885
        %v888 = vld [vmem:[#allocation9] sm:$0xff]
        %v889 = vld [vmem:[#allocation11] sm:$0xff]
        %vm890 = vcmask 7168
        %891 = vst.msk [vmem:[#allocation5] sm:$0xff] %vm890, 0.0
        %893 = vrot.lane.b32.xlu0 %v887, 1
        %v894 = vpop.permute.xlu0 %893
        %vm896 = vcmask 261128
        %897 = vst.msk [vmem:[#allocation5] sm:$0xff] %vm896, %v894
        %vm898 = vcmask 261120
        %899 = vst.msk [vmem:[#allocation5 + $0x8] sm:$0xff] %vm898, %v887
        %900 = vrot.lane.b32.xlu0 %v887, 127
        %v901 = vpop.permute.xlu0 %900
        %vm903 = vcmask 252928
        %904 = vst.msk [vmem:[#allocation5 + $0x10] sm:$0xff] %vm903, %v901
        %vm905 = vcmask 261368
        %906 = vst.msk [vmem:[#allocation5 + $0x10] sm:$0xff] %vm905, 0.0
        %v907 = vld [vmem:[#allocation5] sm:$0xff]
        %v908 = vld [vmem:[#allocation5 + $0x8] sm:$0xff]
        %v909 = vld [vmem:[#allocation5 + $0x10] sm:$0xff]
        %911 = vset.pattern.permute.xlu0 0
        %912 = vperm.xlu0 %911, %v888
        %v913 = vpop.permute.xlu0 %912
        %v915 = vperm.slane %v907, 0
        %v916 = vmul.f32 %v913, %v915
        %917 = vset.pattern.permute.xlu0 1
        %918 = vperm.xlu0 %917, %v888
        %v919 = vpop.permute.xlu0 %918
        %v921 = vperm.slane %v907, 1
        %v922 = vmul.f32 %v919, %v921
        %v923 = vadd.f32 %v916, %v922
        %924 = vset.pattern.permute.xlu0 2
        %925 = vperm.xlu0 %924, %v888
        %v926 = vpop.permute.xlu0 %925
        %v928 = vperm.slane %v907, 2
        %v929 = vmul.f32 %v926, %v928
        %v930 = vadd.f32 %v923, %v929
        %931 = vset.pattern.permute.xlu0 3
        %932 = vperm.xlu0 %931, %v888
        %v933 = vpop.permute.xlu0 %932
        %v935 = vperm.slane %v907, 3
        %v936 = vmul.f32 %v933, %v935
        %v937 = vadd.f32 %v930, %v936
        %938 = vset.pattern.permute.xlu0 4
        %939 = vperm.xlu0 %938, %v888
        %v940 = vpop.permute.xlu0 %939
        %v942 = vperm.slane %v907, 4
        %v943 = vmul.f32 %v940, %v942
        %v944 = vadd.f32 %v937, %v943
        %945 = vset.pattern.permute.xlu0 5
        %946 = vperm.xlu0 %945, %v888
        %v947 = vpop.permute.xlu0 %946
        %v949 = vperm.slane %v907, 5
        %v950 = vmul.f32 %v947, %v949
        %v951 = vadd.f32 %v944, %v950
        %952 = vset.pattern.permute.xlu0 6
        %953 = vperm.xlu0 %952, %v888
        %v954 = vpop.permute.xlu0 %953
        %v956 = vperm.slane %v907, 6
        %v957 = vmul.f32 %v954, %v956
        %v958 = vadd.f32 %v951, %v957
        %959 = vset.pattern.permute.xlu0 7
        %960 = vperm.xlu0 %959, %v888
        %v961 = vpop.permute.xlu0 %960
        %v963 = vperm.slane %v907, 7
        %v964 = vmul.f32 %v961, %v963
        %v965 = vadd.f32 %v958, %v964
        %966 = vset.pattern.permute.xlu0 8
        %967 = vperm.xlu0 %966, %v888
        %v968 = vpop.permute.xlu0 %967
        %v970 = vperm.slane %v908, 0
        %v971 = vmul.f32 %v968, %v970
        %972 = vset.pattern.permute.xlu0 9
        %973 = vperm.xlu0 %972, %v888
        %v974 = vpop.permute.xlu0 %973
        %v976 = vperm.slane %v908, 1
        %v977 = vmul.f32 %v974, %v976
        %v978 = vadd.f32 %v971, %v977
        %979 = vset.pattern.permute.xlu0 10
        %980 = vperm.xlu0 %979, %v888
        %v981 = vpop.permute.xlu0 %980
        %v983 = vperm.slane %v908, 2
        %v984 = vmul.f32 %v981, %v983
        %v985 = vadd.f32 %v978, %v984
        %986 = vset.pattern.permute.xlu0 11
        %987 = vperm.xlu0 %986, %v888
        %v988 = vpop.permute.xlu0 %987
        %v990 = vperm.slane %v908, 3
        %v991 = vmul.f32 %v988, %v990
        %v992 = vadd.f32 %v985, %v991
        %993 = vset.pattern.permute.xlu0 12
        %994 = vperm.xlu0 %993, %v888
        %v995 = vpop.permute.xlu0 %994
        %v997 = vperm.slane %v908, 4
        %v998 = vmul.f32 %v995, %v997
        %v999 = vadd.f32 %v992, %v998
        %1000 = vset.pattern.permute.xlu0 13
        %1001 = vperm.xlu0 %1000, %v888
        %v1002 = vpop.permute.xlu0 %1001
        %v1004 = vperm.slane %v908, 5
        %v1005 = vmul.f32 %v1002, %v1004
        %v1006 = vadd.f32 %v999, %v1005
        %1007 = vset.pattern.permute.xlu0 14
        %1008 = vperm.xlu0 %1007, %v888
        %v1009 = vpop.permute.xlu0 %1008
        %v1011 = vperm.slane %v908, 6
        %v1012 = vmul.f32 %v1009, %v1011
        %v1013 = vadd.f32 %v1006, %v1012
        %1014 = vset.pattern.permute.xlu0 15
        %1015 = vperm.xlu0 %1014, %v888
        %v1016 = vpop.permute.xlu0 %1015
        %v1018 = vperm.slane %v908, 7
        %v1019 = vmul.f32 %v1016, %v1018
        %v1020 = vadd.f32 %v1013, %v1019
        %1021 = vset.pattern.permute.xlu0 16
        %1022 = vperm.xlu0 %1021, %v888
        %v1023 = vpop.permute.xlu0 %1022
        %v1025 = vperm.slane %v909, 0
        %v1026 = vmul.f32 %v1023, %v1025
        %1027 = vset.pattern.permute.xlu0 17
        %1028 = vperm.xlu0 %1027, %v888
        %v1029 = vpop.permute.xlu0 %1028
        %v1031 = vperm.slane %v909, 1
        %v1032 = vmul.f32 %v1029, %v1031
        %v1033 = vadd.f32 %v1026, %v1032
        %1034 = vset.pattern.permute.xlu0 18
        %1035 = vperm.xlu0 %1034, %v888
        %v1036 = vpop.permute.xlu0 %1035
        %v1038 = vperm.slane %v909, 2
        %v1039 = vmul.f32 %v1036, %v1038
        %v1040 = vadd.f32 %v1033, %v1039
        %1041 = vset.pattern.permute.xlu0 19
        %1042 = vperm.xlu0 %1041, %v888
        %v1043 = vpop.permute.xlu0 %1042
        %v1045 = vperm.slane %v909, 3
        %v1046 = vmul.f32 %v1043, %v1045
        %v1047 = vadd.f32 %v1040, %v1046
        %1048 = vset.pattern.permute.xlu0 20
        %1049 = vperm.xlu0 %1048, %v888
        %v1050 = vpop.permute.xlu0 %1049
        %v1052 = vperm.slane %v909, 4
        %v1053 = vmul.f32 %v1050, %v1052
        %v1054 = vadd.f32 %v1047, %v1053
        %1055 = vset.pattern.permute.xlu0 21
        %1056 = vperm.xlu0 %1055, %v888
        %v1057 = vpop.permute.xlu0 %1056
        %v1059 = vperm.slane %v909, 5
        %v1060 = vmul.f32 %v1057, %v1059
        %v1061 = vadd.f32 %v1054, %v1060
        %1062 = vset.pattern.permute.xlu0 22
        %1063 = vperm.xlu0 %1062, %v888
        %v1064 = vpop.permute.xlu0 %1063
        %v1066 = vperm.slane %v909, 6
        %v1067 = vmul.f32 %v1064, %v1066
        %v1068 = vadd.f32 %v1061, %v1067
        %1069 = vset.pattern.permute.xlu0 23
        %1070 = vperm.xlu0 %1069, %v888
        %v1071 = vpop.permute.xlu0 %1070
        %v1073 = vperm.slane %v909, 7
        %v1074 = vmul.f32 %v1071, %v1073
        %v1075 = vadd.f32 %v1068, %v1074
        %v1076 = vadd.f32 %v965, %v1020
        %v1077 = vadd.f32 %v1076, %v1075
        %1079 = vset.pattern.permute.xlu0 0
        %1080 = vperm.xlu0 %1079, %v889
        %v1081 = vpop.permute.xlu0 %1080
        %v1083 = vadd.f32 %v1077, %v1081
        %s1084 = scalar_lea.vmem [#allocation15], 8
        %v1085 = vld [vmem:[%s1084] sm:$0xff]
        %s1086 = scalar_lea.vmem [#allocation17], 8
        %v1087 = vld [vmem:[%s1086] sm:$0xff]
        %1089 = vset.pattern.permute.xlu0 0
        %1090 = vperm.xlu0 %1089, %v1083
        %v1091 = vpop.permute.xlu0 %1090
        %1093 = vst.msk [vmem:[#allocation2] sm:$0xff] %vm403, %v1091
        %1094 = vrot.lane.b32.xlu0 %v1083, 3
        %v1095 = vpop.permute.xlu0 %1094
        %1097 = vst.msk [vmem:[#allocation2] sm:$0xff] %vm408, %v1095
        %1098 = vset.pattern.permute.xlu0 31
        %1099 = vperm.xlu0 %1098, %v1083
        %v1100 = vpop.permute.xlu0 %1099
        %1102 = vst.msk [vmem:[#allocation2] sm:$0xff] %vm414, %v1100
        %v1103 = vld [vmem:[#allocation2] sm:$0xff]
        %v1104 = vmul.f32 %v1103, 0.018778928
        %v1105 = vmul.f32 %v1103, 0.004057933
        %v1106 = vmul.f32 %v1103, -0.11531475
        %1108 = vrot.lane.b32.xlu0 %v1106, 1
        %v1109 = vpop.permute.xlu0 %1108
        %v1111 = vadd.f32 %v1104, %v1109
        %v1112 = vmul.f32 %v1103, -0.05108693
        %1114 = vrot.lane.b32.xlu0 %v1112, 1
        %v1115 = vpop.permute.xlu0 %1114
        %v1117 = vadd.f32 %v1105, %v1115
        %v1118 = vmul.f32 %v1103, 0.8864196
        %1120 = vrot.lane.b32.xlu0 %v1118, 2
        %v1121 = vpop.permute.xlu0 %1120
        %v1123 = vadd.f32 %v1111, %v1121
        %v1124 = vmul.f32 %v1103, 0.25714523
        %1126 = vrot.lane.b32.xlu0 %v1124, 2
        %v1127 = vpop.permute.xlu0 %1126
        %v1129 = vadd.f32 %v1117, %v1127
        %1130 = vrot.lane.b32.xlu0 %v1124, 3
        %v1131 = vpop.permute.xlu0 %1130
        %v1133 = vadd.f32 %v1123, %v1131
        %1134 = vrot.lane.b32.xlu0 %v1118, 3
        %v1135 = vpop.permute.xlu0 %1134
        %v1137 = vadd.f32 %v1129, %v1135
        %1138 = vrot.lane.b32.xlu0 %v1112, 4
        %v1139 = vpop.permute.xlu0 %1138
        %v1141 = vadd.f32 %v1133, %v1139
        %1142 = vrot.lane.b32.xlu0 %v1106, 4
        %v1143 = vpop.permute.xlu0 %1142
        %v1145 = vadd.f32 %v1137, %v1143
        %1147 = vrot.lane.b32.xlu0 %v1105, 5
        %v1148 = vpop.permute.xlu0 %1147
        %v1150 = vadd.f32 %v1141, %v1148
        %1152 = vrot.lane.b32.xlu0 %v1104, 5
        %v1153 = vpop.permute.xlu0 %1152
        %v1155 = vadd.f32 %v1145, %v1153
        %1157 = vset.pattern.permute.xlu0 0
        %1158 = vperm.xlu0 %1157, %v1085
        %v1159 = vpop.permute.xlu0 %1158
        %v1161 = vmul.f32 %v1150, %v1159
        %v1162 = vand.u32 2147483647, %v1161
        %vm1163 = vcmp.le.f32.partialorder %v1162, 0.7853982
        %vm1164 = vcmp.lt.s32.totalorder %v1161, 0
        %v1165 = vand.u32 %v1161, 2139095040
        %v1166 = vshrl.u32 %v1165, 23
        %v1167 = vsub.s32 %v1166, 127
        %v1168 = vand.u32 2147483647, %v1161
        %v1169 = vand.u32 %v1168, 8388607
        %v1170 = vor.u32 %v1169, 8388608
        %v1171 = vsub.s32 0, %v1170
        %v1172 = vadd.s32 %v1167, 1
        %vm1173 = vcmp.gt.s32.totalorder %v1172, 0
        %v1174 = vsel %vm1173, %v1172, 0
        %v1175 = vshrl.u32 %v1174, 5
        %v1176 = vand.u32 %v1174, 31
        %v1177 = vsub.s32 32, %v1176
        %v1178 = vshrl.u32 683565275, %v1177
        %v1179 = vshll.u32 683565275, %v1176
        %v1180 = vshrl.u32 2475754826, %v1177
        %v1181 = vor.u32 %v1179, %v1180
        %v1182 = vshll.u32 2475754826, %v1176
        %v1183 = vshrl.u32 2131351028, %v1177
        %v1184 = vor.u32 %v1182, %v1183
        %v1185 = vshll.u32 2131351028, %v1176
        %v1186 = vshrl.u32 2102212464, %v1177
        %v1187 = vor.u32 %v1185, %v1186
        %v1188 = vshll.u32 2102212464, %v1176
        %v1189 = vshrl.u32 920167782, %v1177
        %v1190 = vor.u32 %v1188, %v1189
        %v1191 = vshll.u32 920167782, %v1176
        %v1192 = vshrl.u32 1326507024, %v1177
        %v1193 = vor.u32 %v1191, %v1192
        %vm1194 = vcmp.lt.s32.totalorder %v1175, 1
        %vm1195 = vcmp.lt.s32.totalorder %v1175, 2
        %vm1196 = vcmp.lt.s32.totalorder %v1175, 3
        %vm1197 = vcmp.lt.s32.totalorder %v1175, 4
        %v1198 = vsel %vm1194, %v1178, %v1181
        %v1199 = vsel %vm1197, %v1187, 2102212464
        %v1200 = vsel %vm1196, %v1184, %v1199
        %v1201 = vsel %vm1195, %v1198, %v1200
        %v1202 = vsel %vm1194, %v1181, %v1184
        %v1203 = vsel %vm1197, %v1190, 920167782
        %v1204 = vsel %vm1196, %v1187, %v1203
        %v1205 = vsel %vm1195, %v1202, %v1204
        %v1206 = vsel %vm1194, %v1184, %v1187
        %v1207 = vsel %vm1197, %v1193, 1326507024
        %v1208 = vsel %vm1196, %v1190, %v1207
        %v1209 = vsel %vm1195, %v1206, %v1208
        %v1210 = vshll.u32 %v1170, 8
        %v1211 = vand.u32 %v1210, 65535
        %v1212 = vshrl.u32 %v1210, 16
        %v1213 = vand.u32 %v1209, 65535
        %v1214 = vshrl.u32 %v1209, 16
        %v1215 = vmul.u32 %v1211, %v1213
        %v1216 = vmul.u32 %v1211, %v1214
        %v1217 = vmul.u32 %v1212, %v1213
        %v1218 = vmul.u32 %v1212, %v1214
        %v1219 = vshll.u32 %v1216, 16
        %v1220 = vshrl.u32 %v1216, 16
        %v1221 = vshll.u32 %v1217, 16
        %v1222 = vshrl.u32 %v1217, 16
        %vm1223 = vc.u32 %v1215, %v1219
        %v1224 = vsel %vm1223, 1, 0
        %v1225 = vadd.s32 %v1215, %v1219
        %v1226 = vadd.s32 %v1218, %v1224
        %vm1227 = vc.u32 %v1225, %v1221
        %v1228 = vsel %vm1227, 1, 0
        %v1229 = vadd.s32 %v1225, %v1221
        %v1230 = vadd.s32 %v1226, %v1228
        %v1231 = vadd.s32 %v1230, %v1220
        %v1232 = vadd.s32 %v1231, %v1222
        %v1233 = vand.u32 %v1210, 65535
        %v1234 = vshrl.u32 %v1210, 16
        %v1235 = vand.u32 %v1205, 65535
        %v1236 = vshrl.u32 %v1205, 16
        %v1237 = vmul.u32 %v1233, %v1235
        %v1238 = vmul.u32 %v1233, %v1236
        %v1239 = vmul.u32 %v1234, %v1235
        %v1240 = vmul.u32 %v1234, %v1236
        %v1241 = vshll.u32 %v1238, 16
        %v1242 = vshrl.u32 %v1238, 16
        %v1243 = vshll.u32 %v1239, 16
        %v1244 = vshrl.u32 %v1239, 16
        %vm1245 = vc.u32 %v1237, %v1241
        %v1246 = vsel %vm1245, 1, 0
        %v1247 = vadd.s32 %v1237, %v1241
        %v1248 = vadd.s32 %v1240, %v1246
        %vm1249 = vc.u32 %v1247, %v1243
        %v1250 = vsel %vm1249, 1, 0
        %v1251 = vadd.s32 %v1247, %v1243
        %v1252 = vadd.s32 %v1248, %v1250
        %v1253 = vadd.s32 %v1252, %v1242
        %v1254 = vadd.s32 %v1253, %v1244
        %v1255 = vmul.u32 %v1210, %v1201
        %v1256 = vadd.s32 %v1232, %v1251
        %vm1257 = vc.u32 %v1232, %v1251
        %v1258 = vadd.s32 %v1254, 1
        %v1259 = vsel %vm1257, %v1258, %v1254
        %v1260 = vadd.s32 %v1255, %v1259
        %v1261 = vadd.s32 %v1260, 536870912
        %v1262 = vshrl.u32 %v1261, 30
        %v1263 = vshll.u32 %v1262, 30
        %v1264 = vsub.s32 %v1260, %v1263
        %vm1265 = vcmp.lt.s32.totalorder %v1264, 0
        %v1266 = vsub.s32 0, %v1264
        %v1267 = vsel %vm1265, %v1266, %v1264
        %v1268 = vclz %v1267
        %v1269 = vsub.s32 %v1268, 2
        %vm1270 = vcmp.gt.s32.totalorder 0, %v1269
        %v1271 = vsel %vm1270, 0, %v1269
        %v1272 = vsub.s32 32, %v1271
        %v1273 = vshll.u32 %v1264, %v1271
        %v1274 = vshrl.u32 %v1256, %v1272
        %v1275 = vor.u32 %v1273, %v1274
        %v1276 = vsub.s32 4294967266, %v1271
        %v1277 = vadd.s32 %v1276, 127
        %v1278 = vshll.u32 %v1277, 23
        %v1279 = vor.u32 4788187, %v1278
        %v1280 = vand.u32 2147483647, %v1279
        %v1282 = vcvt.s32.f32 %v1275
        %v1283 = vmul.f32 %v1282, %v1280
        %v1284 = vxor.u32 %v1283, 2147483648
        %v1285 = vsel %vm1164, %v1284, %v1283
        %v1286 = vsub.s32 4, %v1262
        %v1287 = vsel %vm1164, %v1286, %v1262
        %v1288 = vsel %vm1163, %v1161, %v1285
        %v1289 = vsel %vm1163, 0, %v1287
        %v1290 = vmul.f32 %v1288, %v1288
        %v1291 = vmul.f32 %v1290, -0.001358992
        %v1292 = vadd.f32 %v1291, 0.041655596
        %v1293 = vmul.f32 %v1290, %v1292
        %v1294 = vadd.f32 %v1293, -0.4999988
        %v1295 = vmul.f32 %v1290, %v1294
        %v1296 = vadd.f32 1.0, %v1295
        %v1297 = vmul.f32 %v1288, %v1288
        %v1298 = vmul.f32 %v1297, -0.00019511016
        %v1299 = vadd.f32 %v1298, 0.008332121
        %v1300 = vmul.f32 %v1297, %v1299
        %v1301 = vadd.f32 %v1300, -0.16666654
        %v1302 = vmul.f32 %v1297, %v1301
        %v1303 = vadd.f32 %v1302, 1.0
        %v1304 = vmul.f32 %v1303, %v1288
        %vm1305 = vweird.f32 %v1161
        %v1306 = vadd.s32 %v1289, 3
        %v1307 = vand.u32 %v1306, 3
        %vm1308 = vcmp.lt.s32.totalorder %v1307, 2
        %vm1309 = vcmp.eq.s32.totalorder %v1307, 0
        %v1310 = vxor.u32 %v1304, 2147483648
        %v1311 = vsel %vm1309, %v1296, %v1310
        %vm1312 = vcmp.eq.s32.totalorder %v1307, 2
        %v1313 = vxor.u32 %v1296, 2147483648
        %v1314 = vsel %vm1312, %v1313, %v1304
        %v1315 = vsel %vm1308, %v1311, %v1314
        %v1316 = vsel %vm1305, nan, %v1315
        %v1317 = vmul.f32 %v1316, %v1316
        %1319 = vset.pattern.permute.xlu0 0
        %1320 = vperm.xlu0 %1319, %v1087
        %v1321 = vpop.permute.xlu0 %1320
        %v1323 = vmul.f32 %v1321, %v1317
        %v1324 = vadd.f32 %v1150, %v1323
        %v1325 = vmul.f32 %v1155, %v1159
        %v1326 = vand.u32 2147483647, %v1325
        %vm1327 = vcmp.le.f32.partialorder %v1326, 0.7853982
        %vm1328 = vcmp.lt.s32.totalorder %v1325, 0
        %v1329 = vand.u32 %v1325, 2139095040
        %v1330 = vshrl.u32 %v1329, 23
        %v1331 = vsub.s32 %v1330, 127
        %v1332 = vand.u32 2147483647, %v1325
        %v1333 = vand.u32 %v1332, 8388607
        %v1334 = vor.u32 %v1333, 8388608
        %v1335 = vsub.s32 0, %v1334
        %v1336 = vadd.s32 %v1331, 1
        %vm1337 = vcmp.gt.s32.totalorder %v1336, 0
        %v1338 = vsel %vm1337, %v1336, 0
        %v1339 = vshrl.u32 %v1338, 5
        %v1340 = vand.u32 %v1338, 31
        %v1341 = vsub.s32 32, %v1340
        %v1342 = vshrl.u32 683565275, %v1341
        %v1343 = vshll.u32 683565275, %v1340
        %v1344 = vshrl.u32 2475754826, %v1341
        %v1345 = vor.u32 %v1343, %v1344
        %v1346 = vshll.u32 2475754826, %v1340
        %v1347 = vshrl.u32 2131351028, %v1341
        %v1348 = vor.u32 %v1346, %v1347
        %v1349 = vshll.u32 2131351028, %v1340
        %v1350 = vshrl.u32 2102212464, %v1341
        %v1351 = vor.u32 %v1349, %v1350
        %v1352 = vshll.u32 2102212464, %v1340
        %v1353 = vshrl.u32 920167782, %v1341
        %v1354 = vor.u32 %v1352, %v1353
        %v1355 = vshll.u32 920167782, %v1340
        %v1356 = vshrl.u32 1326507024, %v1341
        %v1357 = vor.u32 %v1355, %v1356
        %vm1358 = vcmp.lt.s32.totalorder %v1339, 1
        %vm1359 = vcmp.lt.s32.totalorder %v1339, 2
        %vm1360 = vcmp.lt.s32.totalorder %v1339, 3
        %vm1361 = vcmp.lt.s32.totalorder %v1339, 4
        %v1362 = vsel %vm1358, %v1342, %v1345
        %v1363 = vsel %vm1361, %v1351, 2102212464
        %v1364 = vsel %vm1360, %v1348, %v1363
        %v1365 = vsel %vm1359, %v1362, %v1364
        %v1366 = vsel %vm1358, %v1345, %v1348
        %v1367 = vsel %vm1361, %v1354, 920167782
        %v1368 = vsel %vm1360, %v1351, %v1367
        %v1369 = vsel %vm1359, %v1366, %v1368
        %v1370 = vsel %vm1358, %v1348, %v1351
        %v1371 = vsel %vm1361, %v1357, 1326507024
        %v1372 = vsel %vm1360, %v1354, %v1371
        %v1373 = vsel %vm1359, %v1370, %v1372
        %v1374 = vshll.u32 %v1334, 8
        %v1375 = vand.u32 %v1374, 65535
        %v1376 = vshrl.u32 %v1374, 16
        %v1377 = vand.u32 %v1373, 65535
        %v1378 = vshrl.u32 %v1373, 16
        %v1379 = vmul.u32 %v1375, %v1377
        %v1380 = vmul.u32 %v1375, %v1378
        %v1381 = vmul.u32 %v1376, %v1377
        %v1382 = vmul.u32 %v1376, %v1378
        %v1383 = vshll.u32 %v1380, 16
        %v1384 = vshrl.u32 %v1380, 16
        %v1385 = vshll.u32 %v1381, 16
        %v1386 = vshrl.u32 %v1381, 16
        %vm1387 = vc.u32 %v1379, %v1383
        %v1388 = vsel %vm1387, 1, 0
        %v1389 = vadd.s32 %v1379, %v1383
        %v1390 = vadd.s32 %v1382, %v1388
        %vm1391 = vc.u32 %v1389, %v1385
        %v1392 = vsel %vm1391, 1, 0
        %v1393 = vadd.s32 %v1389, %v1385
        %v1394 = vadd.s32 %v1390, %v1392
        %v1395 = vadd.s32 %v1394, %v1384
        %v1396 = vadd.s32 %v1395, %v1386
        %v1397 = vand.u32 %v1374, 65535
        %v1398 = vshrl.u32 %v1374, 16
        %v1399 = vand.u32 %v1369, 65535
        %v1400 = vshrl.u32 %v1369, 16
        %v1401 = vmul.u32 %v1397, %v1399
        %v1402 = vmul.u32 %v1397, %v1400
        %v1403 = vmul.u32 %v1398, %v1399
        %v1404 = vmul.u32 %v1398, %v1400
        %v1405 = vshll.u32 %v1402, 16
        %v1406 = vshrl.u32 %v1402, 16
        %v1407 = vshll.u32 %v1403, 16
        %v1408 = vshrl.u32 %v1403, 16
        %vm1409 = vc.u32 %v1401, %v1405
        %v1410 = vsel %vm1409, 1, 0
        %v1411 = vadd.s32 %v1401, %v1405
        %v1412 = vadd.s32 %v1404, %v1410
        %vm1413 = vc.u32 %v1411, %v1407
        %v1414 = vsel %vm1413, 1, 0
        %v1415 = vadd.s32 %v1411, %v1407
        %v1416 = vadd.s32 %v1412, %v1414
        %v1417 = vadd.s32 %v1416, %v1406
        %v1418 = vadd.s32 %v1417, %v1408
        %v1419 = vmul.u32 %v1374, %v1365
        %v1420 = vadd.s32 %v1396, %v1415
        %vm1421 = vc.u32 %v1396, %v1415
        %v1422 = vadd.s32 %v1418, 1
        %v1423 = vsel %vm1421, %v1422, %v1418
        %v1424 = vadd.s32 %v1419, %v1423
        %v1425 = vadd.s32 %v1424, 536870912
        %v1426 = vshrl.u32 %v1425, 30
        %v1427 = vshll.u32 %v1426, 30
        %v1428 = vsub.s32 %v1424, %v1427
        %vm1429 = vcmp.lt.s32.totalorder %v1428, 0
        %v1430 = vsub.s32 0, %v1428
        %v1431 = vsel %vm1429, %v1430, %v1428
        %v1432 = vclz %v1431
        %v1433 = vsub.s32 %v1432, 2
        %vm1434 = vcmp.gt.s32.totalorder 0, %v1433
        %v1435 = vsel %vm1434, 0, %v1433
        %v1436 = vsub.s32 32, %v1435
        %v1437 = vshll.u32 %v1428, %v1435
        %v1438 = vshrl.u32 %v1420, %v1436
        %v1439 = vor.u32 %v1437, %v1438
        %v1440 = vsub.s32 4294967266, %v1435
        %v1441 = vadd.s32 %v1440, 127
        %v1442 = vshll.u32 %v1441, 23
        %v1443 = vor.u32 4788187, %v1442
        %v1444 = vand.u32 2147483647, %v1443
        %v1446 = vcvt.s32.f32 %v1439
        %v1447 = vmul.f32 %v1446, %v1444
        %v1448 = vxor.u32 %v1447, 2147483648
        %v1449 = vsel %vm1328, %v1448, %v1447
        %v1450 = vsub.s32 4, %v1426
        %v1451 = vsel %vm1328, %v1450, %v1426
        %v1452 = vsel %vm1327, %v1325, %v1449
        %v1453 = vsel %vm1327, 0, %v1451
        %v1454 = vmul.f32 %v1452, %v1452
        %v1455 = vmul.f32 %v1454, -0.001358992
        %v1456 = vadd.f32 %v1455, 0.041655596
        %v1457 = vmul.f32 %v1454, %v1456
        %v1458 = vadd.f32 %v1457, -0.4999988
        %v1459 = vmul.f32 %v1454, %v1458
        %v1460 = vadd.f32 1.0, %v1459
        %v1461 = vmul.f32 %v1452, %v1452
        %v1462 = vmul.f32 %v1461, -0.00019511016
        %v1463 = vadd.f32 %v1462, 0.008332121
        %v1464 = vmul.f32 %v1461, %v1463
        %v1465 = vadd.f32 %v1464, -0.16666654
        %v1466 = vmul.f32 %v1461, %v1465
        %v1467 = vadd.f32 %v1466, 1.0
        %v1468 = vmul.f32 %v1467, %v1452
        %vm1469 = vweird.f32 %v1325
        %v1470 = vadd.s32 %v1453, 3
        %v1471 = vand.u32 %v1470, 3
        %vm1472 = vcmp.lt.s32.totalorder %v1471, 2
        %vm1473 = vcmp.eq.s32.totalorder %v1471, 0
        %v1474 = vxor.u32 %v1468, 2147483648
        %v1475 = vsel %vm1473, %v1460, %v1474
        %vm1476 = vcmp.eq.s32.totalorder %v1471, 2
        %v1477 = vxor.u32 %v1460, 2147483648
        %v1478 = vsel %vm1476, %v1477, %v1468
        %v1479 = vsel %vm1472, %v1475, %v1478
        %v1480 = vsel %vm1469, nan, %v1479
        %v1481 = vmul.f32 %v1480, %v1480
        %v1482 = vmul.f32 %v1321, %v1481
        %v1483 = vadd.f32 %v1155, %v1482
        %1485 = vset.pattern.permute.xlu0 5
        %1486 = vperm.xlu0 %1485, %v1324
        %v1487 = vpop.permute.xlu0 %1486
        %1489 = vst.msk [vmem:[#allocation3] sm:$0xff] %vm403, %v1487
        %1491 = vrot.lane.b32.xlu0 %v1483, 125
        %v1492 = vpop.permute.xlu0 %1491
        %1494 = vst.msk [vmem:[#allocation3] sm:$0xff] %vm408, %v1492
        %1495 = vset.pattern.permute.xlu0 37
        %1496 = vperm.xlu0 %1495, %v1483
        %v1497 = vpop.permute.xlu0 %1496
        %1499 = vst.msk [vmem:[#allocation3] sm:$0xff] %vm812, %v1497
        %1500 = vst.msk [vmem:[#allocation4] sm:$0xff] %vm814, %v1487
        %1501 = vrot.lane.b32.xlu0 %v1324, 125
        %v1502 = vpop.permute.xlu0 %1501
        %1504 = vst.msk [vmem:[#allocation4] sm:$0xff] %vm819, %v1502
        %1505 = vst.msk [vmem:[#allocation4] sm:$0xff] %vm821, %v1497
        %v1506 = vld [vmem:[#allocation3] sm:$0xff]
        %v1507 = vld [vmem:[#allocation4] sm:$0xff]
        %v1508 = vmul.f32 %v1506, 0.0020289666
        %v1509 = vmul.f32 %v1507, 0.009389464
        %v1510 = vadd.f32 %v1508, %v1509
        %v1511 = vmul.f32 %v1506, -0.025543464
        %1513 = vrot.lane.b32.xlu0 %v1511, 127
        %v1514 = vpop.permute.xlu0 %1513
        %v1516 = vadd.f32 %v1510, %v1514
        %v1517 = vmul.f32 %v1507, -0.057657376
        %1519 = vrot.lane.b32.xlu0 %v1517, 127
        %v1520 = vpop.permute.xlu0 %1519
        %v1522 = vadd.f32 %v1516, %v1520
        %v1523 = vmul.f32 %v1506, 0.12857261
        %1525 = vrot.lane.b32.xlu0 %v1523, 126
        %v1526 = vpop.permute.xlu0 %1525
        %v1528 = vadd.f32 %v1522, %v1526
        %v1529 = vmul.f32 %v1507, 0.4432098
        %1531 = vrot.lane.b32.xlu0 %v1529, 126
        %v1532 = vpop.permute.xlu0 %1531
        %v1534 = vadd.f32 %v1528, %v1532
        %v1535 = vmul.f32 %v1506, 0.4432098
        %1537 = vrot.lane.b32.xlu0 %v1535, 125
        %v1538 = vpop.permute.xlu0 %1537
        %v1540 = vadd.f32 %v1534, %v1538
        %v1541 = vmul.f32 %v1507, 0.12857261
        %1543 = vrot.lane.b32.xlu0 %v1541, 125
        %v1544 = vpop.permute.xlu0 %1543
        %v1546 = vadd.f32 %v1540, %v1544
        %v1547 = vmul.f32 %v1506, -0.057657376
        %1549 = vrot.lane.b32.xlu0 %v1547, 124
        %v1550 = vpop.permute.xlu0 %1549
        %v1552 = vadd.f32 %v1546, %v1550
        %v1553 = vmul.f32 %v1507, -0.025543464
        %1555 = vrot.lane.b32.xlu0 %v1553, 124
        %v1556 = vpop.permute.xlu0 %1555
        %v1558 = vadd.f32 %v1552, %v1556
        %v1559 = vmul.f32 %v1506, 0.009389464
        %1561 = vrot.lane.b32.xlu0 %v1559, 123
        %v1562 = vpop.permute.xlu0 %1561
        %v1564 = vadd.f32 %v1558, %v1562
        %v1565 = vmul.f32 %v1507, 0.0020289666
        %1567 = vrot.lane.b32.xlu0 %v1565, 123
        %v1568 = vpop.permute.xlu0 %1567
        %v1570 = vadd.f32 %v1564, %v1568
        %v1571 = vld [vmem:[#allocation12] sm:$0xff]
        %v1572 = vld [vmem:[#allocation14] sm:$0xff]
        %1573 = vst.msk [vmem:[#allocation5] sm:$0xff] %vm890, 0.0
        %1575 = vrot.lane.b32.xlu0 %v1570, 1
        %v1576 = vpop.permute.xlu0 %1575
        %1578 = vst.msk [vmem:[#allocation5] sm:$0xff] %vm896, %v1576
        %1579 = vst.msk [vmem:[#allocation5 + $0x8] sm:$0xff] %vm898, %v1570
        %1580 = vrot.lane.b32.xlu0 %v1570, 127
        %v1581 = vpop.permute.xlu0 %1580
        %1583 = vst.msk [vmem:[#allocation5 + $0x10] sm:$0xff] %vm903, %v1581
        %1584 = vst.msk [vmem:[#allocation5 + $0x10] sm:$0xff] %vm905, 0.0
        %v1585 = vld [vmem:[#allocation5] sm:$0xff]
        %v1586 = vld [vmem:[#allocation5 + $0x8] sm:$0xff]
        %v1587 = vld [vmem:[#allocation5 + $0x10] sm:$0xff]
        %1589 = vset.pattern.permute.xlu0 0
        %1590 = vperm.xlu0 %1589, %v1571
        %v1591 = vpop.permute.xlu0 %1590
        %v1593 = vperm.slane %v1585, 0
        %v1594 = vmul.f32 %v1591, %v1593
        %1595 = vset.pattern.permute.xlu0 1
        %1596 = vperm.xlu0 %1595, %v1571
        %v1597 = vpop.permute.xlu0 %1596
        %v1599 = vperm.slane %v1585, 1
        %v1600 = vmul.f32 %v1597, %v1599
        %v1601 = vadd.f32 %v1594, %v1600
        %1602 = vset.pattern.permute.xlu0 2
        %1603 = vperm.xlu0 %1602, %v1571
        %v1604 = vpop.permute.xlu0 %1603
        %v1606 = vperm.slane %v1585, 2
        %v1607 = vmul.f32 %v1604, %v1606
        %v1608 = vadd.f32 %v1601, %v1607
        %1609 = vset.pattern.permute.xlu0 3
        %1610 = vperm.xlu0 %1609, %v1571
        %v1611 = vpop.permute.xlu0 %1610
        %v1613 = vperm.slane %v1585, 3
        %v1614 = vmul.f32 %v1611, %v1613
        %v1615 = vadd.f32 %v1608, %v1614
        %1616 = vset.pattern.permute.xlu0 4
        %1617 = vperm.xlu0 %1616, %v1571
        %v1618 = vpop.permute.xlu0 %1617
        %v1620 = vperm.slane %v1585, 4
        %v1621 = vmul.f32 %v1618, %v1620
        %v1622 = vadd.f32 %v1615, %v1621
        %1623 = vset.pattern.permute.xlu0 5
        %1624 = vperm.xlu0 %1623, %v1571
        %v1625 = vpop.permute.xlu0 %1624
        %v1627 = vperm.slane %v1585, 5
        %v1628 = vmul.f32 %v1625, %v1627
        %v1629 = vadd.f32 %v1622, %v1628
        %1630 = vset.pattern.permute.xlu0 6
        %1631 = vperm.xlu0 %1630, %v1571
        %v1632 = vpop.permute.xlu0 %1631
        %v1634 = vperm.slane %v1585, 6
        %v1635 = vmul.f32 %v1632, %v1634
        %v1636 = vadd.f32 %v1629, %v1635
        %1637 = vset.pattern.permute.xlu0 7
        %1638 = vperm.xlu0 %1637, %v1571
        %v1639 = vpop.permute.xlu0 %1638
        %v1641 = vperm.slane %v1585, 7
        %v1642 = vmul.f32 %v1639, %v1641
        %v1643 = vadd.f32 %v1636, %v1642
        %1644 = vset.pattern.permute.xlu0 8
        %1645 = vperm.xlu0 %1644, %v1571
        %v1646 = vpop.permute.xlu0 %1645
        %v1648 = vperm.slane %v1586, 0
        %v1649 = vmul.f32 %v1646, %v1648
        %1650 = vset.pattern.permute.xlu0 9
        %1651 = vperm.xlu0 %1650, %v1571
        %v1652 = vpop.permute.xlu0 %1651
        %v1654 = vperm.slane %v1586, 1
        %v1655 = vmul.f32 %v1652, %v1654
        %v1656 = vadd.f32 %v1649, %v1655
        %1657 = vset.pattern.permute.xlu0 10
        %1658 = vperm.xlu0 %1657, %v1571
        %v1659 = vpop.permute.xlu0 %1658
        %v1661 = vperm.slane %v1586, 2
        %v1662 = vmul.f32 %v1659, %v1661
        %v1663 = vadd.f32 %v1656, %v1662
        %1664 = vset.pattern.permute.xlu0 11
        %1665 = vperm.xlu0 %1664, %v1571
        %v1666 = vpop.permute.xlu0 %1665
        %v1668 = vperm.slane %v1586, 3
        %v1669 = vmul.f32 %v1666, %v1668
        %v1670 = vadd.f32 %v1663, %v1669
        %1671 = vset.pattern.permute.xlu0 12
        %1672 = vperm.xlu0 %1671, %v1571
        %v1673 = vpop.permute.xlu0 %1672
        %v1675 = vperm.slane %v1586, 4
        %v1676 = vmul.f32 %v1673, %v1675
        %v1677 = vadd.f32 %v1670, %v1676
        %1678 = vset.pattern.permute.xlu0 13
        %1679 = vperm.xlu0 %1678, %v1571
        %v1680 = vpop.permute.xlu0 %1679
        %v1682 = vperm.slane %v1586, 5
        %v1683 = vmul.f32 %v1680, %v1682
        %v1684 = vadd.f32 %v1677, %v1683
        %1685 = vset.pattern.permute.xlu0 14
        %1686 = vperm.xlu0 %1685, %v1571
        %v1687 = vpop.permute.xlu0 %1686
        %v1689 = vperm.slane %v1586, 6
        %v1690 = vmul.f32 %v1687, %v1689
        %v1691 = vadd.f32 %v1684, %v1690
        %1692 = vset.pattern.permute.xlu0 15
        %1693 = vperm.xlu0 %1692, %v1571
        %v1694 = vpop.permute.xlu0 %1693
        %v1696 = vperm.slane %v1586, 7
        %v1697 = vmul.f32 %v1694, %v1696
        %v1698 = vadd.f32 %v1691, %v1697
        %1699 = vset.pattern.permute.xlu0 16
        %1700 = vperm.xlu0 %1699, %v1571
        %v1701 = vpop.permute.xlu0 %1700
        %v1703 = vperm.slane %v1587, 0
        %v1704 = vmul.f32 %v1701, %v1703
        %1705 = vset.pattern.permute.xlu0 17
        %1706 = vperm.xlu0 %1705, %v1571
        %v1707 = vpop.permute.xlu0 %1706
        %v1709 = vperm.slane %v1587, 1
        %v1710 = vmul.f32 %v1707, %v1709
        %v1711 = vadd.f32 %v1704, %v1710
        %1712 = vset.pattern.permute.xlu0 18
        %1713 = vperm.xlu0 %1712, %v1571
        %v1714 = vpop.permute.xlu0 %1713
        %v1716 = vperm.slane %v1587, 2
        %v1717 = vmul.f32 %v1714, %v1716
        %v1718 = vadd.f32 %v1711, %v1717
        %1719 = vset.pattern.permute.xlu0 19
        %1720 = vperm.xlu0 %1719, %v1571
        %v1721 = vpop.permute.xlu0 %1720
        %v1723 = vperm.slane %v1587, 3
        %v1724 = vmul.f32 %v1721, %v1723
        %v1725 = vadd.f32 %v1718, %v1724
        %1726 = vset.pattern.permute.xlu0 20
        %1727 = vperm.xlu0 %1726, %v1571
        %v1728 = vpop.permute.xlu0 %1727
        %v1730 = vperm.slane %v1587, 4
        %v1731 = vmul.f32 %v1728, %v1730
        %v1732 = vadd.f32 %v1725, %v1731
        %1733 = vset.pattern.permute.xlu0 21
        %1734 = vperm.xlu0 %1733, %v1571
        %v1735 = vpop.permute.xlu0 %1734
        %v1737 = vperm.slane %v1587, 5
        %v1738 = vmul.f32 %v1735, %v1737
        %v1739 = vadd.f32 %v1732, %v1738
        %1740 = vset.pattern.permute.xlu0 22
        %1741 = vperm.xlu0 %1740, %v1571
        %v1742 = vpop.permute.xlu0 %1741
        %v1744 = vperm.slane %v1587, 6
        %v1745 = vmul.f32 %v1742, %v1744
        %v1746 = vadd.f32 %v1739, %v1745
        %1747 = vset.pattern.permute.xlu0 23
        %1748 = vperm.xlu0 %1747, %v1571
        %v1749 = vpop.permute.xlu0 %1748
        %v1751 = vperm.slane %v1587, 7
        %v1752 = vmul.f32 %v1749, %v1751
        %v1753 = vadd.f32 %v1746, %v1752
        %v1754 = vadd.f32 %v1643, %v1698
        %v1755 = vadd.f32 %v1754, %v1753
        %1757 = vset.pattern.permute.xlu0 0
        %1758 = vperm.xlu0 %1757, %v1572
        %v1759 = vpop.permute.xlu0 %1758
        %v1761 = vadd.f32 %v1755, %v1759
        %v1762 = vadd.f32 %v1761, %v395
        %s1763 = scalar_lea.vmem [#allocation15], 16
        %v1764 = vld [vmem:[%s1763] sm:$0xff]
        %s1765 = scalar_lea.vmem [#allocation17], 16
        %v1766 = vld [vmem:[%s1765] sm:$0xff]
        %1768 = vset.pattern.permute.xlu0 0
        %1769 = vperm.xlu0 %1768, %v1762
        %v1770 = vpop.permute.xlu0 %1769
        %1772 = vst.msk [vmem:[#allocation2] sm:$0xff] %vm403, %v1770
        %1773 = vrot.lane.b32.xlu0 %v1762, 3
        %v1774 = vpop.permute.xlu0 %1773
        %1776 = vst.msk [vmem:[#allocation2] sm:$0xff] %vm408, %v1774
        %1777 = vset.pattern.permute.xlu0 31
        %1778 = vperm.xlu0 %1777, %v1762
        %v1779 = vpop.permute.xlu0 %1778
        %1781 = vst.msk [vmem:[#allocation2] sm:$0xff] %vm414, %v1779
        %v1782 = vld [vmem:[#allocation2] sm:$0xff]
        %v1783 = vmul.f32 %v1782, 0.018778928
        %v1784 = vmul.f32 %v1782, 0.004057933
        %v1785 = vmul.f32 %v1782, -0.11531475
        %1787 = vrot.lane.b32.xlu0 %v1785, 1
        %v1788 = vpop.permute.xlu0 %1787
        %v1790 = vadd.f32 %v1783, %v1788
        %v1791 = vmul.f32 %v1782, -0.05108693
        %1793 = vrot.lane.b32.xlu0 %v1791, 1
        %v1794 = vpop.permute.xlu0 %1793
        %v1796 = vadd.f32 %v1784, %v1794
        %v1797 = vmul.f32 %v1782, 0.8864196
        %1799 = vrot.lane.b32.xlu0 %v1797, 2
        %v1800 = vpop.permute.xlu0 %1799
        %v1802 = vadd.f32 %v1790, %v1800
        %v1803 = vmul.f32 %v1782, 0.25714523
        %1805 = vrot.lane.b32.xlu0 %v1803, 2
        %v1806 = vpop.permute.xlu0 %1805
        %v1808 = vadd.f32 %v1796, %v1806
        %1809 = vrot.lane.b32.xlu0 %v1803, 3
        %v1810 = vpop.permute.xlu0 %1809
        %v1812 = vadd.f32 %v1802, %v1810
        %1813 = vrot.lane.b32.xlu0 %v1797, 3
        %v1814 = vpop.permute.xlu0 %1813
        %v1816 = vadd.f32 %v1808, %v1814
        %1817 = vrot.lane.b32.xlu0 %v1791, 4
        %v1818 = vpop.permute.xlu0 %1817
        %v1820 = vadd.f32 %v1812, %v1818
        %1821 = vrot.lane.b32.xlu0 %v1785, 4
        %v1822 = vpop.permute.xlu0 %1821
        %v1824 = vadd.f32 %v1816, %v1822
        %1826 = vrot.lane.b32.xlu0 %v1784, 5
        %v1827 = vpop.permute.xlu0 %1826
        %v1829 = vadd.f32 %v1820, %v1827
        %1831 = vrot.lane.b32.xlu0 %v1783, 5
        %v1832 = vpop.permute.xlu0 %1831
        %v1834 = vadd.f32 %v1824, %v1832
        %1836 = vset.pattern.permute.xlu0 0
        %1837 = vperm.xlu0 %1836, %v1764
        %v1838 = vpop.permute.xlu0 %1837
        %v1840 = vmul.f32 %v1829, %v1838
        %v1841 = vand.u32 2147483647, %v1840
        %vm1842 = vcmp.le.f32.partialorder %v1841, 0.7853982
        %vm1843 = vcmp.lt.s32.totalorder %v1840, 0
        %v1844 = vand.u32 %v1840, 2139095040
        %v1845 = vshrl.u32 %v1844, 23
        %v1846 = vsub.s32 %v1845, 127
        %v1847 = vand.u32 2147483647, %v1840
        %v1848 = vand.u32 %v1847, 8388607
        %v1849 = vor.u32 %v1848, 8388608
        %v1850 = vsub.s32 0, %v1849
        %v1851 = vadd.s32 %v1846, 1
        %vm1852 = vcmp.gt.s32.totalorder %v1851, 0
        %v1853 = vsel %vm1852, %v1851, 0
        %v1854 = vshrl.u32 %v1853, 5
        %v1855 = vand.u32 %v1853, 31
        %v1856 = vsub.s32 32, %v1855
        %v1857 = vshrl.u32 683565275, %v1856
        %v1858 = vshll.u32 683565275, %v1855
        %v1859 = vshrl.u32 2475754826, %v1856
        %v1860 = vor.u32 %v1858, %v1859
        %v1861 = vshll.u32 2475754826, %v1855
        %v1862 = vshrl.u32 2131351028, %v1856
        %v1863 = vor.u32 %v1861, %v1862
        %v1864 = vshll.u32 2131351028, %v1855
        %v1865 = vshrl.u32 2102212464, %v1856
        %v1866 = vor.u32 %v1864, %v1865
        %v1867 = vshll.u32 2102212464, %v1855
        %v1868 = vshrl.u32 920167782, %v1856
        %v1869 = vor.u32 %v1867, %v1868
        %v1870 = vshll.u32 920167782, %v1855
        %v1871 = vshrl.u32 1326507024, %v1856
        %v1872 = vor.u32 %v1870, %v1871
        %vm1873 = vcmp.lt.s32.totalorder %v1854, 1
        %vm1874 = vcmp.lt.s32.totalorder %v1854, 2
        %vm1875 = vcmp.lt.s32.totalorder %v1854, 3
        %vm1876 = vcmp.lt.s32.totalorder %v1854, 4
        %v1877 = vsel %vm1873, %v1857, %v1860
        %v1878 = vsel %vm1876, %v1866, 2102212464
        %v1879 = vsel %vm1875, %v1863, %v1878
        %v1880 = vsel %vm1874, %v1877, %v1879
        %v1881 = vsel %vm1873, %v1860, %v1863
        %v1882 = vsel %vm1876, %v1869, 920167782
        %v1883 = vsel %vm1875, %v1866, %v1882
        %v1884 = vsel %vm1874, %v1881, %v1883
        %v1885 = vsel %vm1873, %v1863, %v1866
        %v1886 = vsel %vm1876, %v1872, 1326507024
        %v1887 = vsel %vm1875, %v1869, %v1886
        %v1888 = vsel %vm1874, %v1885, %v1887
        %v1889 = vshll.u32 %v1849, 8
        %v1890 = vand.u32 %v1889, 65535
        %v1891 = vshrl.u32 %v1889, 16
        %v1892 = vand.u32 %v1888, 65535
        %v1893 = vshrl.u32 %v1888, 16
        %v1894 = vmul.u32 %v1890, %v1892
        %v1895 = vmul.u32 %v1890, %v1893
        %v1896 = vmul.u32 %v1891, %v1892
        %v1897 = vmul.u32 %v1891, %v1893
        %v1898 = vshll.u32 %v1895, 16
        %v1899 = vshrl.u32 %v1895, 16
        %v1900 = vshll.u32 %v1896, 16
        %v1901 = vshrl.u32 %v1896, 16
        %vm1902 = vc.u32 %v1894, %v1898
        %v1903 = vsel %vm1902, 1, 0
        %v1904 = vadd.s32 %v1894, %v1898
        %v1905 = vadd.s32 %v1897, %v1903
        %vm1906 = vc.u32 %v1904, %v1900
        %v1907 = vsel %vm1906, 1, 0
        %v1908 = vadd.s32 %v1904, %v1900
        %v1909 = vadd.s32 %v1905, %v1907
        %v1910 = vadd.s32 %v1909, %v1899
        %v1911 = vadd.s32 %v1910, %v1901
        %v1912 = vand.u32 %v1889, 65535
        %v1913 = vshrl.u32 %v1889, 16
        %v1914 = vand.u32 %v1884, 65535
        %v1915 = vshrl.u32 %v1884, 16
        %v1916 = vmul.u32 %v1912, %v1914
        %v1917 = vmul.u32 %v1912, %v1915
        %v1918 = vmul.u32 %v1913, %v1914
        %v1919 = vmul.u32 %v1913, %v1915
        %v1920 = vshll.u32 %v1917, 16
        %v1921 = vshrl.u32 %v1917, 16
        %v1922 = vshll.u32 %v1918, 16
        %v1923 = vshrl.u32 %v1918, 16
        %vm1924 = vc.u32 %v1916, %v1920
        %v1925 = vsel %vm1924, 1, 0
        %v1926 = vadd.s32 %v1916, %v1920
        %v1927 = vadd.s32 %v1919, %v1925
        %vm1928 = vc.u32 %v1926, %v1922
        %v1929 = vsel %vm1928, 1, 0
        %v1930 = vadd.s32 %v1926, %v1922
        %v1931 = vadd.s32 %v1927, %v1929
        %v1932 = vadd.s32 %v1931, %v1921
        %v1933 = vadd.s32 %v1932, %v1923
        %v1934 = vmul.u32 %v1889, %v1880
        %v1935 = vadd.s32 %v1911, %v1930
        %vm1936 = vc.u32 %v1911, %v1930
        %v1937 = vadd.s32 %v1933, 1
        %v1938 = vsel %vm1936, %v1937, %v1933
        %v1939 = vadd.s32 %v1934, %v1938
        %v1940 = vadd.s32 %v1939, 536870912
        %v1941 = vshrl.u32 %v1940, 30
        %v1942 = vshll.u32 %v1941, 30
        %v1943 = vsub.s32 %v1939, %v1942
        %vm1944 = vcmp.lt.s32.totalorder %v1943, 0
        %v1945 = vsub.s32 0, %v1943
        %v1946 = vsel %vm1944, %v1945, %v1943
        %v1947 = vclz %v1946
        %v1948 = vsub.s32 %v1947, 2
        %vm1949 = vcmp.gt.s32.totalorder 0, %v1948
        %v1950 = vsel %vm1949, 0, %v1948
        %v1951 = vsub.s32 32, %v1950
        %v1952 = vshll.u32 %v1943, %v1950
        %v1953 = vshrl.u32 %v1935, %v1951
        %v1954 = vor.u32 %v1952, %v1953
        %v1955 = vsub.s32 4294967266, %v1950
        %v1956 = vadd.s32 %v1955, 127
        %v1957 = vshll.u32 %v1956, 23
        %v1958 = vor.u32 4788187, %v1957
        %v1959 = vand.u32 2147483647, %v1958
        %v1961 = vcvt.s32.f32 %v1954
        %v1962 = vmul.f32 %v1961, %v1959
        %v1963 = vxor.u32 %v1962, 2147483648
        %v1964 = vsel %vm1843, %v1963, %v1962
        %v1965 = vsub.s32 4, %v1941
        %v1966 = vsel %vm1843, %v1965, %v1941
        %v1967 = vsel %vm1842, %v1840, %v1964
        %v1968 = vsel %vm1842, 0, %v1966
        %v1969 = vmul.f32 %v1967, %v1967
        %v1970 = vmul.f32 %v1969, -0.001358992
        %v1971 = vadd.f32 %v1970, 0.041655596
        %v1972 = vmul.f32 %v1969, %v1971
        %v1973 = vadd.f32 %v1972, -0.4999988
        %v1974 = vmul.f32 %v1969, %v1973
        %v1975 = vadd.f32 1.0, %v1974
        %v1976 = vmul.f32 %v1967, %v1967
        %v1977 = vmul.f32 %v1976, -0.00019511016
        %v1978 = vadd.f32 %v1977, 0.008332121
        %v1979 = vmul.f32 %v1976, %v1978
        %v1980 = vadd.f32 %v1979, -0.16666654
        %v1981 = vmul.f32 %v1976, %v1980
        %v1982 = vadd.f32 %v1981, 1.0
        %v1983 = vmul.f32 %v1982, %v1967
        %vm1984 = vweird.f32 %v1840
        %v1985 = vadd.s32 %v1968, 3
        %v1986 = vand.u32 %v1985, 3
        %vm1987 = vcmp.lt.s32.totalorder %v1986, 2
        %vm1988 = vcmp.eq.s32.totalorder %v1986, 0
        %v1989 = vxor.u32 %v1983, 2147483648
        %v1990 = vsel %vm1988, %v1975, %v1989
        %vm1991 = vcmp.eq.s32.totalorder %v1986, 2
        %v1992 = vxor.u32 %v1975, 2147483648
        %v1993 = vsel %vm1991, %v1992, %v1983
        %v1994 = vsel %vm1987, %v1990, %v1993
        %v1995 = vsel %vm1984, nan, %v1994
        %v1996 = vmul.f32 %v1995, %v1995
        %1998 = vset.pattern.permute.xlu0 0
        %1999 = vperm.xlu0 %1998, %v1766
        %v2000 = vpop.permute.xlu0 %1999
        %v2002 = vmul.f32 %v2000, %v1996
        %v2003 = vadd.f32 %v1829, %v2002
        %v2004 = vmul.f32 %v1834, %v1838
        %v2005 = vand.u32 2147483647, %v2004
        %vm2006 = vcmp.le.f32.partialorder %v2005, 0.7853982
        %vm2007 = vcmp.lt.s32.totalorder %v2004, 0
        %v2008 = vand.u32 %v2004, 2139095040
        %v2009 = vshrl.u32 %v2008, 23
        %v2010 = vsub.s32 %v2009, 127
        %v2011 = vand.u32 2147483647, %v2004
        %v2012 = vand.u32 %v2011, 8388607
        %v2013 = vor.u32 %v2012, 8388608
        %v2014 = vsub.s32 0, %v2013
        %v2015 = vadd.s32 %v2010, 1
        %vm2016 = vcmp.gt.s32.totalorder %v2015, 0
        %v2017 = vsel %vm2016, %v2015, 0
        %v2018 = vshrl.u32 %v2017, 5
        %v2019 = vand.u32 %v2017, 31
        %v2020 = vsub.s32 32, %v2019
        %v2021 = vshrl.u32 683565275, %v2020
        %v2022 = vshll.u32 683565275, %v2019
        %v2023 = vshrl.u32 2475754826, %v2020
        %v2024 = vor.u32 %v2022, %v2023
        %v2025 = vshll.u32 2475754826, %v2019
        %v2026 = vshrl.u32 2131351028, %v2020
        %v2027 = vor.u32 %v2025, %v2026
        %v2028 = vshll.u32 2131351028, %v2019
        %v2029 = vshrl.u32 2102212464, %v2020
        %v2030 = vor.u32 %v2028, %v2029
        %v2031 = vshll.u32 2102212464, %v2019
        %v2032 = vshrl.u32 920167782, %v2020
        %v2033 = vor.u32 %v2031, %v2032
        %v2034 = vshll.u32 920167782, %v2019
        %v2035 = vshrl.u32 1326507024, %v2020
        %v2036 = vor.u32 %v2034, %v2035
        %vm2037 = vcmp.lt.s32.totalorder %v2018, 1
        %vm2038 = vcmp.lt.s32.totalorder %v2018, 2
        %vm2039 = vcmp.lt.s32.totalorder %v2018, 3
        %vm2040 = vcmp.lt.s32.totalorder %v2018, 4
        %v2041 = vsel %vm2037, %v2021, %v2024
        %v2042 = vsel %vm2040, %v2030, 2102212464
        %v2043 = vsel %vm2039, %v2027, %v2042
        %v2044 = vsel %vm2038, %v2041, %v2043
        %v2045 = vsel %vm2037, %v2024, %v2027
        %v2046 = vsel %vm2040, %v2033, 920167782
        %v2047 = vsel %vm2039, %v2030, %v2046
        %v2048 = vsel %vm2038, %v2045, %v2047
        %v2049 = vsel %vm2037, %v2027, %v2030
        %v2050 = vsel %vm2040, %v2036, 1326507024
        %v2051 = vsel %vm2039, %v2033, %v2050
        %v2052 = vsel %vm2038, %v2049, %v2051
        %v2053 = vshll.u32 %v2013, 8
        %v2054 = vand.u32 %v2053, 65535
        %v2055 = vshrl.u32 %v2053, 16
        %v2056 = vand.u32 %v2052, 65535
        %v2057 = vshrl.u32 %v2052, 16
        %v2058 = vmul.u32 %v2054, %v2056
        %v2059 = vmul.u32 %v2054, %v2057
        %v2060 = vmul.u32 %v2055, %v2056
        %v2061 = vmul.u32 %v2055, %v2057
        %v2062 = vshll.u32 %v2059, 16
        %v2063 = vshrl.u32 %v2059, 16
        %v2064 = vshll.u32 %v2060, 16
        %v2065 = vshrl.u32 %v2060, 16
        %vm2066 = vc.u32 %v2058, %v2062
        %v2067 = vsel %vm2066, 1, 0
        %v2068 = vadd.s32 %v2058, %v2062
        %v2069 = vadd.s32 %v2061, %v2067
        %vm2070 = vc.u32 %v2068, %v2064
        %v2071 = vsel %vm2070, 1, 0
        %v2072 = vadd.s32 %v2068, %v2064
        %v2073 = vadd.s32 %v2069, %v2071
        %v2074 = vadd.s32 %v2073, %v2063
        %v2075 = vadd.s32 %v2074, %v2065
        %v2076 = vand.u32 %v2053, 65535
        %v2077 = vshrl.u32 %v2053, 16
        %v2078 = vand.u32 %v2048, 65535
        %v2079 = vshrl.u32 %v2048, 16
        %v2080 = vmul.u32 %v2076, %v2078
        %v2081 = vmul.u32 %v2076, %v2079
        %v2082 = vmul.u32 %v2077, %v2078
        %v2083 = vmul.u32 %v2077, %v2079
        %v2084 = vshll.u32 %v2081, 16
        %v2085 = vshrl.u32 %v2081, 16
        %v2086 = vshll.u32 %v2082, 16
        %v2087 = vshrl.u32 %v2082, 16
        %vm2088 = vc.u32 %v2080, %v2084
        %v2089 = vsel %vm2088, 1, 0
        %v2090 = vadd.s32 %v2080, %v2084
        %v2091 = vadd.s32 %v2083, %v2089
        %vm2092 = vc.u32 %v2090, %v2086
        %v2093 = vsel %vm2092, 1, 0
        %v2094 = vadd.s32 %v2090, %v2086
        %v2095 = vadd.s32 %v2091, %v2093
        %v2096 = vadd.s32 %v2095, %v2085
        %v2097 = vadd.s32 %v2096, %v2087
        %v2098 = vmul.u32 %v2053, %v2044
        %v2099 = vadd.s32 %v2075, %v2094
        %vm2100 = vc.u32 %v2075, %v2094
        %v2101 = vadd.s32 %v2097, 1
        %v2102 = vsel %vm2100, %v2101, %v2097
        %v2103 = vadd.s32 %v2098, %v2102
        %v2104 = vadd.s32 %v2103, 536870912
        %v2105 = vshrl.u32 %v2104, 30
        %v2106 = vshll.u32 %v2105, 30
        %v2107 = vsub.s32 %v2103, %v2106
        %vm2108 = vcmp.lt.s32.totalorder %v2107, 0
        %v2109 = vsub.s32 0, %v2107
        %v2110 = vsel %vm2108, %v2109, %v2107
        %v2111 = vclz %v2110
        %v2112 = vsub.s32 %v2111, 2
        %vm2113 = vcmp.gt.s32.totalorder 0, %v2112
        %v2114 = vsel %vm2113, 0, %v2112
        %v2115 = vsub.s32 32, %v2114
        %v2116 = vshll.u32 %v2107, %v2114
        %v2117 = vshrl.u32 %v2099, %v2115
        %v2118 = vor.u32 %v2116, %v2117
        %v2119 = vsub.s32 4294967266, %v2114
        %v2120 = vadd.s32 %v2119, 127
        %v2121 = vshll.u32 %v2120, 23
        %v2122 = vor.u32 4788187, %v2121
        %v2123 = vand.u32 2147483647, %v2122
        %v2125 = vcvt.s32.f32 %v2118
        %v2126 = vmul.f32 %v2125, %v2123
        %v2127 = vxor.u32 %v2126, 2147483648
        %v2128 = vsel %vm2007, %v2127, %v2126
        %v2129 = vsub.s32 4, %v2105
        %v2130 = vsel %vm2007, %v2129, %v2105
        %v2131 = vsel %vm2006, %v2004, %v2128
        %v2132 = vsel %vm2006, 0, %v2130
        %v2133 = vmul.f32 %v2131, %v2131
        %v2134 = vmul.f32 %v2133, -0.001358992
        %v2135 = vadd.f32 %v2134, 0.041655596
        %v2136 = vmul.f32 %v2133, %v2135
        %v2137 = vadd.f32 %v2136, -0.4999988
        %v2138 = vmul.f32 %v2133, %v2137
        %v2139 = vadd.f32 1.0, %v2138
        %v2140 = vmul.f32 %v2131, %v2131
        %v2141 = vmul.f32 %v2140, -0.00019511016
        %v2142 = vadd.f32 %v2141, 0.008332121
        %v2143 = vmul.f32 %v2140, %v2142
        %v2144 = vadd.f32 %v2143, -0.16666654
        %v2145 = vmul.f32 %v2140, %v2144
        %v2146 = vadd.f32 %v2145, 1.0
        %v2147 = vmul.f32 %v2146, %v2131
        %vm2148 = vweird.f32 %v2004
        %v2149 = vadd.s32 %v2132, 3
        %v2150 = vand.u32 %v2149, 3
        %vm2151 = vcmp.lt.s32.totalorder %v2150, 2
        %vm2152 = vcmp.eq.s32.totalorder %v2150, 0
        %v2153 = vxor.u32 %v2147, 2147483648
        %v2154 = vsel %vm2152, %v2139, %v2153
        %vm2155 = vcmp.eq.s32.totalorder %v2150, 2
        %v2156 = vxor.u32 %v2139, 2147483648
        %v2157 = vsel %vm2155, %v2156, %v2147
        %v2158 = vsel %vm2151, %v2154, %v2157
        %v2159 = vsel %vm2148, nan, %v2158
        %v2160 = vmul.f32 %v2159, %v2159
        %v2161 = vmul.f32 %v2000, %v2160
        %v2162 = vadd.f32 %v1834, %v2161
        %2164 = vset.pattern.permute.xlu0 5
        %2165 = vperm.xlu0 %2164, %v2003
        %v2166 = vpop.permute.xlu0 %2165
        %2168 = vst.msk [vmem:[#allocation3] sm:$0xff] %vm403, %v2166
        %2170 = vrot.lane.b32.xlu0 %v2162, 125
        %v2171 = vpop.permute.xlu0 %2170
        %2173 = vst.msk [vmem:[#allocation3] sm:$0xff] %vm408, %v2171
        %2174 = vset.pattern.permute.xlu0 37
        %2175 = vperm.xlu0 %2174, %v2162
        %v2176 = vpop.permute.xlu0 %2175
        %2178 = vst.msk [vmem:[#allocation3] sm:$0xff] %vm812, %v2176
        %2179 = vst.msk [vmem:[#allocation4] sm:$0xff] %vm814, %v2166
        %2180 = vrot.lane.b32.xlu0 %v2003, 125
        %v2181 = vpop.permute.xlu0 %2180
        %2183 = vst.msk [vmem:[#allocation4] sm:$0xff] %vm819, %v2181
        %2184 = vst.msk [vmem:[#allocation4] sm:$0xff] %vm821, %v2176
        %v2185 = vld [vmem:[#allocation3] sm:$0xff]
        %v2186 = vld [vmem:[#allocation4] sm:$0xff]
        %v2187 = vmul.f32 %v2185, 0.0020289666
        %v2188 = vmul.f32 %v2186, 0.009389464
        %v2189 = vadd.f32 %v2187, %v2188
        %v2190 = vmul.f32 %v2185, -0.025543464
        %2192 = vrot.lane.b32.xlu0 %v2190, 127
        %v2193 = vpop.permute.xlu0 %2192
        %v2195 = vadd.f32 %v2189, %v2193
        %v2196 = vmul.f32 %v2186, -0.057657376
        %2198 = vrot.lane.b32.xlu0 %v2196, 127
        %v2199 = vpop.permute.xlu0 %2198
        %v2201 = vadd.f32 %v2195, %v2199
        %v2202 = vmul.f32 %v2185, 0.12857261
        %2204 = vrot.lane.b32.xlu0 %v2202, 126
        %v2205 = vpop.permute.xlu0 %2204
        %v2207 = vadd.f32 %v2201, %v2205
        %v2208 = vmul.f32 %v2186, 0.4432098
        %2210 = vrot.lane.b32.xlu0 %v2208, 126
        %v2211 = vpop.permute.xlu0 %2210
        %v2213 = vadd.f32 %v2207, %v2211
        %v2214 = vmul.f32 %v2185, 0.4432098
        %2216 = vrot.lane.b32.xlu0 %v2214, 125
        %v2217 = vpop.permute.xlu0 %2216
        %v2219 = vadd.f32 %v2213, %v2217
        %v2220 = vmul.f32 %v2186, 0.12857261
        %2222 = vrot.lane.b32.xlu0 %v2220, 125
        %v2223 = vpop.permute.xlu0 %2222
        %v2225 = vadd.f32 %v2219, %v2223
        %v2226 = vmul.f32 %v2185, -0.057657376
        %2228 = vrot.lane.b32.xlu0 %v2226, 124
        %v2229 = vpop.permute.xlu0 %2228
        %v2231 = vadd.f32 %v2225, %v2229
        %v2232 = vmul.f32 %v2186, -0.025543464
        %2234 = vrot.lane.b32.xlu0 %v2232, 124
        %v2235 = vpop.permute.xlu0 %2234
        %v2237 = vadd.f32 %v2231, %v2235
        %v2238 = vmul.f32 %v2185, 0.009389464
        %2240 = vrot.lane.b32.xlu0 %v2238, 123
        %v2241 = vpop.permute.xlu0 %2240
        %v2243 = vadd.f32 %v2237, %v2241
        %v2244 = vmul.f32 %v2186, 0.0020289666
        %2246 = vrot.lane.b32.xlu0 %v2244, 123
        %v2247 = vpop.permute.xlu0 %2246
        %v2249 = vadd.f32 %v2243, %v2247
        %s2250 = scalar_lea.vmem [#allocation9], 8
        %v2251 = vld [vmem:[%s2250] sm:$0xff]
        %s2252 = scalar_lea.vmem [#allocation11], 8
        %v2253 = vld [vmem:[%s2252] sm:$0xff]
        %2254 = vst.msk [vmem:[#allocation5] sm:$0xff] %vm403, 0.0
        %2256 = vrot.lane.b32.xlu0 %v2249, 3
        %v2257 = vpop.permute.xlu0 %2256
        %vm2259 = vcmask 261144
        %2260 = vst.msk [vmem:[#allocation5] sm:$0xff] %vm2259, %v2257
        %2261 = vst.msk [vmem:[#allocation5 + $0x8] sm:$0xff] %vm898, %v2249
        %2262 = vrot.lane.b32.xlu0 %v2249, 125
        %v2263 = vpop.permute.xlu0 %2262
        %vm2265 = vcmask 236544
        %2266 = vst.msk [vmem:[#allocation5 + $0x10] sm:$0xff] %vm2265, %v2263
        %vm2267 = vcmask 261352
        %2268 = vst.msk [vmem:[#allocation5 + $0x10] sm:$0xff] %vm2267, 0.0
        %v2269 = vld [vmem:[#allocation5] sm:$0xff]
        %v2270 = vld [vmem:[#allocation5 + $0x8] sm:$0xff]
        %v2271 = vld [vmem:[#allocation5 + $0x10] sm:$0xff]
        %2273 = vset.pattern.permute.xlu0 0
        %2274 = vperm.xlu0 %2273, %v2251
        %v2275 = vpop.permute.xlu0 %2274
        %v2277 = vperm.slane %v2269, 0
        %v2278 = vmul.f32 %v2275, %v2277
        %2279 = vset.pattern.permute.xlu0 1
        %2280 = vperm.xlu0 %2279, %v2251
        %v2281 = vpop.permute.xlu0 %2280
        %v2283 = vperm.slane %v2269, 1
        %v2284 = vmul.f32 %v2281, %v2283
        %v2285 = vadd.f32 %v2278, %v2284
        %2286 = vset.pattern.permute.xlu0 2
        %2287 = vperm.xlu0 %2286, %v2251
        %v2288 = vpop.permute.xlu0 %2287
        %v2290 = vperm.slane %v2269, 2
        %v2291 = vmul.f32 %v2288, %v2290
        %v2292 = vadd.f32 %v2285, %v2291
        %2293 = vset.pattern.permute.xlu0 3
        %2294 = vperm.xlu0 %2293, %v2251
        %v2295 = vpop.permute.xlu0 %2294
        %v2297 = vperm.slane %v2269, 3
        %v2298 = vmul.f32 %v2295, %v2297
        %v2299 = vadd.f32 %v2292, %v2298
        %2300 = vset.pattern.permute.xlu0 4
        %2301 = vperm.xlu0 %2300, %v2251
        %v2302 = vpop.permute.xlu0 %2301
        %v2304 = vperm.slane %v2269, 4
        %v2305 = vmul.f32 %v2302, %v2304
        %v2306 = vadd.f32 %v2299, %v2305
        %2307 = vset.pattern.permute.xlu0 5
        %2308 = vperm.xlu0 %2307, %v2251
        %v2309 = vpop.permute.xlu0 %2308
        %v2311 = vperm.slane %v2269, 5
        %v2312 = vmul.f32 %v2309, %v2311
        %v2313 = vadd.f32 %v2306, %v2312
        %2314 = vset.pattern.permute.xlu0 6
        %2315 = vperm.xlu0 %2314, %v2251
        %v2316 = vpop.permute.xlu0 %2315
        %v2318 = vperm.slane %v2269, 6
        %v2319 = vmul.f32 %v2316, %v2318
        %v2320 = vadd.f32 %v2313, %v2319
        %2321 = vset.pattern.permute.xlu0 7
        %2322 = vperm.xlu0 %2321, %v2251
        %v2323 = vpop.permute.xlu0 %2322
        %v2325 = vperm.slane %v2269, 7
        %v2326 = vmul.f32 %v2323, %v2325
        %v2327 = vadd.f32 %v2320, %v2326
        %2328 = vset.pattern.permute.xlu0 8
        %2329 = vperm.xlu0 %2328, %v2251
        %v2330 = vpop.permute.xlu0 %2329
        %v2332 = vperm.slane %v2270, 0
        %v2333 = vmul.f32 %v2330, %v2332
        %2334 = vset.pattern.permute.xlu0 9
        %2335 = vperm.xlu0 %2334, %v2251
        %v2336 = vpop.permute.xlu0 %2335
        %v2338 = vperm.slane %v2270, 1
        %v2339 = vmul.f32 %v2336, %v2338
        %v2340 = vadd.f32 %v2333, %v2339
        %2341 = vset.pattern.permute.xlu0 10
        %2342 = vperm.xlu0 %2341, %v2251
        %v2343 = vpop.permute.xlu0 %2342
        %v2345 = vperm.slane %v2270, 2
        %v2346 = vmul.f32 %v2343, %v2345
        %v2347 = vadd.f32 %v2340, %v2346
        %2348 = vset.pattern.permute.xlu0 11
        %2349 = vperm.xlu0 %2348, %v2251
        %v2350 = vpop.permute.xlu0 %2349
        %v2352 = vperm.slane %v2270, 3
        %v2353 = vmul.f32 %v2350, %v2352
        %v2354 = vadd.f32 %v2347, %v2353
        %2355 = vset.pattern.permute.xlu0 12
        %2356 = vperm.xlu0 %2355, %v2251
        %v2357 = vpop.permute.xlu0 %2356
        %v2359 = vperm.slane %v2270, 4
        %v2360 = vmul.f32 %v2357, %v2359
        %v2361 = vadd.f32 %v2354, %v2360
        %2362 = vset.pattern.permute.xlu0 13
        %2363 = vperm.xlu0 %2362, %v2251
        %v2364 = vpop.permute.xlu0 %2363
        %v2366 = vperm.slane %v2270, 5
        %v2367 = vmul.f32 %v2364, %v2366
        %v2368 = vadd.f32 %v2361, %v2367
        %2369 = vset.pattern.permute.xlu0 14
        %2370 = vperm.xlu0 %2369, %v2251
        %v2371 = vpop.permute.xlu0 %2370
        %v2373 = vperm.slane %v2270, 6
        %v2374 = vmul.f32 %v2371, %v2373
        %v2375 = vadd.f32 %v2368, %v2374
        %2376 = vset.pattern.permute.xlu0 15
        %2377 = vperm.xlu0 %2376, %v2251
        %v2378 = vpop.permute.xlu0 %2377
        %v2380 = vperm.slane %v2270, 7
        %v2381 = vmul.f32 %v2378, %v2380
        %v2382 = vadd.f32 %v2375, %v2381
        %2383 = vset.pattern.permute.xlu0 16
        %2384 = vperm.xlu0 %2383, %v2251
        %v2385 = vpop.permute.xlu0 %2384
        %v2387 = vperm.slane %v2271, 0
        %v2388 = vmul.f32 %v2385, %v2387
        %2389 = vset.pattern.permute.xlu0 17
        %2390 = vperm.xlu0 %2389, %v2251
        %v2391 = vpop.permute.xlu0 %2390
        %v2393 = vperm.slane %v2271, 1
        %v2394 = vmul.f32 %v2391, %v2393
        %v2395 = vadd.f32 %v2388, %v2394
        %2396 = vset.pattern.permute.xlu0 18
        %2397 = vperm.xlu0 %2396, %v2251
        %v2398 = vpop.permute.xlu0 %2397
        %v2400 = vperm.slane %v2271, 2
        %v2401 = vmul.f32 %v2398, %v2400
        %v2402 = vadd.f32 %v2395, %v2401
        %2403 = vset.pattern.permute.xlu0 19
        %2404 = vperm.xlu0 %2403, %v2251
        %v2405 = vpop.permute.xlu0 %2404
        %v2407 = vperm.slane %v2271, 3
        %v2408 = vmul.f32 %v2405, %v2407
        %v2409 = vadd.f32 %v2402, %v2408
        %2410 = vset.pattern.permute.xlu0 20
        %2411 = vperm.xlu0 %2410, %v2251
        %v2412 = vpop.permute.xlu0 %2411
        %v2414 = vperm.slane %v2271, 4
        %v2415 = vmul.f32 %v2412, %v2414
        %v2416 = vadd.f32 %v2409, %v2415
        %2417 = vset.pattern.permute.xlu0 21
        %2418 = vperm.xlu0 %2417, %v2251
        %v2419 = vpop.permute.xlu0 %2418
        %v2421 = vperm.slane %v2271, 5
        %v2422 = vmul.f32 %v2419, %v2421
        %v2423 = vadd.f32 %v2416, %v2422
        %2424 = vset.pattern.permute.xlu0 22
        %2425 = vperm.xlu0 %2424, %v2251
        %v2426 = vpop.permute.xlu0 %2425
        %v2428 = vperm.slane %v2271, 6
        %v2429 = vmul.f32 %v2426, %v2428
        %v2430 = vadd.f32 %v2423, %v2429
        %2431 = vset.pattern.permute.xlu0 23
        %2432 = vperm.xlu0 %2431, %v2251
        %v2433 = vpop.permute.xlu0 %2432
        %v2435 = vperm.slane %v2271, 7
        %v2436 = vmul.f32 %v2433, %v2435
        %v2437 = vadd.f32 %v2430, %v2436
        %v2438 = vadd.f32 %v2327, %v2382
        %v2439 = vadd.f32 %v2438, %v2437
        %2441 = vset.pattern.permute.xlu0 0
        %2442 = vperm.xlu0 %2441, %v2253
        %v2443 = vpop.permute.xlu0 %2442
        %v2445 = vadd.f32 %v2439, %v2443
        %s2446 = scalar_lea.vmem [#allocation15], 24
        %v2447 = vld [vmem:[%s2446] sm:$0xff]
        %s2448 = scalar_lea.vmem [#allocation17], 24
        %v2449 = vld [vmem:[%s2448] sm:$0xff]
        %2451 = vset.pattern.permute.xlu0 0
        %2452 = vperm.xlu0 %2451, %v2445
        %v2453 = vpop.permute.xlu0 %2452
        %2455 = vst.msk [vmem:[#allocation2] sm:$0xff] %vm403, %v2453
        %2456 = vrot.lane.b32.xlu0 %v2445, 3
        %v2457 = vpop.permute.xlu0 %2456
        %2459 = vst.msk [vmem:[#allocation2] sm:$0xff] %vm408, %v2457
        %2460 = vset.pattern.permute.xlu0 31
        %2461 = vperm.xlu0 %2460, %v2445
        %v2462 = vpop.permute.xlu0 %2461
        %2464 = vst.msk [vmem:[#allocation2] sm:$0xff] %vm414, %v2462
        %v2465 = vld [vmem:[#allocation2] sm:$0xff]
        %v2466 = vmul.f32 %v2465, 0.018778928
        %v2467 = vmul.f32 %v2465, 0.004057933
        %v2468 = vmul.f32 %v2465, -0.11531475
        %2470 = vrot.lane.b32.xlu0 %v2468, 1
        %v2471 = vpop.permute.xlu0 %2470
        %v2473 = vadd.f32 %v2466, %v2471
        %v2474 = vmul.f32 %v2465, -0.05108693
        %2476 = vrot.lane.b32.xlu0 %v2474, 1
        %v2477 = vpop.permute.xlu0 %2476
        %v2479 = vadd.f32 %v2467, %v2477
        %v2480 = vmul.f32 %v2465, 0.8864196
        %2482 = vrot.lane.b32.xlu0 %v2480, 2
        %v2483 = vpop.permute.xlu0 %2482
        %v2485 = vadd.f32 %v2473, %v2483
        %v2486 = vmul.f32 %v2465, 0.25714523
        %2488 = vrot.lane.b32.xlu0 %v2486, 2
        %v2489 = vpop.permute.xlu0 %2488
        %v2491 = vadd.f32 %v2479, %v2489
        %2492 = vrot.lane.b32.xlu0 %v2486, 3
        %v2493 = vpop.permute.xlu0 %2492
        %v2495 = vadd.f32 %v2485, %v2493
        %2496 = vrot.lane.b32.xlu0 %v2480, 3
        %v2497 = vpop.permute.xlu0 %2496
        %v2499 = vadd.f32 %v2491, %v2497
        %2500 = vrot.lane.b32.xlu0 %v2474, 4
        %v2501 = vpop.permute.xlu0 %2500
        %v2503 = vadd.f32 %v2495, %v2501
        %2504 = vrot.lane.b32.xlu0 %v2468, 4
        %v2505 = vpop.permute.xlu0 %2504
        %v2507 = vadd.f32 %v2499, %v2505
        %2509 = vrot.lane.b32.xlu0 %v2467, 5
        %v2510 = vpop.permute.xlu0 %2509
        %v2512 = vadd.f32 %v2503, %v2510
        %2514 = vrot.lane.b32.xlu0 %v2466, 5
        %v2515 = vpop.permute.xlu0 %2514
        %v2517 = vadd.f32 %v2507, %v2515
        %2519 = vset.pattern.permute.xlu0 0
        %2520 = vperm.xlu0 %2519, %v2447
        %v2521 = vpop.permute.xlu0 %2520
        %v2523 = vmul.f32 %v2512, %v2521
        %v2524 = vand.u32 2147483647, %v2523
        %vm2525 = vcmp.le.f32.partialorder %v2524, 0.7853982
        %vm2526 = vcmp.lt.s32.totalorder %v2523, 0
        %v2527 = vand.u32 %v2523, 2139095040
        %v2528 = vshrl.u32 %v2527, 23
        %v2529 = vsub.s32 %v2528, 127
        %v2530 = vand.u32 2147483647, %v2523
        %v2531 = vand.u32 %v2530, 8388607
        %v2532 = vor.u32 %v2531, 8388608
        %v2533 = vsub.s32 0, %v2532
        %v2534 = vadd.s32 %v2529, 1
        %vm2535 = vcmp.gt.s32.totalorder %v2534, 0
        %v2536 = vsel %vm2535, %v2534, 0
        %v2537 = vshrl.u32 %v2536, 5
        %v2538 = vand.u32 %v2536, 31
        %v2539 = vsub.s32 32, %v2538
        %v2540 = vshrl.u32 683565275, %v2539
        %v2541 = vshll.u32 683565275, %v2538
        %v2542 = vshrl.u32 2475754826, %v2539
        %v2543 = vor.u32 %v2541, %v2542
        %v2544 = vshll.u32 2475754826, %v2538
        %v2545 = vshrl.u32 2131351028, %v2539
        %v2546 = vor.u32 %v2544, %v2545
        %v2547 = vshll.u32 2131351028, %v2538
        %v2548 = vshrl.u32 2102212464, %v2539
        %v2549 = vor.u32 %v2547, %v2548
        %v2550 = vshll.u32 2102212464, %v2538
        %v2551 = vshrl.u32 920167782, %v2539
        %v2552 = vor.u32 %v2550, %v2551
        %v2553 = vshll.u32 920167782, %v2538
        %v2554 = vshrl.u32 1326507024, %v2539
        %v2555 = vor.u32 %v2553, %v2554
        %vm2556 = vcmp.lt.s32.totalorder %v2537, 1
        %vm2557 = vcmp.lt.s32.totalorder %v2537, 2
        %vm2558 = vcmp.lt.s32.totalorder %v2537, 3
        %vm2559 = vcmp.lt.s32.totalorder %v2537, 4
        %v2560 = vsel %vm2556, %v2540, %v2543
        %v2561 = vsel %vm2559, %v2549, 2102212464
        %v2562 = vsel %vm2558, %v2546, %v2561
        %v2563 = vsel %vm2557, %v2560, %v2562
        %v2564 = vsel %vm2556, %v2543, %v2546
        %v2565 = vsel %vm2559, %v2552, 920167782
        %v2566 = vsel %vm2558, %v2549, %v2565
        %v2567 = vsel %vm2557, %v2564, %v2566
        %v2568 = vsel %vm2556, %v2546, %v2549
        %v2569 = vsel %vm2559, %v2555, 1326507024
        %v2570 = vsel %vm2558, %v2552, %v2569
        %v2571 = vsel %vm2557, %v2568, %v2570
        %v2572 = vshll.u32 %v2532, 8
        %v2573 = vand.u32 %v2572, 65535
        %v2574 = vshrl.u32 %v2572, 16
        %v2575 = vand.u32 %v2571, 65535
        %v2576 = vshrl.u32 %v2571, 16
        %v2577 = vmul.u32 %v2573, %v2575
        %v2578 = vmul.u32 %v2573, %v2576
        %v2579 = vmul.u32 %v2574, %v2575
        %v2580 = vmul.u32 %v2574, %v2576
        %v2581 = vshll.u32 %v2578, 16
        %v2582 = vshrl.u32 %v2578, 16
        %v2583 = vshll.u32 %v2579, 16
        %v2584 = vshrl.u32 %v2579, 16
        %vm2585 = vc.u32 %v2577, %v2581
        %v2586 = vsel %vm2585, 1, 0
        %v2587 = vadd.s32 %v2577, %v2581
        %v2588 = vadd.s32 %v2580, %v2586
        %vm2589 = vc.u32 %v2587, %v2583
        %v2590 = vsel %vm2589, 1, 0
        %v2591 = vadd.s32 %v2587, %v2583
        %v2592 = vadd.s32 %v2588, %v2590
        %v2593 = vadd.s32 %v2592, %v2582
        %v2594 = vadd.s32 %v2593, %v2584
        %v2595 = vand.u32 %v2572, 65535
        %v2596 = vshrl.u32 %v2572, 16
        %v2597 = vand.u32 %v2567, 65535
        %v2598 = vshrl.u32 %v2567, 16
        %v2599 = vmul.u32 %v2595, %v2597
        %v2600 = vmul.u32 %v2595, %v2598
        %v2601 = vmul.u32 %v2596, %v2597
        %v2602 = vmul.u32 %v2596, %v2598
        %v2603 = vshll.u32 %v2600, 16
        %v2604 = vshrl.u32 %v2600, 16
        %v2605 = vshll.u32 %v2601, 16
        %v2606 = vshrl.u32 %v2601, 16
        %vm2607 = vc.u32 %v2599, %v2603
        %v2608 = vsel %vm2607, 1, 0
        %v2609 = vadd.s32 %v2599, %v2603
        %v2610 = vadd.s32 %v2602, %v2608
        %vm2611 = vc.u32 %v2609, %v2605
        %v2612 = vsel %vm2611, 1, 0
        %v2613 = vadd.s32 %v2609, %v2605
        %v2614 = vadd.s32 %v2610, %v2612
        %v2615 = vadd.s32 %v2614, %v2604
        %v2616 = vadd.s32 %v2615, %v2606
        %v2617 = vmul.u32 %v2572, %v2563
        %v2618 = vadd.s32 %v2594, %v2613
        %vm2619 = vc.u32 %v2594, %v2613
        %v2620 = vadd.s32 %v2616, 1
        %v2621 = vsel %vm2619, %v2620, %v2616
        %v2622 = vadd.s32 %v2617, %v2621
        %v2623 = vadd.s32 %v2622, 536870912
        %v2624 = vshrl.u32 %v2623, 30
        %v2625 = vshll.u32 %v2624, 30
        %v2626 = vsub.s32 %v2622, %v2625
        %vm2627 = vcmp.lt.s32.totalorder %v2626, 0
        %v2628 = vsub.s32 0, %v2626
        %v2629 = vsel %vm2627, %v2628, %v2626
        %v2630 = vclz %v2629
        %v2631 = vsub.s32 %v2630, 2
        %vm2632 = vcmp.gt.s32.totalorder 0, %v2631
        %v2633 = vsel %vm2632, 0, %v2631
        %v2634 = vsub.s32 32, %v2633
        %v2635 = vshll.u32 %v2626, %v2633
        %v2636 = vshrl.u32 %v2618, %v2634
        %v2637 = vor.u32 %v2635, %v2636
        %v2638 = vsub.s32 4294967266, %v2633
        %v2639 = vadd.s32 %v2638, 127
        %v2640 = vshll.u32 %v2639, 23
        %v2641 = vor.u32 4788187, %v2640
        %v2642 = vand.u32 2147483647, %v2641
        %v2644 = vcvt.s32.f32 %v2637
        %v2645 = vmul.f32 %v2644, %v2642
        %v2646 = vxor.u32 %v2645, 2147483648
        %v2647 = vsel %vm2526, %v2646, %v2645
        %v2648 = vsub.s32 4, %v2624
        %v2649 = vsel %vm2526, %v2648, %v2624
        %v2650 = vsel %vm2525, %v2523, %v2647
        %v2651 = vsel %vm2525, 0, %v2649
        %v2652 = vmul.f32 %v2650, %v2650
        %v2653 = vmul.f32 %v2652, -0.001358992
        %v2654 = vadd.f32 %v2653, 0.041655596
        %v2655 = vmul.f32 %v2652, %v2654
        %v2656 = vadd.f32 %v2655, -0.4999988
        %v2657 = vmul.f32 %v2652, %v2656
        %v2658 = vadd.f32 1.0, %v2657
        %v2659 = vmul.f32 %v2650, %v2650
        %v2660 = vmul.f32 %v2659, -0.00019511016
        %v2661 = vadd.f32 %v2660, 0.008332121
        %v2662 = vmul.f32 %v2659, %v2661
        %v2663 = vadd.f32 %v2662, -0.16666654
        %v2664 = vmul.f32 %v2659, %v2663
        %v2665 = vadd.f32 %v2664, 1.0
        %v2666 = vmul.f32 %v2665, %v2650
        %vm2667 = vweird.f32 %v2523
        %v2668 = vadd.s32 %v2651, 3
        %v2669 = vand.u32 %v2668, 3
        %vm2670 = vcmp.lt.s32.totalorder %v2669, 2
        %vm2671 = vcmp.eq.s32.totalorder %v2669, 0
        %v2672 = vxor.u32 %v2666, 2147483648
        %v2673 = vsel %vm2671, %v2658, %v2672
        %vm2674 = vcmp.eq.s32.totalorder %v2669, 2
        %v2675 = vxor.u32 %v2658, 2147483648
        %v2676 = vsel %vm2674, %v2675, %v2666
        %v2677 = vsel %vm2670, %v2673, %v2676
        %v2678 = vsel %vm2667, nan, %v2677
        %v2679 = vmul.f32 %v2678, %v2678
        %2681 = vset.pattern.permute.xlu0 0
        %2682 = vperm.xlu0 %2681, %v2449
        %v2683 = vpop.permute.xlu0 %2682
        %v2685 = vmul.f32 %v2683, %v2679
        %v2686 = vadd.f32 %v2512, %v2685
        %v2687 = vmul.f32 %v2517, %v2521
        %v2688 = vand.u32 2147483647, %v2687
        %vm2689 = vcmp.le.f32.partialorder %v2688, 0.7853982
        %vm2690 = vcmp.lt.s32.totalorder %v2687, 0
        %v2691 = vand.u32 %v2687, 2139095040
        %v2692 = vshrl.u32 %v2691, 23
        %v2693 = vsub.s32 %v2692, 127
        %v2694 = vand.u32 2147483647, %v2687
        %v2695 = vand.u32 %v2694, 8388607
        %v2696 = vor.u32 %v2695, 8388608
        %v2697 = vsub.s32 0, %v2696
        %v2698 = vadd.s32 %v2693, 1
        %vm2699 = vcmp.gt.s32.totalorder %v2698, 0
        %v2700 = vsel %vm2699, %v2698, 0
        %v2701 = vshrl.u32 %v2700, 5
        %v2702 = vand.u32 %v2700, 31
        %v2703 = vsub.s32 32, %v2702
        %v2704 = vshrl.u32 683565275, %v2703
        %v2705 = vshll.u32 683565275, %v2702
        %v2706 = vshrl.u32 2475754826, %v2703
        %v2707 = vor.u32 %v2705, %v2706
        %v2708 = vshll.u32 2475754826, %v2702
        %v2709 = vshrl.u32 2131351028, %v2703
        %v2710 = vor.u32 %v2708, %v2709
        %v2711 = vshll.u32 2131351028, %v2702
        %v2712 = vshrl.u32 2102212464, %v2703
        %v2713 = vor.u32 %v2711, %v2712
        %v2714 = vshll.u32 2102212464, %v2702
        %v2715 = vshrl.u32 920167782, %v2703
        %v2716 = vor.u32 %v2714, %v2715
        %v2717 = vshll.u32 920167782, %v2702
        %v2718 = vshrl.u32 1326507024, %v2703
        %v2719 = vor.u32 %v2717, %v2718
        %vm2720 = vcmp.lt.s32.totalorder %v2701, 1
        %vm2721 = vcmp.lt.s32.totalorder %v2701, 2
        %vm2722 = vcmp.lt.s32.totalorder %v2701, 3
        %vm2723 = vcmp.lt.s32.totalorder %v2701, 4
        %v2724 = vsel %vm2720, %v2704, %v2707
        %v2725 = vsel %vm2723, %v2713, 2102212464
        %v2726 = vsel %vm2722, %v2710, %v2725
        %v2727 = vsel %vm2721, %v2724, %v2726
        %v2728 = vsel %vm2720, %v2707, %v2710
        %v2729 = vsel %vm2723, %v2716, 920167782
        %v2730 = vsel %vm2722, %v2713, %v2729
        %v2731 = vsel %vm2721, %v2728, %v2730
        %v2732 = vsel %vm2720, %v2710, %v2713
        %v2733 = vsel %vm2723, %v2719, 1326507024
        %v2734 = vsel %vm2722, %v2716, %v2733
        %v2735 = vsel %vm2721, %v2732, %v2734
        %v2736 = vshll.u32 %v2696, 8
        %v2737 = vand.u32 %v2736, 65535
        %v2738 = vshrl.u32 %v2736, 16
        %v2739 = vand.u32 %v2735, 65535
        %v2740 = vshrl.u32 %v2735, 16
        %v2741 = vmul.u32 %v2737, %v2739
        %v2742 = vmul.u32 %v2737, %v2740
        %v2743 = vmul.u32 %v2738, %v2739
        %v2744 = vmul.u32 %v2738, %v2740
        %v2745 = vshll.u32 %v2742, 16
        %v2746 = vshrl.u32 %v2742, 16
        %v2747 = vshll.u32 %v2743, 16
        %v2748 = vshrl.u32 %v2743, 16
        %vm2749 = vc.u32 %v2741, %v2745
        %v2750 = vsel %vm2749, 1, 0
        %v2751 = vadd.s32 %v2741, %v2745
        %v2752 = vadd.s32 %v2744, %v2750
        %vm2753 = vc.u32 %v2751, %v2747
        %v2754 = vsel %vm2753, 1, 0
        %v2755 = vadd.s32 %v2751, %v2747
        %v2756 = vadd.s32 %v2752, %v2754
        %v2757 = vadd.s32 %v2756, %v2746
        %v2758 = vadd.s32 %v2757, %v2748
        %v2759 = vand.u32 %v2736, 65535
        %v2760 = vshrl.u32 %v2736, 16
        %v2761 = vand.u32 %v2731, 65535
        %v2762 = vshrl.u32 %v2731, 16
        %v2763 = vmul.u32 %v2759, %v2761
        %v2764 = vmul.u32 %v2759, %v2762
        %v2765 = vmul.u32 %v2760, %v2761
        %v2766 = vmul.u32 %v2760, %v2762
        %v2767 = vshll.u32 %v2764, 16
        %v2768 = vshrl.u32 %v2764, 16
        %v2769 = vshll.u32 %v2765, 16
        %v2770 = vshrl.u32 %v2765, 16
        %vm2771 = vc.u32 %v2763, %v2767
        %v2772 = vsel %vm2771, 1, 0
        %v2773 = vadd.s32 %v2763, %v2767
        %v2774 = vadd.s32 %v2766, %v2772
        %vm2775 = vc.u32 %v2773, %v2769
        %v2776 = vsel %vm2775, 1, 0
        %v2777 = vadd.s32 %v2773, %v2769
        %v2778 = vadd.s32 %v2774, %v2776
        %v2779 = vadd.s32 %v2778, %v2768
        %v2780 = vadd.s32 %v2779, %v2770
        %v2781 = vmul.u32 %v2736, %v2727
        %v2782 = vadd.s32 %v2758, %v2777
        %vm2783 = vc.u32 %v2758, %v2777
        %v2784 = vadd.s32 %v2780, 1
        %v2785 = vsel %vm2783, %v2784, %v2780
        %v2786 = vadd.s32 %v2781, %v2785
        %v2787 = vadd.s32 %v2786, 536870912
        %v2788 = vshrl.u32 %v2787, 30
        %v2789 = vshll.u32 %v2788, 30
        %v2790 = vsub.s32 %v2786, %v2789
        %vm2791 = vcmp.lt.s32.totalorder %v2790, 0
        %v2792 = vsub.s32 0, %v2790
        %v2793 = vsel %vm2791, %v2792, %v2790
        %v2794 = vclz %v2793
        %v2795 = vsub.s32 %v2794, 2
        %vm2796 = vcmp.gt.s32.totalorder 0, %v2795
        %v2797 = vsel %vm2796, 0, %v2795
        %v2798 = vsub.s32 32, %v2797
        %v2799 = vshll.u32 %v2790, %v2797
        %v2800 = vshrl.u32 %v2782, %v2798
        %v2801 = vor.u32 %v2799, %v2800
        %v2802 = vsub.s32 4294967266, %v2797
        %v2803 = vadd.s32 %v2802, 127
        %v2804 = vshll.u32 %v2803, 23
        %v2805 = vor.u32 4788187, %v2804
        %v2806 = vand.u32 2147483647, %v2805
        %v2808 = vcvt.s32.f32 %v2801
        %v2809 = vmul.f32 %v2808, %v2806
        %v2810 = vxor.u32 %v2809, 2147483648
        %v2811 = vsel %vm2690, %v2810, %v2809
        %v2812 = vsub.s32 4, %v2788
        %v2813 = vsel %vm2690, %v2812, %v2788
        %v2814 = vsel %vm2689, %v2687, %v2811
        %v2815 = vsel %vm2689, 0, %v2813
        %v2816 = vmul.f32 %v2814, %v2814
        %v2817 = vmul.f32 %v2816, -0.001358992
        %v2818 = vadd.f32 %v2817, 0.041655596
        %v2819 = vmul.f32 %v2816, %v2818
        %v2820 = vadd.f32 %v2819, -0.4999988
        %v2821 = vmul.f32 %v2816, %v2820
        %v2822 = vadd.f32 1.0, %v2821
        %v2823 = vmul.f32 %v2814, %v2814
        %v2824 = vmul.f32 %v2823, -0.00019511016
        %v2825 = vadd.f32 %v2824, 0.008332121
        %v2826 = vmul.f32 %v2823, %v2825
        %v2827 = vadd.f32 %v2826, -0.16666654
        %v2828 = vmul.f32 %v2823, %v2827
        %v2829 = vadd.f32 %v2828, 1.0
        %v2830 = vmul.f32 %v2829, %v2814
        %vm2831 = vweird.f32 %v2687
        %v2832 = vadd.s32 %v2815, 3
        %v2833 = vand.u32 %v2832, 3
        %vm2834 = vcmp.lt.s32.totalorder %v2833, 2
        %vm2835 = vcmp.eq.s32.totalorder %v2833, 0
        %v2836 = vxor.u32 %v2830, 2147483648
        %v2837 = vsel %vm2835, %v2822, %v2836
        %vm2838 = vcmp.eq.s32.totalorder %v2833, 2
        %v2839 = vxor.u32 %v2822, 2147483648
        %v2840 = vsel %vm2838, %v2839, %v2830
        %v2841 = vsel %vm2834, %v2837, %v2840
        %v2842 = vsel %vm2831, nan, %v2841
        %v2843 = vmul.f32 %v2842, %v2842
        %v2844 = vmul.f32 %v2683, %v2843
        %v2845 = vadd.f32 %v2517, %v2844
        %2847 = vset.pattern.permute.xlu0 5
        %2848 = vperm.xlu0 %2847, %v2686
        %v2849 = vpop.permute.xlu0 %2848
        %2851 = vst.msk [vmem:[#allocation3] sm:$0xff] %vm403, %v2849
        %2853 = vrot.lane.b32.xlu0 %v2845, 125
        %v2854 = vpop.permute.xlu0 %2853
        %2856 = vst.msk [vmem:[#allocation3] sm:$0xff] %vm408, %v2854
        %2857 = vset.pattern.permute.xlu0 37
        %2858 = vperm.xlu0 %2857, %v2845
        %v2859 = vpop.permute.xlu0 %2858
        %2861 = vst.msk [vmem:[#allocation3] sm:$0xff] %vm812, %v2859
        %2862 = vst.msk [vmem:[#allocation4] sm:$0xff] %vm814, %v2849
        %2863 = vrot.lane.b32.xlu0 %v2686, 125
        %v2864 = vpop.permute.xlu0 %2863
        %2866 = vst.msk [vmem:[#allocation4] sm:$0xff] %vm819, %v2864
        %2867 = vst.msk [vmem:[#allocation4] sm:$0xff] %vm821, %v2859
        %v2868 = vld [vmem:[#allocation3] sm:$0xff]
        %v2869 = vld [vmem:[#allocation4] sm:$0xff]
        %v2870 = vmul.f32 %v2868, 0.0020289666
        %v2871 = vmul.f32 %v2869, 0.009389464
        %v2872 = vadd.f32 %v2870, %v2871
        %v2873 = vmul.f32 %v2868, -0.025543464
        %2875 = vrot.lane.b32.xlu0 %v2873, 127
        %v2876 = vpop.permute.xlu0 %2875
        %v2878 = vadd.f32 %v2872, %v2876
        %v2879 = vmul.f32 %v2869, -0.057657376
        %2881 = vrot.lane.b32.xlu0 %v2879, 127
        %v2882 = vpop.permute.xlu0 %2881
        %v2884 = vadd.f32 %v2878, %v2882
        %v2885 = vmul.f32 %v2868, 0.12857261
        %2887 = vrot.lane.b32.xlu0 %v2885, 126
        %v2888 = vpop.permute.xlu0 %2887
        %v2890 = vadd.f32 %v2884, %v2888
        %v2891 = vmul.f32 %v2869, 0.4432098
        %2893 = vrot.lane.b32.xlu0 %v2891, 126
        %v2894 = vpop.permute.xlu0 %2893
        %v2896 = vadd.f32 %v2890, %v2894
        %v2897 = vmul.f32 %v2868, 0.4432098
        %2899 = vrot.lane.b32.xlu0 %v2897, 125
        %v2900 = vpop.permute.xlu0 %2899
        %v2902 = vadd.f32 %v2896, %v2900
        %v2903 = vmul.f32 %v2869, 0.12857261
        %2905 = vrot.lane.b32.xlu0 %v2903, 125
        %v2906 = vpop.permute.xlu0 %2905
        %v2908 = vadd.f32 %v2902, %v2906
        %v2909 = vmul.f32 %v2868, -0.057657376
        %2911 = vrot.lane.b32.xlu0 %v2909, 124
        %v2912 = vpop.permute.xlu0 %2911
        %v2914 = vadd.f32 %v2908, %v2912
        %v2915 = vmul.f32 %v2869, -0.025543464
        %2917 = vrot.lane.b32.xlu0 %v2915, 124
        %v2918 = vpop.permute.xlu0 %2917
        %v2920 = vadd.f32 %v2914, %v2918
        %v2921 = vmul.f32 %v2868, 0.009389464
        %2923 = vrot.lane.b32.xlu0 %v2921, 123
        %v2924 = vpop.permute.xlu0 %2923
        %v2926 = vadd.f32 %v2920, %v2924
        %v2927 = vmul.f32 %v2869, 0.0020289666
        %2929 = vrot.lane.b32.xlu0 %v2927, 123
        %v2930 = vpop.permute.xlu0 %2929
        %v2932 = vadd.f32 %v2926, %v2930
        %s2933 = scalar_lea.vmem [#allocation12], 8
        %v2934 = vld [vmem:[%s2933] sm:$0xff]
        %s2935 = scalar_lea.vmem [#allocation14], 8
        %v2936 = vld [vmem:[%s2935] sm:$0xff]
        %2937 = vst.msk [vmem:[#allocation5] sm:$0xff] %vm890, 0.0
        %2939 = vrot.lane.b32.xlu0 %v2932, 1
        %v2940 = vpop.permute.xlu0 %2939
        %2942 = vst.msk [vmem:[#allocation5] sm:$0xff] %vm896, %v2940
        %2943 = vst.msk [vmem:[#allocation5 + $0x8] sm:$0xff] %vm898, %v2932
        %2944 = vrot.lane.b32.xlu0 %v2932, 127
        %v2945 = vpop.permute.xlu0 %2944
        %2947 = vst.msk [vmem:[#allocation5 + $0x10] sm:$0xff] %vm903, %v2945
        %2948 = vst.msk [vmem:[#allocation5 + $0x10] sm:$0xff] %vm905, 0.0
        %v2949 = vld [vmem:[#allocation5] sm:$0xff]
        %v2950 = vld [vmem:[#allocation5 + $0x8] sm:$0xff]
        %v2951 = vld [vmem:[#allocation5 + $0x10] sm:$0xff]
        %2953 = vset.pattern.permute.xlu0 0
        %2954 = vperm.xlu0 %2953, %v2934
        %v2955 = vpop.permute.xlu0 %2954
        %v2957 = vperm.slane %v2949, 0
        %v2958 = vmul.f32 %v2955, %v2957
        %2959 = vset.pattern.permute.xlu0 1
        %2960 = vperm.xlu0 %2959, %v2934
        %v2961 = vpop.permute.xlu0 %2960
        %v2963 = vperm.slane %v2949, 1
        %v2964 = vmul.f32 %v2961, %v2963
        %v2965 = vadd.f32 %v2958, %v2964
        %2966 = vset.pattern.permute.xlu0 2
        %2967 = vperm.xlu0 %2966, %v2934
        %v2968 = vpop.permute.xlu0 %2967
        %v2970 = vperm.slane %v2949, 2
        %v2971 = vmul.f32 %v2968, %v2970
        %v2972 = vadd.f32 %v2965, %v2971
        %2973 = vset.pattern.permute.xlu0 3
        %2974 = vperm.xlu0 %2973, %v2934
        %v2975 = vpop.permute.xlu0 %2974
        %v2977 = vperm.slane %v2949, 3
        %v2978 = vmul.f32 %v2975, %v2977
        %v2979 = vadd.f32 %v2972, %v2978
        %2980 = vset.pattern.permute.xlu0 4
        %2981 = vperm.xlu0 %2980, %v2934
        %v2982 = vpop.permute.xlu0 %2981
        %v2984 = vperm.slane %v2949, 4
        %v2985 = vmul.f32 %v2982, %v2984
        %v2986 = vadd.f32 %v2979, %v2985
        %2987 = vset.pattern.permute.xlu0 5
        %2988 = vperm.xlu0 %2987, %v2934
        %v2989 = vpop.permute.xlu0 %2988
        %v2991 = vperm.slane %v2949, 5
        %v2992 = vmul.f32 %v2989, %v2991
        %v2993 = vadd.f32 %v2986, %v2992
        %2994 = vset.pattern.permute.xlu0 6
        %2995 = vperm.xlu0 %2994, %v2934
        %v2996 = vpop.permute.xlu0 %2995
        %v2998 = vperm.slane %v2949, 6
        %v2999 = vmul.f32 %v2996, %v2998
        %v3000 = vadd.f32 %v2993, %v2999
        %3001 = vset.pattern.permute.xlu0 7
        %3002 = vperm.xlu0 %3001, %v2934
        %v3003 = vpop.permute.xlu0 %3002
        %v3005 = vperm.slane %v2949, 7
        %v3006 = vmul.f32 %v3003, %v3005
        %v3007 = vadd.f32 %v3000, %v3006
        %3008 = vset.pattern.permute.xlu0 8
        %3009 = vperm.xlu0 %3008, %v2934
        %v3010 = vpop.permute.xlu0 %3009
        %v3012 = vperm.slane %v2950, 0
        %v3013 = vmul.f32 %v3010, %v3012
        %3014 = vset.pattern.permute.xlu0 9
        %3015 = vperm.xlu0 %3014, %v2934
        %v3016 = vpop.permute.xlu0 %3015
        %v3018 = vperm.slane %v2950, 1
        %v3019 = vmul.f32 %v3016, %v3018
        %v3020 = vadd.f32 %v3013, %v3019
        %3021 = vset.pattern.permute.xlu0 10
        %3022 = vperm.xlu0 %3021, %v2934
        %v3023 = vpop.permute.xlu0 %3022
        %v3025 = vperm.slane %v2950, 2
        %v3026 = vmul.f32 %v3023, %v3025
        %v3027 = vadd.f32 %v3020, %v3026
        %3028 = vset.pattern.permute.xlu0 11
        %3029 = vperm.xlu0 %3028, %v2934
        %v3030 = vpop.permute.xlu0 %3029
        %v3032 = vperm.slane %v2950, 3
        %v3033 = vmul.f32 %v3030, %v3032
        %v3034 = vadd.f32 %v3027, %v3033
        %3035 = vset.pattern.permute.xlu0 12
        %3036 = vperm.xlu0 %3035, %v2934
        %v3037 = vpop.permute.xlu0 %3036
        %v3039 = vperm.slane %v2950, 4
        %v3040 = vmul.f32 %v3037, %v3039
        %v3041 = vadd.f32 %v3034, %v3040
        %3042 = vset.pattern.permute.xlu0 13
        %3043 = vperm.xlu0 %3042, %v2934
        %v3044 = vpop.permute.xlu0 %3043
        %v3046 = vperm.slane %v2950, 5
        %v3047 = vmul.f32 %v3044, %v3046
        %v3048 = vadd.f32 %v3041, %v3047
        %3049 = vset.pattern.permute.xlu0 14
        %3050 = vperm.xlu0 %3049, %v2934
        %v3051 = vpop.permute.xlu0 %3050
        %v3053 = vperm.slane %v2950, 6
        %v3054 = vmul.f32 %v3051, %v3053
        %v3055 = vadd.f32 %v3048, %v3054
        %3056 = vset.pattern.permute.xlu0 15
        %3057 = vperm.xlu0 %3056, %v2934
        %v3058 = vpop.permute.xlu0 %3057
        %v3060 = vperm.slane %v2950, 7
        %v3061 = vmul.f32 %v3058, %v3060
        %v3062 = vadd.f32 %v3055, %v3061
        %3063 = vset.pattern.permute.xlu0 16
        %3064 = vperm.xlu0 %3063, %v2934
        %v3065 = vpop.permute.xlu0 %3064
        %v3067 = vperm.slane %v2951, 0
        %v3068 = vmul.f32 %v3065, %v3067
        %3069 = vset.pattern.permute.xlu0 17
        %3070 = vperm.xlu0 %3069, %v2934
        %v3071 = vpop.permute.xlu0 %3070
        %v3073 = vperm.slane %v2951, 1
        %v3074 = vmul.f32 %v3071, %v3073
        %v3075 = vadd.f32 %v3068, %v3074
        %3076 = vset.pattern.permute.xlu0 18
        %3077 = vperm.xlu0 %3076, %v2934
        %v3078 = vpop.permute.xlu0 %3077
        %v3080 = vperm.slane %v2951, 2
        %v3081 = vmul.f32 %v3078, %v3080
        %v3082 = vadd.f32 %v3075, %v3081
        %3083 = vset.pattern.permute.xlu0 19
        %3084 = vperm.xlu0 %3083, %v2934
        %v3085 = vpop.permute.xlu0 %3084
        %v3087 = vperm.slane %v2951, 3
        %v3088 = vmul.f32 %v3085, %v3087
        %v3089 = vadd.f32 %v3082, %v3088
        %3090 = vset.pattern.permute.xlu0 20
        %3091 = vperm.xlu0 %3090, %v2934
        %v3092 = vpop.permute.xlu0 %3091
        %v3094 = vperm.slane %v2951, 4
        %v3095 = vmul.f32 %v3092, %v3094
        %v3096 = vadd.f32 %v3089, %v3095
        %3097 = vset.pattern.permute.xlu0 21
        %3098 = vperm.xlu0 %3097, %v2934
        %v3099 = vpop.permute.xlu0 %3098
        %v3101 = vperm.slane %v2951, 5
        %v3102 = vmul.f32 %v3099, %v3101
        %v3103 = vadd.f32 %v3096, %v3102
        %3104 = vset.pattern.permute.xlu0 22
        %3105 = vperm.xlu0 %3104, %v2934
        %v3106 = vpop.permute.xlu0 %3105
        %v3108 = vperm.slane %v2951, 6
        %v3109 = vmul.f32 %v3106, %v3108
        %v3110 = vadd.f32 %v3103, %v3109
        %3111 = vset.pattern.permute.xlu0 23
        %3112 = vperm.xlu0 %3111, %v2934
        %v3113 = vpop.permute.xlu0 %3112
        %v3115 = vperm.slane %v2951, 7
        %v3116 = vmul.f32 %v3113, %v3115
        %v3117 = vadd.f32 %v3110, %v3116
        %v3118 = vadd.f32 %v3007, %v3062
        %v3119 = vadd.f32 %v3118, %v3117
        %3121 = vset.pattern.permute.xlu0 0
        %3122 = vperm.xlu0 %3121, %v2936
        %v3123 = vpop.permute.xlu0 %3122
        %v3125 = vadd.f32 %v3119, %v3123
        %v3126 = vadd.f32 %v3125, %v1762
        %s3127 = scalar_lea.vmem [#allocation15], 32
        %v3128 = vld [vmem:[%s3127] sm:$0xff]
        %s3129 = scalar_lea.vmem [#allocation17], 32
        %v3130 = vld [vmem:[%s3129] sm:$0xff]
        %3132 = vset.pattern.permute.xlu0 0
        %3133 = vperm.xlu0 %3132, %v3126
        %v3134 = vpop.permute.xlu0 %3133
        %3136 = vst.msk [vmem:[#allocation2] sm:$0xff] %vm403, %v3134
        %3137 = vrot.lane.b32.xlu0 %v3126, 3
        %v3138 = vpop.permute.xlu0 %3137
        %3140 = vst.msk [vmem:[#allocation2] sm:$0xff] %vm408, %v3138
        %3141 = vset.pattern.permute.xlu0 31
        %3142 = vperm.xlu0 %3141, %v3126
        %v3143 = vpop.permute.xlu0 %3142
        %3145 = vst.msk [vmem:[#allocation2] sm:$0xff] %vm414, %v3143
        %v3146 = vld [vmem:[#allocation2] sm:$0xff]
        %v3147 = vmul.f32 %v3146, 0.018778928
        %v3148 = vmul.f32 %v3146, 0.004057933
        %v3149 = vmul.f32 %v3146, -0.11531475
        %3151 = vrot.lane.b32.xlu0 %v3149, 1
        %v3152 = vpop.permute.xlu0 %3151
        %v3154 = vadd.f32 %v3147, %v3152
        %v3155 = vmul.f32 %v3146, -0.05108693
        %3157 = vrot.lane.b32.xlu0 %v3155, 1
        %v3158 = vpop.permute.xlu0 %3157
        %v3160 = vadd.f32 %v3148, %v3158
        %v3161 = vmul.f32 %v3146, 0.8864196
        %3163 = vrot.lane.b32.xlu0 %v3161, 2
        %v3164 = vpop.permute.xlu0 %3163
        %v3166 = vadd.f32 %v3154, %v3164
        %v3167 = vmul.f32 %v3146, 0.25714523
        %3169 = vrot.lane.b32.xlu0 %v3167, 2
        %v3170 = vpop.permute.xlu0 %3169
        %v3172 = vadd.f32 %v3160, %v3170
        %3173 = vrot.lane.b32.xlu0 %v3167, 3
        %v3174 = vpop.permute.xlu0 %3173
        %v3176 = vadd.f32 %v3166, %v3174
        %3177 = vrot.lane.b32.xlu0 %v3161, 3
        %v3178 = vpop.permute.xlu0 %3177
        %v3180 = vadd.f32 %v3172, %v3178
        %3181 = vrot.lane.b32.xlu0 %v3155, 4
        %v3182 = vpop.permute.xlu0 %3181
        %v3184 = vadd.f32 %v3176, %v3182
        %3185 = vrot.lane.b32.xlu0 %v3149, 4
        %v3186 = vpop.permute.xlu0 %3185
        %v3188 = vadd.f32 %v3180, %v3186
        %3190 = vrot.lane.b32.xlu0 %v3148, 5
        %v3191 = vpop.permute.xlu0 %3190
        %v3193 = vadd.f32 %v3184, %v3191
        %3195 = vrot.lane.b32.xlu0 %v3147, 5
        %v3196 = vpop.permute.xlu0 %3195
        %v3198 = vadd.f32 %v3188, %v3196
        %3200 = vset.pattern.permute.xlu0 0
        %3201 = vperm.xlu0 %3200, %v3128
        %v3202 = vpop.permute.xlu0 %3201
        %v3204 = vmul.f32 %v3193, %v3202
        %v3205 = vand.u32 2147483647, %v3204
        %vm3206 = vcmp.le.f32.partialorder %v3205, 0.7853982
        %vm3207 = vcmp.lt.s32.totalorder %v3204, 0
        %v3208 = vand.u32 %v3204, 2139095040
        %v3209 = vshrl.u32 %v3208, 23
        %v3210 = vsub.s32 %v3209, 127
        %v3211 = vand.u32 2147483647, %v3204
        %v3212 = vand.u32 %v3211, 8388607
        %v3213 = vor.u32 %v3212, 8388608
        %v3214 = vsub.s32 0, %v3213
        %v3215 = vadd.s32 %v3210, 1
        %vm3216 = vcmp.gt.s32.totalorder %v3215, 0
        %v3217 = vsel %vm3216, %v3215, 0
        %v3218 = vshrl.u32 %v3217, 5
        %v3219 = vand.u32 %v3217, 31
        %v3220 = vsub.s32 32, %v3219
        %v3221 = vshrl.u32 683565275, %v3220
        %v3222 = vshll.u32 683565275, %v3219
        %v3223 = vshrl.u32 2475754826, %v3220
        %v3224 = vor.u32 %v3222, %v3223
        %v3225 = vshll.u32 2475754826, %v3219
        %v3226 = vshrl.u32 2131351028, %v3220
        %v3227 = vor.u32 %v3225, %v3226
        %v3228 = vshll.u32 2131351028, %v3219
        %v3229 = vshrl.u32 2102212464, %v3220
        %v3230 = vor.u32 %v3228, %v3229
        %v3231 = vshll.u32 2102212464, %v3219
        %v3232 = vshrl.u32 920167782, %v3220
        %v3233 = vor.u32 %v3231, %v3232
        %v3234 = vshll.u32 920167782, %v3219
        %v3235 = vshrl.u32 1326507024, %v3220
        %v3236 = vor.u32 %v3234, %v3235
        %vm3237 = vcmp.lt.s32.totalorder %v3218, 1
        %vm3238 = vcmp.lt.s32.totalorder %v3218, 2
        %vm3239 = vcmp.lt.s32.totalorder %v3218, 3
        %vm3240 = vcmp.lt.s32.totalorder %v3218, 4
        %v3241 = vsel %vm3237, %v3221, %v3224
        %v3242 = vsel %vm3240, %v3230, 2102212464
        %v3243 = vsel %vm3239, %v3227, %v3242
        %v3244 = vsel %vm3238, %v3241, %v3243
        %v3245 = vsel %vm3237, %v3224, %v3227
        %v3246 = vsel %vm3240, %v3233, 920167782
        %v3247 = vsel %vm3239, %v3230, %v3246
        %v3248 = vsel %vm3238, %v3245, %v3247
        %v3249 = vsel %vm3237, %v3227, %v3230
        %v3250 = vsel %vm3240, %v3236, 1326507024
        %v3251 = vsel %vm3239, %v3233, %v3250
        %v3252 = vsel %vm3238, %v3249, %v3251
        %v3253 = vshll.u32 %v3213, 8
        %v3254 = vand.u32 %v3253, 65535
        %v3255 = vshrl.u32 %v3253, 16
        %v3256 = vand.u32 %v3252, 65535
        %v3257 = vshrl.u32 %v3252, 16
        %v3258 = vmul.u32 %v3254, %v3256
        %v3259 = vmul.u32 %v3254, %v3257
        %v3260 = vmul.u32 %v3255, %v3256
        %v3261 = vmul.u32 %v3255, %v3257
        %v3262 = vshll.u32 %v3259, 16
        %v3263 = vshrl.u32 %v3259, 16
        %v3264 = vshll.u32 %v3260, 16
        %v3265 = vshrl.u32 %v3260, 16
        %vm3266 = vc.u32 %v3258, %v3262
        %v3267 = vsel %vm3266, 1, 0
        %v3268 = vadd.s32 %v3258, %v3262
        %v3269 = vadd.s32 %v3261, %v3267
        %vm3270 = vc.u32 %v3268, %v3264
        %v3271 = vsel %vm3270, 1, 0
        %v3272 = vadd.s32 %v3268, %v3264
        %v3273 = vadd.s32 %v3269, %v3271
        %v3274 = vadd.s32 %v3273, %v3263
        %v3275 = vadd.s32 %v3274, %v3265
        %v3276 = vand.u32 %v3253, 65535
        %v3277 = vshrl.u32 %v3253, 16
        %v3278 = vand.u32 %v3248, 65535
        %v3279 = vshrl.u32 %v3248, 16
        %v3280 = vmul.u32 %v3276, %v3278
        %v3281 = vmul.u32 %v3276, %v3279
        %v3282 = vmul.u32 %v3277, %v3278
        %v3283 = vmul.u32 %v3277, %v3279
        %v3284 = vshll.u32 %v3281, 16
        %v3285 = vshrl.u32 %v3281, 16
        %v3286 = vshll.u32 %v3282, 16
        %v3287 = vshrl.u32 %v3282, 16
        %vm3288 = vc.u32 %v3280, %v3284
        %v3289 = vsel %vm3288, 1, 0
        %v3290 = vadd.s32 %v3280, %v3284
        %v3291 = vadd.s32 %v3283, %v3289
        %vm3292 = vc.u32 %v3290, %v3286
        %v3293 = vsel %vm3292, 1, 0
        %v3294 = vadd.s32 %v3290, %v3286
        %v3295 = vadd.s32 %v3291, %v3293
        %v3296 = vadd.s32 %v3295, %v3285
        %v3297 = vadd.s32 %v3296, %v3287
        %v3298 = vmul.u32 %v3253, %v3244
        %v3299 = vadd.s32 %v3275, %v3294
        %vm3300 = vc.u32 %v3275, %v3294
        %v3301 = vadd.s32 %v3297, 1
        %v3302 = vsel %vm3300, %v3301, %v3297
        %v3303 = vadd.s32 %v3298, %v3302
        %v3304 = vadd.s32 %v3303, 536870912
        %v3305 = vshrl.u32 %v3304, 30
        %v3306 = vshll.u32 %v3305, 30
        %v3307 = vsub.s32 %v3303, %v3306
        %vm3308 = vcmp.lt.s32.totalorder %v3307, 0
        %v3309 = vsub.s32 0, %v3307
        %v3310 = vsel %vm3308, %v3309, %v3307
        %v3311 = vclz %v3310
        %v3312 = vsub.s32 %v3311, 2
        %vm3313 = vcmp.gt.s32.totalorder 0, %v3312
        %v3314 = vsel %vm3313, 0, %v3312
        %v3315 = vsub.s32 32, %v3314
        %v3316 = vshll.u32 %v3307, %v3314
        %v3317 = vshrl.u32 %v3299, %v3315
        %v3318 = vor.u32 %v3316, %v3317
        %v3319 = vsub.s32 4294967266, %v3314
        %v3320 = vadd.s32 %v3319, 127
        %v3321 = vshll.u32 %v3320, 23
        %v3322 = vor.u32 4788187, %v3321
        %v3323 = vand.u32 2147483647, %v3322
        %v3325 = vcvt.s32.f32 %v3318
        %v3326 = vmul.f32 %v3325, %v3323
        %v3327 = vxor.u32 %v3326, 2147483648
        %v3328 = vsel %vm3207, %v3327, %v3326
        %v3329 = vsub.s32 4, %v3305
        %v3330 = vsel %vm3207, %v3329, %v3305
        %v3331 = vsel %vm3206, %v3204, %v3328
        %v3332 = vsel %vm3206, 0, %v3330
        %v3333 = vmul.f32 %v3331, %v3331
        %v3334 = vmul.f32 %v3333, -0.001358992
        %v3335 = vadd.f32 %v3334, 0.041655596
        %v3336 = vmul.f32 %v3333, %v3335
        %v3337 = vadd.f32 %v3336, -0.4999988
        %v3338 = vmul.f32 %v3333, %v3337
        %v3339 = vadd.f32 1.0, %v3338
        %v3340 = vmul.f32 %v3331, %v3331
        %v3341 = vmul.f32 %v3340, -0.00019511016
        %v3342 = vadd.f32 %v3341, 0.008332121
        %v3343 = vmul.f32 %v3340, %v3342
        %v3344 = vadd.f32 %v3343, -0.16666654
        %v3345 = vmul.f32 %v3340, %v3344
        %v3346 = vadd.f32 %v3345, 1.0
        %v3347 = vmul.f32 %v3346, %v3331
        %vm3348 = vweird.f32 %v3204
        %v3349 = vadd.s32 %v3332, 3
        %v3350 = vand.u32 %v3349, 3
        %vm3351 = vcmp.lt.s32.totalorder %v3350, 2
        %vm3352 = vcmp.eq.s32.totalorder %v3350, 0
        %v3353 = vxor.u32 %v3347, 2147483648
        %v3354 = vsel %vm3352, %v3339, %v3353
        %vm3355 = vcmp.eq.s32.totalorder %v3350, 2
        %v3356 = vxor.u32 %v3339, 2147483648
        %v3357 = vsel %vm3355, %v3356, %v3347
        %v3358 = vsel %vm3351, %v3354, %v3357
        %v3359 = vsel %vm3348, nan, %v3358
        %v3360 = vmul.f32 %v3359, %v3359
        %3362 = vset.pattern.permute.xlu0 0
        %3363 = vperm.xlu0 %3362, %v3130
        %v3364 = vpop.permute.xlu0 %3363
        %v3366 = vmul.f32 %v3364, %v3360
        %v3367 = vadd.f32 %v3193, %v3366
        %v3368 = vmul.f32 %v3198, %v3202
        %v3369 = vand.u32 2147483647, %v3368
        %vm3370 = vcmp.le.f32.partialorder %v3369, 0.7853982
        %vm3371 = vcmp.lt.s32.totalorder %v3368, 0
        %v3372 = vand.u32 %v3368, 2139095040
        %v3373 = vshrl.u32 %v3372, 23
        %v3374 = vsub.s32 %v3373, 127
        %v3375 = vand.u32 2147483647, %v3368
        %v3376 = vand.u32 %v3375, 8388607
        %v3377 = vor.u32 %v3376, 8388608
        %v3378 = vsub.s32 0, %v3377
        %v3379 = vadd.s32 %v3374, 1
        %vm3380 = vcmp.gt.s32.totalorder %v3379, 0
        %v3381 = vsel %vm3380, %v3379, 0
        %v3382 = vshrl.u32 %v3381, 5
        %v3383 = vand.u32 %v3381, 31
        %v3384 = vsub.s32 32, %v3383
        %v3385 = vshrl.u32 683565275, %v3384
        %v3386 = vshll.u32 683565275, %v3383
        %v3387 = vshrl.u32 2475754826, %v3384
        %v3388 = vor.u32 %v3386, %v3387
        %v3389 = vshll.u32 2475754826, %v3383
        %v3390 = vshrl.u32 2131351028, %v3384
        %v3391 = vor.u32 %v3389, %v3390
        %v3392 = vshll.u32 2131351028, %v3383
        %v3393 = vshrl.u32 2102212464, %v3384
        %v3394 = vor.u32 %v3392, %v3393
        %v3395 = vshll.u32 2102212464, %v3383
        %v3396 = vshrl.u32 920167782, %v3384
        %v3397 = vor.u32 %v3395, %v3396
        %v3398 = vshll.u32 920167782, %v3383
        %v3399 = vshrl.u32 1326507024, %v3384
        %v3400 = vor.u32 %v3398, %v3399
        %vm3401 = vcmp.lt.s32.totalorder %v3382, 1
        %vm3402 = vcmp.lt.s32.totalorder %v3382, 2
        %vm3403 = vcmp.lt.s32.totalorder %v3382, 3
        %vm3404 = vcmp.lt.s32.totalorder %v3382, 4
        %v3405 = vsel %vm3401, %v3385, %v3388
        %v3406 = vsel %vm3404, %v3394, 2102212464
        %v3407 = vsel %vm3403, %v3391, %v3406
        %v3408 = vsel %vm3402, %v3405, %v3407
        %v3409 = vsel %vm3401, %v3388, %v3391
        %v3410 = vsel %vm3404, %v3397, 920167782
        %v3411 = vsel %vm3403, %v3394, %v3410
        %v3412 = vsel %vm3402, %v3409, %v3411
        %v3413 = vsel %vm3401, %v3391, %v3394
        %v3414 = vsel %vm3404, %v3400, 1326507024
        %v3415 = vsel %vm3403, %v3397, %v3414
        %v3416 = vsel %vm3402, %v3413, %v3415
        %v3417 = vshll.u32 %v3377, 8
        %v3418 = vand.u32 %v3417, 65535
        %v3419 = vshrl.u32 %v3417, 16
        %v3420 = vand.u32 %v3416, 65535
        %v3421 = vshrl.u32 %v3416, 16
        %v3422 = vmul.u32 %v3418, %v3420
        %v3423 = vmul.u32 %v3418, %v3421
        %v3424 = vmul.u32 %v3419, %v3420
        %v3425 = vmul.u32 %v3419, %v3421
        %v3426 = vshll.u32 %v3423, 16
        %v3427 = vshrl.u32 %v3423, 16
        %v3428 = vshll.u32 %v3424, 16
        %v3429 = vshrl.u32 %v3424, 16
        %vm3430 = vc.u32 %v3422, %v3426
        %v3431 = vsel %vm3430, 1, 0
        %v3432 = vadd.s32 %v3422, %v3426
        %v3433 = vadd.s32 %v3425, %v3431
        %vm3434 = vc.u32 %v3432, %v3428
        %v3435 = vsel %vm3434, 1, 0
        %v3436 = vadd.s32 %v3432, %v3428
        %v3437 = vadd.s32 %v3433, %v3435
        %v3438 = vadd.s32 %v3437, %v3427
        %v3439 = vadd.s32 %v3438, %v3429
        %v3440 = vand.u32 %v3417, 65535
        %v3441 = vshrl.u32 %v3417, 16
        %v3442 = vand.u32 %v3412, 65535
        %v3443 = vshrl.u32 %v3412, 16
        %v3444 = vmul.u32 %v3440, %v3442
        %v3445 = vmul.u32 %v3440, %v3443
        %v3446 = vmul.u32 %v3441, %v3442
        %v3447 = vmul.u32 %v3441, %v3443
        %v3448 = vshll.u32 %v3445, 16
        %v3449 = vshrl.u32 %v3445, 16
        %v3450 = vshll.u32 %v3446, 16
        %v3451 = vshrl.u32 %v3446, 16
        %vm3452 = vc.u32 %v3444, %v3448
        %v3453 = vsel %vm3452, 1, 0
        %v3454 = vadd.s32 %v3444, %v3448
        %v3455 = vadd.s32 %v3447, %v3453
        %vm3456 = vc.u32 %v3454, %v3450
        %v3457 = vsel %vm3456, 1, 0
        %v3458 = vadd.s32 %v3454, %v3450
        %v3459 = vadd.s32 %v3455, %v3457
        %v3460 = vadd.s32 %v3459, %v3449
        %v3461 = vadd.s32 %v3460, %v3451
        %v3462 = vmul.u32 %v3417, %v3408
        %v3463 = vadd.s32 %v3439, %v3458
        %vm3464 = vc.u32 %v3439, %v3458
        %v3465 = vadd.s32 %v3461, 1
        %v3466 = vsel %vm3464, %v3465, %v3461
        %v3467 = vadd.s32 %v3462, %v3466
        %v3468 = vadd.s32 %v3467, 536870912
        %v3469 = vshrl.u32 %v3468, 30
        %v3470 = vshll.u32 %v3469, 30
        %v3471 = vsub.s32 %v3467, %v3470
        %vm3472 = vcmp.lt.s32.totalorder %v3471, 0
        %v3473 = vsub.s32 0, %v3471
        %v3474 = vsel %vm3472, %v3473, %v3471
        %v3475 = vclz %v3474
        %v3476 = vsub.s32 %v3475, 2
        %vm3477 = vcmp.gt.s32.totalorder 0, %v3476
        %v3478 = vsel %vm3477, 0, %v3476
        %v3479 = vsub.s32 32, %v3478
        %v3480 = vshll.u32 %v3471, %v3478
        %v3481 = vshrl.u32 %v3463, %v3479
        %v3482 = vor.u32 %v3480, %v3481
        %v3483 = vsub.s32 4294967266, %v3478
        %v3484 = vadd.s32 %v3483, 127
        %v3485 = vshll.u32 %v3484, 23
        %v3486 = vor.u32 4788187, %v3485
        %v3487 = vand.u32 2147483647, %v3486
        %v3489 = vcvt.s32.f32 %v3482
        %v3490 = vmul.f32 %v3489, %v3487
        %v3491 = vxor.u32 %v3490, 2147483648
        %v3492 = vsel %vm3371, %v3491, %v3490
        %v3493 = vsub.s32 4, %v3469
        %v3494 = vsel %vm3371, %v3493, %v3469
        %v3495 = vsel %vm3370, %v3368, %v3492
        %v3496 = vsel %vm3370, 0, %v3494
        %v3497 = vmul.f32 %v3495, %v3495
        %v3498 = vmul.f32 %v3497, -0.001358992
        %v3499 = vadd.f32 %v3498, 0.041655596
        %v3500 = vmul.f32 %v3497, %v3499
        %v3501 = vadd.f32 %v3500, -0.4999988
        %v3502 = vmul.f32 %v3497, %v3501
        %v3503 = vadd.f32 1.0, %v3502
        %v3504 = vmul.f32 %v3495, %v3495
        %v3505 = vmul.f32 %v3504, -0.00019511016
        %v3506 = vadd.f32 %v3505, 0.008332121
        %v3507 = vmul.f32 %v3504, %v3506
        %v3508 = vadd.f32 %v3507, -0.16666654
        %v3509 = vmul.f32 %v3504, %v3508
        %v3510 = vadd.f32 %v3509, 1.0
        %v3511 = vmul.f32 %v3510, %v3495
        %vm3512 = vweird.f32 %v3368
        %v3513 = vadd.s32 %v3496, 3
        %v3514 = vand.u32 %v3513, 3
        %vm3515 = vcmp.lt.s32.totalorder %v3514, 2
        %vm3516 = vcmp.eq.s32.totalorder %v3514, 0
        %v3517 = vxor.u32 %v3511, 2147483648
        %v3518 = vsel %vm3516, %v3503, %v3517
        %vm3519 = vcmp.eq.s32.totalorder %v3514, 2
        %v3520 = vxor.u32 %v3503, 2147483648
        %v3521 = vsel %vm3519, %v3520, %v3511
        %v3522 = vsel %vm3515, %v3518, %v3521
        %v3523 = vsel %vm3512, nan, %v3522
        %v3524 = vmul.f32 %v3523, %v3523
        %v3525 = vmul.f32 %v3364, %v3524
        %v3526 = vadd.f32 %v3198, %v3525
        %3528 = vset.pattern.permute.xlu0 5
        %3529 = vperm.xlu0 %3528, %v3367
        %v3530 = vpop.permute.xlu0 %3529
        %3532 = vst.msk [vmem:[#allocation3] sm:$0xff] %vm403, %v3530
        %3534 = vrot.lane.b32.xlu0 %v3526, 125
        %v3535 = vpop.permute.xlu0 %3534
        %3537 = vst.msk [vmem:[#allocation3] sm:$0xff] %vm408, %v3535
        %3538 = vset.pattern.permute.xlu0 37
        %3539 = vperm.xlu0 %3538, %v3526
        %v3540 = vpop.permute.xlu0 %3539
        %3542 = vst.msk [vmem:[#allocation3] sm:$0xff] %vm812, %v3540
        %3543 = vst.msk [vmem:[#allocation4] sm:$0xff] %vm814, %v3530
        %3544 = vrot.lane.b32.xlu0 %v3367, 125
        %v3545 = vpop.permute.xlu0 %3544
        %3547 = vst.msk [vmem:[#allocation4] sm:$0xff] %vm819, %v3545
        %3548 = vst.msk [vmem:[#allocation4] sm:$0xff] %vm821, %v3540
        %v3549 = vld [vmem:[#allocation3] sm:$0xff]
        %v3550 = vld [vmem:[#allocation4] sm:$0xff]
        %v3551 = vmul.f32 %v3549, 0.0020289666
        %v3552 = vmul.f32 %v3550, 0.009389464
        %v3553 = vadd.f32 %v3551, %v3552
        %v3554 = vmul.f32 %v3549, -0.025543464
        %3556 = vrot.lane.b32.xlu0 %v3554, 127
        %v3557 = vpop.permute.xlu0 %3556
        %v3559 = vadd.f32 %v3553, %v3557
        %v3560 = vmul.f32 %v3550, -0.057657376
        %3562 = vrot.lane.b32.xlu0 %v3560, 127
        %v3563 = vpop.permute.xlu0 %3562
        %v3565 = vadd.f32 %v3559, %v3563
        %v3566 = vmul.f32 %v3549, 0.12857261
        %3568 = vrot.lane.b32.xlu0 %v3566, 126
        %v3569 = vpop.permute.xlu0 %3568
        %v3571 = vadd.f32 %v3565, %v3569
        %v3572 = vmul.f32 %v3550, 0.4432098
        %3574 = vrot.lane.b32.xlu0 %v3572, 126
        %v3575 = vpop.permute.xlu0 %3574
        %v3577 = vadd.f32 %v3571, %v3575
        %v3578 = vmul.f32 %v3549, 0.4432098
        %3580 = vrot.lane.b32.xlu0 %v3578, 125
        %v3581 = vpop.permute.xlu0 %3580
        %v3583 = vadd.f32 %v3577, %v3581
        %v3584 = vmul.f32 %v3550, 0.12857261
        %3586 = vrot.lane.b32.xlu0 %v3584, 125
        %v3587 = vpop.permute.xlu0 %3586
        %v3589 = vadd.f32 %v3583, %v3587
        %v3590 = vmul.f32 %v3549, -0.057657376
        %3592 = vrot.lane.b32.xlu0 %v3590, 124
        %v3593 = vpop.permute.xlu0 %3592
        %v3595 = vadd.f32 %v3589, %v3593
        %v3596 = vmul.f32 %v3550, -0.025543464
        %3598 = vrot.lane.b32.xlu0 %v3596, 124
        %v3599 = vpop.permute.xlu0 %3598
        %v3601 = vadd.f32 %v3595, %v3599
        %v3602 = vmul.f32 %v3549, 0.009389464
        %3604 = vrot.lane.b32.xlu0 %v3602, 123
        %v3605 = vpop.permute.xlu0 %3604
        %v3607 = vadd.f32 %v3601, %v3605
        %v3608 = vmul.f32 %v3550, 0.0020289666
        %3610 = vrot.lane.b32.xlu0 %v3608, 123
        %v3611 = vpop.permute.xlu0 %3610
        %v3613 = vadd.f32 %v3607, %v3611
        %s3614 = scalar_lea.vmem [#allocation9], 16
        %v3615 = vld [vmem:[%s3614] sm:$0xff]
        %s3616 = scalar_lea.vmem [#allocation11], 16
        %v3617 = vld [vmem:[%s3616] sm:$0xff]
        %vm3618 = vcmask 39936
        %3619 = vst.msk [vmem:[#allocation5] sm:$0xff] %vm3618, 0.0
        %3621 = vrot.lane.b32.xlu0 %v3613, 5
        %v3622 = vpop.permute.xlu0 %3621
        %vm3624 = vcmask 261160
        %3625 = vst.msk [vmem:[#allocation5] sm:$0xff] %vm3624, %v3622
        %3626 = vst.msk [vmem:[#allocation5 + $0x8] sm:$0xff] %vm898, %v3613
        %3627 = vrot.lane.b32.xlu0 %v3613, 123
        %v3628 = vpop.permute.xlu0 %3627
        %vm3630 = vcmask 220160
        %3631 = vst.msk [vmem:[#allocation5 + $0x10] sm:$0xff] %vm3630, %v3628
        %vm3632 = vcmask 261336
        %3633 = vst.msk [vmem:[#allocation5 + $0x10] sm:$0xff] %vm3632, 0.0
        %v3634 = vld [vmem:[#allocation5] sm:$0xff]
        %v3635 = vld [vmem:[#allocation5 + $0x8] sm:$0xff]
        %v3636 = vld [vmem:[#allocation5 + $0x10] sm:$0xff]
        %3638 = vset.pattern.permute.xlu0 0
        %3639 = vperm.xlu0 %3638, %v3615
        %v3640 = vpop.permute.xlu0 %3639
        %v3642 = vperm.slane %v3634, 0
        %v3643 = vmul.f32 %v3640, %v3642
        %3644 = vset.pattern.permute.xlu0 1
        %3645 = vperm.xlu0 %3644, %v3615
        %v3646 = vpop.permute.xlu0 %3645
        %v3648 = vperm.slane %v3634, 1
        %v3649 = vmul.f32 %v3646, %v3648
        %v3650 = vadd.f32 %v3643, %v3649
        %3651 = vset.pattern.permute.xlu0 2
        %3652 = vperm.xlu0 %3651, %v3615
        %v3653 = vpop.permute.xlu0 %3652
        %v3655 = vperm.slane %v3634, 2
        %v3656 = vmul.f32 %v3653, %v3655
        %v3657 = vadd.f32 %v3650, %v3656
        %3658 = vset.pattern.permute.xlu0 3
        %3659 = vperm.xlu0 %3658, %v3615
        %v3660 = vpop.permute.xlu0 %3659
        %v3662 = vperm.slane %v3634, 3
        %v3663 = vmul.f32 %v3660, %v3662
        %v3664 = vadd.f32 %v3657, %v3663
        %3665 = vset.pattern.permute.xlu0 4
        %3666 = vperm.xlu0 %3665, %v3615
        %v3667 = vpop.permute.xlu0 %3666
        %v3669 = vperm.slane %v3634, 4
        %v3670 = vmul.f32 %v3667, %v3669
        %v3671 = vadd.f32 %v3664, %v3670
        %3672 = vset.pattern.permute.xlu0 5
        %3673 = vperm.xlu0 %3672, %v3615
        %v3674 = vpop.permute.xlu0 %3673
        %v3676 = vperm.slane %v3634, 5
        %v3677 = vmul.f32 %v3674, %v3676
        %v3678 = vadd.f32 %v3671, %v3677
        %3679 = vset.pattern.permute.xlu0 6
        %3680 = vperm.xlu0 %3679, %v3615
        %v3681 = vpop.permute.xlu0 %3680
        %v3683 = vperm.slane %v3634, 6
        %v3684 = vmul.f32 %v3681, %v3683
        %v3685 = vadd.f32 %v3678, %v3684
        %3686 = vset.pattern.permute.xlu0 7
        %3687 = vperm.xlu0 %3686, %v3615
        %v3688 = vpop.permute.xlu0 %3687
        %v3690 = vperm.slane %v3634, 7
        %v3691 = vmul.f32 %v3688, %v3690
        %v3692 = vadd.f32 %v3685, %v3691
        %3693 = vset.pattern.permute.xlu0 8
        %3694 = vperm.xlu0 %3693, %v3615
        %v3695 = vpop.permute.xlu0 %3694
        %v3697 = vperm.slane %v3635, 0
        %v3698 = vmul.f32 %v3695, %v3697
        %3699 = vset.pattern.permute.xlu0 9
        %3700 = vperm.xlu0 %3699, %v3615
        %v3701 = vpop.permute.xlu0 %3700
        %v3703 = vperm.slane %v3635, 1
        %v3704 = vmul.f32 %v3701, %v3703
        %v3705 = vadd.f32 %v3698, %v3704
        %3706 = vset.pattern.permute.xlu0 10
        %3707 = vperm.xlu0 %3706, %v3615
        %v3708 = vpop.permute.xlu0 %3707
        %v3710 = vperm.slane %v3635, 2
        %v3711 = vmul.f32 %v3708, %v3710
        %v3712 = vadd.f32 %v3705, %v3711
        %3713 = vset.pattern.permute.xlu0 11
        %3714 = vperm.xlu0 %3713, %v3615
        %v3715 = vpop.permute.xlu0 %3714
        %v3717 = vperm.slane %v3635, 3
        %v3718 = vmul.f32 %v3715, %v3717
        %v3719 = vadd.f32 %v3712, %v3718
        %3720 = vset.pattern.permute.xlu0 12
        %3721 = vperm.xlu0 %3720, %v3615
        %v3722 = vpop.permute.xlu0 %3721
        %v3724 = vperm.slane %v3635, 4
        %v3725 = vmul.f32 %v3722, %v3724
        %v3726 = vadd.f32 %v3719, %v3725
        %3727 = vset.pattern.permute.xlu0 13
        %3728 = vperm.xlu0 %3727, %v3615
        %v3729 = vpop.permute.xlu0 %3728
        %v3731 = vperm.slane %v3635, 5
        %v3732 = vmul.f32 %v3729, %v3731
        %v3733 = vadd.f32 %v3726, %v3732
        %3734 = vset.pattern.permute.xlu0 14
        %3735 = vperm.xlu0 %3734, %v3615
        %v3736 = vpop.permute.xlu0 %3735
        %v3738 = vperm.slane %v3635, 6
        %v3739 = vmul.f32 %v3736, %v3738
        %v3740 = vadd.f32 %v3733, %v3739
        %3741 = vset.pattern.permute.xlu0 15
        %3742 = vperm.xlu0 %3741, %v3615
        %v3743 = vpop.permute.xlu0 %3742
        %v3745 = vperm.slane %v3635, 7
        %v3746 = vmul.f32 %v3743, %v3745
        %v3747 = vadd.f32 %v3740, %v3746
        %3748 = vset.pattern.permute.xlu0 16
        %3749 = vperm.xlu0 %3748, %v3615
        %v3750 = vpop.permute.xlu0 %3749
        %v3752 = vperm.slane %v3636, 0
        %v3753 = vmul.f32 %v3750, %v3752
        %3754 = vset.pattern.permute.xlu0 17
        %3755 = vperm.xlu0 %3754, %v3615
        %v3756 = vpop.permute.xlu0 %3755
        %v3758 = vperm.slane %v3636, 1
        %v3759 = vmul.f32 %v3756, %v3758
        %v3760 = vadd.f32 %v3753, %v3759
        %3761 = vset.pattern.permute.xlu0 18
        %3762 = vperm.xlu0 %3761, %v3615
        %v3763 = vpop.permute.xlu0 %3762
        %v3765 = vperm.slane %v3636, 2
        %v3766 = vmul.f32 %v3763, %v3765
        %v3767 = vadd.f32 %v3760, %v3766
        %3768 = vset.pattern.permute.xlu0 19
        %3769 = vperm.xlu0 %3768, %v3615
        %v3770 = vpop.permute.xlu0 %3769
        %v3772 = vperm.slane %v3636, 3
        %v3773 = vmul.f32 %v3770, %v3772
        %v3774 = vadd.f32 %v3767, %v3773
        %3775 = vset.pattern.permute.xlu0 20
        %3776 = vperm.xlu0 %3775, %v3615
        %v3777 = vpop.permute.xlu0 %3776
        %v3779 = vperm.slane %v3636, 4
        %v3780 = vmul.f32 %v3777, %v3779
        %v3781 = vadd.f32 %v3774, %v3780
        %3782 = vset.pattern.permute.xlu0 21
        %3783 = vperm.xlu0 %3782, %v3615
        %v3784 = vpop.permute.xlu0 %3783
        %v3786 = vperm.slane %v3636, 5
        %v3787 = vmul.f32 %v3784, %v3786
        %v3788 = vadd.f32 %v3781, %v3787
        %3789 = vset.pattern.permute.xlu0 22
        %3790 = vperm.xlu0 %3789, %v3615
        %v3791 = vpop.permute.xlu0 %3790
        %v3793 = vperm.slane %v3636, 6
        %v3794 = vmul.f32 %v3791, %v3793
        %v3795 = vadd.f32 %v3788, %v3794
        %3796 = vset.pattern.permute.xlu0 23
        %3797 = vperm.xlu0 %3796, %v3615
        %v3798 = vpop.permute.xlu0 %3797
        %v3800 = vperm.slane %v3636, 7
        %v3801 = vmul.f32 %v3798, %v3800
        %v3802 = vadd.f32 %v3795, %v3801
        %v3803 = vadd.f32 %v3692, %v3747
        %v3804 = vadd.f32 %v3803, %v3802
        %3806 = vset.pattern.permute.xlu0 0
        %3807 = vperm.xlu0 %3806, %v3617
        %v3808 = vpop.permute.xlu0 %3807
        %v3810 = vadd.f32 %v3804, %v3808
        %s3811 = scalar_lea.vmem [#allocation15], 40
        %v3812 = vld [vmem:[%s3811] sm:$0xff]
        %s3813 = scalar_lea.vmem [#allocation17], 40
        %v3814 = vld [vmem:[%s3813] sm:$0xff]
        %3816 = vset.pattern.permute.xlu0 0
        %3817 = vperm.xlu0 %3816, %v3810
        %v3818 = vpop.permute.xlu0 %3817
        %3820 = vst.msk [vmem:[#allocation2] sm:$0xff] %vm403, %v3818
        %3821 = vrot.lane.b32.xlu0 %v3810, 3
        %v3822 = vpop.permute.xlu0 %3821
        %3824 = vst.msk [vmem:[#allocation2] sm:$0xff] %vm408, %v3822
        %3825 = vset.pattern.permute.xlu0 31
        %3826 = vperm.xlu0 %3825, %v3810
        %v3827 = vpop.permute.xlu0 %3826
        %3829 = vst.msk [vmem:[#allocation2] sm:$0xff] %vm414, %v3827
        %v3830 = vld [vmem:[#allocation2] sm:$0xff]
        %v3831 = vmul.f32 %v3830, 0.018778928
        %v3832 = vmul.f32 %v3830, 0.004057933
        %v3833 = vmul.f32 %v3830, -0.11531475
        %3835 = vrot.lane.b32.xlu0 %v3833, 1
        %v3836 = vpop.permute.xlu0 %3835
        %v3838 = vadd.f32 %v3831, %v3836
        %v3839 = vmul.f32 %v3830, -0.05108693
        %3841 = vrot.lane.b32.xlu0 %v3839, 1
        %v3842 = vpop.permute.xlu0 %3841
        %v3844 = vadd.f32 %v3832, %v3842
        %v3845 = vmul.f32 %v3830, 0.8864196
        %3847 = vrot.lane.b32.xlu0 %v3845, 2
        %v3848 = vpop.permute.xlu0 %3847
        %v3850 = vadd.f32 %v3838, %v3848
        %v3851 = vmul.f32 %v3830, 0.25714523
        %3853 = vrot.lane.b32.xlu0 %v3851, 2
        %v3854 = vpop.permute.xlu0 %3853
        %v3856 = vadd.f32 %v3844, %v3854
        %3857 = vrot.lane.b32.xlu0 %v3851, 3
        %v3858 = vpop.permute.xlu0 %3857
        %v3860 = vadd.f32 %v3850, %v3858
        %3861 = vrot.lane.b32.xlu0 %v3845, 3
        %v3862 = vpop.permute.xlu0 %3861
        %v3864 = vadd.f32 %v3856, %v3862
        %3865 = vrot.lane.b32.xlu0 %v3839, 4
        %v3866 = vpop.permute.xlu0 %3865
        %v3868 = vadd.f32 %v3860, %v3866
        %3869 = vrot.lane.b32.xlu0 %v3833, 4
        %v3870 = vpop.permute.xlu0 %3869
        %v3872 = vadd.f32 %v3864, %v3870
        %3874 = vrot.lane.b32.xlu0 %v3832, 5
        %v3875 = vpop.permute.xlu0 %3874
        %v3877 = vadd.f32 %v3868, %v3875
        %3879 = vrot.lane.b32.xlu0 %v3831, 5
        %v3880 = vpop.permute.xlu0 %3879
        %v3882 = vadd.f32 %v3872, %v3880
        %3884 = vset.pattern.permute.xlu0 0
        %3885 = vperm.xlu0 %3884, %v3812
        %v3886 = vpop.permute.xlu0 %3885
        %v3888 = vmul.f32 %v3877, %v3886
        %v3889 = vand.u32 2147483647, %v3888
        %vm3890 = vcmp.le.f32.partialorder %v3889, 0.7853982
        %vm3891 = vcmp.lt.s32.totalorder %v3888, 0
        %v3892 = vand.u32 %v3888, 2139095040
        %v3893 = vshrl.u32 %v3892, 23
        %v3894 = vsub.s32 %v3893, 127
        %v3895 = vand.u32 2147483647, %v3888
        %v3896 = vand.u32 %v3895, 8388607
        %v3897 = vor.u32 %v3896, 8388608
        %v3898 = vsub.s32 0, %v3897
        %v3899 = vadd.s32 %v3894, 1
        %vm3900 = vcmp.gt.s32.totalorder %v3899, 0
        %v3901 = vsel %vm3900, %v3899, 0
        %v3902 = vshrl.u32 %v3901, 5
        %v3903 = vand.u32 %v3901, 31
        %v3904 = vsub.s32 32, %v3903
        %v3905 = vshrl.u32 683565275, %v3904
        %v3906 = vshll.u32 683565275, %v3903
        %v3907 = vshrl.u32 2475754826, %v3904
        %v3908 = vor.u32 %v3906, %v3907
        %v3909 = vshll.u32 2475754826, %v3903
        %v3910 = vshrl.u32 2131351028, %v3904
        %v3911 = vor.u32 %v3909, %v3910
        %v3912 = vshll.u32 2131351028, %v3903
        %v3913 = vshrl.u32 2102212464, %v3904
        %v3914 = vor.u32 %v3912, %v3913
        %v3915 = vshll.u32 2102212464, %v3903
        %v3916 = vshrl.u32 920167782, %v3904
        %v3917 = vor.u32 %v3915, %v3916
        %v3918 = vshll.u32 920167782, %v3903
        %v3919 = vshrl.u32 1326507024, %v3904
        %v3920 = vor.u32 %v3918, %v3919
        %vm3921 = vcmp.lt.s32.totalorder %v3902, 1
        %vm3922 = vcmp.lt.s32.totalorder %v3902, 2
        %vm3923 = vcmp.lt.s32.totalorder %v3902, 3
        %vm3924 = vcmp.lt.s32.totalorder %v3902, 4
        %v3925 = vsel %vm3921, %v3905, %v3908
        %v3926 = vsel %vm3924, %v3914, 2102212464
        %v3927 = vsel %vm3923, %v3911, %v3926
        %v3928 = vsel %vm3922, %v3925, %v3927
        %v3929 = vsel %vm3921, %v3908, %v3911
        %v3930 = vsel %vm3924, %v3917, 920167782
        %v3931 = vsel %vm3923, %v3914, %v3930
        %v3932 = vsel %vm3922, %v3929, %v3931
        %v3933 = vsel %vm3921, %v3911, %v3914
        %v3934 = vsel %vm3924, %v3920, 1326507024
        %v3935 = vsel %vm3923, %v3917, %v3934
        %v3936 = vsel %vm3922, %v3933, %v3935
        %v3937 = vshll.u32 %v3897, 8
        %v3938 = vand.u32 %v3937, 65535
        %v3939 = vshrl.u32 %v3937, 16
        %v3940 = vand.u32 %v3936, 65535
        %v3941 = vshrl.u32 %v3936, 16
        %v3942 = vmul.u32 %v3938, %v3940
        %v3943 = vmul.u32 %v3938, %v3941
        %v3944 = vmul.u32 %v3939, %v3940
        %v3945 = vmul.u32 %v3939, %v3941
        %v3946 = vshll.u32 %v3943, 16
        %v3947 = vshrl.u32 %v3943, 16
        %v3948 = vshll.u32 %v3944, 16
        %v3949 = vshrl.u32 %v3944, 16
        %vm3950 = vc.u32 %v3942, %v3946
        %v3951 = vsel %vm3950, 1, 0
        %v3952 = vadd.s32 %v3942, %v3946
        %v3953 = vadd.s32 %v3945, %v3951
        %vm3954 = vc.u32 %v3952, %v3948
        %v3955 = vsel %vm3954, 1, 0
        %v3956 = vadd.s32 %v3952, %v3948
        %v3957 = vadd.s32 %v3953, %v3955
        %v3958 = vadd.s32 %v3957, %v3947
        %v3959 = vadd.s32 %v3958, %v3949
        %v3960 = vand.u32 %v3937, 65535
        %v3961 = vshrl.u32 %v3937, 16
        %v3962 = vand.u32 %v3932, 65535
        %v3963 = vshrl.u32 %v3932, 16
        %v3964 = vmul.u32 %v3960, %v3962
        %v3965 = vmul.u32 %v3960, %v3963
        %v3966 = vmul.u32 %v3961, %v3962
        %v3967 = vmul.u32 %v3961, %v3963
        %v3968 = vshll.u32 %v3965, 16
        %v3969 = vshrl.u32 %v3965, 16
        %v3970 = vshll.u32 %v3966, 16
        %v3971 = vshrl.u32 %v3966, 16
        %vm3972 = vc.u32 %v3964, %v3968
        %v3973 = vsel %vm3972, 1, 0
        %v3974 = vadd.s32 %v3964, %v3968
        %v3975 = vadd.s32 %v3967, %v3973
        %vm3976 = vc.u32 %v3974, %v3970
        %v3977 = vsel %vm3976, 1, 0
        %v3978 = vadd.s32 %v3974, %v3970
        %v3979 = vadd.s32 %v3975, %v3977
        %v3980 = vadd.s32 %v3979, %v3969
        %v3981 = vadd.s32 %v3980, %v3971
        %v3982 = vmul.u32 %v3937, %v3928
        %v3983 = vadd.s32 %v3959, %v3978
        %vm3984 = vc.u32 %v3959, %v3978
        %v3985 = vadd.s32 %v3981, 1
        %v3986 = vsel %vm3984, %v3985, %v3981
        %v3987 = vadd.s32 %v3982, %v3986
        %v3988 = vadd.s32 %v3987, 536870912
        %v3989 = vshrl.u32 %v3988, 30
        %v3990 = vshll.u32 %v3989, 30
        %v3991 = vsub.s32 %v3987, %v3990
        %vm3992 = vcmp.lt.s32.totalorder %v3991, 0
        %v3993 = vsub.s32 0, %v3991
        %v3994 = vsel %vm3992, %v3993, %v3991
        %v3995 = vclz %v3994
        %v3996 = vsub.s32 %v3995, 2
        %vm3997 = vcmp.gt.s32.totalorder 0, %v3996
        %v3998 = vsel %vm3997, 0, %v3996
        %v3999 = vsub.s32 32, %v3998
        %v4000 = vshll.u32 %v3991, %v3998
        %v4001 = vshrl.u32 %v3983, %v3999
        %v4002 = vor.u32 %v4000, %v4001
        %v4003 = vsub.s32 4294967266, %v3998
        %v4004 = vadd.s32 %v4003, 127
        %v4005 = vshll.u32 %v4004, 23
        %v4006 = vor.u32 4788187, %v4005
        %v4007 = vand.u32 2147483647, %v4006
        %v4009 = vcvt.s32.f32 %v4002
        %v4010 = vmul.f32 %v4009, %v4007
        %v4011 = vxor.u32 %v4010, 2147483648
        %v4012 = vsel %vm3891, %v4011, %v4010
        %v4013 = vsub.s32 4, %v3989
        %v4014 = vsel %vm3891, %v4013, %v3989
        %v4015 = vsel %vm3890, %v3888, %v4012
        %v4016 = vsel %vm3890, 0, %v4014
        %v4017 = vmul.f32 %v4015, %v4015
        %v4018 = vmul.f32 %v4017, -0.001358992
        %v4019 = vadd.f32 %v4018, 0.041655596
        %v4020 = vmul.f32 %v4017, %v4019
        %v4021 = vadd.f32 %v4020, -0.4999988
        %v4022 = vmul.f32 %v4017, %v4021
        %v4023 = vadd.f32 1.0, %v4022
        %v4024 = vmul.f32 %v4015, %v4015
        %v4025 = vmul.f32 %v4024, -0.00019511016
        %v4026 = vadd.f32 %v4025, 0.008332121
        %v4027 = vmul.f32 %v4024, %v4026
        %v4028 = vadd.f32 %v4027, -0.16666654
        %v4029 = vmul.f32 %v4024, %v4028
        %v4030 = vadd.f32 %v4029, 1.0
        %v4031 = vmul.f32 %v4030, %v4015
        %vm4032 = vweird.f32 %v3888
        %v4033 = vadd.s32 %v4016, 3
        %v4034 = vand.u32 %v4033, 3
        %vm4035 = vcmp.lt.s32.totalorder %v4034, 2
        %vm4036 = vcmp.eq.s32.totalorder %v4034, 0
        %v4037 = vxor.u32 %v4031, 2147483648
        %v4038 = vsel %vm4036, %v4023, %v4037
        %vm4039 = vcmp.eq.s32.totalorder %v4034, 2
        %v4040 = vxor.u32 %v4023, 2147483648
        %v4041 = vsel %vm4039, %v4040, %v4031
        %v4042 = vsel %vm4035, %v4038, %v4041
        %v4043 = vsel %vm4032, nan, %v4042
        %v4044 = vmul.f32 %v4043, %v4043
        %4046 = vset.pattern.permute.xlu0 0
        %4047 = vperm.xlu0 %4046, %v3814
        %v4048 = vpop.permute.xlu0 %4047
        %v4050 = vmul.f32 %v4048, %v4044
        %v4051 = vadd.f32 %v3877, %v4050
        %v4052 = vmul.f32 %v3882, %v3886
        %v4053 = vand.u32 2147483647, %v4052
        %vm4054 = vcmp.le.f32.partialorder %v4053, 0.7853982
        %vm4055 = vcmp.lt.s32.totalorder %v4052, 0
        %v4056 = vand.u32 %v4052, 2139095040
        %v4057 = vshrl.u32 %v4056, 23
        %v4058 = vsub.s32 %v4057, 127
        %v4059 = vand.u32 2147483647, %v4052
        %v4060 = vand.u32 %v4059, 8388607
        %v4061 = vor.u32 %v4060, 8388608
        %v4062 = vsub.s32 0, %v4061
        %v4063 = vadd.s32 %v4058, 1
        %vm4064 = vcmp.gt.s32.totalorder %v4063, 0
        %v4065 = vsel %vm4064, %v4063, 0
        %v4066 = vshrl.u32 %v4065, 5
        %v4067 = vand.u32 %v4065, 31
        %v4068 = vsub.s32 32, %v4067
        %v4069 = vshrl.u32 683565275, %v4068
        %v4070 = vshll.u32 683565275, %v4067
        %v4071 = vshrl.u32 2475754826, %v4068
        %v4072 = vor.u32 %v4070, %v4071
        %v4073 = vshll.u32 2475754826, %v4067
        %v4074 = vshrl.u32 2131351028, %v4068
        %v4075 = vor.u32 %v4073, %v4074
        %v4076 = vshll.u32 2131351028, %v4067
        %v4077 = vshrl.u32 2102212464, %v4068
        %v4078 = vor.u32 %v4076, %v4077
        %v4079 = vshll.u32 2102212464, %v4067
        %v4080 = vshrl.u32 920167782, %v4068
        %v4081 = vor.u32 %v4079, %v4080
        %v4082 = vshll.u32 920167782, %v4067
        %v4083 = vshrl.u32 1326507024, %v4068
        %v4084 = vor.u32 %v4082, %v4083
        %vm4085 = vcmp.lt.s32.totalorder %v4066, 1
        %vm4086 = vcmp.lt.s32.totalorder %v4066, 2
        %vm4087 = vcmp.lt.s32.totalorder %v4066, 3
        %vm4088 = vcmp.lt.s32.totalorder %v4066, 4
        %v4089 = vsel %vm4085, %v4069, %v4072
        %v4090 = vsel %vm4088, %v4078, 2102212464
        %v4091 = vsel %vm4087, %v4075, %v4090
        %v4092 = vsel %vm4086, %v4089, %v4091
        %v4093 = vsel %vm4085, %v4072, %v4075
        %v4094 = vsel %vm4088, %v4081, 920167782
        %v4095 = vsel %vm4087, %v4078, %v4094
        %v4096 = vsel %vm4086, %v4093, %v4095
        %v4097 = vsel %vm4085, %v4075, %v4078
        %v4098 = vsel %vm4088, %v4084, 1326507024
        %v4099 = vsel %vm4087, %v4081, %v4098
        %v4100 = vsel %vm4086, %v4097, %v4099
        %v4101 = vshll.u32 %v4061, 8
        %v4102 = vand.u32 %v4101, 65535
        %v4103 = vshrl.u32 %v4101, 16
        %v4104 = vand.u32 %v4100, 65535
        %v4105 = vshrl.u32 %v4100, 16
        %v4106 = vmul.u32 %v4102, %v4104
        %v4107 = vmul.u32 %v4102, %v4105
        %v4108 = vmul.u32 %v4103, %v4104
        %v4109 = vmul.u32 %v4103, %v4105
        %v4110 = vshll.u32 %v4107, 16
        %v4111 = vshrl.u32 %v4107, 16
        %v4112 = vshll.u32 %v4108, 16
        %v4113 = vshrl.u32 %v4108, 16
        %vm4114 = vc.u32 %v4106, %v4110
        %v4115 = vsel %vm4114, 1, 0
        %v4116 = vadd.s32 %v4106, %v4110
        %v4117 = vadd.s32 %v4109, %v4115
        %vm4118 = vc.u32 %v4116, %v4112
        %v4119 = vsel %vm4118, 1, 0
        %v4120 = vadd.s32 %v4116, %v4112
        %v4121 = vadd.s32 %v4117, %v4119
        %v4122 = vadd.s32 %v4121, %v4111
        %v4123 = vadd.s32 %v4122, %v4113
        %v4124 = vand.u32 %v4101, 65535
        %v4125 = vshrl.u32 %v4101, 16
        %v4126 = vand.u32 %v4096, 65535
        %v4127 = vshrl.u32 %v4096, 16
        %v4128 = vmul.u32 %v4124, %v4126
        %v4129 = vmul.u32 %v4124, %v4127
        %v4130 = vmul.u32 %v4125, %v4126
        %v4131 = vmul.u32 %v4125, %v4127
        %v4132 = vshll.u32 %v4129, 16
        %v4133 = vshrl.u32 %v4129, 16
        %v4134 = vshll.u32 %v4130, 16
        %v4135 = vshrl.u32 %v4130, 16
        %vm4136 = vc.u32 %v4128, %v4132
        %v4137 = vsel %vm4136, 1, 0
        %v4138 = vadd.s32 %v4128, %v4132
        %v4139 = vadd.s32 %v4131, %v4137
        %vm4140 = vc.u32 %v4138, %v4134
        %v4141 = vsel %vm4140, 1, 0
        %v4142 = vadd.s32 %v4138, %v4134
        %v4143 = vadd.s32 %v4139, %v4141
        %v4144 = vadd.s32 %v4143, %v4133
        %v4145 = vadd.s32 %v4144, %v4135
        %v4146 = vmul.u32 %v4101, %v4092
        %v4147 = vadd.s32 %v4123, %v4142
        %vm4148 = vc.u32 %v4123, %v4142
        %v4149 = vadd.s32 %v4145, 1
        %v4150 = vsel %vm4148, %v4149, %v4145
        %v4151 = vadd.s32 %v4146, %v4150
        %v4152 = vadd.s32 %v4151, 536870912
        %v4153 = vshrl.u32 %v4152, 30
        %v4154 = vshll.u32 %v4153, 30
        %v4155 = vsub.s32 %v4151, %v4154
        %vm4156 = vcmp.lt.s32.totalorder %v4155, 0
        %v4157 = vsub.s32 0, %v4155
        %v4158 = vsel %vm4156, %v4157, %v4155
        %v4159 = vclz %v4158
        %v4160 = vsub.s32 %v4159, 2
        %vm4161 = vcmp.gt.s32.totalorder 0, %v4160
        %v4162 = vsel %vm4161, 0, %v4160
        %v4163 = vsub.s32 32, %v4162
        %v4164 = vshll.u32 %v4155, %v4162
        %v4165 = vshrl.u32 %v4147, %v4163
        %v4166 = vor.u32 %v4164, %v4165
        %v4167 = vsub.s32 4294967266, %v4162
        %v4168 = vadd.s32 %v4167, 127
        %v4169 = vshll.u32 %v4168, 23
        %v4170 = vor.u32 4788187, %v4169
        %v4171 = vand.u32 2147483647, %v4170
        %v4173 = vcvt.s32.f32 %v4166
        %v4174 = vmul.f32 %v4173, %v4171
        %v4175 = vxor.u32 %v4174, 2147483648
        %v4176 = vsel %vm4055, %v4175, %v4174
        %v4177 = vsub.s32 4, %v4153
        %v4178 = vsel %vm4055, %v4177, %v4153
        %v4179 = vsel %vm4054, %v4052, %v4176
        %v4180 = vsel %vm4054, 0, %v4178
        %v4181 = vmul.f32 %v4179, %v4179
        %v4182 = vmul.f32 %v4181, -0.001358992
        %v4183 = vadd.f32 %v4182, 0.041655596
        %v4184 = vmul.f32 %v4181, %v4183
        %v4185 = vadd.f32 %v4184, -0.4999988
        %v4186 = vmul.f32 %v4181, %v4185
        %v4187 = vadd.f32 1.0, %v4186
        %v4188 = vmul.f32 %v4179, %v4179
        %v4189 = vmul.f32 %v4188, -0.00019511016
        %v4190 = vadd.f32 %v4189, 0.008332121
        %v4191 = vmul.f32 %v4188, %v4190
        %v4192 = vadd.f32 %v4191, -0.16666654
        %v4193 = vmul.f32 %v4188, %v4192
        %v4194 = vadd.f32 %v4193, 1.0
        %v4195 = vmul.f32 %v4194, %v4179
        %vm4196 = vweird.f32 %v4052
        %v4197 = vadd.s32 %v4180, 3
        %v4198 = vand.u32 %v4197, 3
        %vm4199 = vcmp.lt.s32.totalorder %v4198, 2
        %vm4200 = vcmp.eq.s32.totalorder %v4198, 0
        %v4201 = vxor.u32 %v4195, 2147483648
        %v4202 = vsel %vm4200, %v4187, %v4201
        %vm4203 = vcmp.eq.s32.totalorder %v4198, 2
        %v4204 = vxor.u32 %v4187, 2147483648
        %v4205 = vsel %vm4203, %v4204, %v4195
        %v4206 = vsel %vm4199, %v4202, %v4205
        %v4207 = vsel %vm4196, nan, %v4206
        %v4208 = vmul.f32 %v4207, %v4207
        %v4209 = vmul.f32 %v4048, %v4208
        %v4210 = vadd.f32 %v3882, %v4209
        %4212 = vset.pattern.permute.xlu0 5
        %4213 = vperm.xlu0 %4212, %v4051
        %v4214 = vpop.permute.xlu0 %4213
        %4216 = vst.msk [vmem:[#allocation3] sm:$0xff] %vm403, %v4214
        %4218 = vrot.lane.b32.xlu0 %v4210, 125
        %v4219 = vpop.permute.xlu0 %4218
        %4221 = vst.msk [vmem:[#allocation3] sm:$0xff] %vm408, %v4219
        %4222 = vset.pattern.permute.xlu0 37
        %4223 = vperm.xlu0 %4222, %v4210
        %v4224 = vpop.permute.xlu0 %4223
        %4226 = vst.msk [vmem:[#allocation3] sm:$0xff] %vm812, %v4224
        %4227 = vst.msk [vmem:[#allocation4] sm:$0xff] %vm814, %v4214
        %4228 = vrot.lane.b32.xlu0 %v4051, 125
        %v4229 = vpop.permute.xlu0 %4228
        %4231 = vst.msk [vmem:[#allocation4] sm:$0xff] %vm819, %v4229
        %4232 = vst.msk [vmem:[#allocation4] sm:$0xff] %vm821, %v4224
        %v4233 = vld [vmem:[#allocation3] sm:$0xff]
        %v4234 = vld [vmem:[#allocation4] sm:$0xff]
        %v4235 = vmul.f32 %v4233, 0.0020289666
        %v4236 = vmul.f32 %v4234, 0.009389464
        %v4237 = vadd.f32 %v4235, %v4236
        %v4238 = vmul.f32 %v4233, -0.025543464
        %4240 = vrot.lane.b32.xlu0 %v4238, 127
        %v4241 = vpop.permute.xlu0 %4240
        %v4243 = vadd.f32 %v4237, %v4241
        %v4244 = vmul.f32 %v4234, -0.057657376
        %4246 = vrot.lane.b32.xlu0 %v4244, 127
        %v4247 = vpop.permute.xlu0 %4246
        %v4249 = vadd.f32 %v4243, %v4247
        %v4250 = vmul.f32 %v4233, 0.12857261
        %4252 = vrot.lane.b32.xlu0 %v4250, 126
        %v4253 = vpop.permute.xlu0 %4252
        %v4255 = vadd.f32 %v4249, %v4253
        %v4256 = vmul.f32 %v4234, 0.4432098
        %4258 = vrot.lane.b32.xlu0 %v4256, 126
        %v4259 = vpop.permute.xlu0 %4258
        %v4261 = vadd.f32 %v4255, %v4259
        %v4262 = vmul.f32 %v4233, 0.4432098
        %4264 = vrot.lane.b32.xlu0 %v4262, 125
        %v4265 = vpop.permute.xlu0 %4264
        %v4267 = vadd.f32 %v4261, %v4265
        %v4268 = vmul.f32 %v4234, 0.12857261
        %4270 = vrot.lane.b32.xlu0 %v4268, 125
        %v4271 = vpop.permute.xlu0 %4270
        %v4273 = vadd.f32 %v4267, %v4271
        %v4274 = vmul.f32 %v4233, -0.057657376
        %4276 = vrot.lane.b32.xlu0 %v4274, 124
        %v4277 = vpop.permute.xlu0 %4276
        %v4279 = vadd.f32 %v4273, %v4277
        %v4280 = vmul.f32 %v4234, -0.025543464
        %4282 = vrot.lane.b32.xlu0 %v4280, 124
        %v4283 = vpop.permute.xlu0 %4282
        %v4285 = vadd.f32 %v4279, %v4283
        %v4286 = vmul.f32 %v4233, 0.009389464
        %4288 = vrot.lane.b32.xlu0 %v4286, 123
        %v4289 = vpop.permute.xlu0 %4288
        %v4291 = vadd.f32 %v4285, %v4289
        %v4292 = vmul.f32 %v4234, 0.0020289666
        %4294 = vrot.lane.b32.xlu0 %v4292, 123
        %v4295 = vpop.permute.xlu0 %4294
        %v4297 = vadd.f32 %v4291, %v4295
        %s4298 = scalar_lea.vmem [#allocation12], 16
        %v4299 = vld [vmem:[%s4298] sm:$0xff]
        %s4300 = scalar_lea.vmem [#allocation14], 16
        %v4301 = vld [vmem:[%s4300] sm:$0xff]
        %4302 = vst.msk [vmem:[#allocation5] sm:$0xff] %vm890, 0.0
        %4304 = vrot.lane.b32.xlu0 %v4297, 1
        %v4305 = vpop.permute.xlu0 %4304
        %4307 = vst.msk [vmem:[#allocation5] sm:$0xff] %vm896, %v4305
        %4308 = vst.msk [vmem:[#allocation5 + $0x8] sm:$0xff] %vm898, %v4297
        %4309 = vrot.lane.b32.xlu0 %v4297, 127
        %v4310 = vpop.permute.xlu0 %4309
        %4312 = vst.msk [vmem:[#allocation5 + $0x10] sm:$0xff] %vm903, %v4310
        %4313 = vst.msk [vmem:[#allocation5 + $0x10] sm:$0xff] %vm905, 0.0
        %v4314 = vld [vmem:[#allocation5] sm:$0xff]
        %v4315 = vld [vmem:[#allocation5 + $0x8] sm:$0xff]
        %v4316 = vld [vmem:[#allocation5 + $0x10] sm:$0xff]
        %4318 = vset.pattern.permute.xlu0 0
        %4319 = vperm.xlu0 %4318, %v4299
        %v4320 = vpop.permute.xlu0 %4319
        %v4322 = vperm.slane %v4314, 0
        %v4323 = vmul.f32 %v4320, %v4322
        %4324 = vset.pattern.permute.xlu0 1
        %4325 = vperm.xlu0 %4324, %v4299
        %v4326 = vpop.permute.xlu0 %4325
        %v4328 = vperm.slane %v4314, 1
        %v4329 = vmul.f32 %v4326, %v4328
        %v4330 = vadd.f32 %v4323, %v4329
        %4331 = vset.pattern.permute.xlu0 2
        %4332 = vperm.xlu0 %4331, %v4299
        %v4333 = vpop.permute.xlu0 %4332
        %v4335 = vperm.slane %v4314, 2
        %v4336 = vmul.f32 %v4333, %v4335
        %v4337 = vadd.f32 %v4330, %v4336
        %4338 = vset.pattern.permute.xlu0 3
        %4339 = vperm.xlu0 %4338, %v4299
        %v4340 = vpop.permute.xlu0 %4339
        %v4342 = vperm.slane %v4314, 3
        %v4343 = vmul.f32 %v4340, %v4342
        %v4344 = vadd.f32 %v4337, %v4343
        %4345 = vset.pattern.permute.xlu0 4
        %4346 = vperm.xlu0 %4345, %v4299
        %v4347 = vpop.permute.xlu0 %4346
        %v4349 = vperm.slane %v4314, 4
        %v4350 = vmul.f32 %v4347, %v4349
        %v4351 = vadd.f32 %v4344, %v4350
        %4352 = vset.pattern.permute.xlu0 5
        %4353 = vperm.xlu0 %4352, %v4299
        %v4354 = vpop.permute.xlu0 %4353
        %v4356 = vperm.slane %v4314, 5
        %v4357 = vmul.f32 %v4354, %v4356
        %v4358 = vadd.f32 %v4351, %v4357
        %4359 = vset.pattern.permute.xlu0 6
        %4360 = vperm.xlu0 %4359, %v4299
        %v4361 = vpop.permute.xlu0 %4360
        %v4363 = vperm.slane %v4314, 6
        %v4364 = vmul.f32 %v4361, %v4363
        %v4365 = vadd.f32 %v4358, %v4364
        %4366 = vset.pattern.permute.xlu0 7
        %4367 = vperm.xlu0 %4366, %v4299
        %v4368 = vpop.permute.xlu0 %4367
        %v4370 = vperm.slane %v4314, 7
        %v4371 = vmul.f32 %v4368, %v4370
        %v4372 = vadd.f32 %v4365, %v4371
        %4373 = vset.pattern.permute.xlu0 8
        %4374 = vperm.xlu0 %4373, %v4299
        %v4375 = vpop.permute.xlu0 %4374
        %v4377 = vperm.slane %v4315, 0
        %v4378 = vmul.f32 %v4375, %v4377
        %4379 = vset.pattern.permute.xlu0 9
        %4380 = vperm.xlu0 %4379, %v4299
        %v4381 = vpop.permute.xlu0 %4380
        %v4383 = vperm.slane %v4315, 1
        %v4384 = vmul.f32 %v4381, %v4383
        %v4385 = vadd.f32 %v4378, %v4384
        %4386 = vset.pattern.permute.xlu0 10
        %4387 = vperm.xlu0 %4386, %v4299
        %v4388 = vpop.permute.xlu0 %4387
        %v4390 = vperm.slane %v4315, 2
        %v4391 = vmul.f32 %v4388, %v4390
        %v4392 = vadd.f32 %v4385, %v4391
        %4393 = vset.pattern.permute.xlu0 11
        %4394 = vperm.xlu0 %4393, %v4299
        %v4395 = vpop.permute.xlu0 %4394
        %v4397 = vperm.slane %v4315, 3
        %v4398 = vmul.f32 %v4395, %v4397
        %v4399 = vadd.f32 %v4392, %v4398
        %4400 = vset.pattern.permute.xlu0 12
        %4401 = vperm.xlu0 %4400, %v4299
        %v4402 = vpop.permute.xlu0 %4401
        %v4404 = vperm.slane %v4315, 4
        %v4405 = vmul.f32 %v4402, %v4404
        %v4406 = vadd.f32 %v4399, %v4405
        %4407 = vset.pattern.permute.xlu0 13
        %4408 = vperm.xlu0 %4407, %v4299
        %v4409 = vpop.permute.xlu0 %4408
        %v4411 = vperm.slane %v4315, 5
        %v4412 = vmul.f32 %v4409, %v4411
        %v4413 = vadd.f32 %v4406, %v4412
        %4414 = vset.pattern.permute.xlu0 14
        %4415 = vperm.xlu0 %4414, %v4299
        %v4416 = vpop.permute.xlu0 %4415
        %v4418 = vperm.slane %v4315, 6
        %v4419 = vmul.f32 %v4416, %v4418
        %v4420 = vadd.f32 %v4413, %v4419
        %4421 = vset.pattern.permute.xlu0 15
        %4422 = vperm.xlu0 %4421, %v4299
        %v4423 = vpop.permute.xlu0 %4422
        %v4425 = vperm.slane %v4315, 7
        %v4426 = vmul.f32 %v4423, %v4425
        %v4427 = vadd.f32 %v4420, %v4426
        %4428 = vset.pattern.permute.xlu0 16
        %4429 = vperm.xlu0 %4428, %v4299
        %v4430 = vpop.permute.xlu0 %4429
        %v4432 = vperm.slane %v4316, 0
        %v4433 = vmul.f32 %v4430, %v4432
        %4434 = vset.pattern.permute.xlu0 17
        %4435 = vperm.xlu0 %4434, %v4299
        %v4436 = vpop.permute.xlu0 %4435
        %v4438 = vperm.slane %v4316, 1
        %v4439 = vmul.f32 %v4436, %v4438
        %v4440 = vadd.f32 %v4433, %v4439
        %4441 = vset.pattern.permute.xlu0 18
        %4442 = vperm.xlu0 %4441, %v4299
        %v4443 = vpop.permute.xlu0 %4442
        %v4445 = vperm.slane %v4316, 2
        %v4446 = vmul.f32 %v4443, %v4445
        %v4447 = vadd.f32 %v4440, %v4446
        %4448 = vset.pattern.permute.xlu0 19
        %4449 = vperm.xlu0 %4448, %v4299
        %v4450 = vpop.permute.xlu0 %4449
        %v4452 = vperm.slane %v4316, 3
        %v4453 = vmul.f32 %v4450, %v4452
        %v4454 = vadd.f32 %v4447, %v4453
        %4455 = vset.pattern.permute.xlu0 20
        %4456 = vperm.xlu0 %4455, %v4299
        %v4457 = vpop.permute.xlu0 %4456
        %v4459 = vperm.slane %v4316, 4
        %v4460 = vmul.f32 %v4457, %v4459
        %v4461 = vadd.f32 %v4454, %v4460
        %4462 = vset.pattern.permute.xlu0 21
        %4463 = vperm.xlu0 %4462, %v4299
        %v4464 = vpop.permute.xlu0 %4463
        %v4466 = vperm.slane %v4316, 5
        %v4467 = vmul.f32 %v4464, %v4466
        %v4468 = vadd.f32 %v4461, %v4467
        %4469 = vset.pattern.permute.xlu0 22
        %4470 = vperm.xlu0 %4469, %v4299
        %v4471 = vpop.permute.xlu0 %4470
        %v4473 = vperm.slane %v4316, 6
        %v4474 = vmul.f32 %v4471, %v4473
        %v4475 = vadd.f32 %v4468, %v4474
        %4476 = vset.pattern.permute.xlu0 23
        %4477 = vperm.xlu0 %4476, %v4299
        %v4478 = vpop.permute.xlu0 %4477
        %v4480 = vperm.slane %v4316, 7
        %v4481 = vmul.f32 %v4478, %v4480
        %v4482 = vadd.f32 %v4475, %v4481
        %v4483 = vadd.f32 %v4372, %v4427
        %v4484 = vadd.f32 %v4483, %v4482
        %4486 = vset.pattern.permute.xlu0 0
        %4487 = vperm.xlu0 %4486, %v4301
        %v4488 = vpop.permute.xlu0 %4487
        %v4490 = vadd.f32 %v4484, %v4488
        %v4491 = vadd.f32 %v4490, %v3126
        %4492 = vst.msk [vmem:[%s394] sm:$0xff] %vm898, %v4491
        %s4493 = sand.u32 %s187, 1
        %s4494 = scalar_lea.sflag [#allocation8], %s4493
        %s4495 = sand.u32 %s187, 1
        %s4496 = smul.addr %s4495, 8
        %s4497 = scalar_lea.vmem [#allocation18], %s4496
        // Predicated region
        $region77: #{_lambda_.1} parent=47 // pred_check
          %p4498 = pneg %p197
        $region78: #{_lambda_.1} parent=47 // pred_check_branch
          %4500 = sbr.rel (%p4498) target = $region80
        $region79: #{_lambda_.1} parent=47 // pred_region
          %4502 = vsyncadd %s4494, 0
          %s4503 = smul.addr %s27, 8
          %s4504 = scalar_lea.hbm %s7, %s4503
          %s4506 = sshll.u32 %s4497, 4
          %s4507 = int_to_ptr.vmem [resolvable:$true] %s4506
          %s4508 = sshll.u32 %s4504, 4
          %s4509 = int_to_ptr.hbm [resolvable:$true] %s4508
          %4511 = dma.vmem_to_hbm [thread:$0]  %s4507, 128, %s4509, %s4494
        $region80: #{_lambda_.1} parent=47 // pred_fallthru
          _
      $region48: #{_lambda_.1} parent=5 // pred_fallthru
        _
      %p4512 = scmp.le.s32.totalorder 2, %s22
      // Predicated region
      $region81: #{_lambda_.1} parent=5 // pred_check
        %p4513 = pneg %p4512
      $region82: #{_lambda_.1} parent=5 // pred_check_branch
        %4515 = sbr.rel (%p4513) target = $region84
      $region83: #{_lambda_.1} parent=5 // pred_region
        %s4516 = ssub.s32 %s22, 2
        // Predicated region
        $region85: #{_lambda_.1} parent=83 // pred_check
          %p4517 = pneg %p203
        $region86: #{_lambda_.1} parent=83 // pred_check_branch
          %4519 = sbr.rel (%p4517) target = $region88
        $region87: #{_lambda_.1} parent=83 // pred_region
          %s4520 = sand.u32 %s188, 1
          %s4521 = scalar_lea.sflag [#allocation8], %s4520
          %s4522 = sand.u32 %s188, 1
          %s4523 = smul.addr %s4522, 8
          %s4524 = scalar_lea.vmem [#allocation18], %s4523
          %4526 = dma.done %s4521, 128
        $region88: #{_lambda_.1} parent=83 // pred_fallthru
          _
      $region84: #{_lambda_.1} parent=5 // pred_fallthru
        _
    $region6: #{_lambda_.1} parent=1 // loop_footer
      %s26 = sadd.s32 1, %s22
    $region7: #{_lambda_.1} parent=1 // loop_footer_branch
      %21 = sbr.rel target = $region3
    $region8: #{_lambda_.1} parent=1 // loop_exit
      _
    %4527 = vsyncpa [#allocation7], 1
    %s4528 = scalar_lea.sflag [#allocation7], 1
    %4529 = vsyncpa %s4528, 1
    %4530 = vsyncpa [#allocation10], 1
    %4531 = vsyncpa [#allocation13], 1
    %4532 = vsyncpa [#allocation16], 1
    %4533 = vsyncpa [#allocation8], 1
    %s4534 = scalar_lea.sflag [#allocation8], 1
    %4535 = vsyncpa %s4534, 1

</llo_original>
